<compile_context>
chip_gen: v7x
topology: tpu7x:2x2x1
jax: 0.10.0
libtpu: 0.0.40
codegen_flags: <defaults>
</compile_context>

<pallas_src>
import functools

import jax
import jax.numpy as jnp
from jax.experimental import pallas as pl
from jax.experimental.pallas import tpu as pltpu


# ---------------------------------------------------------------------------
# Fused SPP kernel (per image)
# ---------------------------------------------------------------------------

def _spp_kernel(x_ref, w1_ref, b1_ref, *rest, H, W, pools):
    """rest = (w2 splits [len(pools)+1], b2, out, hp_scratch)."""
    n_br = len(pools) + 1
    w2_refs = rest[:n_br]
    b2_ref = rest[n_br]
    o_ref = rest[n_br + 1]
    hp_ref = rest[n_br + 2]

    c1 = x_ref.shape[-1]
    c_ = w1_ref.shape[-1]
    c2 = b2_ref.shape[-1]
    pad = max(pools) // 2

    # ---- cv1: 1x1 conv (+ folded BN) + SiLU on this image's pixels ----------
    x = x_ref[0].reshape(H * W, c1)
    h = jnp.dot(x, w1_ref[...], preferred_element_type=jnp.float32) + b1_ref[...]
    h = h * jax.nn.sigmoid(h)                       # SiLU
    h3 = h.reshape(H, W, c_)

    # ---- -inf halo copy of h for the max pools (torch MaxPool2d pads -inf) --
    hp_ref[...] = jnp.full((H + 2 * pad, W + 2 * pad, c_), -jnp.inf, jnp.float32)
    hp_ref[pad:pad + H, pad:pad + W, :] = h3

    # ---- cv2 as a sum of per-branch matmuls (concat never materialized) -----
    acc = jnp.dot(h, w2_refs[0][...], preferred_element_type=jnp.float32) + b2_ref[...]

    for w2_ref, k in zip(w2_refs[1:], pools):
        r = k // 2
        # separable k x k max pool, stride 1, 'same': rows then cols
        rowm = hp_ref[pad - r:pad - r + H, :, :]
        for d in range(1, k):
            rowm = jnp.maximum(rowm, hp_ref[pad - r + d:pad - r + d + H, :, :])
        poolv = rowm[:, pad - r:pad - r + W, :]
        for d in range(1, k):
            poolv = jnp.maximum(poolv, rowm[:, pad - r + d:pad - r + d + W, :])
        acc = acc + jnp.dot(poolv.reshape(H * W, c_), w2_ref[...],
                            preferred_element_type=jnp.float32)

    acc = acc * jax.nn.sigmoid(acc)                 # SiLU
    o_ref[0] = acc.reshape(H, W, c2).astype(o_ref.dtype)


# ---------------------------------------------------------------------------
# Wrapper
# ---------------------------------------------------------------------------

def spp_forward(x_nchw, p, pools=(5, 9, 13)):
    x = jnp.transpose(x_nchw, (0, 2, 3, 1))         # NCHW -> NHWC
    N, H, W, c1 = x.shape
    c_ = p['cv1_w'].shape[1]
    c2 = p['cv2_w'].shape[1]
    pad = max(pools) // 2
    n_br = len(pools) + 1

    # split cv2's weight along K: rows [i*c_:(i+1)*c_] match torch.cat order
    w2_splits = tuple(p['cv2_w'][i * c_:(i + 1) * c_] for i in range(n_br))

    kernel = functools.partial(_spp_kernel, H=H, W=W, pools=tuple(pools))

    img_map = lambda n: (n, 0, 0, 0)
    const_map = lambda n: (0, 0)                    # weights/bias stay resident

    in_specs = [pl.BlockSpec((1, H, W, c1), img_map),
                pl.BlockSpec((c1, c_), const_map),
                pl.BlockSpec((1, c_), const_map)]
    in_specs += [pl.BlockSpec((c_, c2), const_map) for _ in range(n_br)]
    in_specs += [pl.BlockSpec((1, c2), const_map)]

    weight_elems = p['cv1_w'].size + p['cv2_w'].size + c_ + c2
    cost = pl.CostEstimate(
        flops=2 * N * H * W * c_ * (c1 + n_br * c2),
        transcendentals=N * H * W * (c_ + c2),
        bytes_accessed=4 * (x.size + N * H * W * c2 + weight_elems),
    )

    out = pl.pallas_call(
        kernel,
        out_shape=jax.ShapeDtypeStruct((N, H, W, c2), x.dtype),
        grid=(N,),
        in_specs=in_specs,
        out_specs=pl.BlockSpec((1, H, W, c2), img_map),
        scratch_shapes=[pltpu.VMEM((H + 2 * pad, W + 2 * pad, c_), jnp.float32)],
        compiler_params=pltpu.CompilerParams(dimension_semantics=("parallel",)),
        cost_estimate=cost,
    )(x, p['cv1_w'], p['cv1_b'].reshape(1, c_),
      *w2_splits, p['cv2_b'].reshape(1, c2))

    return jnp.transpose(out, (0, 3, 1, 2))         # NHWC -> NCHW


# ---------------------------------------------------------------------------
# Parameters (deterministic, synthetic) with eval-mode BN folded into the convs
# ---------------------------------------------------------------------------

def init_params(key, c1, c2, pools=(5, 9, 13), eps=1e-5):
    c_ = c1 // 2
    keys = iter(jax.random.split(key, 16))

    def conv_w(shape):
        return 0.1 * jax.random.normal(next(keys), shape, jnp.float32)

    def bn_params(c):
        gamma = 1.0 + 0.1 * jax.random.normal(next(keys), (c,), jnp.float32)
        beta = 0.1 * jax.random.normal(next(keys), (c,), jnp.float32)
        mean = 0.1 * jax.random.normal(next(keys), (c,), jnp.float32)
        var = 0.5 + jax.random.uniform(next(keys), (c,), jnp.float32)
        return gamma, beta, mean, var

    def fold(w, bnp):                               # w: (Cin, Cout)
        gamma, beta, mean, var = bnp
        scale = gamma / jnp.sqrt(var + eps)
        return w * scale, beta - mean * scale

    p = {}
    p['cv1_w'], p['cv1_b'] = fold(conv_w((c1, c_)), bn_params(c_))
    p['cv2_w'], p['cv2_b'] = fold(conv_w((c_ * (len(pools) + 1), c2)), bn_params(c2))
    return p


# ---------------------------------------------------------------------------
# Pure-JAX reference (same math, XLA ops)
# ---------------------------------------------------------------------------

def ref_forward(x_nchw, p, pools=(5, 9, 13)):
    silu = lambda v: v * jax.nn.sigmoid(v)
    x = jnp.transpose(x_nchw, (0, 2, 3, 1))
    h = silu(jnp.einsum('nhwc,cd->nhwd', x, p['cv1_w']) + p['cv1_b'])
    branches = [h]
    for k in pools:
        branches.append(jax.lax.reduce_window(
            h, -jnp.inf, jax.lax.max,
            window_dimensions=(1, k, k, 1),
            window_strides=(1, 1, 1, 1),
            padding='SAME'))
    cat = jnp.concatenate(branches, axis=-1)
    out = silu(jnp.einsum('nhwc,cd->nhwd', cat, p['cv2_w']) + p['cv2_b'])
    return jnp.transpose(out, (0, 3, 1, 2))


# ---------------------------------------------------------------------------

if __name__ == "__main__":
    key = jax.random.PRNGKey(0)
    kp, kx = jax.random.split(key)

    c1, c2 = 4, 4
    params = init_params(kp, c1, c2)
    x = jax.random.normal(kx, (2, c1, 16, 16), jnp.float32)   # NCHW like PyTorch

    out = jax.block_until_ready(spp_forward(x, params))
    ref = ref_forward(x, params)

    assert out.shape == (2, c2, 16, 16), out.shape
    max_err = float(jnp.max(jnp.abs(out - ref)))
    # default (non-HIGHEST) MXU precision -> bf16-grade products, f32 accumulate
    assert jnp.allclose(out, ref, atol=1e-2, rtol=1e-2), f"max_err={max_err}"
    print("KERNEL_OK")
</pallas_src>

<mosaic_0001>
module attributes {stable_mosaic.version = 11 : i64} {
  func.func @_spp_kernel(%arg0: i32, %arg1: memref<1x16x16x4xf32, #tpu.memory_space<vmem>>, %arg2: memref<4x2xf32, #tpu.memory_space<vmem>>, %arg3: memref<1x2xf32, #tpu.memory_space<vmem>>, %arg4: memref<2x4xf32, #tpu.memory_space<vmem>>, %arg5: memref<2x4xf32, #tpu.memory_space<vmem>>, %arg6: memref<2x4xf32, #tpu.memory_space<vmem>>, %arg7: memref<2x4xf32, #tpu.memory_space<vmem>>, %arg8: memref<1x4xf32, #tpu.memory_space<vmem>>, %arg9: memref<1x16x16x4xf32, #tpu.memory_space<vmem>>, %arg10: memref<28x28x2xf32, #tpu.memory_space<vmem>>) attributes {dimension_semantics = [#tpu.dimension_semantics<parallel>], iteration_bounds = array<i64: 2>, scalar_prefetch = 0 : i64, scratch_operands = 1 : i64, tpu.core_type = #tpu.core_type<tc>, window_params = [{transform_indices = @transform_0, window_bounds = array<i64: 1, 16, 16, 4>}, {pipeline_mode = #tpu.pipeline_mode<synchronous>, transform_indices = @transform_1, window_bounds = array<i64: 4, 2>}, {pipeline_mode = #tpu.pipeline_mode<synchronous>, transform_indices = @transform_2, window_bounds = array<i64: 1, 2>}, {pipeline_mode = #tpu.pipeline_mode<synchronous>, transform_indices = @transform_3, window_bounds = array<i64: 2, 4>}, {pipeline_mode = #tpu.pipeline_mode<synchronous>, transform_indices = @transform_4, window_bounds = array<i64: 2, 4>}, {pipeline_mode = #tpu.pipeline_mode<synchronous>, transform_indices = @transform_5, window_bounds = array<i64: 2, 4>}, {pipeline_mode = #tpu.pipeline_mode<synchronous>, transform_indices = @transform_6, window_bounds = array<i64: 2, 4>}, {pipeline_mode = #tpu.pipeline_mode<synchronous>, transform_indices = @transform_7, window_bounds = array<i64: 1, 4>}, {transform_indices = @transform_8, window_bounds = array<i64: 1, 16, 16, 4>}]} {
    %c0 = arith.constant 0 : index
    %c0_0 = arith.constant 0 : index
    %c0_1 = arith.constant 0 : index
    %c0_2 = arith.constant 0 : index
    %0 = vector.load %arg1[%c0, %c0_0, %c0_1, %c0_2] : memref<1x16x16x4xf32, #tpu.memory_space<vmem>>, vector<1x16x16x4xf32>
    %1 = vector.shape_cast %0 : vector<1x16x16x4xf32> to vector<16x16x4xf32>
    %2 = vector.shape_cast %1 : vector<16x16x4xf32> to vector<256x4xf32>
    %c0_3 = arith.constant 0 : index
    %c0_4 = arith.constant 0 : index
    %3 = vector.load %arg2[%c0_3, %c0_4] : memref<4x2xf32, #tpu.memory_space<vmem>>, vector<4x2xf32>
    %cst = arith.constant dense<0.000000e+00> : vector<256x2xf32>
    %4 = tpu.matmul %2, %3, %cst {dimension_numbers = #tpu.dot_dimension_numbers<[1], [0], [0], [1], [0, 0, 1, 1], [], []>} : vector<256x4xf32>, vector<4x2xf32>, vector<256x2xf32> -> vector<256x2xf32>
    %c0_5 = arith.constant 0 : index
    %c0_6 = arith.constant 0 : index
    %5 = vector.load %arg3[%c0_5, %c0_6] : memref<1x2xf32, #tpu.memory_space<vmem>>, vector<1x2xf32>
    %6 = vector.broadcast %5 : vector<1x2xf32> to vector<256x2xf32>
    %7 = arith.addf %4, %6 : vector<256x2xf32>
    %8 = arith.negf %7 : vector<256x2xf32>
    %9 = math.exp %8 : vector<256x2xf32>
    %cst_7 = arith.constant 1.000000e+00 : f32
    %10 = vector.broadcast %cst_7 : f32 to vector<256x2xf32>
    %11 = arith.addf %10, %9 : vector<256x2xf32>
    %12 = arith.divf %10, %11 : vector<256x2xf32>
    %13 = arith.mulf %7, %12 : vector<256x2xf32>
    %14 = vector.shape_cast %13 : vector<256x2xf32> to vector<16x16x2xf32>
    %cst_8 = arith.constant 0xFF800000 : f32
    %15 = vector.broadcast %cst_8 : f32 to vector<28x28x2xf32>
    %c0_9 = arith.constant 0 : index
    %c0_10 = arith.constant 0 : index
    %c0_11 = arith.constant 0 : index
    %16 = vector.load %arg10[%c0_9, %c0_10, %c0_11] : memref<28x28x2xf32, #tpu.memory_space<vmem>>, vector<28x28x2xf32>
    tpu.vector_store %arg10[%c0_9, %c0_10, %c0_11], %15 {strides = array<i32>} : memref<28x28x2xf32, #tpu.memory_space<vmem>>, vector<28x28x2xf32>,
    %c6 = arith.constant 6 : index
    %c6_12 = arith.constant 6 : index
    %c0_13 = arith.constant 0 : index
    %17 = vector.load %arg10[%c6, %c6_12, %c0_13] : memref<28x28x2xf32, #tpu.memory_space<vmem>>, vector<16x16x2xf32>
    tpu.vector_store %arg10[%c6, %c6_12, %c0_13], %14 {strides = array<i32>} : memref<28x28x2xf32, #tpu.memory_space<vmem>>, vector<16x16x2xf32>,
    %c0_14 = arith.constant 0 : index
    %c0_15 = arith.constant 0 : index
    %18 = vector.load %arg4[%c0_14, %c0_15] : memref<2x4xf32, #tpu.memory_space<vmem>>, vector<2x4xf32>
    %cst_16 = arith.constant dense<0.000000e+00> : vector<256x4xf32>
    %19 = tpu.matmul %13, %18, %cst_16 {dimension_numbers = #tpu.dot_dimension_numbers<[1], [0], [0], [1], [0, 0, 1, 1], [], []>} : vector<256x2xf32>, vector<2x4xf32>, vector<256x4xf32> -> vector<256x4xf32>
    %c0_17 = arith.constant 0 : index
    %c0_18 = arith.constant 0 : index
    %20 = vector.load %arg8[%c0_17, %c0_18] : memref<1x4xf32, #tpu.memory_space<vmem>>, vector<1x4xf32>
    %21 = vector.broadcast %20 : vector<1x4xf32> to vector<256x4xf32>
    %22 = arith.addf %19, %21 : vector<256x4xf32>
    %c4 = arith.constant 4 : index
    %c0_19 = arith.constant 0 : index
    %c0_20 = arith.constant 0 : index
    %23 = vector.load %arg10[%c4, %c0_19, %c0_20] : memref<28x28x2xf32, #tpu.memory_space<vmem>>, vector<16x28x2xf32>
    %c5 = arith.constant 5 : index
    %c0_21 = arith.constant 0 : index
    %c0_22 = arith.constant 0 : index
    %24 = vector.load %arg10[%c5, %c0_21, %c0_22] : memref<28x28x2xf32, #tpu.memory_space<vmem>>, vector<16x28x2xf32>
    %25 = arith.maximumf %23, %24 : vector<16x28x2xf32>
    %c6_23 = arith.constant 6 : index
    %c0_24 = arith.constant 0 : index
    %c0_25 = arith.constant 0 : index
    %26 = vector.load %arg10[%c6_23, %c0_24, %c0_25] : memref<28x28x2xf32, #tpu.memory_space<vmem>>, vector<16x28x2xf32>
    %27 = arith.maximumf %25, %26 : vector<16x28x2xf32>
    %c7 = arith.constant 7 : index
    %c0_26 = arith.constant 0 : index
    %c0_27 = arith.constant 0 : index
    %28 = vector.load %arg10[%c7, %c0_26, %c0_27] : memref<28x28x2xf32, #tpu.memory_space<vmem>>, vector<16x28x2xf32>
    %29 = arith.maximumf %27, %28 : vector<16x28x2xf32>
    %c8 = arith.constant 8 : index
    %c0_28 = arith.constant 0 : index
    %c0_29 = arith.constant 0 : index
    %30 = vector.load %arg10[%c8, %c0_28, %c0_29] : memref<28x28x2xf32, #tpu.memory_space<vmem>>, vector<16x28x2xf32>
    %31 = arith.maximumf %29, %30 : vector<16x28x2xf32>
    %32 = vector.extract_strided_slice %31 {offsets = [0, 4, 0], sizes = [16, 16, 2], strides = [1, 1, 1]} : vector<16x28x2xf32> to vector<16x16x2xf32>
    %33 = vector.extract_strided_slice %31 {offsets = [0, 5, 0], sizes = [16, 16, 2], strides = [1, 1, 1]} : vector<16x28x2xf32> to vector<16x16x2xf32>
    %34 = arith.maximumf %32, %33 : vector<16x16x2xf32>
    %35 = vector.extract_strided_slice %31 {offsets = [0, 6, 0], sizes = [16, 16, 2], strides = [1, 1, 1]} : vector<16x28x2xf32> to vector<16x16x2xf32>
    %36 = arith.maximumf %34, %35 : vector<16x16x2xf32>
    %37 = vector.extract_strided_slice %31 {offsets = [0, 7, 0], sizes = [16, 16, 2], strides = [1, 1, 1]} : vector<16x28x2xf32> to vector<16x16x2xf32>
    %38 = arith.maximumf %36, %37 : vector<16x16x2xf32>
    %39 = vector.extract_strided_slice %31 {offsets = [0, 8, 0], sizes = [16, 16, 2], strides = [1, 1, 1]} : vector<16x28x2xf32> to vector<16x16x2xf32>
    %40 = arith.maximumf %38, %39 : vector<16x16x2xf32>
    %41 = vector.shape_cast %40 : vector<16x16x2xf32> to vector<256x2xf32>
    %c0_30 = arith.constant 0 : index
    %c0_31 = arith.constant 0 : index
    %42 = vector.load %arg5[%c0_30, %c0_31] : memref<2x4xf32, #tpu.memory_space<vmem>>, vector<2x4xf32>
    %cst_32 = arith.constant dense<0.000000e+00> : vector<256x4xf32>
    %43 = tpu.matmul %41, %42, %cst_32 {dimension_numbers = #tpu.dot_dimension_numbers<[1], [0], [0], [1], [0, 0, 1, 1], [], []>} : vector<256x2xf32>, vector<2x4xf32>, vector<256x4xf32> -> vector<256x4xf32>
    %44 = arith.addf %22, %43 : vector<256x4xf32>
    %c2 = arith.constant 2 : index
    %c0_33 = arith.constant 0 : index
    %c0_34 = arith.constant 0 : index
    %45 = vector.load %arg10[%c2, %c0_33, %c0_34] : memref<28x28x2xf32, #tpu.memory_space<vmem>>, vector<16x28x2xf32>
    %c3 = arith.constant 3 : index
    %c0_35 = arith.constant 0 : index
    %c0_36 = arith.constant 0 : index
    %46 = vector.load %arg10[%c3, %c0_35, %c0_36] : memref<28x28x2xf32, #tpu.memory_space<vmem>>, vector<16x28x2xf32>
    %47 = arith.maximumf %45, %46 : vector<16x28x2xf32>
    %c4_37 = arith.constant 4 : index
    %c0_38 = arith.constant 0 : index
    %c0_39 = arith.constant 0 : index
    %48 = vector.load %arg10[%c4_37, %c0_38, %c0_39] : memref<28x28x2xf32, #tpu.memory_space<vmem>>, vector<16x28x2xf32>
    %49 = arith.maximumf %47, %48 : vector<16x28x2xf32>
    %c5_40 = arith.constant 5 : index
    %c0_41 = arith.constant 0 : index
    %c0_42 = arith.constant 0 : index
    %50 = vector.load %arg10[%c5_40, %c0_41, %c0_42] : memref<28x28x2xf32, #tpu.memory_space<vmem>>, vector<16x28x2xf32>
    %51 = arith.maximumf %49, %50 : vector<16x28x2xf32>
    %c6_43 = arith.constant 6 : index
    %c0_44 = arith.constant 0 : index
    %c0_45 = arith.constant 0 : index
    %52 = vector.load %arg10[%c6_43, %c0_44, %c0_45] : memref<28x28x2xf32, #tpu.memory_space<vmem>>, vector<16x28x2xf32>
    %53 = arith.maximumf %51, %52 : vector<16x28x2xf32>
    %c7_46 = arith.constant 7 : index
    %c0_47 = arith.constant 0 : index
    %c0_48 = arith.constant 0 : index
    %54 = vector.load %arg10[%c7_46, %c0_47, %c0_48] : memref<28x28x2xf32, #tpu.memory_space<vmem>>, vector<16x28x2xf32>
    %55 = arith.maximumf %53, %54 : vector<16x28x2xf32>
    %c8_49 = arith.constant 8 : index
    %c0_50 = arith.constant 0 : index
    %c0_51 = arith.constant 0 : index
    %56 = vector.load %arg10[%c8_49, %c0_50, %c0_51] : memref<28x28x2xf32, #tpu.memory_space<vmem>>, vector<16x28x2xf32>
    %57 = arith.maximumf %55, %56 : vector<16x28x2xf32>
    %c9 = arith.constant 9 : index
    %c0_52 = arith.constant 0 : index
    %c0_53 = arith.constant 0 : index
    %58 = vector.load %arg10[%c9, %c0_52, %c0_53] : memref<28x28x2xf32, #tpu.memory_space<vmem>>, vector<16x28x2xf32>
    %59 = arith.maximumf %57, %58 : vector<16x28x2xf32>
    %c10 = arith.constant 10 : index
    %c0_54 = arith.constant 0 : index
    %c0_55 = arith.constant 0 : index
    %60 = vector.load %arg10[%c10, %c0_54, %c0_55] : memref<28x28x2xf32, #tpu.memory_space<vmem>>, vector<16x28x2xf32>
    %61 = arith.maximumf %59, %60 : vector<16x28x2xf32>
    %62 = vector.extract_strided_slice %61 {offsets = [0, 2, 0], sizes = [16, 16, 2], strides = [1, 1, 1]} : vector<16x28x2xf32> to vector<16x16x2xf32>
    %63 = vector.extract_strided_slice %61 {offsets = [0, 3, 0], sizes = [16, 16, 2], strides = [1, 1, 1]} : vector<16x28x2xf32> to vector<16x16x2xf32>
    %64 = arith.maximumf %62, %63 : vector<16x16x2xf32>
    %65 = vector.extract_strided_slice %61 {offsets = [0, 4, 0], sizes = [16, 16, 2], strides = [1, 1, 1]} : vector<16x28x2xf32> to vector<16x16x2xf32>
    %66 = arith.maximumf %64, %65 : vector<16x16x2xf32>
    %67 = vector.extract_strided_slice %61 {offsets = [0, 5, 0], sizes = [16, 16, 2], strides = [1, 1, 1]} : vector<16x28x2xf32> to vector<16x16x2xf32>
    %68 = arith.maximumf %66, %67 : vector<16x16x2xf32>
    %69 = vector.extract_strided_slice %61 {offsets = [0, 6, 0], sizes = [16, 16, 2], strides = [1, 1, 1]} : vector<16x28x2xf32> to vector<16x16x2xf32>
    %70 = arith.maximumf %68, %69 : vector<16x16x2xf32>
    %71 = vector.extract_strided_slice %61 {offsets = [0, 7, 0], sizes = [16, 16, 2], strides = [1, 1, 1]} : vector<16x28x2xf32> to vector<16x16x2xf32>
    %72 = arith.maximumf %70, %71 : vector<16x16x2xf32>
    %73 = vector.extract_strided_slice %61 {offsets = [0, 8, 0], sizes = [16, 16, 2], strides = [1, 1, 1]} : vector<16x28x2xf32> to vector<16x16x2xf32>
    %74 = arith.maximumf %72, %73 : vector<16x16x2xf32>
    %75 = vector.extract_strided_slice %61 {offsets = [0, 9, 0], sizes = [16, 16, 2], strides = [1, 1, 1]} : vector<16x28x2xf32> to vector<16x16x2xf32>
    %76 = arith.maximumf %74, %75 : vector<16x16x2xf32>
    %77 = vector.extract_strided_slice %61 {offsets = [0, 10, 0], sizes = [16, 16, 2], strides = [1, 1, 1]} : vector<16x28x2xf32> to vector<16x16x2xf32>
    %78 = arith.maximumf %76, %77 : vector<16x16x2xf32>
    %79 = vector.shape_cast %78 : vector<16x16x2xf32> to vector<256x2xf32>
    %c0_56 = arith.constant 0 : index
    %c0_57 = arith.constant 0 : index
    %80 = vector.load %arg6[%c0_56, %c0_57] : memref<2x4xf32, #tpu.memory_space<vmem>>, vector<2x4xf32>
    %cst_58 = arith.constant dense<0.000000e+00> : vector<256x4xf32>
    %81 = tpu.matmul %79, %80, %cst_58 {dimension_numbers = #tpu.dot_dimension_numbers<[1], [0], [0], [1], [0, 0, 1, 1], [], []>} : vector<256x2xf32>, vector<2x4xf32>, vector<256x4xf32> -> vector<256x4xf32>
    %82 = arith.addf %44, %81 : vector<256x4xf32>
    %c0_59 = arith.constant 0 : index
    %c0_60 = arith.constant 0 : index
    %c0_61 = arith.constant 0 : index
    %83 = vector.load %arg10[%c0_59, %c0_60, %c0_61] : memref<28x28x2xf32, #tpu.memory_space<vmem>>, vector<16x28x2xf32>
    %c1 = arith.constant 1 : index
    %c0_62 = arith.constant 0 : index
    %c0_63 = arith.constant 0 : index
    %84 = vector.load %arg10[%c1, %c0_62, %c0_63] : memref<28x28x2xf32, #tpu.memory_space<vmem>>, vector<16x28x2xf32>
    %85 = arith.maximumf %83, %84 : vector<16x28x2xf32>
    %c2_64 = arith.constant 2 : index
    %c0_65 = arith.constant 0 : index
    %c0_66 = arith.constant 0 : index
    %86 = vector.load %arg10[%c2_64, %c0_65, %c0_66] : memref<28x28x2xf32, #tpu.memory_space<vmem>>, vector<16x28x2xf32>
    %87 = arith.maximumf %85, %86 : vector<16x28x2xf32>
    %c3_67 = arith.constant 3 : index
    %c0_68 = arith.constant 0 : index
    %c0_69 = arith.constant 0 : index
    %88 = vector.load %arg10[%c3_67, %c0_68, %c0_69] : memref<28x28x2xf32, #tpu.memory_space<vmem>>, vector<16x28x2xf32>
    %89 = arith.maximumf %87, %88 : vector<16x28x2xf32>
    %c4_70 = arith.constant 4 : index
    %c0_71 = arith.constant 0 : index
    %c0_72 = arith.constant 0 : index
    %90 = vector.load %arg10[%c4_70, %c0_71, %c0_72] : memref<28x28x2xf32, #tpu.memory_space<vmem>>, vector<16x28x2xf32>
    %91 = arith.maximumf %89, %90 : vector<16x28x2xf32>
    %c5_73 = arith.constant 5 : index
    %c0_74 = arith.constant 0 : index
    %c0_75 = arith.constant 0 : index
    %92 = vector.load %arg10[%c5_73, %c0_74, %c0_75] : memref<28x28x2xf32, #tpu.memory_space<vmem>>, vector<16x28x2xf32>
    %93 = arith.maximumf %91, %92 : vector<16x28x2xf32>
    %c6_76 = arith.constant 6 : index
    %c0_77 = arith.constant 0 : index
    %c0_78 = arith.constant 0 : index
    %94 = vector.load %arg10[%c6_76, %c0_77, %c0_78] : memref<28x28x2xf32, #tpu.memory_space<vmem>>, vector<16x28x2xf32>
    %95 = arith.maximumf %93, %94 : vector<16x28x2xf32>
    %c7_79 = arith.constant 7 : index
    %c0_80 = arith.constant 0 : index
    %c0_81 = arith.constant 0 : index
    %96 = vector.load %arg10[%c7_79, %c0_80, %c0_81] : memref<28x28x2xf32, #tpu.memory_space<vmem>>, vector<16x28x2xf32>
    %97 = arith.maximumf %95, %96 : vector<16x28x2xf32>
    %c8_82 = arith.constant 8 : index
    %c0_83 = arith.constant 0 : index
    %c0_84 = arith.constant 0 : index
    %98 = vector.load %arg10[%c8_82, %c0_83, %c0_84] : memref<28x28x2xf32, #tpu.memory_space<vmem>>, vector<16x28x2xf32>
    %99 = arith.maximumf %97, %98 : vector<16x28x2xf32>
    %c9_85 = arith.constant 9 : index
    %c0_86 = arith.constant 0 : index
    %c0_87 = arith.constant 0 : index
    %100 = vector.load %arg10[%c9_85, %c0_86, %c0_87] : memref<28x28x2xf32, #tpu.memory_space<vmem>>, vector<16x28x2xf32>
    %101 = arith.maximumf %99, %100 : vector<16x28x2xf32>
    %c10_88 = arith.constant 10 : index
    %c0_89 = arith.constant 0 : index
    %c0_90 = arith.constant 0 : index
    %102 = vector.load %arg10[%c10_88, %c0_89, %c0_90] : memref<28x28x2xf32, #tpu.memory_space<vmem>>, vector<16x28x2xf32>
    %103 = arith.maximumf %101, %102 : vector<16x28x2xf32>
    %c11 = arith.constant 11 : index
    %c0_91 = arith.constant 0 : index
    %c0_92 = arith.constant 0 : index
    %104 = vector.load %arg10[%c11, %c0_91, %c0_92] : memref<28x28x2xf32, #tpu.memory_space<vmem>>, vector<16x28x2xf32>
    %105 = arith.maximumf %103, %104 : vector<16x28x2xf32>
    %c12 = arith.constant 12 : index
    %c0_93 = arith.constant 0 : index
    %c0_94 = arith.constant 0 : index
    %106 = vector.load %arg10[%c12, %c0_93, %c0_94] : memref<28x28x2xf32, #tpu.memory_space<vmem>>, vector<16x28x2xf32>
    %107 = arith.maximumf %105, %106 : vector<16x28x2xf32>
    %108 = vector.extract_strided_slice %107 {offsets = [0, 0, 0], sizes = [16, 16, 2], strides = [1, 1, 1]} : vector<16x28x2xf32> to vector<16x16x2xf32>
    %109 = vector.extract_strided_slice %107 {offsets = [0, 1, 0], sizes = [16, 16, 2], strides = [1, 1, 1]} : vector<16x28x2xf32> to vector<16x16x2xf32>
    %110 = arith.maximumf %108, %109 : vector<16x16x2xf32>
    %111 = vector.extract_strided_slice %107 {offsets = [0, 2, 0], sizes = [16, 16, 2], strides = [1, 1, 1]} : vector<16x28x2xf32> to vector<16x16x2xf32>
    %112 = arith.maximumf %110, %111 : vector<16x16x2xf32>
    %113 = vector.extract_strided_slice %107 {offsets = [0, 3, 0], sizes = [16, 16, 2], strides = [1, 1, 1]} : vector<16x28x2xf32> to vector<16x16x2xf32>
    %114 = arith.maximumf %112, %113 : vector<16x16x2xf32>
    %115 = vector.extract_strided_slice %107 {offsets = [0, 4, 0], sizes = [16, 16, 2], strides = [1, 1, 1]} : vector<16x28x2xf32> to vector<16x16x2xf32>
    %116 = arith.maximumf %114, %115 : vector<16x16x2xf32>
    %117 = vector.extract_strided_slice %107 {offsets = [0, 5, 0], sizes = [16, 16, 2], strides = [1, 1, 1]} : vector<16x28x2xf32> to vector<16x16x2xf32>
    %118 = arith.maximumf %116, %117 : vector<16x16x2xf32>
    %119 = vector.extract_strided_slice %107 {offsets = [0, 6, 0], sizes = [16, 16, 2], strides = [1, 1, 1]} : vector<16x28x2xf32> to vector<16x16x2xf32>
    %120 = arith.maximumf %118, %119 : vector<16x16x2xf32>
    %121 = vector.extract_strided_slice %107 {offsets = [0, 7, 0], sizes = [16, 16, 2], strides = [1, 1, 1]} : vector<16x28x2xf32> to vector<16x16x2xf32>
    %122 = arith.maximumf %120, %121 : vector<16x16x2xf32>
    %123 = vector.extract_strided_slice %107 {offsets = [0, 8, 0], sizes = [16, 16, 2], strides = [1, 1, 1]} : vector<16x28x2xf32> to vector<16x16x2xf32>
    %124 = arith.maximumf %122, %123 : vector<16x16x2xf32>
    %125 = vector.extract_strided_slice %107 {offsets = [0, 9, 0], sizes = [16, 16, 2], strides = [1, 1, 1]} : vector<16x28x2xf32> to vector<16x16x2xf32>
    %126 = arith.maximumf %124, %125 : vector<16x16x2xf32>
    %127 = vector.extract_strided_slice %107 {offsets = [0, 10, 0], sizes = [16, 16, 2], strides = [1, 1, 1]} : vector<16x28x2xf32> to vector<16x16x2xf32>
    %128 = arith.maximumf %126, %127 : vector<16x16x2xf32>
    %129 = vector.extract_strided_slice %107 {offsets = [0, 11, 0], sizes = [16, 16, 2], strides = [1, 1, 1]} : vector<16x28x2xf32> to vector<16x16x2xf32>
    %130 = arith.maximumf %128, %129 : vector<16x16x2xf32>
    %131 = vector.extract_strided_slice %107 {offsets = [0, 12, 0], sizes = [16, 16, 2], strides = [1, 1, 1]} : vector<16x28x2xf32> to vector<16x16x2xf32>
    %132 = arith.maximumf %130, %131 : vector<16x16x2xf32>
    %133 = vector.shape_cast %132 : vector<16x16x2xf32> to vector<256x2xf32>
    %c0_95 = arith.constant 0 : index
    %c0_96 = arith.constant 0 : index
    %134 = vector.load %arg7[%c0_95, %c0_96] : memref<2x4xf32, #tpu.memory_space<vmem>>, vector<2x4xf32>
    %cst_97 = arith.constant dense<0.000000e+00> : vector<256x4xf32>
    %135 = tpu.matmul %133, %134, %cst_97 {dimension_numbers = #tpu.dot_dimension_numbers<[1], [0], [0], [1], [0, 0, 1, 1], [], []>} : vector<256x2xf32>, vector<2x4xf32>, vector<256x4xf32> -> vector<256x4xf32>
    %136 = arith.addf %82, %135 : vector<256x4xf32>
    %137 = arith.negf %136 : vector<256x4xf32>
    %138 = math.exp %137 : vector<256x4xf32>
    %cst_98 = arith.constant 1.000000e+00 : f32
    %139 = vector.broadcast %cst_98 : f32 to vector<256x4xf32>
    %140 = arith.addf %139, %138 : vector<256x4xf32>
    %141 = arith.divf %139, %140 : vector<256x4xf32>
    %142 = arith.mulf %136, %141 : vector<256x4xf32>
    %143 = vector.shape_cast %142 : vector<256x4xf32> to vector<16x16x4xf32>
    %c0_99 = arith.constant 0 : index
    %c0_100 = arith.constant 0 : index
    %c0_101 = arith.constant 0 : index
    %c0_102 = arith.constant 0 : index
    %144 = vector.load %arg9[%c0_99, %c0_100, %c0_101, %c0_102] : memref<1x16x16x4xf32, #tpu.memory_space<vmem>>, vector<1x16x16x4xf32>
    %145 = vector.shape_cast %144 : vector<1x16x16x4xf32> to vector<16x16x4xf32>
    %146 = vector.shape_cast %143 : vector<16x16x4xf32> to vector<1x16x16x4xf32>
    tpu.vector_store %arg9[%c0_99, %c0_100, %c0_101, %c0_102], %146 {strides = array<i32>} : memref<1x16x16x4xf32, #tpu.memory_space<vmem>>, vector<1x16x16x4xf32>,
    return
  }
  func.func @transform_0(%arg0: i32) -> (i32, i32, i32, i32) {
    %c0_i32 = arith.constant 0 : i32
    %c0_i32_0 = arith.constant 0 : i32
    %c0_i32_1 = arith.constant 0 : i32
    %c0_i32_2 = arith.constant 0 : i32
    return %arg0, %c0_i32, %c0_i32_0, %c0_i32_1 : i32, i32, i32, i32
  }
  func.func @transform_1(%arg0: i32) -> (i32, i32) {
    %c0_i32 = arith.constant 0 : i32
    %c0_i32_0 = arith.constant 0 : i32
    %c0_i32_1 = arith.constant 0 : i32
    return %c0_i32, %c0_i32_0 : i32, i32
  }
  func.func @transform_2(%arg0: i32) -> (i32, i32) {
    %c0_i32 = arith.constant 0 : i32
    %c0_i32_0 = arith.constant 0 : i32
    %c0_i32_1 = arith.constant 0 : i32
    return %c0_i32, %c0_i32_0 : i32, i32
  }
  func.func @transform_3(%arg0: i32) -> (i32, i32) {
    %c0_i32 = arith.constant 0 : i32
    %c0_i32_0 = arith.constant 0 : i32
    %c0_i32_1 = arith.constant 0 : i32
    return %c0_i32, %c0_i32_0 : i32, i32
  }
  func.func @transform_4(%arg0: i32) -> (i32, i32) {
    %c0_i32 = arith.constant 0 : i32
    %c0_i32_0 = arith.constant 0 : i32
    %c0_i32_1 = arith.constant 0 : i32
    return %c0_i32, %c0_i32_0 : i32, i32
  }
  func.func @transform_5(%arg0: i32) -> (i32, i32) {
    %c0_i32 = arith.constant 0 : i32
    %c0_i32_0 = arith.constant 0 : i32
    %c0_i32_1 = arith.constant 0 : i32
    return %c0_i32, %c0_i32_0 : i32, i32
  }
  func.func @transform_6(%arg0: i32) -> (i32, i32) {
    %c0_i32 = arith.constant 0 : i32
    %c0_i32_0 = arith.constant 0 : i32
    %c0_i32_1 = arith.constant 0 : i32
    return %c0_i32, %c0_i32_0 : i32, i32
  }
  func.func @transform_7(%arg0: i32) -> (i32, i32) {
    %c0_i32 = arith.constant 0 : i32
    %c0_i32_0 = arith.constant 0 : i32
    %c0_i32_1 = arith.constant 0 : i32
    return %c0_i32, %c0_i32_0 : i32, i32
  }
  func.func @transform_8(%arg0: i32) -> (i32, i32, i32, i32) {
    %c0_i32 = arith.constant 0 : i32
    %c0_i32_0 = arith.constant 0 : i32
    %c0_i32_1 = arith.constant 0 : i32
    %c0_i32_2 = arith.constant 0 : i32
    return %arg0, %c0_i32, %c0_i32_0, %c0_i32_1 : i32, i32, i32, i32
  }
}

</mosaic_0001>

<llo_original>
// kernel: tpu_custom_call.1
$region0: #{tpu_custom_call.1}
  #allocation0 [shape = 'u32[]', space=smem, size = 0x4, offset = 0x4, fixed_abs, tag = 'smem constant byte address 0x4 - core index']
  #allocation1 [shape = 'u32[144,128]{1,0:T(1,128)}', space=vmem, size = 0x12000, scoped, tag = 'internal scratch']
  #allocation2 [shape = 'f32[28,28,2]{2,1,0:T(8,128)}', space=vmem, size = 0x70000, scoped, tag = 'scratch operand']
  %s0 = inlined_call_operand.vmem [shape: f32[2,16,16,4], index: 0, kind: input, shape index: {}]
  %s1 = inlined_call_operand.vmem [shape: f32[4,2], index: 1, kind: input, shape index: {}]
  %s2 = inlined_call_operand.vmem [shape: f32[1,2], index: 2, kind: input, shape index: {}]
  %s3 = inlined_call_operand.vmem [shape: f32[2,4], index: 3, kind: input, shape index: {}]
  %s4 = inlined_call_operand.vmem [shape: f32[2,4], index: 4, kind: input, shape index: {}]
  %s5 = inlined_call_operand.vmem [shape: f32[2,4], index: 5, kind: input, shape index: {}]
  %s6 = inlined_call_operand.vmem [shape: f32[2,4], index: 6, kind: input, shape index: {}]
  %s7 = inlined_call_operand.vmem [shape: f32[1,4], index: 7, kind: input, shape index: {}]
  %s8 = inlined_call_operand.vmem [shape: f32[2,16,16,4], index: 8, kind: output, shape index: {}]
  %s9 = sld [smem:[#allocation0]]
  $region65: #{tpu_custom_call.1} parent=0
    _
  %s11 = ssub.s32 1, %s9
  %s12 = scalar_select 0, %s11, %s9
  loop: start=0, step=1, limit=4
  $region2: #{tpu_custom_call.1} parent=0 // loop_pre_header
    _
  $region3: #{tpu_custom_call.1} parent=0 // loop_header
    %s14 = sphi 0, %s18
    %p15 = scmp.ge.s32.totalorder %s14, 4
    %s24 = sphi 0, %s26
    %s27 = sphi 0, %s24
    %s28 = sphi 0, %s27
    %s44 = sphi 0, %s28
    %s48 = sphi 0, %s48
    %s50 = sphi 0, %s48
    %s51 = sphi 0, %s50
    %s65 = sphi 0, %s51
    %s69 = sphi 0, %s69
    %s71 = sphi 0, %s69
    %s72 = sphi 0, %s71
    %s86 = sphi 0, %s72
    %s90 = sphi 0, %s90
    %s92 = sphi 0, %s90
    %s93 = sphi 0, %s92
    %s107 = sphi 0, %s93
    %s111 = sphi 0, %s111
    %s113 = sphi 0, %s111
    %s114 = sphi 0, %s113
    %s128 = sphi 0, %s114
    %s132 = sphi 0, %s132
    %s134 = sphi 0, %s132
    %s135 = sphi 0, %s134
    %s149 = sphi 0, %s135
    %s153 = sphi 0, %s153
    %s155 = sphi 0, %s153
    %s156 = sphi 0, %s155
    %s170 = sphi 0, %s156
    %s174 = sphi 0, %s174
    %s176 = sphi 0, %s174
    %s177 = sphi 0, %s176
    %s191 = sphi 0, %s177
    %s197 = sphi 0, %s199
    %s200 = sphi 0, %s197
    %s201 = sphi 0, %s200
    %s217 = sphi 0, %s201
  $region4: #{tpu_custom_call.1} parent=0 // loop_header_branch
    %17 = sbr.rel (%p15) target = $region8
  $region5: #{tpu_custom_call.1} parent=0 // loop_body
    %s19 = ssub.s32 %s14, 1
    %s20 = ssub.s32 %s14, 2
    %s21 = sadd.s32 %s14, 1
    %s22 = ssub.s32 %s14, %s21
    %p23 = scmp.eq.s32.totalorder %s22, 0
    %s25 = sadd.s32 %s24, 1
    %s26 = scalar_select %p23, %s24, %s25
    %p29 = pneg %p23
    %p30 = scmp.eq.s32.totalorder %s14, 1
    %p31 = por %p29, %p30
    %p32 = scmp.ne.s32.totalorder %s24, %s27
    %p33 = scmp.eq.s32.totalorder %s14, 0
    %p34 = por %p32, %p33
    %p35 = scmp.ne.s32.totalorder %s24, %s27
    %p36 = scmp.eq.s32.totalorder %s19, 1
    %p37 = por %p35, %p36
    %p38 = scmp.ne.s32.totalorder %s27, %s28
    %p39 = scmp.eq.s32.totalorder %s19, 0
    %p40 = por %p38, %p39
    %p41 = scmp.ne.s32.totalorder %s27, %s28
    %p42 = scmp.eq.s32.totalorder %s20, 1
    %p43 = por %p41, %p42
    %p45 = scmp.ne.s32.totalorder %s28, %s44
    %p46 = scmp.eq.s32.totalorder %s20, 0
    %p47 = por %p45, %p46
    %s49 = sadd.s32 %s48, 1
    %p52 = scmp.eq.s32.totalorder %s14, 1
    %p53 = scmp.ne.s32.totalorder %s48, %s50
    %p54 = scmp.eq.s32.totalorder %s14, 0
    %p55 = por %p53, %p54
    %p56 = scmp.ne.s32.totalorder %s48, %s50
    %p57 = scmp.eq.s32.totalorder %s19, 1
    %p58 = por %p56, %p57
    %p59 = scmp.ne.s32.totalorder %s50, %s51
    %p60 = scmp.eq.s32.totalorder %s19, 0
    %p61 = por %p59, %p60
    %p62 = scmp.ne.s32.totalorder %s50, %s51
    %p63 = scmp.eq.s32.totalorder %s20, 1
    %p64 = por %p62, %p63
    %p66 = scmp.ne.s32.totalorder %s51, %s65
    %p67 = scmp.eq.s32.totalorder %s20, 0
    %p68 = por %p66, %p67
    %s70 = sadd.s32 %s69, 1
    %p73 = scmp.eq.s32.totalorder %s14, 1
    %p74 = scmp.ne.s32.totalorder %s69, %s71
    %p75 = scmp.eq.s32.totalorder %s14, 0
    %p76 = por %p74, %p75
    %p77 = scmp.ne.s32.totalorder %s69, %s71
    %p78 = scmp.eq.s32.totalorder %s19, 1
    %p79 = por %p77, %p78
    %p80 = scmp.ne.s32.totalorder %s71, %s72
    %p81 = scmp.eq.s32.totalorder %s19, 0
    %p82 = por %p80, %p81
    %p83 = scmp.ne.s32.totalorder %s71, %s72
    %p84 = scmp.eq.s32.totalorder %s20, 1
    %p85 = por %p83, %p84
    %p87 = scmp.ne.s32.totalorder %s72, %s86
    %p88 = scmp.eq.s32.totalorder %s20, 0
    %p89 = por %p87, %p88
    %s91 = sadd.s32 %s90, 1
    %p94 = scmp.eq.s32.totalorder %s14, 1
    %p95 = scmp.ne.s32.totalorder %s90, %s92
    %p96 = scmp.eq.s32.totalorder %s14, 0
    %p97 = por %p95, %p96
    %p98 = scmp.ne.s32.totalorder %s90, %s92
    %p99 = scmp.eq.s32.totalorder %s19, 1
    %p100 = por %p98, %p99
    %p101 = scmp.ne.s32.totalorder %s92, %s93
    %p102 = scmp.eq.s32.totalorder %s19, 0
    %p103 = por %p101, %p102
    %p104 = scmp.ne.s32.totalorder %s92, %s93
    %p105 = scmp.eq.s32.totalorder %s20, 1
    %p106 = por %p104, %p105
    %p108 = scmp.ne.s32.totalorder %s93, %s107
    %p109 = scmp.eq.s32.totalorder %s20, 0
    %p110 = por %p108, %p109
    %s112 = sadd.s32 %s111, 1
    %p115 = scmp.eq.s32.totalorder %s14, 1
    %p116 = scmp.ne.s32.totalorder %s111, %s113
    %p117 = scmp.eq.s32.totalorder %s14, 0
    %p118 = por %p116, %p117
    %p119 = scmp.ne.s32.totalorder %s111, %s113
    %p120 = scmp.eq.s32.totalorder %s19, 1
    %p121 = por %p119, %p120
    %p122 = scmp.ne.s32.totalorder %s113, %s114
    %p123 = scmp.eq.s32.totalorder %s19, 0
    %p124 = por %p122, %p123
    %p125 = scmp.ne.s32.totalorder %s113, %s114
    %p126 = scmp.eq.s32.totalorder %s20, 1
    %p127 = por %p125, %p126
    %p129 = scmp.ne.s32.totalorder %s114, %s128
    %p130 = scmp.eq.s32.totalorder %s20, 0
    %p131 = por %p129, %p130
    %s133 = sadd.s32 %s132, 1
    %p136 = scmp.eq.s32.totalorder %s14, 1
    %p137 = scmp.ne.s32.totalorder %s132, %s134
    %p138 = scmp.eq.s32.totalorder %s14, 0
    %p139 = por %p137, %p138
    %p140 = scmp.ne.s32.totalorder %s132, %s134
    %p141 = scmp.eq.s32.totalorder %s19, 1
    %p142 = por %p140, %p141
    %p143 = scmp.ne.s32.totalorder %s134, %s135
    %p144 = scmp.eq.s32.totalorder %s19, 0
    %p145 = por %p143, %p144
    %p146 = scmp.ne.s32.totalorder %s134, %s135
    %p147 = scmp.eq.s32.totalorder %s20, 1
    %p148 = por %p146, %p147
    %p150 = scmp.ne.s32.totalorder %s135, %s149
    %p151 = scmp.eq.s32.totalorder %s20, 0
    %p152 = por %p150, %p151
    %s154 = sadd.s32 %s153, 1
    %p157 = scmp.eq.s32.totalorder %s14, 1
    %p158 = scmp.ne.s32.totalorder %s153, %s155
    %p159 = scmp.eq.s32.totalorder %s14, 0
    %p160 = por %p158, %p159
    %p161 = scmp.ne.s32.totalorder %s153, %s155
    %p162 = scmp.eq.s32.totalorder %s19, 1
    %p163 = por %p161, %p162
    %p164 = scmp.ne.s32.totalorder %s155, %s156
    %p165 = scmp.eq.s32.totalorder %s19, 0
    %p166 = por %p164, %p165
    %p167 = scmp.ne.s32.totalorder %s155, %s156
    %p168 = scmp.eq.s32.totalorder %s20, 1
    %p169 = por %p167, %p168
    %p171 = scmp.ne.s32.totalorder %s156, %s170
    %p172 = scmp.eq.s32.totalorder %s20, 0
    %p173 = por %p171, %p172
    %s175 = sadd.s32 %s174, 1
    %p178 = scmp.eq.s32.totalorder %s14, 1
    %p179 = scmp.ne.s32.totalorder %s174, %s176
    %p180 = scmp.eq.s32.totalorder %s14, 0
    %p181 = por %p179, %p180
    %p182 = scmp.ne.s32.totalorder %s174, %s176
    %p183 = scmp.eq.s32.totalorder %s19, 1
    %p184 = por %p182, %p183
    %p185 = scmp.ne.s32.totalorder %s176, %s177
    %p186 = scmp.eq.s32.totalorder %s19, 0
    %p187 = por %p185, %p186
    %p188 = scmp.ne.s32.totalorder %s176, %s177
    %p189 = scmp.eq.s32.totalorder %s20, 1
    %p190 = por %p188, %p189
    %p192 = scmp.ne.s32.totalorder %s177, %s191
    %p193 = scmp.eq.s32.totalorder %s20, 0
    %p194 = por %p192, %p193
    %s195 = ssub.s32 %s14, %s21
    %p196 = scmp.eq.s32.totalorder %s195, 0
    %s198 = sadd.s32 %s197, 1
    %s199 = scalar_select %p196, %s197, %s198
    %p202 = pneg %p196
    %p203 = scmp.eq.s32.totalorder %s14, 1
    %p204 = por %p202, %p203
    %p205 = scmp.ne.s32.totalorder %s197, %s200
    %p206 = scmp.eq.s32.totalorder %s14, 0
    %p207 = por %p205, %p206
    %p208 = scmp.ne.s32.totalorder %s197, %s200
    %p209 = scmp.eq.s32.totalorder %s19, 1
    %p210 = por %p208, %p209
    %p211 = scmp.ne.s32.totalorder %s200, %s201
    %p212 = scmp.eq.s32.totalorder %s19, 0
    %p213 = por %p211, %p212
    %p214 = scmp.ne.s32.totalorder %s200, %s201
    %p215 = scmp.eq.s32.totalorder %s20, 1
    %p216 = por %p214, %p215
    %p218 = scmp.ne.s32.totalorder %s201, %s217
    %p219 = scmp.eq.s32.totalorder %s20, 0
    %p220 = por %p218, %p219
    %p221 = scmp.le.s32.totalorder 1, %s14
    %p222 = scmp.lt.s32.totalorder %s14, 3
    %p223 = pnand %p221, %p222
    %p224 = pneg %p223
    // Predicated region
    $region9: #{tpu_custom_call.1} parent=5 // pred_check
      _
    $region10: #{tpu_custom_call.1} parent=5 // pred_check_branch
      %226 = sbr.rel (%p223) target = $region12
    $region11: #{tpu_custom_call.1} parent=5 // pred_region
      %s227 = ssub.s32 %s14, 1
      // Predicated region
      $region13: #{tpu_custom_call.1} parent=11 // pred_check
        %p228 = pneg %p61
      $region14: #{tpu_custom_call.1} parent=11 // pred_check_branch
        %230 = sbr.rel (%p228) target = $region16
      $region15: #{tpu_custom_call.1} parent=11 // pred_region
        _
      $region16: #{tpu_custom_call.1} parent=11 // pred_fallthru
        _
      // Predicated region
      $region17: #{tpu_custom_call.1} parent=11 // pred_check
        %p231 = pneg %p82
      $region18: #{tpu_custom_call.1} parent=11 // pred_check_branch
        %233 = sbr.rel (%p231) target = $region20
      $region19: #{tpu_custom_call.1} parent=11 // pred_region
        _
      $region20: #{tpu_custom_call.1} parent=11 // pred_fallthru
        _
      // Predicated region
      $region21: #{tpu_custom_call.1} parent=11 // pred_check
        %p234 = pneg %p103
      $region22: #{tpu_custom_call.1} parent=11 // pred_check_branch
        %236 = sbr.rel (%p234) target = $region24
      $region23: #{tpu_custom_call.1} parent=11 // pred_region
        _
      $region24: #{tpu_custom_call.1} parent=11 // pred_fallthru
        _
      // Predicated region
      $region25: #{tpu_custom_call.1} parent=11 // pred_check
        %p237 = pneg %p124
      $region26: #{tpu_custom_call.1} parent=11 // pred_check_branch
        %239 = sbr.rel (%p237) target = $region28
      $region27: #{tpu_custom_call.1} parent=11 // pred_region
        _
      $region28: #{tpu_custom_call.1} parent=11 // pred_fallthru
        _
      // Predicated region
      $region29: #{tpu_custom_call.1} parent=11 // pred_check
        %p240 = pneg %p145
      $region30: #{tpu_custom_call.1} parent=11 // pred_check_branch
        %242 = sbr.rel (%p240) target = $region32
      $region31: #{tpu_custom_call.1} parent=11 // pred_region
        _
      $region32: #{tpu_custom_call.1} parent=11 // pred_fallthru
        _
      // Predicated region
      $region33: #{tpu_custom_call.1} parent=11 // pred_check
        %p243 = pneg %p166
      $region34: #{tpu_custom_call.1} parent=11 // pred_check_branch
        %245 = sbr.rel (%p243) target = $region36
      $region35: #{tpu_custom_call.1} parent=11 // pred_region
        _
      $region36: #{tpu_custom_call.1} parent=11 // pred_fallthru
        _
      // Predicated region
      $region37: #{tpu_custom_call.1} parent=11 // pred_check
        %p246 = pneg %p187
      $region38: #{tpu_custom_call.1} parent=11 // pred_check_branch
        %248 = sbr.rel (%p246) target = $region40
      $region39: #{tpu_custom_call.1} parent=11 // pred_region
        _
      $region40: #{tpu_custom_call.1} parent=11 // pred_fallthru
        _
    $region12: #{tpu_custom_call.1} parent=5 // pred_fallthru
      _
    %p249 = scmp.lt.s32.totalorder %s14, 2
    // Predicated region
    $region41: #{tpu_custom_call.1} parent=5 // pred_check
      %p250 = pneg %p249
    $region42: #{tpu_custom_call.1} parent=5 // pred_check_branch
      %252 = sbr.rel (%p250) target = $region44
    $region43: #{tpu_custom_call.1} parent=5 // pred_region
      // Predicated region
      $region45: #{tpu_custom_call.1} parent=43 // pred_check
        %p253 = pneg %p34
      $region46: #{tpu_custom_call.1} parent=43 // pred_check_branch
        %255 = sbr.rel (%p253) target = $region48
      $region47: #{tpu_custom_call.1} parent=43 // pred_region
        %p256 = scmp.lt.s32.totalorder %s14, 1
        %s257 = scalar_select %p256, %s14, 1
        %s258 = smul.addr %s257, 32
        %s259 = smul.addr %s258, 8
        %s260 = scalar_lea.vmem %s0, %s259
      $region48: #{tpu_custom_call.1} parent=43 // pred_fallthru
        _
    $region44: #{tpu_custom_call.1} parent=5 // pred_fallthru
      _
    %p261 = scmp.le.s32.totalorder 1, %s14
    %p262 = scmp.lt.s32.totalorder %s14, 3
    %p263 = pnand %p261, %p262
    %p264 = pneg %p263
    // Predicated region
    $region49: #{tpu_custom_call.1} parent=5 // pred_check
      _
    $region50: #{tpu_custom_call.1} parent=5 // pred_check_branch
      %266 = sbr.rel (%p263) target = $region52
    $region51: #{tpu_custom_call.1} parent=5 // pred_region
      %s267 = ssub.s32 %s14, 1
      %p268 = scmp.lt.s32.totalorder %s19, 1
      %s269 = scalar_select %p268, %s19, 1
      %s270 = smul.addr %s269, 32
      %s271 = smul.addr %s270, 8
      %s272 = scalar_lea.vmem %s0, %s271
      %p273 = pneg %p40
      %p274 = pneg %p37
      %p275 = pneg %p61
      %p276 = pneg %p58
      %p277 = pneg %p82
      %p278 = pneg %p79
      %p279 = pneg %p103
      %p280 = pneg %p100
      %p281 = pneg %p124
      %p282 = pneg %p121
      %p283 = pneg %p145
      %p284 = pneg %p142
      %p285 = pneg %p166
      %p286 = pneg %p163
      %p287 = pneg %p187
      %p288 = pneg %p184
      %p289 = pneg %p213
      %p290 = pneg %p210
      %p291 = scmp.lt.s32.totalorder %s19, 1
      %s292 = scalar_select %p291, %s19, 1
      %s293 = smul.addr %s292, 32
      %s294 = smul.addr %s293, 8
      %s295 = scalar_lea.vmem %s8, %s294
      %p296 = scmp.lt.s32.totalorder %s19, 1
      %s297 = scalar_select %p296, %s19, 1
      %s298 = smul.addr %s297, 32
      %s299 = smul.addr %s298, 8
      %s300 = scalar_lea.vmem %s0, %s299
      %p301 = scmp.lt.s32.totalorder %s19, 1
      %s302 = scalar_select %p301, %s19, 1
      %s303 = smul.addr %s302, 32
      %s304 = smul.addr %s303, 8
      %s305 = scalar_lea.vmem %s8, %s304
      %v306 = vld [vmem:[%s300] sm:$0xff]
      %v307 = vld [vmem:[%s300 + $0x8] sm:$0xff]
      %v308 = vld [vmem:[%s300 + $0x10] sm:$0xff]
      %v309 = vld [vmem:[%s300 + $0x18] sm:$0xff]
      %v310 = vld [vmem:[%s300 + $0x20] sm:$0xff]
      %v311 = vld [vmem:[%s300 + $0x28] sm:$0xff]
      %v312 = vld [vmem:[%s300 + $0x30] sm:$0xff]
      %v313 = vld [vmem:[%s300 + $0x38] sm:$0xff]
      %v314 = vld [vmem:[%s300 + $0x40] sm:$0xff]
      %v315 = vld [vmem:[%s300 + $0x48] sm:$0xff]
      %v316 = vld [vmem:[%s300 + $0x50] sm:$0xff]
      %v317 = vld [vmem:[%s300 + $0x58] sm:$0xff]
      %v318 = vld [vmem:[%s300 + $0x60] sm:$0xff]
      %v319 = vld [vmem:[%s300 + $0x68] sm:$0xff]
      %v320 = vld [vmem:[%s300 + $0x70] sm:$0xff]
      %v321 = vld [vmem:[%s300 + $0x78] sm:$0xff]
      %v322 = vld [vmem:[%s300 + $0x80] sm:$0xff]
      %v323 = vld [vmem:[%s300 + $0x88] sm:$0xff]
      %v324 = vld [vmem:[%s300 + $0x90] sm:$0xff]
      %v325 = vld [vmem:[%s300 + $0x98] sm:$0xff]
      %v326 = vld [vmem:[%s300 + $0xa0] sm:$0xff]
      %v327 = vld [vmem:[%s300 + $0xa8] sm:$0xff]
      %v328 = vld [vmem:[%s300 + $0xb0] sm:$0xff]
      %v329 = vld [vmem:[%s300 + $0xb8] sm:$0xff]
      %v330 = vld [vmem:[%s300 + $0xc0] sm:$0xff]
      %v331 = vld [vmem:[%s300 + $0xc8] sm:$0xff]
      %v332 = vld [vmem:[%s300 + $0xd0] sm:$0xff]
      %v333 = vld [vmem:[%s300 + $0xd8] sm:$0xff]
      %v334 = vld [vmem:[%s300 + $0xe0] sm:$0xff]
      %v335 = vld [vmem:[%s300 + $0xe8] sm:$0xff]
      %v336 = vld [vmem:[%s300 + $0xf0] sm:$0xff]
      %v337 = vld [vmem:[%s300 + $0xf8] sm:$0xff]
      %v338 = vld [vmem:[%s1] sm:$0xf]
      %v339 = vld [vmem:[%s2] sm:$0x1]
      %v341 = vlaneseq
      %v342 = vshrl.u32 %v341, 7
      %v343 = vsub.s32 0, %v342
      %v344 = vrot.slane %v339, %v343
      %vm346 = vcmask 31744
      %v348 = vsel %vm346, %v306, 0
      %v351 = vsel %vm346, %v307, 0
      %v354 = vsel %vm346, %v308, 0
      %v357 = vsel %vm346, %v309, 0
      %v360 = vsel %vm346, %v310, 0
      %v363 = vsel %vm346, %v311, 0
      %v366 = vsel %vm346, %v312, 0
      %v369 = vsel %vm346, %v313, 0
      %v372 = vsel %vm346, %v314, 0
      %v375 = vsel %vm346, %v315, 0
      %v378 = vsel %vm346, %v316, 0
      %v381 = vsel %vm346, %v317, 0
      %v384 = vsel %vm346, %v318, 0
      %v387 = vsel %vm346, %v319, 0
      %v390 = vsel %vm346, %v320, 0
      %v393 = vsel %vm346, %v321, 0
      %v396 = vsel %vm346, %v322, 0
      %v399 = vsel %vm346, %v323, 0
      %v402 = vsel %vm346, %v324, 0
      %v405 = vsel %vm346, %v325, 0
      %v408 = vsel %vm346, %v326, 0
      %v411 = vsel %vm346, %v327, 0
      %v414 = vsel %vm346, %v328, 0
      %v417 = vsel %vm346, %v329, 0
      %v420 = vsel %vm346, %v330, 0
      %v423 = vsel %vm346, %v331, 0
      %v426 = vsel %vm346, %v332, 0
      %v429 = vsel %vm346, %v333, 0
      %v432 = vsel %vm346, %v334, 0
      %v435 = vsel %vm346, %v335, 0
      %v438 = vsel %vm346, %v336, 0
      %v441 = vsel %vm346, %v337, 0
      %vm443 = vcmask 1043456
      %v445 = vsel %vm443, %v338, 0
      %447 = vmatprep.subr.mxu0 0.0
      %448 = vmatpush1.msra.mxu0 %v445
      %449 = vmatprep.subr.mxu0 0.0
      %450 = vmatpush1.msra.mxu0 0.0
      %451 = vmatprep.subr.mxu0 0.0
      %452 = vmatpush1.msra.mxu0 0.0
      %453 = vmatprep.subr.mxu0 0.0
      %454 = vmatpush1.msra.mxu0 0.0
      %455 = vmatprep.subr.mxu0 0.0
      %456 = vmatpush1.msra.mxu0 0.0
      %457 = vmatprep.subr.mxu0 0.0
      %458 = vmatpush1.msra.mxu0 0.0
      %459 = vmatprep.subr.mxu0 0.0
      %460 = vmatpush1.msra.mxu0 0.0
      %461 = vmatprep.subr.mxu0 0.0
      %462 = vmatpush1.msra.mxu0 0.0
      %463 = vmatprep.subr.mxu0 0.0
      %464 = vmatpush1.msra.mxu0 0.0
      %465 = vmatprep.subr.mxu0 0.0
      %466 = vmatpush1.msra.mxu0 0.0
      %467 = vmatprep.subr.mxu0 0.0
      %468 = vmatpush1.msra.mxu0 0.0
      %469 = vmatprep.subr.mxu0 0.0
      %470 = vmatpush1.msra.mxu0 0.0
      %471 = vmatprep.subr.mxu0 0.0
      %472 = vmatpush1.msra.mxu0 0.0
      %473 = vmatprep.subr.mxu0 0.0
      %474 = vmatpush1.msra.mxu0 0.0
      %475 = vmatprep.subr.mxu0 0.0
      %476 = vmatpush1.msra.mxu0 0.0
      %477 = vmatprep.subr.mxu0 0.0
      %478 = vmatpush1.msra.mxu0 0.0
      %479 = vmatprep.subr.mxu0 0.0
      %480 = vmatpush1.msra.mxu0 0.0
      %481 = vmatprep.subr.mxu0 0.0
      %482 = vmatpush1.msra.mxu0 0.0
      %483 = vmatprep.subr.mxu0 0.0
      %484 = vmatpush1.msra.mxu0 0.0
      %485 = vmatprep.subr.mxu0 0.0
      %486 = vmatpush1.msra.mxu0 0.0
      %487 = vmatprep.subr.mxu0 0.0
      %488 = vmatpush1.msra.mxu0 0.0
      %489 = vmatprep.subr.mxu0 0.0
      %490 = vmatpush1.msra.mxu0 0.0
      %491 = vmatprep.subr.mxu0 0.0
      %492 = vmatpush1.msra.mxu0 0.0
      %493 = vmatprep.subr.mxu0 0.0
      %494 = vmatpush1.msra.mxu0 0.0
      %495 = vmatprep.subr.mxu0 0.0
      %496 = vmatpush1.msra.mxu0 0.0
      %497 = vmatprep.subr.mxu0 0.0
      %498 = vmatpush1.msra.mxu0 0.0
      %499 = vmatprep.subr.mxu0 0.0
      %500 = vmatpush1.msra.mxu0 0.0
      %501 = vmatprep.subr.mxu0 0.0
      %502 = vmatpush1.msra.mxu0 0.0
      %503 = vmatprep.subr.mxu0 0.0
      %504 = vmatpush1.msra.mxu0 0.0
      %505 = vmatprep.subr.mxu0 0.0
      %506 = vmatpush1.msra.mxu0 0.0
      %507 = vmatprep.subr.mxu0 0.0
      %508 = vmatpush1.msra.mxu0 0.0
      %509 = vmatprep.subr.mxu0 0.0
      %510 = vmatpush1.msra.mxu0 0.0
      %511 = vmatprep.mubr.f32.mxu0 0.0
      %512 = vmatmul.mubr.f32.gmra.mrb[0].mxu0 %v348
      %v513 = vpop.f32.mrb[0].mxu0
      %v514 = vadd.f32 %v344, %v513
      %v515 = vpop.f32.mrb[0].mxu0
      %516 = vmatprep.mubr.f32.mxu0 0.0
      %517 = vmatmul.mubr.f32.gmra.mrb[0].mxu0 %v351
      %v518 = vpop.f32.mrb[0].mxu0
      %v519 = vadd.f32 %v344, %v518
      %v520 = vpop.f32.mrb[0].mxu0
      %521 = vmatprep.mubr.f32.mxu0 0.0
      %522 = vmatmul.mubr.f32.gmra.mrb[0].mxu0 %v354
      %v523 = vpop.f32.mrb[0].mxu0
      %v524 = vadd.f32 %v344, %v523
      %v525 = vpop.f32.mrb[0].mxu0
      %526 = vmatprep.mubr.f32.mxu0 0.0
      %527 = vmatmul.mubr.f32.gmra.mrb[0].mxu0 %v357
      %v528 = vpop.f32.mrb[0].mxu0
      %v529 = vadd.f32 %v344, %v528
      %v530 = vpop.f32.mrb[0].mxu0
      %531 = vmatprep.mubr.f32.mxu0 0.0
      %532 = vmatmul.mubr.f32.gmra.mrb[0].mxu0 %v360
      %v533 = vpop.f32.mrb[0].mxu0
      %v534 = vadd.f32 %v344, %v533
      %v535 = vpop.f32.mrb[0].mxu0
      %536 = vmatprep.mubr.f32.mxu0 0.0
      %537 = vmatmul.mubr.f32.gmra.mrb[0].mxu0 %v363
      %v538 = vpop.f32.mrb[0].mxu0
      %v539 = vadd.f32 %v344, %v538
      %v540 = vpop.f32.mrb[0].mxu0
      %541 = vmatprep.mubr.f32.mxu0 0.0
      %542 = vmatmul.mubr.f32.gmra.mrb[0].mxu0 %v366
      %v543 = vpop.f32.mrb[0].mxu0
      %v544 = vadd.f32 %v344, %v543
      %v545 = vpop.f32.mrb[0].mxu0
      %546 = vmatprep.mubr.f32.mxu0 0.0
      %547 = vmatmul.mubr.f32.gmra.mrb[0].mxu0 %v369
      %v548 = vpop.f32.mrb[0].mxu0
      %v549 = vadd.f32 %v344, %v548
      %v550 = vpop.f32.mrb[0].mxu0
      %551 = vmatprep.mubr.f32.mxu0 0.0
      %552 = vmatmul.mubr.f32.gmra.mrb[0].mxu0 %v372
      %v553 = vpop.f32.mrb[0].mxu0
      %v554 = vadd.f32 %v344, %v553
      %v555 = vpop.f32.mrb[0].mxu0
      %556 = vmatprep.mubr.f32.mxu0 0.0
      %557 = vmatmul.mubr.f32.gmra.mrb[0].mxu0 %v375
      %v558 = vpop.f32.mrb[0].mxu0
      %v559 = vadd.f32 %v344, %v558
      %v560 = vpop.f32.mrb[0].mxu0
      %561 = vmatprep.mubr.f32.mxu0 0.0
      %562 = vmatmul.mubr.f32.gmra.mrb[0].mxu0 %v378
      %v563 = vpop.f32.mrb[0].mxu0
      %v564 = vadd.f32 %v344, %v563
      %v565 = vpop.f32.mrb[0].mxu0
      %566 = vmatprep.mubr.f32.mxu0 0.0
      %567 = vmatmul.mubr.f32.gmra.mrb[0].mxu0 %v381
      %v568 = vpop.f32.mrb[0].mxu0
      %v569 = vadd.f32 %v344, %v568
      %v570 = vpop.f32.mrb[0].mxu0
      %571 = vmatprep.mubr.f32.mxu0 0.0
      %572 = vmatmul.mubr.f32.gmra.mrb[0].mxu0 %v384
      %v573 = vpop.f32.mrb[0].mxu0
      %v574 = vadd.f32 %v344, %v573
      %v575 = vpop.f32.mrb[0].mxu0
      %576 = vmatprep.mubr.f32.mxu0 0.0
      %577 = vmatmul.mubr.f32.gmra.mrb[0].mxu0 %v387
      %v578 = vpop.f32.mrb[0].mxu0
      %v579 = vadd.f32 %v344, %v578
      %v580 = vpop.f32.mrb[0].mxu0
      %581 = vmatprep.mubr.f32.mxu0 0.0
      %582 = vmatmul.mubr.f32.gmra.mrb[0].mxu0 %v390
      %v583 = vpop.f32.mrb[0].mxu0
      %v584 = vadd.f32 %v344, %v583
      %v585 = vpop.f32.mrb[0].mxu0
      %586 = vmatprep.mubr.f32.mxu0 0.0
      %587 = vmatmul.mubr.f32.gmra.mrb[0].mxu0 %v393
      %v588 = vpop.f32.mrb[0].mxu0
      %v589 = vadd.f32 %v344, %v588
      %v590 = vpop.f32.mrb[0].mxu0
      %591 = vmatprep.mubr.f32.mxu0 0.0
      %592 = vmatmul.mubr.f32.gmra.mrb[0].mxu0 %v396
      %v593 = vpop.f32.mrb[0].mxu0
      %v594 = vadd.f32 %v344, %v593
      %v595 = vpop.f32.mrb[0].mxu0
      %596 = vmatprep.mubr.f32.mxu0 0.0
      %597 = vmatmul.mubr.f32.gmra.mrb[0].mxu0 %v399
      %v598 = vpop.f32.mrb[0].mxu0
      %v599 = vadd.f32 %v344, %v598
      %v600 = vpop.f32.mrb[0].mxu0
      %601 = vmatprep.mubr.f32.mxu0 0.0
      %602 = vmatmul.mubr.f32.gmra.mrb[0].mxu0 %v402
      %v603 = vpop.f32.mrb[0].mxu0
      %v604 = vadd.f32 %v344, %v603
      %v605 = vpop.f32.mrb[0].mxu0
      %606 = vmatprep.mubr.f32.mxu0 0.0
      %607 = vmatmul.mubr.f32.gmra.mrb[0].mxu0 %v405
      %v608 = vpop.f32.mrb[0].mxu0
      %v609 = vadd.f32 %v344, %v608
      %v610 = vpop.f32.mrb[0].mxu0
      %611 = vmatprep.mubr.f32.mxu0 0.0
      %612 = vmatmul.mubr.f32.gmra.mrb[0].mxu0 %v408
      %v613 = vpop.f32.mrb[0].mxu0
      %v614 = vadd.f32 %v344, %v613
      %v615 = vpop.f32.mrb[0].mxu0
      %616 = vmatprep.mubr.f32.mxu0 0.0
      %617 = vmatmul.mubr.f32.gmra.mrb[0].mxu0 %v411
      %v618 = vpop.f32.mrb[0].mxu0
      %v619 = vadd.f32 %v344, %v618
      %v620 = vpop.f32.mrb[0].mxu0
      %621 = vmatprep.mubr.f32.mxu0 0.0
      %622 = vmatmul.mubr.f32.gmra.mrb[0].mxu0 %v414
      %v623 = vpop.f32.mrb[0].mxu0
      %v624 = vadd.f32 %v344, %v623
      %v625 = vpop.f32.mrb[0].mxu0
      %626 = vmatprep.mubr.f32.mxu0 0.0
      %627 = vmatmul.mubr.f32.gmra.mrb[0].mxu0 %v417
      %v628 = vpop.f32.mrb[0].mxu0
      %v629 = vadd.f32 %v344, %v628
      %v630 = vpop.f32.mrb[0].mxu0
      %631 = vmatprep.mubr.f32.mxu0 0.0
      %632 = vmatmul.mubr.f32.gmra.mrb[0].mxu0 %v420
      %v633 = vpop.f32.mrb[0].mxu0
      %v634 = vadd.f32 %v344, %v633
      %v635 = vpop.f32.mrb[0].mxu0
      %636 = vmatprep.mubr.f32.mxu0 0.0
      %637 = vmatmul.mubr.f32.gmra.mrb[0].mxu0 %v423
      %v638 = vpop.f32.mrb[0].mxu0
      %v639 = vadd.f32 %v344, %v638
      %v640 = vpop.f32.mrb[0].mxu0
      %641 = vmatprep.mubr.f32.mxu0 0.0
      %642 = vmatmul.mubr.f32.gmra.mrb[0].mxu0 %v426
      %v643 = vpop.f32.mrb[0].mxu0
      %v644 = vadd.f32 %v344, %v643
      %v645 = vpop.f32.mrb[0].mxu0
      %646 = vmatprep.mubr.f32.mxu0 0.0
      %647 = vmatmul.mubr.f32.gmra.mrb[0].mxu0 %v429
      %v648 = vpop.f32.mrb[0].mxu0
      %v649 = vadd.f32 %v344, %v648
      %v650 = vpop.f32.mrb[0].mxu0
      %651 = vmatprep.mubr.f32.mxu0 0.0
      %652 = vmatmul.mubr.f32.gmra.mrb[0].mxu0 %v432
      %v653 = vpop.f32.mrb[0].mxu0
      %v654 = vadd.f32 %v344, %v653
      %v655 = vpop.f32.mrb[0].mxu0
      %656 = vmatprep.mubr.f32.mxu0 0.0
      %657 = vmatmul.mubr.f32.gmra.mrb[0].mxu0 %v435
      %v658 = vpop.f32.mrb[0].mxu0
      %v659 = vadd.f32 %v344, %v658
      %v660 = vpop.f32.mrb[0].mxu0
      %661 = vmatprep.mubr.f32.mxu0 0.0
      %662 = vmatmul.mubr.f32.gmra.mrb[0].mxu0 %v438
      %v663 = vpop.f32.mrb[0].mxu0
      %v664 = vadd.f32 %v344, %v663
      %v665 = vpop.f32.mrb[0].mxu0
      %666 = vmatprep.mubr.f32.mxu0 0.0
      %667 = vmatmul.mubr.f32.gmra.mrb[0].mxu0 %v441
      %v668 = vpop.f32.mrb[0].mxu0
      %v669 = vadd.f32 %v344, %v668
      %v670 = vpop.f32.mrb[0].mxu0
      %671 = vdwg.mxu0
      %v672 = vxor.u32 %v514, 2147483648
      %v673 = vxor.u32 %v519, 2147483648
      %v674 = vxor.u32 %v524, 2147483648
      %v675 = vxor.u32 %v529, 2147483648
      %v676 = vxor.u32 %v534, 2147483648
      %v677 = vxor.u32 %v539, 2147483648
      %v678 = vxor.u32 %v544, 2147483648
      %v679 = vxor.u32 %v549, 2147483648
      %v680 = vxor.u32 %v554, 2147483648
      %v681 = vxor.u32 %v559, 2147483648
      %v682 = vxor.u32 %v564, 2147483648
      %v683 = vxor.u32 %v569, 2147483648
      %v684 = vxor.u32 %v574, 2147483648
      %v685 = vxor.u32 %v579, 2147483648
      %v686 = vxor.u32 %v584, 2147483648
      %v687 = vxor.u32 %v589, 2147483648
      %v688 = vxor.u32 %v594, 2147483648
      %v689 = vxor.u32 %v599, 2147483648
      %v690 = vxor.u32 %v604, 2147483648
      %v691 = vxor.u32 %v609, 2147483648
      %v692 = vxor.u32 %v614, 2147483648
      %v693 = vxor.u32 %v619, 2147483648
      %v694 = vxor.u32 %v624, 2147483648
      %v695 = vxor.u32 %v629, 2147483648
      %v696 = vxor.u32 %v634, 2147483648
      %v697 = vxor.u32 %v639, 2147483648
      %v698 = vxor.u32 %v644, 2147483648
      %v699 = vxor.u32 %v649, 2147483648
      %v700 = vxor.u32 %v654, 2147483648
      %v701 = vxor.u32 %v659, 2147483648
      %v702 = vxor.u32 %v664, 2147483648
      %v703 = vxor.u32 %v669, 2147483648
      %v704 = vmul.f32 %v672, 1.442695
      %v705 = vpow.pop %v704
      %v706 = vmul.f32 %v673, 1.442695
      %v707 = vpow.pop %v706
      %v708 = vmul.f32 %v674, 1.442695
      %v709 = vpow.pop %v708
      %v710 = vmul.f32 %v675, 1.442695
      %v711 = vpow.pop %v710
      %v712 = vmul.f32 %v676, 1.442695
      %v713 = vpow.pop %v712
      %v714 = vmul.f32 %v677, 1.442695
      %v715 = vpow.pop %v714
      %v716 = vmul.f32 %v678, 1.442695
      %v717 = vpow.pop %v716
      %v718 = vmul.f32 %v679, 1.442695
      %v719 = vpow.pop %v718
      %v720 = vmul.f32 %v680, 1.442695
      %v721 = vpow.pop %v720
      %v722 = vmul.f32 %v681, 1.442695
      %v723 = vpow.pop %v722
      %v724 = vmul.f32 %v682, 1.442695
      %v725 = vpow.pop %v724
      %v726 = vmul.f32 %v683, 1.442695
      %v727 = vpow.pop %v726
      %v728 = vmul.f32 %v684, 1.442695
      %v729 = vpow.pop %v728
      %v730 = vmul.f32 %v685, 1.442695
      %v731 = vpow.pop %v730
      %v732 = vmul.f32 %v686, 1.442695
      %v733 = vpow.pop %v732
      %v734 = vmul.f32 %v687, 1.442695
      %v735 = vpow.pop %v734
      %v736 = vmul.f32 %v688, 1.442695
      %v737 = vpow.pop %v736
      %v738 = vmul.f32 %v689, 1.442695
      %v739 = vpow.pop %v738
      %v740 = vmul.f32 %v690, 1.442695
      %v741 = vpow.pop %v740
      %v742 = vmul.f32 %v691, 1.442695
      %v743 = vpow.pop %v742
      %v744 = vmul.f32 %v692, 1.442695
      %v745 = vpow.pop %v744
      %v746 = vmul.f32 %v693, 1.442695
      %v747 = vpow.pop %v746
      %v748 = vmul.f32 %v694, 1.442695
      %v749 = vpow.pop %v748
      %v750 = vmul.f32 %v695, 1.442695
      %v751 = vpow.pop %v750
      %v752 = vmul.f32 %v696, 1.442695
      %v753 = vpow.pop %v752
      %v754 = vmul.f32 %v697, 1.442695
      %v755 = vpow.pop %v754
      %v756 = vmul.f32 %v698, 1.442695
      %v757 = vpow.pop %v756
      %v758 = vmul.f32 %v699, 1.442695
      %v759 = vpow.pop %v758
      %v760 = vmul.f32 %v700, 1.442695
      %v761 = vpow.pop %v760
      %v762 = vmul.f32 %v701, 1.442695
      %v763 = vpow.pop %v762
      %v764 = vmul.f32 %v702, 1.442695
      %v765 = vpow.pop %v764
      %v766 = vmul.f32 %v703, 1.442695
      %v767 = vpow.pop %v766
      %v768 = vadd.f32 %v705, 1.0
      %v769 = vadd.f32 %v707, 1.0
      %v770 = vadd.f32 %v709, 1.0
      %v771 = vadd.f32 %v711, 1.0
      %v772 = vadd.f32 %v713, 1.0
      %v773 = vadd.f32 %v715, 1.0
      %v774 = vadd.f32 %v717, 1.0
      %v775 = vadd.f32 %v719, 1.0
      %v776 = vadd.f32 %v721, 1.0
      %v777 = vadd.f32 %v723, 1.0
      %v778 = vadd.f32 %v725, 1.0
      %v779 = vadd.f32 %v727, 1.0
      %v780 = vadd.f32 %v729, 1.0
      %v781 = vadd.f32 %v731, 1.0
      %v782 = vadd.f32 %v733, 1.0
      %v783 = vadd.f32 %v735, 1.0
      %v784 = vadd.f32 %v737, 1.0
      %v785 = vadd.f32 %v739, 1.0
      %v786 = vadd.f32 %v741, 1.0
      %v787 = vadd.f32 %v743, 1.0
      %v788 = vadd.f32 %v745, 1.0
      %v789 = vadd.f32 %v747, 1.0
      %v790 = vadd.f32 %v749, 1.0
      %v791 = vadd.f32 %v751, 1.0
      %v792 = vadd.f32 %v753, 1.0
      %v793 = vadd.f32 %v755, 1.0
      %v794 = vadd.f32 %v757, 1.0
      %v795 = vadd.f32 %v759, 1.0
      %v796 = vadd.f32 %v761, 1.0
      %v797 = vadd.f32 %v763, 1.0
      %v798 = vadd.f32 %v765, 1.0
      %v799 = vadd.f32 %v767, 1.0
      %v800 = vrcp.pop %v768
      %v801 = vmul.f32 1.0, %v800
      %v802 = vrcp.pop %v769
      %v803 = vmul.f32 1.0, %v802
      %v804 = vrcp.pop %v770
      %v805 = vmul.f32 1.0, %v804
      %v806 = vrcp.pop %v771
      %v807 = vmul.f32 1.0, %v806
      %v808 = vrcp.pop %v772
      %v809 = vmul.f32 1.0, %v808
      %v810 = vrcp.pop %v773
      %v811 = vmul.f32 1.0, %v810
      %v812 = vrcp.pop %v774
      %v813 = vmul.f32 1.0, %v812
      %v814 = vrcp.pop %v775
      %v815 = vmul.f32 1.0, %v814
      %v816 = vrcp.pop %v776
      %v817 = vmul.f32 1.0, %v816
      %v818 = vrcp.pop %v777
      %v819 = vmul.f32 1.0, %v818
      %v820 = vrcp.pop %v778
      %v821 = vmul.f32 1.0, %v820
      %v822 = vrcp.pop %v779
      %v823 = vmul.f32 1.0, %v822
      %v824 = vrcp.pop %v780
      %v825 = vmul.f32 1.0, %v824
      %v826 = vrcp.pop %v781
      %v827 = vmul.f32 1.0, %v826
      %v828 = vrcp.pop %v782
      %v829 = vmul.f32 1.0, %v828
      %v830 = vrcp.pop %v783
      %v831 = vmul.f32 1.0, %v830
      %v832 = vrcp.pop %v784
      %v833 = vmul.f32 1.0, %v832
      %v834 = vrcp.pop %v785
      %v835 = vmul.f32 1.0, %v834
      %v836 = vrcp.pop %v786
      %v837 = vmul.f32 1.0, %v836
      %v838 = vrcp.pop %v787
      %v839 = vmul.f32 1.0, %v838
      %v840 = vrcp.pop %v788
      %v841 = vmul.f32 1.0, %v840
      %v842 = vrcp.pop %v789
      %v843 = vmul.f32 1.0, %v842
      %v844 = vrcp.pop %v790
      %v845 = vmul.f32 1.0, %v844
      %v846 = vrcp.pop %v791
      %v847 = vmul.f32 1.0, %v846
      %v848 = vrcp.pop %v792
      %v849 = vmul.f32 1.0, %v848
      %v850 = vrcp.pop %v793
      %v851 = vmul.f32 1.0, %v850
      %v852 = vrcp.pop %v794
      %v853 = vmul.f32 1.0, %v852
      %v854 = vrcp.pop %v795
      %v855 = vmul.f32 1.0, %v854
      %v856 = vrcp.pop %v796
      %v857 = vmul.f32 1.0, %v856
      %v858 = vrcp.pop %v797
      %v859 = vmul.f32 1.0, %v858
      %v860 = vrcp.pop %v798
      %v861 = vmul.f32 1.0, %v860
      %v862 = vrcp.pop %v799
      %v863 = vmul.f32 1.0, %v862
      %v864 = vmul.f32 %v514, %v801
      %v865 = vmul.f32 %v519, %v803
      %v866 = vmul.f32 %v524, %v805
      %v867 = vmul.f32 %v529, %v807
      %v868 = vmul.f32 %v534, %v809
      %v869 = vmul.f32 %v539, %v811
      %v870 = vmul.f32 %v544, %v813
      %v871 = vmul.f32 %v549, %v815
      %v872 = vmul.f32 %v554, %v817
      %v873 = vmul.f32 %v559, %v819
      %v874 = vmul.f32 %v564, %v821
      %v875 = vmul.f32 %v569, %v823
      %v876 = vmul.f32 %v574, %v825
      %v877 = vmul.f32 %v579, %v827
      %v878 = vmul.f32 %v584, %v829
      %v879 = vmul.f32 %v589, %v831
      %v880 = vmul.f32 %v594, %v833
      %v881 = vmul.f32 %v599, %v835
      %v882 = vmul.f32 %v604, %v837
      %v883 = vmul.f32 %v609, %v839
      %v884 = vmul.f32 %v614, %v841
      %v885 = vmul.f32 %v619, %v843
      %v886 = vmul.f32 %v624, %v845
      %v887 = vmul.f32 %v629, %v847
      %v888 = vmul.f32 %v634, %v849
      %v889 = vmul.f32 %v639, %v851
      %v890 = vmul.f32 %v644, %v853
      %v891 = vmul.f32 %v649, %v855
      %v892 = vmul.f32 %v654, %v857
      %v893 = vmul.f32 %v659, %v859
      %v894 = vmul.f32 %v664, %v861
      %v895 = vmul.f32 %v669, %v863
      %vm896 = vcmask 15360
      %897 = vst.msk [vmem:[#allocation2] sm:$0xff] %vm896, -inf
      %898 = vst.msk [vmem:[#allocation2 + $0x8] sm:$0xff] %vm896, -inf
      %899 = vst.msk [vmem:[#allocation2 + $0x10] sm:$0xff] %vm896, -inf
      %vm900 = vcmask 11264
      %901 = vst.msk [vmem:[#allocation2 + $0x18] sm:$0xf] %vm900, -inf
      %902 = vst.msk [vmem:[#allocation2 + $0x20] sm:$0xff] %vm896, -inf
      %903 = vst.msk [vmem:[#allocation2 + $0x28] sm:$0xff] %vm896, -inf
      %904 = vst.msk [vmem:[#allocation2 + $0x30] sm:$0xff] %vm896, -inf
      %905 = vst.msk [vmem:[#allocation2 + $0x38] sm:$0xf] %vm900, -inf
      %906 = vst.msk [vmem:[#allocation2 + $0x40] sm:$0xff] %vm896, -inf
      %907 = vst.msk [vmem:[#allocation2 + $0x48] sm:$0xff] %vm896, -inf
      %908 = vst.msk [vmem:[#allocation2 + $0x50] sm:$0xff] %vm896, -inf
      %909 = vst.msk [vmem:[#allocation2 + $0x58] sm:$0xf] %vm900, -inf
      %910 = vst.msk [vmem:[#allocation2 + $0x60] sm:$0xff] %vm896, -inf
      %911 = vst.msk [vmem:[#allocation2 + $0x68] sm:$0xff] %vm896, -inf
      %912 = vst.msk [vmem:[#allocation2 + $0x70] sm:$0xff] %vm896, -inf
      %913 = vst.msk [vmem:[#allocation2 + $0x78] sm:$0xf] %vm900, -inf
      %914 = vst.msk [vmem:[#allocation2 + $0x80] sm:$0xff] %vm896, -inf
      %915 = vst.msk [vmem:[#allocation2 + $0x88] sm:$0xff] %vm896, -inf
      %916 = vst.msk [vmem:[#allocation2 + $0x90] sm:$0xff] %vm896, -inf
      %917 = vst.msk [vmem:[#allocation2 + $0x98] sm:$0xf] %vm900, -inf
      %918 = vst.msk [vmem:[#allocation2 + $0xa0] sm:$0xff] %vm896, -inf
      %919 = vst.msk [vmem:[#allocation2 + $0xa8] sm:$0xff] %vm896, -inf
      %920 = vst.msk [vmem:[#allocation2 + $0xb0] sm:$0xff] %vm896, -inf
      %921 = vst.msk [vmem:[#allocation2 + $0xb8] sm:$0xf] %vm900, -inf
      %922 = vst.msk [vmem:[#allocation2 + $0xc0] sm:$0xff] %vm896, -inf
      %923 = vst.msk [vmem:[#allocation2 + $0xc8] sm:$0xff] %vm896, -inf
      %924 = vst.msk [vmem:[#allocation2 + $0xd0] sm:$0xff] %vm896, -inf
      %925 = vst.msk [vmem:[#allocation2 + $0xd8] sm:$0xf] %vm900, -inf
      %926 = vst.msk [vmem:[#allocation2 + $0xe0] sm:$0xff] %vm896, -inf
      %927 = vst.msk [vmem:[#allocation2 + $0xe8] sm:$0xff] %vm896, -inf
      %928 = vst.msk [vmem:[#allocation2 + $0xf0] sm:$0xff] %vm896, -inf
      %929 = vst.msk [vmem:[#allocation2 + $0xf8] sm:$0xf] %vm900, -inf
      %930 = vst.msk [vmem:[#allocation2 + $0x100] sm:$0xff] %vm896, -inf
      %931 = vst.msk [vmem:[#allocation2 + $0x108] sm:$0xff] %vm896, -inf
      %932 = vst.msk [vmem:[#allocation2 + $0x110] sm:$0xff] %vm896, -inf
      %933 = vst.msk [vmem:[#allocation2 + $0x118] sm:$0xf] %vm900, -inf
      %934 = vst.msk [vmem:[#allocation2 + $0x120] sm:$0xff] %vm896, -inf
      %935 = vst.msk [vmem:[#allocation2 + $0x128] sm:$0xff] %vm896, -inf
      %936 = vst.msk [vmem:[#allocation2 + $0x130] sm:$0xff] %vm896, -inf
      %937 = vst.msk [vmem:[#allocation2 + $0x138] sm:$0xf] %vm900, -inf
      %938 = vst.msk [vmem:[#allocation2 + $0x140] sm:$0xff] %vm896, -inf
      %939 = vst.msk [vmem:[#allocation2 + $0x148] sm:$0xff] %vm896, -inf
      %940 = vst.msk [vmem:[#allocation2 + $0x150] sm:$0xff] %vm896, -inf
      %941 = vst.msk [vmem:[#allocation2 + $0x158] sm:$0xf] %vm900, -inf
      %942 = vst.msk [vmem:[#allocation2 + $0x160] sm:$0xff] %vm896, -inf
      %943 = vst.msk [vmem:[#allocation2 + $0x168] sm:$0xff] %vm896, -inf
      %944 = vst.msk [vmem:[#allocation2 + $0x170] sm:$0xff] %vm896, -inf
      %945 = vst.msk [vmem:[#allocation2 + $0x178] sm:$0xf] %vm900, -inf
      %946 = vst.msk [vmem:[#allocation2 + $0x180] sm:$0xff] %vm896, -inf
      %947 = vst.msk [vmem:[#allocation2 + $0x188] sm:$0xff] %vm896, -inf
      %948 = vst.msk [vmem:[#allocation2 + $0x190] sm:$0xff] %vm896, -inf
      %949 = vst.msk [vmem:[#allocation2 + $0x198] sm:$0xf] %vm900, -inf
      %950 = vst.msk [vmem:[#allocation2 + $0x1a0] sm:$0xff] %vm896, -inf
      %951 = vst.msk [vmem:[#allocation2 + $0x1a8] sm:$0xff] %vm896, -inf
      %952 = vst.msk [vmem:[#allocation2 + $0x1b0] sm:$0xff] %vm896, -inf
      %953 = vst.msk [vmem:[#allocation2 + $0x1b8] sm:$0xf] %vm900, -inf
      %954 = vst.msk [vmem:[#allocation2 + $0x1c0] sm:$0xff] %vm896, -inf
      %955 = vst.msk [vmem:[#allocation2 + $0x1c8] sm:$0xff] %vm896, -inf
      %956 = vst.msk [vmem:[#allocation2 + $0x1d0] sm:$0xff] %vm896, -inf
      %957 = vst.msk [vmem:[#allocation2 + $0x1d8] sm:$0xf] %vm900, -inf
      %958 = vst.msk [vmem:[#allocation2 + $0x1e0] sm:$0xff] %vm896, -inf
      %959 = vst.msk [vmem:[#allocation2 + $0x1e8] sm:$0xff] %vm896, -inf
      %960 = vst.msk [vmem:[#allocation2 + $0x1f0] sm:$0xff] %vm896, -inf
      %961 = vst.msk [vmem:[#allocation2 + $0x1f8] sm:$0xf] %vm900, -inf
      %962 = vst.msk [vmem:[#allocation2 + $0x200] sm:$0xff] %vm896, -inf
      %963 = vst.msk [vmem:[#allocation2 + $0x208] sm:$0xff] %vm896, -inf
      %964 = vst.msk [vmem:[#allocation2 + $0x210] sm:$0xff] %vm896, -inf
      %965 = vst.msk [vmem:[#allocation2 + $0x218] sm:$0xf] %vm900, -inf
      %966 = vst.msk [vmem:[#allocation2 + $0x220] sm:$0xff] %vm896, -inf
      %967 = vst.msk [vmem:[#allocation2 + $0x228] sm:$0xff] %vm896, -inf
      %968 = vst.msk [vmem:[#allocation2 + $0x230] sm:$0xff] %vm896, -inf
      %969 = vst.msk [vmem:[#allocation2 + $0x238] sm:$0xf] %vm900, -inf
      %970 = vst.msk [vmem:[#allocation2 + $0x240] sm:$0xff] %vm896, -inf
      %971 = vst.msk [vmem:[#allocation2 + $0x248] sm:$0xff] %vm896, -inf
      %972 = vst.msk [vmem:[#allocation2 + $0x250] sm:$0xff] %vm896, -inf
      %973 = vst.msk [vmem:[#allocation2 + $0x258] sm:$0xf] %vm900, -inf
      %974 = vst.msk [vmem:[#allocation2 + $0x260] sm:$0xff] %vm896, -inf
      %975 = vst.msk [vmem:[#allocation2 + $0x268] sm:$0xff] %vm896, -inf
      %976 = vst.msk [vmem:[#allocation2 + $0x270] sm:$0xff] %vm896, -inf
      %977 = vst.msk [vmem:[#allocation2 + $0x278] sm:$0xf] %vm900, -inf
      %978 = vst.msk [vmem:[#allocation2 + $0x280] sm:$0xff] %vm896, -inf
      %979 = vst.msk [vmem:[#allocation2 + $0x288] sm:$0xff] %vm896, -inf
      %980 = vst.msk [vmem:[#allocation2 + $0x290] sm:$0xff] %vm896, -inf
      %981 = vst.msk [vmem:[#allocation2 + $0x298] sm:$0xf] %vm900, -inf
      %982 = vst.msk [vmem:[#allocation2 + $0x2a0] sm:$0xff] %vm896, -inf
      %983 = vst.msk [vmem:[#allocation2 + $0x2a8] sm:$0xff] %vm896, -inf
      %984 = vst.msk [vmem:[#allocation2 + $0x2b0] sm:$0xff] %vm896, -inf
      %985 = vst.msk [vmem:[#allocation2 + $0x2b8] sm:$0xf] %vm900, -inf
      %986 = vst.msk [vmem:[#allocation2 + $0x2c0] sm:$0xff] %vm896, -inf
      %987 = vst.msk [vmem:[#allocation2 + $0x2c8] sm:$0xff] %vm896, -inf
      %988 = vst.msk [vmem:[#allocation2 + $0x2d0] sm:$0xff] %vm896, -inf
      %989 = vst.msk [vmem:[#allocation2 + $0x2d8] sm:$0xf] %vm900, -inf
      %990 = vst.msk [vmem:[#allocation2 + $0x2e0] sm:$0xff] %vm896, -inf
      %991 = vst.msk [vmem:[#allocation2 + $0x2e8] sm:$0xff] %vm896, -inf
      %992 = vst.msk [vmem:[#allocation2 + $0x2f0] sm:$0xff] %vm896, -inf
      %993 = vst.msk [vmem:[#allocation2 + $0x2f8] sm:$0xf] %vm900, -inf
      %994 = vst.msk [vmem:[#allocation2 + $0x300] sm:$0xff] %vm896, -inf
      %995 = vst.msk [vmem:[#allocation2 + $0x308] sm:$0xff] %vm896, -inf
      %996 = vst.msk [vmem:[#allocation2 + $0x310] sm:$0xff] %vm896, -inf
      %997 = vst.msk [vmem:[#allocation2 + $0x318] sm:$0xf] %vm900, -inf
      %998 = vst.msk [vmem:[#allocation2 + $0x320] sm:$0xff] %vm896, -inf
      %999 = vst.msk [vmem:[#allocation2 + $0x328] sm:$0xff] %vm896, -inf
      %1000 = vst.msk [vmem:[#allocation2 + $0x330] sm:$0xff] %vm896, -inf
      %1001 = vst.msk [vmem:[#allocation2 + $0x338] sm:$0xf] %vm900, -inf
      %1002 = vst.msk [vmem:[#allocation2 + $0x340] sm:$0xff] %vm896, -inf
      %1003 = vst.msk [vmem:[#allocation2 + $0x348] sm:$0xff] %vm896, -inf
      %1004 = vst.msk [vmem:[#allocation2 + $0x350] sm:$0xff] %vm896, -inf
      %1005 = vst.msk [vmem:[#allocation2 + $0x358] sm:$0xf] %vm900, -inf
      %1006 = vst.msk [vmem:[#allocation2 + $0x360] sm:$0xff] %vm896, -inf
      %1007 = vst.msk [vmem:[#allocation2 + $0x368] sm:$0xff] %vm896, -inf
      %1008 = vst.msk [vmem:[#allocation2 + $0x370] sm:$0xff] %vm896, -inf
      %1009 = vst.msk [vmem:[#allocation2 + $0x378] sm:$0xf] %vm900, -inf
      %s1010 = scalar_lea.vmem [#allocation2], 192
      %1011 = vst.msk [vmem:[%s1010 + $0x6] sm:$0xff] %vm896, %v864
      %1012 = vst.msk [vmem:[%s1010 + $0xe] sm:$0xff] %vm896, %v865
      %1013 = vst.msk [vmem:[%s1010 + $0x26] sm:$0xff] %vm896, %v866
      %1014 = vst.msk [vmem:[%s1010 + $0x2e] sm:$0xff] %vm896, %v867
      %1015 = vst.msk [vmem:[%s1010 + $0x46] sm:$0xff] %vm896, %v868
      %1016 = vst.msk [vmem:[%s1010 + $0x4e] sm:$0xff] %vm896, %v869
      %1017 = vst.msk [vmem:[%s1010 + $0x66] sm:$0xff] %vm896, %v870
      %1018 = vst.msk [vmem:[%s1010 + $0x6e] sm:$0xff] %vm896, %v871
      %1019 = vst.msk [vmem:[%s1010 + $0x86] sm:$0xff] %vm896, %v872
      %1020 = vst.msk [vmem:[%s1010 + $0x8e] sm:$0xff] %vm896, %v873
      %1021 = vst.msk [vmem:[%s1010 + $0xa6] sm:$0xff] %vm896, %v874
      %1022 = vst.msk [vmem:[%s1010 + $0xae] sm:$0xff] %vm896, %v875
      %1023 = vst.msk [vmem:[%s1010 + $0xc6] sm:$0xff] %vm896, %v876
      %1024 = vst.msk [vmem:[%s1010 + $0xce] sm:$0xff] %vm896, %v877
      %1025 = vst.msk [vmem:[%s1010 + $0xe6] sm:$0xff] %vm896, %v878
      %1026 = vst.msk [vmem:[%s1010 + $0xee] sm:$0xff] %vm896, %v879
      %1027 = vst.msk [vmem:[%s1010 + $0x106] sm:$0xff] %vm896, %v880
      %1028 = vst.msk [vmem:[%s1010 + $0x10e] sm:$0xff] %vm896, %v881
      %1029 = vst.msk [vmem:[%s1010 + $0x126] sm:$0xff] %vm896, %v882
      %1030 = vst.msk [vmem:[%s1010 + $0x12e] sm:$0xff] %vm896, %v883
      %1031 = vst.msk [vmem:[%s1010 + $0x146] sm:$0xff] %vm896, %v884
      %1032 = vst.msk [vmem:[%s1010 + $0x14e] sm:$0xff] %vm896, %v885
      %1033 = vst.msk [vmem:[%s1010 + $0x166] sm:$0xff] %vm896, %v886
      %1034 = vst.msk [vmem:[%s1010 + $0x16e] sm:$0xff] %vm896, %v887
      %1035 = vst.msk [vmem:[%s1010 + $0x186] sm:$0xff] %vm896, %v888
      %1036 = vst.msk [vmem:[%s1010 + $0x18e] sm:$0xff] %vm896, %v889
      %1037 = vst.msk [vmem:[%s1010 + $0x1a6] sm:$0xff] %vm896, %v890
      %1038 = vst.msk [vmem:[%s1010 + $0x1ae] sm:$0xff] %vm896, %v891
      %1039 = vst.msk [vmem:[%s1010 + $0x1c6] sm:$0xff] %vm896, %v892
      %1040 = vst.msk [vmem:[%s1010 + $0x1ce] sm:$0xff] %vm896, %v893
      %1041 = vst.msk [vmem:[%s1010 + $0x1e6] sm:$0xff] %vm896, %v894
      %1042 = vst.msk [vmem:[%s1010 + $0x1ee] sm:$0xff] %vm896, %v895
      %v1043 = vld [vmem:[%s3] sm:$0x3]
      %v1044 = vld [vmem:[%s7] sm:$0x1]
      %v1046 = vlaneseq
      %v1047 = vshrl.u32 %v1046, 7
      %v1048 = vsub.s32 0, %v1047
      %v1049 = vrot.slane %v1044, %v1048
      %v1052 = vsel %vm896, %v864, 0
      %v1055 = vsel %vm896, %v865, 0
      %v1058 = vsel %vm896, %v866, 0
      %v1061 = vsel %vm896, %v867, 0
      %v1064 = vsel %vm896, %v868, 0
      %v1067 = vsel %vm896, %v869, 0
      %v1070 = vsel %vm896, %v870, 0
      %v1073 = vsel %vm896, %v871, 0
      %v1076 = vsel %vm896, %v872, 0
      %v1079 = vsel %vm896, %v873, 0
      %v1082 = vsel %vm896, %v874, 0
      %v1085 = vsel %vm896, %v875, 0
      %v1088 = vsel %vm896, %v876, 0
      %v1091 = vsel %vm896, %v877, 0
      %v1094 = vsel %vm896, %v878, 0
      %v1097 = vsel %vm896, %v879, 0
      %v1100 = vsel %vm896, %v880, 0
      %v1103 = vsel %vm896, %v881, 0
      %v1106 = vsel %vm896, %v882, 0
      %v1109 = vsel %vm896, %v883, 0
      %v1112 = vsel %vm896, %v884, 0
      %v1115 = vsel %vm896, %v885, 0
      %v1118 = vsel %vm896, %v886, 0
      %v1121 = vsel %vm896, %v887, 0
      %v1124 = vsel %vm896, %v888, 0
      %v1127 = vsel %vm896, %v889, 0
      %v1130 = vsel %vm896, %v890, 0
      %v1133 = vsel %vm896, %v891, 0
      %v1136 = vsel %vm896, %v892, 0
      %v1139 = vsel %vm896, %v893, 0
      %v1142 = vsel %vm896, %v894, 0
      %v1145 = vsel %vm896, %v895, 0
      %vm1147 = vcmask 1041408
      %v1149 = vsel %vm1147, %v1043, 0
      %1151 = vmatprep.subr.mxu0 0.0
      %1152 = vmatpush1.msra.mxu0 %v1149
      %1153 = vmatprep.subr.mxu0 0.0
      %1154 = vmatpush1.msra.mxu0 0.0
      %1155 = vmatprep.subr.mxu0 0.0
      %1156 = vmatpush1.msra.mxu0 0.0
      %1157 = vmatprep.subr.mxu0 0.0
      %1158 = vmatpush1.msra.mxu0 0.0
      %1159 = vmatprep.subr.mxu0 0.0
      %1160 = vmatpush1.msra.mxu0 0.0
      %1161 = vmatprep.subr.mxu0 0.0
      %1162 = vmatpush1.msra.mxu0 0.0
      %1163 = vmatprep.subr.mxu0 0.0
      %1164 = vmatpush1.msra.mxu0 0.0
      %1165 = vmatprep.subr.mxu0 0.0
      %1166 = vmatpush1.msra.mxu0 0.0
      %1167 = vmatprep.subr.mxu0 0.0
      %1168 = vmatpush1.msra.mxu0 0.0
      %1169 = vmatprep.subr.mxu0 0.0
      %1170 = vmatpush1.msra.mxu0 0.0
      %1171 = vmatprep.subr.mxu0 0.0
      %1172 = vmatpush1.msra.mxu0 0.0
      %1173 = vmatprep.subr.mxu0 0.0
      %1174 = vmatpush1.msra.mxu0 0.0
      %1175 = vmatprep.subr.mxu0 0.0
      %1176 = vmatpush1.msra.mxu0 0.0
      %1177 = vmatprep.subr.mxu0 0.0
      %1178 = vmatpush1.msra.mxu0 0.0
      %1179 = vmatprep.subr.mxu0 0.0
      %1180 = vmatpush1.msra.mxu0 0.0
      %1181 = vmatprep.subr.mxu0 0.0
      %1182 = vmatpush1.msra.mxu0 0.0
      %1183 = vmatprep.subr.mxu0 0.0
      %1184 = vmatpush1.msra.mxu0 0.0
      %1185 = vmatprep.subr.mxu0 0.0
      %1186 = vmatpush1.msra.mxu0 0.0
      %1187 = vmatprep.subr.mxu0 0.0
      %1188 = vmatpush1.msra.mxu0 0.0
      %1189 = vmatprep.subr.mxu0 0.0
      %1190 = vmatpush1.msra.mxu0 0.0
      %1191 = vmatprep.subr.mxu0 0.0
      %1192 = vmatpush1.msra.mxu0 0.0
      %1193 = vmatprep.subr.mxu0 0.0
      %1194 = vmatpush1.msra.mxu0 0.0
      %1195 = vmatprep.subr.mxu0 0.0
      %1196 = vmatpush1.msra.mxu0 0.0
      %1197 = vmatprep.subr.mxu0 0.0
      %1198 = vmatpush1.msra.mxu0 0.0
      %1199 = vmatprep.subr.mxu0 0.0
      %1200 = vmatpush1.msra.mxu0 0.0
      %1201 = vmatprep.subr.mxu0 0.0
      %1202 = vmatpush1.msra.mxu0 0.0
      %1203 = vmatprep.subr.mxu0 0.0
      %1204 = vmatpush1.msra.mxu0 0.0
      %1205 = vmatprep.subr.mxu0 0.0
      %1206 = vmatpush1.msra.mxu0 0.0
      %1207 = vmatprep.subr.mxu0 0.0
      %1208 = vmatpush1.msra.mxu0 0.0
      %1209 = vmatprep.subr.mxu0 0.0
      %1210 = vmatpush1.msra.mxu0 0.0
      %1211 = vmatprep.subr.mxu0 0.0
      %1212 = vmatpush1.msra.mxu0 0.0
      %1213 = vmatprep.subr.mxu0 0.0
      %1214 = vmatpush1.msra.mxu0 0.0
      %1215 = vmatprep.mubr.f32.mxu0 0.0
      %1216 = vmatmul.mubr.f32.gmra.mrb[0].mxu0 %v1052
      %v1217 = vpop.f32.mrb[0].mxu0
      %v1218 = vadd.f32 %v1049, %v1217
      %v1219 = vpop.f32.mrb[0].mxu0
      %1220 = vmatprep.mubr.f32.mxu0 0.0
      %1221 = vmatmul.mubr.f32.gmra.mrb[0].mxu0 %v1055
      %v1222 = vpop.f32.mrb[0].mxu0
      %v1223 = vadd.f32 %v1049, %v1222
      %v1224 = vpop.f32.mrb[0].mxu0
      %1225 = vmatprep.mubr.f32.mxu0 0.0
      %1226 = vmatmul.mubr.f32.gmra.mrb[0].mxu0 %v1058
      %v1227 = vpop.f32.mrb[0].mxu0
      %v1228 = vadd.f32 %v1049, %v1227
      %v1229 = vpop.f32.mrb[0].mxu0
      %1230 = vmatprep.mubr.f32.mxu0 0.0
      %1231 = vmatmul.mubr.f32.gmra.mrb[0].mxu0 %v1061
      %v1232 = vpop.f32.mrb[0].mxu0
      %v1233 = vadd.f32 %v1049, %v1232
      %v1234 = vpop.f32.mrb[0].mxu0
      %1235 = vmatprep.mubr.f32.mxu0 0.0
      %1236 = vmatmul.mubr.f32.gmra.mrb[0].mxu0 %v1064
      %v1237 = vpop.f32.mrb[0].mxu0
      %v1238 = vadd.f32 %v1049, %v1237
      %v1239 = vpop.f32.mrb[0].mxu0
      %1240 = vmatprep.mubr.f32.mxu0 0.0
      %1241 = vmatmul.mubr.f32.gmra.mrb[0].mxu0 %v1067
      %v1242 = vpop.f32.mrb[0].mxu0
      %v1243 = vadd.f32 %v1049, %v1242
      %v1244 = vpop.f32.mrb[0].mxu0
      %1245 = vmatprep.mubr.f32.mxu0 0.0
      %1246 = vmatmul.mubr.f32.gmra.mrb[0].mxu0 %v1070
      %v1247 = vpop.f32.mrb[0].mxu0
      %v1248 = vadd.f32 %v1049, %v1247
      %v1249 = vpop.f32.mrb[0].mxu0
      %1250 = vmatprep.mubr.f32.mxu0 0.0
      %1251 = vmatmul.mubr.f32.gmra.mrb[0].mxu0 %v1073
      %v1252 = vpop.f32.mrb[0].mxu0
      %v1253 = vadd.f32 %v1049, %v1252
      %v1254 = vpop.f32.mrb[0].mxu0
      %1255 = vmatprep.mubr.f32.mxu0 0.0
      %1256 = vmatmul.mubr.f32.gmra.mrb[0].mxu0 %v1076
      %v1257 = vpop.f32.mrb[0].mxu0
      %v1258 = vadd.f32 %v1049, %v1257
      %v1259 = vpop.f32.mrb[0].mxu0
      %1260 = vmatprep.mubr.f32.mxu0 0.0
      %1261 = vmatmul.mubr.f32.gmra.mrb[0].mxu0 %v1079
      %v1262 = vpop.f32.mrb[0].mxu0
      %v1263 = vadd.f32 %v1049, %v1262
      %v1264 = vpop.f32.mrb[0].mxu0
      %1265 = vmatprep.mubr.f32.mxu0 0.0
      %1266 = vmatmul.mubr.f32.gmra.mrb[0].mxu0 %v1082
      %v1267 = vpop.f32.mrb[0].mxu0
      %v1268 = vadd.f32 %v1049, %v1267
      %v1269 = vpop.f32.mrb[0].mxu0
      %1270 = vmatprep.mubr.f32.mxu0 0.0
      %1271 = vmatmul.mubr.f32.gmra.mrb[0].mxu0 %v1085
      %v1272 = vpop.f32.mrb[0].mxu0
      %v1273 = vadd.f32 %v1049, %v1272
      %v1274 = vpop.f32.mrb[0].mxu0
      %1275 = vmatprep.mubr.f32.mxu0 0.0
      %1276 = vmatmul.mubr.f32.gmra.mrb[0].mxu0 %v1088
      %v1277 = vpop.f32.mrb[0].mxu0
      %v1278 = vadd.f32 %v1049, %v1277
      %v1279 = vpop.f32.mrb[0].mxu0
      %1280 = vmatprep.mubr.f32.mxu0 0.0
      %1281 = vmatmul.mubr.f32.gmra.mrb[0].mxu0 %v1091
      %v1282 = vpop.f32.mrb[0].mxu0
      %v1283 = vadd.f32 %v1049, %v1282
      %v1284 = vpop.f32.mrb[0].mxu0
      %1285 = vmatprep.mubr.f32.mxu0 0.0
      %1286 = vmatmul.mubr.f32.gmra.mrb[0].mxu0 %v1094
      %v1287 = vpop.f32.mrb[0].mxu0
      %v1288 = vadd.f32 %v1049, %v1287
      %v1289 = vpop.f32.mrb[0].mxu0
      %1290 = vmatprep.mubr.f32.mxu0 0.0
      %1291 = vmatmul.mubr.f32.gmra.mrb[0].mxu0 %v1097
      %v1292 = vpop.f32.mrb[0].mxu0
      %v1293 = vadd.f32 %v1049, %v1292
      %v1294 = vpop.f32.mrb[0].mxu0
      %1295 = vmatprep.mubr.f32.mxu0 0.0
      %1296 = vmatmul.mubr.f32.gmra.mrb[0].mxu0 %v1100
      %v1297 = vpop.f32.mrb[0].mxu0
      %v1298 = vadd.f32 %v1049, %v1297
      %v1299 = vpop.f32.mrb[0].mxu0
      %1300 = vmatprep.mubr.f32.mxu0 0.0
      %1301 = vmatmul.mubr.f32.gmra.mrb[0].mxu0 %v1103
      %v1302 = vpop.f32.mrb[0].mxu0
      %v1303 = vadd.f32 %v1049, %v1302
      %v1304 = vpop.f32.mrb[0].mxu0
      %1305 = vmatprep.mubr.f32.mxu0 0.0
      %1306 = vmatmul.mubr.f32.gmra.mrb[0].mxu0 %v1106
      %v1307 = vpop.f32.mrb[0].mxu0
      %v1308 = vadd.f32 %v1049, %v1307
      %v1309 = vpop.f32.mrb[0].mxu0
      %1310 = vmatprep.mubr.f32.mxu0 0.0
      %1311 = vmatmul.mubr.f32.gmra.mrb[0].mxu0 %v1109
      %v1312 = vpop.f32.mrb[0].mxu0
      %v1313 = vadd.f32 %v1049, %v1312
      %v1314 = vpop.f32.mrb[0].mxu0
      %1315 = vmatprep.mubr.f32.mxu0 0.0
      %1316 = vmatmul.mubr.f32.gmra.mrb[0].mxu0 %v1112
      %v1317 = vpop.f32.mrb[0].mxu0
      %v1318 = vadd.f32 %v1049, %v1317
      %v1319 = vpop.f32.mrb[0].mxu0
      %1320 = vmatprep.mubr.f32.mxu0 0.0
      %1321 = vmatmul.mubr.f32.gmra.mrb[0].mxu0 %v1115
      %v1322 = vpop.f32.mrb[0].mxu0
      %v1323 = vadd.f32 %v1049, %v1322
      %v1324 = vpop.f32.mrb[0].mxu0
      %1325 = vmatprep.mubr.f32.mxu0 0.0
      %1326 = vmatmul.mubr.f32.gmra.mrb[0].mxu0 %v1118
      %v1327 = vpop.f32.mrb[0].mxu0
      %v1328 = vadd.f32 %v1049, %v1327
      %v1329 = vpop.f32.mrb[0].mxu0
      %1330 = vmatprep.mubr.f32.mxu0 0.0
      %1331 = vmatmul.mubr.f32.gmra.mrb[0].mxu0 %v1121
      %v1332 = vpop.f32.mrb[0].mxu0
      %v1333 = vadd.f32 %v1049, %v1332
      %v1334 = vpop.f32.mrb[0].mxu0
      %1335 = vmatprep.mubr.f32.mxu0 0.0
      %1336 = vmatmul.mubr.f32.gmra.mrb[0].mxu0 %v1124
      %v1337 = vpop.f32.mrb[0].mxu0
      %v1338 = vadd.f32 %v1049, %v1337
      %v1339 = vpop.f32.mrb[0].mxu0
      %1340 = vmatprep.mubr.f32.mxu0 0.0
      %1341 = vmatmul.mubr.f32.gmra.mrb[0].mxu0 %v1127
      %v1342 = vpop.f32.mrb[0].mxu0
      %v1343 = vadd.f32 %v1049, %v1342
      %v1344 = vpop.f32.mrb[0].mxu0
      %1345 = vmatprep.mubr.f32.mxu0 0.0
      %1346 = vmatmul.mubr.f32.gmra.mrb[0].mxu0 %v1130
      %v1347 = vpop.f32.mrb[0].mxu0
      %v1348 = vadd.f32 %v1049, %v1347
      %v1349 = vpop.f32.mrb[0].mxu0
      %1350 = vmatprep.mubr.f32.mxu0 0.0
      %1351 = vmatmul.mubr.f32.gmra.mrb[0].mxu0 %v1133
      %v1352 = vpop.f32.mrb[0].mxu0
      %v1353 = vadd.f32 %v1049, %v1352
      %v1354 = vpop.f32.mrb[0].mxu0
      %1355 = vmatprep.mubr.f32.mxu0 0.0
      %1356 = vmatmul.mubr.f32.gmra.mrb[0].mxu0 %v1136
      %v1357 = vpop.f32.mrb[0].mxu0
      %v1358 = vadd.f32 %v1049, %v1357
      %v1359 = vpop.f32.mrb[0].mxu0
      %1360 = vmatprep.mubr.f32.mxu0 0.0
      %1361 = vmatmul.mubr.f32.gmra.mrb[0].mxu0 %v1139
      %v1362 = vpop.f32.mrb[0].mxu0
      %v1363 = vadd.f32 %v1049, %v1362
      %v1364 = vpop.f32.mrb[0].mxu0
      %1365 = vmatprep.mubr.f32.mxu0 0.0
      %1366 = vmatmul.mubr.f32.gmra.mrb[0].mxu0 %v1142
      %v1367 = vpop.f32.mrb[0].mxu0
      %v1368 = vadd.f32 %v1049, %v1367
      %v1369 = vpop.f32.mrb[0].mxu0
      %1370 = vmatprep.mubr.f32.mxu0 0.0
      %1371 = vmatmul.mubr.f32.gmra.mrb[0].mxu0 %v1145
      %v1372 = vpop.f32.mrb[0].mxu0
      %v1373 = vadd.f32 %v1049, %v1372
      %v1374 = vpop.f32.mrb[0].mxu0
      %1375 = vdwg.mxu0
      %s1376 = scalar_lea.vmem [#allocation2], 128
      %v1377 = vld [vmem:[%s1376] sm:$0xff]
      %v1378 = vld [vmem:[%s1376 + $0x8] sm:$0xff]
      %v1379 = vld [vmem:[%s1376 + $0x10] sm:$0xff]
      %v1380 = vld [vmem:[%s1376 + $0x18] sm:$0xf]
      %v1381 = vld [vmem:[%s1376 + $0x20] sm:$0xff]
      %v1382 = vld [vmem:[%s1376 + $0x28] sm:$0xff]
      %v1383 = vld [vmem:[%s1376 + $0x30] sm:$0xff]
      %v1384 = vld [vmem:[%s1376 + $0x38] sm:$0xf]
      %v1385 = vld [vmem:[%s1376 + $0x40] sm:$0xff]
      %v1386 = vld [vmem:[%s1376 + $0x48] sm:$0xff]
      %v1387 = vld [vmem:[%s1376 + $0x50] sm:$0xff]
      %v1388 = vld [vmem:[%s1376 + $0x58] sm:$0xf]
      %v1389 = vld [vmem:[%s1376 + $0x60] sm:$0xff]
      %v1390 = vld [vmem:[%s1376 + $0x68] sm:$0xff]
      %v1391 = vld [vmem:[%s1376 + $0x70] sm:$0xff]
      %v1392 = vld [vmem:[%s1376 + $0x78] sm:$0xf]
      %v1393 = vld [vmem:[%s1376 + $0x80] sm:$0xff]
      %v1394 = vld [vmem:[%s1376 + $0x88] sm:$0xff]
      %v1395 = vld [vmem:[%s1376 + $0x90] sm:$0xff]
      %v1396 = vld [vmem:[%s1376 + $0x98] sm:$0xf]
      %v1397 = vld [vmem:[%s1376 + $0xa0] sm:$0xff]
      %v1398 = vld [vmem:[%s1376 + $0xa8] sm:$0xff]
      %v1399 = vld [vmem:[%s1376 + $0xb0] sm:$0xff]
      %v1400 = vld [vmem:[%s1376 + $0xb8] sm:$0xf]
      %v1401 = vld [vmem:[%s1376 + $0xc0] sm:$0xff]
      %v1402 = vld [vmem:[%s1376 + $0xc8] sm:$0xff]
      %v1403 = vld [vmem:[%s1376 + $0xd0] sm:$0xff]
      %v1404 = vld [vmem:[%s1376 + $0xd8] sm:$0xf]
      %v1405 = vld [vmem:[%s1376 + $0xe0] sm:$0xff]
      %v1406 = vld [vmem:[%s1376 + $0xe8] sm:$0xff]
      %v1407 = vld [vmem:[%s1376 + $0xf0] sm:$0xff]
      %v1408 = vld [vmem:[%s1376 + $0xf8] sm:$0xf]
      %v1409 = vld [vmem:[%s1376 + $0x100] sm:$0xff]
      %v1410 = vld [vmem:[%s1376 + $0x108] sm:$0xff]
      %v1411 = vld [vmem:[%s1376 + $0x110] sm:$0xff]
      %v1412 = vld [vmem:[%s1376 + $0x118] sm:$0xf]
      %v1413 = vld [vmem:[%s1376 + $0x120] sm:$0xff]
      %v1414 = vld [vmem:[%s1376 + $0x128] sm:$0xff]
      %v1415 = vld [vmem:[%s1376 + $0x130] sm:$0xff]
      %v1416 = vld [vmem:[%s1376 + $0x138] sm:$0xf]
      %v1417 = vld [vmem:[%s1376 + $0x140] sm:$0xff]
      %v1418 = vld [vmem:[%s1376 + $0x148] sm:$0xff]
      %v1419 = vld [vmem:[%s1376 + $0x150] sm:$0xff]
      %v1420 = vld [vmem:[%s1376 + $0x158] sm:$0xf]
      %v1421 = vld [vmem:[%s1376 + $0x160] sm:$0xff]
      %v1422 = vld [vmem:[%s1376 + $0x168] sm:$0xff]
      %v1423 = vld [vmem:[%s1376 + $0x170] sm:$0xff]
      %v1424 = vld [vmem:[%s1376 + $0x178] sm:$0xf]
      %v1425 = vld [vmem:[%s1376 + $0x180] sm:$0xff]
      %v1426 = vld [vmem:[%s1376 + $0x188] sm:$0xff]
      %v1427 = vld [vmem:[%s1376 + $0x190] sm:$0xff]
      %v1428 = vld [vmem:[%s1376 + $0x198] sm:$0xf]
      %v1429 = vld [vmem:[%s1376 + $0x1a0] sm:$0xff]
      %v1430 = vld [vmem:[%s1376 + $0x1a8] sm:$0xff]
      %v1431 = vld [vmem:[%s1376 + $0x1b0] sm:$0xff]
      %v1432 = vld [vmem:[%s1376 + $0x1b8] sm:$0xf]
      %v1433 = vld [vmem:[%s1376 + $0x1c0] sm:$0xff]
      %v1434 = vld [vmem:[%s1376 + $0x1c8] sm:$0xff]
      %v1435 = vld [vmem:[%s1376 + $0x1d0] sm:$0xff]
      %v1436 = vld [vmem:[%s1376 + $0x1d8] sm:$0xf]
      %v1437 = vld [vmem:[%s1376 + $0x1e0] sm:$0xff]
      %v1438 = vld [vmem:[%s1376 + $0x1e8] sm:$0xff]
      %v1439 = vld [vmem:[%s1376 + $0x1f0] sm:$0xff]
      %v1440 = vld [vmem:[%s1376 + $0x1f8] sm:$0xf]
      %s1441 = scalar_lea.vmem [#allocation2], 160
      %v1442 = vld [vmem:[%s1441] sm:$0xff]
      %v1443 = vld [vmem:[%s1441 + $0x8] sm:$0xff]
      %v1444 = vld [vmem:[%s1441 + $0x10] sm:$0xff]
      %v1445 = vld [vmem:[%s1441 + $0x18] sm:$0xf]
      %v1446 = vld [vmem:[%s1441 + $0x20] sm:$0xff]
      %v1447 = vld [vmem:[%s1441 + $0x28] sm:$0xff]
      %v1448 = vld [vmem:[%s1441 + $0x30] sm:$0xff]
      %v1449 = vld [vmem:[%s1441 + $0x38] sm:$0xf]
      %v1450 = vld [vmem:[%s1441 + $0x40] sm:$0xff]
      %v1451 = vld [vmem:[%s1441 + $0x48] sm:$0xff]
      %v1452 = vld [vmem:[%s1441 + $0x50] sm:$0xff]
      %v1453 = vld [vmem:[%s1441 + $0x58] sm:$0xf]
      %v1454 = vld [vmem:[%s1441 + $0x60] sm:$0xff]
      %v1455 = vld [vmem:[%s1441 + $0x68] sm:$0xff]
      %v1456 = vld [vmem:[%s1441 + $0x70] sm:$0xff]
      %v1457 = vld [vmem:[%s1441 + $0x78] sm:$0xf]
      %v1458 = vld [vmem:[%s1441 + $0x80] sm:$0xff]
      %v1459 = vld [vmem:[%s1441 + $0x88] sm:$0xff]
      %v1460 = vld [vmem:[%s1441 + $0x90] sm:$0xff]
      %v1461 = vld [vmem:[%s1441 + $0x98] sm:$0xf]
      %v1462 = vld [vmem:[%s1441 + $0xa0] sm:$0xff]
      %v1463 = vld [vmem:[%s1441 + $0xa8] sm:$0xff]
      %v1464 = vld [vmem:[%s1441 + $0xb0] sm:$0xff]
      %v1465 = vld [vmem:[%s1441 + $0xb8] sm:$0xf]
      %v1466 = vld [vmem:[%s1441 + $0xc0] sm:$0xff]
      %v1467 = vld [vmem:[%s1441 + $0xc8] sm:$0xff]
      %v1468 = vld [vmem:[%s1441 + $0xd0] sm:$0xff]
      %v1469 = vld [vmem:[%s1441 + $0xd8] sm:$0xf]
      %v1470 = vld [vmem:[%s1441 + $0xe0] sm:$0xff]
      %v1471 = vld [vmem:[%s1441 + $0xe8] sm:$0xff]
      %v1472 = vld [vmem:[%s1441 + $0xf0] sm:$0xff]
      %v1473 = vld [vmem:[%s1441 + $0xf8] sm:$0xf]
      %v1474 = vld [vmem:[%s1441 + $0x100] sm:$0xff]
      %v1475 = vld [vmem:[%s1441 + $0x108] sm:$0xff]
      %v1476 = vld [vmem:[%s1441 + $0x110] sm:$0xff]
      %v1477 = vld [vmem:[%s1441 + $0x118] sm:$0xf]
      %v1478 = vld [vmem:[%s1441 + $0x120] sm:$0xff]
      %v1479 = vld [vmem:[%s1441 + $0x128] sm:$0xff]
      %v1480 = vld [vmem:[%s1441 + $0x130] sm:$0xff]
      %v1481 = vld [vmem:[%s1441 + $0x138] sm:$0xf]
      %v1482 = vld [vmem:[%s1441 + $0x140] sm:$0xff]
      %v1483 = vld [vmem:[%s1441 + $0x148] sm:$0xff]
      %v1484 = vld [vmem:[%s1441 + $0x150] sm:$0xff]
      %v1485 = vld [vmem:[%s1441 + $0x158] sm:$0xf]
      %v1486 = vld [vmem:[%s1441 + $0x160] sm:$0xff]
      %v1487 = vld [vmem:[%s1441 + $0x168] sm:$0xff]
      %v1488 = vld [vmem:[%s1441 + $0x170] sm:$0xff]
      %v1489 = vld [vmem:[%s1441 + $0x178] sm:$0xf]
      %v1490 = vld [vmem:[%s1441 + $0x180] sm:$0xff]
      %v1491 = vld [vmem:[%s1441 + $0x188] sm:$0xff]
      %v1492 = vld [vmem:[%s1441 + $0x190] sm:$0xff]
      %v1493 = vld [vmem:[%s1441 + $0x198] sm:$0xf]
      %v1494 = vld [vmem:[%s1441 + $0x1a0] sm:$0xff]
      %v1495 = vld [vmem:[%s1441 + $0x1a8] sm:$0xff]
      %v1496 = vld [vmem:[%s1441 + $0x1b0] sm:$0xff]
      %v1497 = vld [vmem:[%s1441 + $0x1b8] sm:$0xf]
      %v1498 = vld [vmem:[%s1441 + $0x1c0] sm:$0xff]
      %v1499 = vld [vmem:[%s1441 + $0x1c8] sm:$0xff]
      %v1500 = vld [vmem:[%s1441 + $0x1d0] sm:$0xff]
      %v1501 = vld [vmem:[%s1441 + $0x1d8] sm:$0xf]
      %v1502 = vld [vmem:[%s1441 + $0x1e0] sm:$0xff]
      %v1503 = vld [vmem:[%s1441 + $0x1e8] sm:$0xff]
      %v1504 = vld [vmem:[%s1441 + $0x1f0] sm:$0xff]
      %v1505 = vld [vmem:[%s1441 + $0x1f8] sm:$0xf]
      %v1506 = vmax.f32 %v1377, %v1442
      %v1507 = vmax.f32 %v1378, %v1443
      %v1508 = vmax.f32 %v1379, %v1444
      %v1509 = vmax.f32 %v1381, %v1446
      %v1510 = vmax.f32 %v1382, %v1447
      %v1511 = vmax.f32 %v1383, %v1448
      %v1512 = vmax.f32 %v1385, %v1450
      %v1513 = vmax.f32 %v1386, %v1451
      %v1514 = vmax.f32 %v1387, %v1452
      %v1515 = vmax.f32 %v1389, %v1454
      %v1516 = vmax.f32 %v1390, %v1455
      %v1517 = vmax.f32 %v1391, %v1456
      %v1518 = vmax.f32 %v1393, %v1458
      %v1519 = vmax.f32 %v1394, %v1459
      %v1520 = vmax.f32 %v1395, %v1460
      %v1521 = vmax.f32 %v1397, %v1462
      %v1522 = vmax.f32 %v1398, %v1463
      %v1523 = vmax.f32 %v1399, %v1464
      %v1524 = vmax.f32 %v1401, %v1466
      %v1525 = vmax.f32 %v1402, %v1467
      %v1526 = vmax.f32 %v1403, %v1468
      %v1527 = vmax.f32 %v1405, %v1470
      %v1528 = vmax.f32 %v1406, %v1471
      %v1529 = vmax.f32 %v1407, %v1472
      %v1530 = vmax.f32 %v1409, %v1474
      %v1531 = vmax.f32 %v1410, %v1475
      %v1532 = vmax.f32 %v1411, %v1476
      %v1533 = vmax.f32 %v1413, %v1478
      %v1534 = vmax.f32 %v1414, %v1479
      %v1535 = vmax.f32 %v1415, %v1480
      %v1536 = vmax.f32 %v1417, %v1482
      %v1537 = vmax.f32 %v1418, %v1483
      %v1538 = vmax.f32 %v1419, %v1484
      %v1539 = vmax.f32 %v1421, %v1486
      %v1540 = vmax.f32 %v1422, %v1487
      %v1541 = vmax.f32 %v1423, %v1488
      %v1542 = vmax.f32 %v1425, %v1490
      %v1543 = vmax.f32 %v1426, %v1491
      %v1544 = vmax.f32 %v1427, %v1492
      %v1545 = vmax.f32 %v1429, %v1494
      %v1546 = vmax.f32 %v1430, %v1495
      %v1547 = vmax.f32 %v1431, %v1496
      %v1548 = vmax.f32 %v1433, %v1498
      %v1549 = vmax.f32 %v1434, %v1499
      %v1550 = vmax.f32 %v1435, %v1500
      %v1551 = vmax.f32 %v1437, %v1502
      %v1552 = vmax.f32 %v1438, %v1503
      %v1553 = vmax.f32 %v1439, %v1504
      %v1554 = vld [vmem:[%s1010] sm:$0xff]
      %v1555 = vld [vmem:[%s1010 + $0x8] sm:$0xff]
      %v1556 = vld [vmem:[%s1010 + $0x10] sm:$0xff]
      %v1557 = vld [vmem:[%s1010 + $0x18] sm:$0xf]
      %v1558 = vld [vmem:[%s1010 + $0x20] sm:$0xff]
      %v1559 = vld [vmem:[%s1010 + $0x28] sm:$0xff]
      %v1560 = vld [vmem:[%s1010 + $0x30] sm:$0xff]
      %v1561 = vld [vmem:[%s1010 + $0x38] sm:$0xf]
      %v1562 = vld [vmem:[%s1010 + $0x40] sm:$0xff]
      %v1563 = vld [vmem:[%s1010 + $0x48] sm:$0xff]
      %v1564 = vld [vmem:[%s1010 + $0x50] sm:$0xff]
      %v1565 = vld [vmem:[%s1010 + $0x58] sm:$0xf]
      %v1566 = vld [vmem:[%s1010 + $0x60] sm:$0xff]
      %v1567 = vld [vmem:[%s1010 + $0x68] sm:$0xff]
      %v1568 = vld [vmem:[%s1010 + $0x70] sm:$0xff]
      %v1569 = vld [vmem:[%s1010 + $0x78] sm:$0xf]
      %v1570 = vld [vmem:[%s1010 + $0x80] sm:$0xff]
      %v1571 = vld [vmem:[%s1010 + $0x88] sm:$0xff]
      %v1572 = vld [vmem:[%s1010 + $0x90] sm:$0xff]
      %v1573 = vld [vmem:[%s1010 + $0x98] sm:$0xf]
      %v1574 = vld [vmem:[%s1010 + $0xa0] sm:$0xff]
      %v1575 = vld [vmem:[%s1010 + $0xa8] sm:$0xff]
      %v1576 = vld [vmem:[%s1010 + $0xb0] sm:$0xff]
      %v1577 = vld [vmem:[%s1010 + $0xb8] sm:$0xf]
      %v1578 = vld [vmem:[%s1010 + $0xc0] sm:$0xff]
      %v1579 = vld [vmem:[%s1010 + $0xc8] sm:$0xff]
      %v1580 = vld [vmem:[%s1010 + $0xd0] sm:$0xff]
      %v1581 = vld [vmem:[%s1010 + $0xd8] sm:$0xf]
      %v1582 = vld [vmem:[%s1010 + $0xe0] sm:$0xff]
      %v1583 = vld [vmem:[%s1010 + $0xe8] sm:$0xff]
      %v1584 = vld [vmem:[%s1010 + $0xf0] sm:$0xff]
      %v1585 = vld [vmem:[%s1010 + $0xf8] sm:$0xf]
      %v1586 = vld [vmem:[%s1010 + $0x100] sm:$0xff]
      %v1587 = vld [vmem:[%s1010 + $0x108] sm:$0xff]
      %v1588 = vld [vmem:[%s1010 + $0x110] sm:$0xff]
      %v1589 = vld [vmem:[%s1010 + $0x118] sm:$0xf]
      %v1590 = vld [vmem:[%s1010 + $0x120] sm:$0xff]
      %v1591 = vld [vmem:[%s1010 + $0x128] sm:$0xff]
      %v1592 = vld [vmem:[%s1010 + $0x130] sm:$0xff]
      %v1593 = vld [vmem:[%s1010 + $0x138] sm:$0xf]
      %v1594 = vld [vmem:[%s1010 + $0x140] sm:$0xff]
      %v1595 = vld [vmem:[%s1010 + $0x148] sm:$0xff]
      %v1596 = vld [vmem:[%s1010 + $0x150] sm:$0xff]
      %v1597 = vld [vmem:[%s1010 + $0x158] sm:$0xf]
      %v1598 = vld [vmem:[%s1010 + $0x160] sm:$0xff]
      %v1599 = vld [vmem:[%s1010 + $0x168] sm:$0xff]
      %v1600 = vld [vmem:[%s1010 + $0x170] sm:$0xff]
      %v1601 = vld [vmem:[%s1010 + $0x178] sm:$0xf]
      %v1602 = vld [vmem:[%s1010 + $0x180] sm:$0xff]
      %v1603 = vld [vmem:[%s1010 + $0x188] sm:$0xff]
      %v1604 = vld [vmem:[%s1010 + $0x190] sm:$0xff]
      %v1605 = vld [vmem:[%s1010 + $0x198] sm:$0xf]
      %v1606 = vld [vmem:[%s1010 + $0x1a0] sm:$0xff]
      %v1607 = vld [vmem:[%s1010 + $0x1a8] sm:$0xff]
      %v1608 = vld [vmem:[%s1010 + $0x1b0] sm:$0xff]
      %v1609 = vld [vmem:[%s1010 + $0x1b8] sm:$0xf]
      %v1610 = vld [vmem:[%s1010 + $0x1c0] sm:$0xff]
      %v1611 = vld [vmem:[%s1010 + $0x1c8] sm:$0xff]
      %v1612 = vld [vmem:[%s1010 + $0x1d0] sm:$0xff]
      %v1613 = vld [vmem:[%s1010 + $0x1d8] sm:$0xf]
      %v1614 = vld [vmem:[%s1010 + $0x1e0] sm:$0xff]
      %v1615 = vld [vmem:[%s1010 + $0x1e8] sm:$0xff]
      %v1616 = vld [vmem:[%s1010 + $0x1f0] sm:$0xff]
      %v1617 = vld [vmem:[%s1010 + $0x1f8] sm:$0xf]
      %v1618 = vmax.f32 %v1506, %v1554
      %v1619 = vmax.f32 %v1507, %v1555
      %v1620 = vmax.f32 %v1508, %v1556
      %v1621 = vmax.f32 %v1509, %v1558
      %v1622 = vmax.f32 %v1510, %v1559
      %v1623 = vmax.f32 %v1511, %v1560
      %v1624 = vmax.f32 %v1512, %v1562
      %v1625 = vmax.f32 %v1513, %v1563
      %v1626 = vmax.f32 %v1514, %v1564
      %v1627 = vmax.f32 %v1515, %v1566
      %v1628 = vmax.f32 %v1516, %v1567
      %v1629 = vmax.f32 %v1517, %v1568
      %v1630 = vmax.f32 %v1518, %v1570
      %v1631 = vmax.f32 %v1519, %v1571
      %v1632 = vmax.f32 %v1520, %v1572
      %v1633 = vmax.f32 %v1521, %v1574
      %v1634 = vmax.f32 %v1522, %v1575
      %v1635 = vmax.f32 %v1523, %v1576
      %v1636 = vmax.f32 %v1524, %v1578
      %v1637 = vmax.f32 %v1525, %v1579
      %v1638 = vmax.f32 %v1526, %v1580
      %v1639 = vmax.f32 %v1527, %v1582
      %v1640 = vmax.f32 %v1528, %v1583
      %v1641 = vmax.f32 %v1529, %v1584
      %v1642 = vmax.f32 %v1530, %v1586
      %v1643 = vmax.f32 %v1531, %v1587
      %v1644 = vmax.f32 %v1532, %v1588
      %v1645 = vmax.f32 %v1533, %v1590
      %v1646 = vmax.f32 %v1534, %v1591
      %v1647 = vmax.f32 %v1535, %v1592
      %v1648 = vmax.f32 %v1536, %v1594
      %v1649 = vmax.f32 %v1537, %v1595
      %v1650 = vmax.f32 %v1538, %v1596
      %v1651 = vmax.f32 %v1539, %v1598
      %v1652 = vmax.f32 %v1540, %v1599
      %v1653 = vmax.f32 %v1541, %v1600
      %v1654 = vmax.f32 %v1542, %v1602
      %v1655 = vmax.f32 %v1543, %v1603
      %v1656 = vmax.f32 %v1544, %v1604
      %v1657 = vmax.f32 %v1545, %v1606
      %v1658 = vmax.f32 %v1546, %v1607
      %v1659 = vmax.f32 %v1547, %v1608
      %v1660 = vmax.f32 %v1548, %v1610
      %v1661 = vmax.f32 %v1549, %v1611
      %v1662 = vmax.f32 %v1550, %v1612
      %v1663 = vmax.f32 %v1551, %v1614
      %v1664 = vmax.f32 %v1552, %v1615
      %v1665 = vmax.f32 %v1553, %v1616
      %s1666 = scalar_lea.vmem [#allocation2], 224
      %v1667 = vld [vmem:[%s1666] sm:$0xff]
      %v1668 = vld [vmem:[%s1666 + $0x8] sm:$0xff]
      %v1669 = vld [vmem:[%s1666 + $0x10] sm:$0xff]
      %v1670 = vld [vmem:[%s1666 + $0x18] sm:$0xf]
      %v1671 = vld [vmem:[%s1666 + $0x20] sm:$0xff]
      %v1672 = vld [vmem:[%s1666 + $0x28] sm:$0xff]
      %v1673 = vld [vmem:[%s1666 + $0x30] sm:$0xff]
      %v1674 = vld [vmem:[%s1666 + $0x38] sm:$0xf]
      %v1675 = vld [vmem:[%s1666 + $0x40] sm:$0xff]
      %v1676 = vld [vmem:[%s1666 + $0x48] sm:$0xff]
      %v1677 = vld [vmem:[%s1666 + $0x50] sm:$0xff]
      %v1678 = vld [vmem:[%s1666 + $0x58] sm:$0xf]
      %v1679 = vld [vmem:[%s1666 + $0x60] sm:$0xff]
      %v1680 = vld [vmem:[%s1666 + $0x68] sm:$0xff]
      %v1681 = vld [vmem:[%s1666 + $0x70] sm:$0xff]
      %v1682 = vld [vmem:[%s1666 + $0x78] sm:$0xf]
      %v1683 = vld [vmem:[%s1666 + $0x80] sm:$0xff]
      %v1684 = vld [vmem:[%s1666 + $0x88] sm:$0xff]
      %v1685 = vld [vmem:[%s1666 + $0x90] sm:$0xff]
      %v1686 = vld [vmem:[%s1666 + $0x98] sm:$0xf]
      %v1687 = vld [vmem:[%s1666 + $0xa0] sm:$0xff]
      %v1688 = vld [vmem:[%s1666 + $0xa8] sm:$0xff]
      %v1689 = vld [vmem:[%s1666 + $0xb0] sm:$0xff]
      %v1690 = vld [vmem:[%s1666 + $0xb8] sm:$0xf]
      %v1691 = vld [vmem:[%s1666 + $0xc0] sm:$0xff]
      %v1692 = vld [vmem:[%s1666 + $0xc8] sm:$0xff]
      %v1693 = vld [vmem:[%s1666 + $0xd0] sm:$0xff]
      %v1694 = vld [vmem:[%s1666 + $0xd8] sm:$0xf]
      %v1695 = vld [vmem:[%s1666 + $0xe0] sm:$0xff]
      %v1696 = vld [vmem:[%s1666 + $0xe8] sm:$0xff]
      %v1697 = vld [vmem:[%s1666 + $0xf0] sm:$0xff]
      %v1698 = vld [vmem:[%s1666 + $0xf8] sm:$0xf]
      %v1699 = vld [vmem:[%s1666 + $0x100] sm:$0xff]
      %v1700 = vld [vmem:[%s1666 + $0x108] sm:$0xff]
      %v1701 = vld [vmem:[%s1666 + $0x110] sm:$0xff]
      %v1702 = vld [vmem:[%s1666 + $0x118] sm:$0xf]
      %v1703 = vld [vmem:[%s1666 + $0x120] sm:$0xff]
      %v1704 = vld [vmem:[%s1666 + $0x128] sm:$0xff]
      %v1705 = vld [vmem:[%s1666 + $0x130] sm:$0xff]
      %v1706 = vld [vmem:[%s1666 + $0x138] sm:$0xf]
      %v1707 = vld [vmem:[%s1666 + $0x140] sm:$0xff]
      %v1708 = vld [vmem:[%s1666 + $0x148] sm:$0xff]
      %v1709 = vld [vmem:[%s1666 + $0x150] sm:$0xff]
      %v1710 = vld [vmem:[%s1666 + $0x158] sm:$0xf]
      %v1711 = vld [vmem:[%s1666 + $0x160] sm:$0xff]
      %v1712 = vld [vmem:[%s1666 + $0x168] sm:$0xff]
      %v1713 = vld [vmem:[%s1666 + $0x170] sm:$0xff]
      %v1714 = vld [vmem:[%s1666 + $0x178] sm:$0xf]
      %v1715 = vld [vmem:[%s1666 + $0x180] sm:$0xff]
      %v1716 = vld [vmem:[%s1666 + $0x188] sm:$0xff]
      %v1717 = vld [vmem:[%s1666 + $0x190] sm:$0xff]
      %v1718 = vld [vmem:[%s1666 + $0x198] sm:$0xf]
      %v1719 = vld [vmem:[%s1666 + $0x1a0] sm:$0xff]
      %v1720 = vld [vmem:[%s1666 + $0x1a8] sm:$0xff]
      %v1721 = vld [vmem:[%s1666 + $0x1b0] sm:$0xff]
      %v1722 = vld [vmem:[%s1666 + $0x1b8] sm:$0xf]
      %v1723 = vld [vmem:[%s1666 + $0x1c0] sm:$0xff]
      %v1724 = vld [vmem:[%s1666 + $0x1c8] sm:$0xff]
      %v1725 = vld [vmem:[%s1666 + $0x1d0] sm:$0xff]
      %v1726 = vld [vmem:[%s1666 + $0x1d8] sm:$0xf]
      %v1727 = vld [vmem:[%s1666 + $0x1e0] sm:$0xff]
      %v1728 = vld [vmem:[%s1666 + $0x1e8] sm:$0xff]
      %v1729 = vld [vmem:[%s1666 + $0x1f0] sm:$0xff]
      %v1730 = vld [vmem:[%s1666 + $0x1f8] sm:$0xf]
      %v1731 = vmax.f32 %v1618, %v1667
      %v1732 = vmax.f32 %v1619, %v1668
      %v1733 = vmax.f32 %v1620, %v1669
      %v1734 = vmax.f32 %v1621, %v1671
      %v1735 = vmax.f32 %v1622, %v1672
      %v1736 = vmax.f32 %v1623, %v1673
      %v1737 = vmax.f32 %v1624, %v1675
      %v1738 = vmax.f32 %v1625, %v1676
      %v1739 = vmax.f32 %v1626, %v1677
      %v1740 = vmax.f32 %v1627, %v1679
      %v1741 = vmax.f32 %v1628, %v1680
      %v1742 = vmax.f32 %v1629, %v1681
      %v1743 = vmax.f32 %v1630, %v1683
      %v1744 = vmax.f32 %v1631, %v1684
      %v1745 = vmax.f32 %v1632, %v1685
      %v1746 = vmax.f32 %v1633, %v1687
      %v1747 = vmax.f32 %v1634, %v1688
      %v1748 = vmax.f32 %v1635, %v1689
      %v1749 = vmax.f32 %v1636, %v1691
      %v1750 = vmax.f32 %v1637, %v1692
      %v1751 = vmax.f32 %v1638, %v1693
      %v1752 = vmax.f32 %v1639, %v1695
      %v1753 = vmax.f32 %v1640, %v1696
      %v1754 = vmax.f32 %v1641, %v1697
      %v1755 = vmax.f32 %v1642, %v1699
      %v1756 = vmax.f32 %v1643, %v1700
      %v1757 = vmax.f32 %v1644, %v1701
      %v1758 = vmax.f32 %v1645, %v1703
      %v1759 = vmax.f32 %v1646, %v1704
      %v1760 = vmax.f32 %v1647, %v1705
      %v1761 = vmax.f32 %v1648, %v1707
      %v1762 = vmax.f32 %v1649, %v1708
      %v1763 = vmax.f32 %v1650, %v1709
      %v1764 = vmax.f32 %v1651, %v1711
      %v1765 = vmax.f32 %v1652, %v1712
      %v1766 = vmax.f32 %v1653, %v1713
      %v1767 = vmax.f32 %v1654, %v1715
      %v1768 = vmax.f32 %v1655, %v1716
      %v1769 = vmax.f32 %v1656, %v1717
      %v1770 = vmax.f32 %v1657, %v1719
      %v1771 = vmax.f32 %v1658, %v1720
      %v1772 = vmax.f32 %v1659, %v1721
      %v1773 = vmax.f32 %v1660, %v1723
      %v1774 = vmax.f32 %v1661, %v1724
      %v1775 = vmax.f32 %v1662, %v1725
      %v1776 = vmax.f32 %v1663, %v1727
      %v1777 = vmax.f32 %v1664, %v1728
      %v1778 = vmax.f32 %v1665, %v1729
      %s1779 = scalar_lea.vmem [#allocation2], 256
      %v1780 = vld [vmem:[%s1779] sm:$0xff]
      %v1781 = vld [vmem:[%s1779 + $0x8] sm:$0xff]
      %v1782 = vld [vmem:[%s1779 + $0x10] sm:$0xff]
      %v1783 = vld [vmem:[%s1779 + $0x18] sm:$0xf]
      %v1784 = vld [vmem:[%s1779 + $0x20] sm:$0xff]
      %v1785 = vld [vmem:[%s1779 + $0x28] sm:$0xff]
      %v1786 = vld [vmem:[%s1779 + $0x30] sm:$0xff]
      %v1787 = vld [vmem:[%s1779 + $0x38] sm:$0xf]
      %v1788 = vld [vmem:[%s1779 + $0x40] sm:$0xff]
      %v1789 = vld [vmem:[%s1779 + $0x48] sm:$0xff]
      %v1790 = vld [vmem:[%s1779 + $0x50] sm:$0xff]
      %v1791 = vld [vmem:[%s1779 + $0x58] sm:$0xf]
      %v1792 = vld [vmem:[%s1779 + $0x60] sm:$0xff]
      %v1793 = vld [vmem:[%s1779 + $0x68] sm:$0xff]
      %v1794 = vld [vmem:[%s1779 + $0x70] sm:$0xff]
      %v1795 = vld [vmem:[%s1779 + $0x78] sm:$0xf]
      %v1796 = vld [vmem:[%s1779 + $0x80] sm:$0xff]
      %v1797 = vld [vmem:[%s1779 + $0x88] sm:$0xff]
      %v1798 = vld [vmem:[%s1779 + $0x90] sm:$0xff]
      %v1799 = vld [vmem:[%s1779 + $0x98] sm:$0xf]
      %v1800 = vld [vmem:[%s1779 + $0xa0] sm:$0xff]
      %v1801 = vld [vmem:[%s1779 + $0xa8] sm:$0xff]
      %v1802 = vld [vmem:[%s1779 + $0xb0] sm:$0xff]
      %v1803 = vld [vmem:[%s1779 + $0xb8] sm:$0xf]
      %v1804 = vld [vmem:[%s1779 + $0xc0] sm:$0xff]
      %v1805 = vld [vmem:[%s1779 + $0xc8] sm:$0xff]
      %v1806 = vld [vmem:[%s1779 + $0xd0] sm:$0xff]
      %v1807 = vld [vmem:[%s1779 + $0xd8] sm:$0xf]
      %v1808 = vld [vmem:[%s1779 + $0xe0] sm:$0xff]
      %v1809 = vld [vmem:[%s1779 + $0xe8] sm:$0xff]
      %v1810 = vld [vmem:[%s1779 + $0xf0] sm:$0xff]
      %v1811 = vld [vmem:[%s1779 + $0xf8] sm:$0xf]
      %v1812 = vld [vmem:[%s1779 + $0x100] sm:$0xff]
      %v1813 = vld [vmem:[%s1779 + $0x108] sm:$0xff]
      %v1814 = vld [vmem:[%s1779 + $0x110] sm:$0xff]
      %v1815 = vld [vmem:[%s1779 + $0x118] sm:$0xf]
      %v1816 = vld [vmem:[%s1779 + $0x120] sm:$0xff]
      %v1817 = vld [vmem:[%s1779 + $0x128] sm:$0xff]
      %v1818 = vld [vmem:[%s1779 + $0x130] sm:$0xff]
      %v1819 = vld [vmem:[%s1779 + $0x138] sm:$0xf]
      %v1820 = vld [vmem:[%s1779 + $0x140] sm:$0xff]
      %v1821 = vld [vmem:[%s1779 + $0x148] sm:$0xff]
      %v1822 = vld [vmem:[%s1779 + $0x150] sm:$0xff]
      %v1823 = vld [vmem:[%s1779 + $0x158] sm:$0xf]
      %v1824 = vld [vmem:[%s1779 + $0x160] sm:$0xff]
      %v1825 = vld [vmem:[%s1779 + $0x168] sm:$0xff]
      %v1826 = vld [vmem:[%s1779 + $0x170] sm:$0xff]
      %v1827 = vld [vmem:[%s1779 + $0x178] sm:$0xf]
      %v1828 = vld [vmem:[%s1779 + $0x180] sm:$0xff]
      %v1829 = vld [vmem:[%s1779 + $0x188] sm:$0xff]
      %v1830 = vld [vmem:[%s1779 + $0x190] sm:$0xff]
      %v1831 = vld [vmem:[%s1779 + $0x198] sm:$0xf]
      %v1832 = vld [vmem:[%s1779 + $0x1a0] sm:$0xff]
      %v1833 = vld [vmem:[%s1779 + $0x1a8] sm:$0xff]
      %v1834 = vld [vmem:[%s1779 + $0x1b0] sm:$0xff]
      %v1835 = vld [vmem:[%s1779 + $0x1b8] sm:$0xf]
      %v1836 = vld [vmem:[%s1779 + $0x1c0] sm:$0xff]
      %v1837 = vld [vmem:[%s1779 + $0x1c8] sm:$0xff]
      %v1838 = vld [vmem:[%s1779 + $0x1d0] sm:$0xff]
      %v1839 = vld [vmem:[%s1779 + $0x1d8] sm:$0xf]
      %v1840 = vld [vmem:[%s1779 + $0x1e0] sm:$0xff]
      %v1841 = vld [vmem:[%s1779 + $0x1e8] sm:$0xff]
      %v1842 = vld [vmem:[%s1779 + $0x1f0] sm:$0xff]
      %v1843 = vld [vmem:[%s1779 + $0x1f8] sm:$0xf]
      %v1844 = vmax.f32 %v1731, %v1780
      %v1845 = vmax.f32 %v1732, %v1781
      %v1846 = vmax.f32 %v1733, %v1782
      %v1847 = vmax.f32 %v1734, %v1784
      %v1848 = vmax.f32 %v1735, %v1785
      %v1849 = vmax.f32 %v1736, %v1786
      %v1850 = vmax.f32 %v1737, %v1788
      %v1851 = vmax.f32 %v1738, %v1789
      %v1852 = vmax.f32 %v1739, %v1790
      %v1853 = vmax.f32 %v1740, %v1792
      %v1854 = vmax.f32 %v1741, %v1793
      %v1855 = vmax.f32 %v1742, %v1794
      %v1856 = vmax.f32 %v1743, %v1796
      %v1857 = vmax.f32 %v1744, %v1797
      %v1858 = vmax.f32 %v1745, %v1798
      %v1859 = vmax.f32 %v1746, %v1800
      %v1860 = vmax.f32 %v1747, %v1801
      %v1861 = vmax.f32 %v1748, %v1802
      %v1862 = vmax.f32 %v1749, %v1804
      %v1863 = vmax.f32 %v1750, %v1805
      %v1864 = vmax.f32 %v1751, %v1806
      %v1865 = vmax.f32 %v1752, %v1808
      %v1866 = vmax.f32 %v1753, %v1809
      %v1867 = vmax.f32 %v1754, %v1810
      %v1868 = vmax.f32 %v1755, %v1812
      %v1869 = vmax.f32 %v1756, %v1813
      %v1870 = vmax.f32 %v1757, %v1814
      %v1871 = vmax.f32 %v1758, %v1816
      %v1872 = vmax.f32 %v1759, %v1817
      %v1873 = vmax.f32 %v1760, %v1818
      %v1874 = vmax.f32 %v1761, %v1820
      %v1875 = vmax.f32 %v1762, %v1821
      %v1876 = vmax.f32 %v1763, %v1822
      %v1877 = vmax.f32 %v1764, %v1824
      %v1878 = vmax.f32 %v1765, %v1825
      %v1879 = vmax.f32 %v1766, %v1826
      %v1880 = vmax.f32 %v1767, %v1828
      %v1881 = vmax.f32 %v1768, %v1829
      %v1882 = vmax.f32 %v1769, %v1830
      %v1883 = vmax.f32 %v1770, %v1832
      %v1884 = vmax.f32 %v1771, %v1833
      %v1885 = vmax.f32 %v1772, %v1834
      %v1886 = vmax.f32 %v1773, %v1836
      %v1887 = vmax.f32 %v1774, %v1837
      %v1888 = vmax.f32 %v1775, %v1838
      %v1889 = vmax.f32 %v1776, %v1840
      %v1890 = vmax.f32 %v1777, %v1841
      %v1891 = vmax.f32 %v1778, %v1842
      %vm1940 = vcmask 1046528
      %v1941 = vrot.slane %v1844, 1
      %v1942 = vrot.slane %v1845, 1
      %v1943 = vsel %vm1940, %v1941, %v1942
      %v1944 = vrot.slane %v1846, 1
      %v1945 = vsel %vm1940, %v1942, %v1944
      %v1946 = vrot.slane %v1847, 1
      %v1947 = vrot.slane %v1848, 1
      %v1948 = vsel %vm1940, %v1946, %v1947
      %v1949 = vrot.slane %v1849, 1
      %v1950 = vsel %vm1940, %v1947, %v1949
      %v1951 = vrot.slane %v1850, 1
      %v1952 = vrot.slane %v1851, 1
      %v1953 = vsel %vm1940, %v1951, %v1952
      %v1954 = vrot.slane %v1852, 1
      %v1955 = vsel %vm1940, %v1952, %v1954
      %v1956 = vrot.slane %v1853, 1
      %v1957 = vrot.slane %v1854, 1
      %v1958 = vsel %vm1940, %v1956, %v1957
      %v1959 = vrot.slane %v1855, 1
      %v1960 = vsel %vm1940, %v1957, %v1959
      %v1961 = vrot.slane %v1856, 1
      %v1962 = vrot.slane %v1857, 1
      %v1963 = vsel %vm1940, %v1961, %v1962
      %v1964 = vrot.slane %v1858, 1
      %v1965 = vsel %vm1940, %v1962, %v1964
      %v1966 = vrot.slane %v1859, 1
      %v1967 = vrot.slane %v1860, 1
      %v1968 = vsel %vm1940, %v1966, %v1967
      %v1969 = vrot.slane %v1861, 1
      %v1970 = vsel %vm1940, %v1967, %v1969
      %v1971 = vrot.slane %v1862, 1
      %v1972 = vrot.slane %v1863, 1
      %v1973 = vsel %vm1940, %v1971, %v1972
      %v1974 = vrot.slane %v1864, 1
      %v1975 = vsel %vm1940, %v1972, %v1974
      %v1976 = vrot.slane %v1865, 1
      %v1977 = vrot.slane %v1866, 1
      %v1978 = vsel %vm1940, %v1976, %v1977
      %v1979 = vrot.slane %v1867, 1
      %v1980 = vsel %vm1940, %v1977, %v1979
      %v1981 = vrot.slane %v1868, 1
      %v1982 = vrot.slane %v1869, 1
      %v1983 = vsel %vm1940, %v1981, %v1982
      %v1984 = vrot.slane %v1870, 1
      %v1985 = vsel %vm1940, %v1982, %v1984
      %v1986 = vrot.slane %v1871, 1
      %v1987 = vrot.slane %v1872, 1
      %v1988 = vsel %vm1940, %v1986, %v1987
      %v1989 = vrot.slane %v1873, 1
      %v1990 = vsel %vm1940, %v1987, %v1989
      %v1991 = vrot.slane %v1874, 1
      %v1992 = vrot.slane %v1875, 1
      %v1993 = vsel %vm1940, %v1991, %v1992
      %v1994 = vrot.slane %v1876, 1
      %v1995 = vsel %vm1940, %v1992, %v1994
      %v1996 = vrot.slane %v1877, 1
      %v1997 = vrot.slane %v1878, 1
      %v1998 = vsel %vm1940, %v1996, %v1997
      %v1999 = vrot.slane %v1879, 1
      %v2000 = vsel %vm1940, %v1997, %v1999
      %v2001 = vrot.slane %v1880, 1
      %v2002 = vrot.slane %v1881, 1
      %v2003 = vsel %vm1940, %v2001, %v2002
      %v2004 = vrot.slane %v1882, 1
      %v2005 = vsel %vm1940, %v2002, %v2004
      %v2006 = vrot.slane %v1883, 1
      %v2007 = vrot.slane %v1884, 1
      %v2008 = vsel %vm1940, %v2006, %v2007
      %v2009 = vrot.slane %v1885, 1
      %v2010 = vsel %vm1940, %v2007, %v2009
      %v2011 = vrot.slane %v1886, 1
      %v2012 = vrot.slane %v1887, 1
      %v2013 = vsel %vm1940, %v2011, %v2012
      %v2014 = vrot.slane %v1888, 1
      %v2015 = vsel %vm1940, %v2012, %v2014
      %v2016 = vrot.slane %v1889, 1
      %v2017 = vrot.slane %v1890, 1
      %v2018 = vsel %vm1940, %v2016, %v2017
      %v2019 = vrot.slane %v1891, 1
      %v2020 = vsel %vm1940, %v2017, %v2019
      %v2069 = vmax.f32 %v1844, %v1943
      %v2070 = vmax.f32 %v1845, %v1945
      %v2071 = vmax.f32 %v1846, %v1944
      %v2072 = vmax.f32 %v1847, %v1948
      %v2073 = vmax.f32 %v1848, %v1950
      %v2074 = vmax.f32 %v1849, %v1949
      %v2075 = vmax.f32 %v1850, %v1953
      %v2076 = vmax.f32 %v1851, %v1955
      %v2077 = vmax.f32 %v1852, %v1954
      %v2078 = vmax.f32 %v1853, %v1958
      %v2079 = vmax.f32 %v1854, %v1960
      %v2080 = vmax.f32 %v1855, %v1959
      %v2081 = vmax.f32 %v1856, %v1963
      %v2082 = vmax.f32 %v1857, %v1965
      %v2083 = vmax.f32 %v1858, %v1964
      %v2084 = vmax.f32 %v1859, %v1968
      %v2085 = vmax.f32 %v1860, %v1970
      %v2086 = vmax.f32 %v1861, %v1969
      %v2087 = vmax.f32 %v1862, %v1973
      %v2088 = vmax.f32 %v1863, %v1975
      %v2089 = vmax.f32 %v1864, %v1974
      %v2090 = vmax.f32 %v1865, %v1978
      %v2091 = vmax.f32 %v1866, %v1980
      %v2092 = vmax.f32 %v1867, %v1979
      %v2093 = vmax.f32 %v1868, %v1983
      %v2094 = vmax.f32 %v1869, %v1985
      %v2095 = vmax.f32 %v1870, %v1984
      %v2096 = vmax.f32 %v1871, %v1988
      %v2097 = vmax.f32 %v1872, %v1990
      %v2098 = vmax.f32 %v1873, %v1989
      %v2099 = vmax.f32 %v1874, %v1993
      %v2100 = vmax.f32 %v1875, %v1995
      %v2101 = vmax.f32 %v1876, %v1994
      %v2102 = vmax.f32 %v1877, %v1998
      %v2103 = vmax.f32 %v1878, %v2000
      %v2104 = vmax.f32 %v1879, %v1999
      %v2105 = vmax.f32 %v1880, %v2003
      %v2106 = vmax.f32 %v1881, %v2005
      %v2107 = vmax.f32 %v1882, %v2004
      %v2108 = vmax.f32 %v1883, %v2008
      %v2109 = vmax.f32 %v1884, %v2010
      %v2110 = vmax.f32 %v1885, %v2009
      %v2111 = vmax.f32 %v1886, %v2013
      %v2112 = vmax.f32 %v1887, %v2015
      %v2113 = vmax.f32 %v1888, %v2014
      %v2114 = vmax.f32 %v1889, %v2018
      %v2115 = vmax.f32 %v1890, %v2020
      %v2116 = vmax.f32 %v1891, %v2019
      %vm2117 = vcmask 1045504
      %v2118 = vrot.slane %v1844, 2
      %v2119 = vrot.slane %v1845, 2
      %v2120 = vsel %vm2117, %v2118, %v2119
      %v2121 = vrot.slane %v1846, 2
      %v2122 = vsel %vm2117, %v2119, %v2121
      %v2123 = vrot.slane %v1847, 2
      %v2124 = vrot.slane %v1848, 2
      %v2125 = vsel %vm2117, %v2123, %v2124
      %v2126 = vrot.slane %v1849, 2
      %v2127 = vsel %vm2117, %v2124, %v2126
      %v2128 = vrot.slane %v1850, 2
      %v2129 = vrot.slane %v1851, 2
      %v2130 = vsel %vm2117, %v2128, %v2129
      %v2131 = vrot.slane %v1852, 2
      %v2132 = vsel %vm2117, %v2129, %v2131
      %v2133 = vrot.slane %v1853, 2
      %v2134 = vrot.slane %v1854, 2
      %v2135 = vsel %vm2117, %v2133, %v2134
      %v2136 = vrot.slane %v1855, 2
      %v2137 = vsel %vm2117, %v2134, %v2136
      %v2138 = vrot.slane %v1856, 2
      %v2139 = vrot.slane %v1857, 2
      %v2140 = vsel %vm2117, %v2138, %v2139
      %v2141 = vrot.slane %v1858, 2
      %v2142 = vsel %vm2117, %v2139, %v2141
      %v2143 = vrot.slane %v1859, 2
      %v2144 = vrot.slane %v1860, 2
      %v2145 = vsel %vm2117, %v2143, %v2144
      %v2146 = vrot.slane %v1861, 2
      %v2147 = vsel %vm2117, %v2144, %v2146
      %v2148 = vrot.slane %v1862, 2
      %v2149 = vrot.slane %v1863, 2
      %v2150 = vsel %vm2117, %v2148, %v2149
      %v2151 = vrot.slane %v1864, 2
      %v2152 = vsel %vm2117, %v2149, %v2151
      %v2153 = vrot.slane %v1865, 2
      %v2154 = vrot.slane %v1866, 2
      %v2155 = vsel %vm2117, %v2153, %v2154
      %v2156 = vrot.slane %v1867, 2
      %v2157 = vsel %vm2117, %v2154, %v2156
      %v2158 = vrot.slane %v1868, 2
      %v2159 = vrot.slane %v1869, 2
      %v2160 = vsel %vm2117, %v2158, %v2159
      %v2161 = vrot.slane %v1870, 2
      %v2162 = vsel %vm2117, %v2159, %v2161
      %v2163 = vrot.slane %v1871, 2
      %v2164 = vrot.slane %v1872, 2
      %v2165 = vsel %vm2117, %v2163, %v2164
      %v2166 = vrot.slane %v1873, 2
      %v2167 = vsel %vm2117, %v2164, %v2166
      %v2168 = vrot.slane %v1874, 2
      %v2169 = vrot.slane %v1875, 2
      %v2170 = vsel %vm2117, %v2168, %v2169
      %v2171 = vrot.slane %v1876, 2
      %v2172 = vsel %vm2117, %v2169, %v2171
      %v2173 = vrot.slane %v1877, 2
      %v2174 = vrot.slane %v1878, 2
      %v2175 = vsel %vm2117, %v2173, %v2174
      %v2176 = vrot.slane %v1879, 2
      %v2177 = vsel %vm2117, %v2174, %v2176
      %v2178 = vrot.slane %v1880, 2
      %v2179 = vrot.slane %v1881, 2
      %v2180 = vsel %vm2117, %v2178, %v2179
      %v2181 = vrot.slane %v1882, 2
      %v2182 = vsel %vm2117, %v2179, %v2181
      %v2183 = vrot.slane %v1883, 2
      %v2184 = vrot.slane %v1884, 2
      %v2185 = vsel %vm2117, %v2183, %v2184
      %v2186 = vrot.slane %v1885, 2
      %v2187 = vsel %vm2117, %v2184, %v2186
      %v2188 = vrot.slane %v1886, 2
      %v2189 = vrot.slane %v1887, 2
      %v2190 = vsel %vm2117, %v2188, %v2189
      %v2191 = vrot.slane %v1888, 2
      %v2192 = vsel %vm2117, %v2189, %v2191
      %v2193 = vrot.slane %v1889, 2
      %v2194 = vrot.slane %v1890, 2
      %v2195 = vsel %vm2117, %v2193, %v2194
      %v2196 = vrot.slane %v1891, 2
      %v2197 = vsel %vm2117, %v2194, %v2196
      %v2246 = vmax.f32 %v2069, %v2120
      %v2247 = vmax.f32 %v2070, %v2122
      %v2248 = vmax.f32 %v2071, %v2121
      %v2249 = vmax.f32 %v2072, %v2125
      %v2250 = vmax.f32 %v2073, %v2127
      %v2251 = vmax.f32 %v2074, %v2126
      %v2252 = vmax.f32 %v2075, %v2130
      %v2253 = vmax.f32 %v2076, %v2132
      %v2254 = vmax.f32 %v2077, %v2131
      %v2255 = vmax.f32 %v2078, %v2135
      %v2256 = vmax.f32 %v2079, %v2137
      %v2257 = vmax.f32 %v2080, %v2136
      %v2258 = vmax.f32 %v2081, %v2140
      %v2259 = vmax.f32 %v2082, %v2142
      %v2260 = vmax.f32 %v2083, %v2141
      %v2261 = vmax.f32 %v2084, %v2145
      %v2262 = vmax.f32 %v2085, %v2147
      %v2263 = vmax.f32 %v2086, %v2146
      %v2264 = vmax.f32 %v2087, %v2150
      %v2265 = vmax.f32 %v2088, %v2152
      %v2266 = vmax.f32 %v2089, %v2151
      %v2267 = vmax.f32 %v2090, %v2155
      %v2268 = vmax.f32 %v2091, %v2157
      %v2269 = vmax.f32 %v2092, %v2156
      %v2270 = vmax.f32 %v2093, %v2160
      %v2271 = vmax.f32 %v2094, %v2162
      %v2272 = vmax.f32 %v2095, %v2161
      %v2273 = vmax.f32 %v2096, %v2165
      %v2274 = vmax.f32 %v2097, %v2167
      %v2275 = vmax.f32 %v2098, %v2166
      %v2276 = vmax.f32 %v2099, %v2170
      %v2277 = vmax.f32 %v2100, %v2172
      %v2278 = vmax.f32 %v2101, %v2171
      %v2279 = vmax.f32 %v2102, %v2175
      %v2280 = vmax.f32 %v2103, %v2177
      %v2281 = vmax.f32 %v2104, %v2176
      %v2282 = vmax.f32 %v2105, %v2180
      %v2283 = vmax.f32 %v2106, %v2182
      %v2284 = vmax.f32 %v2107, %v2181
      %v2285 = vmax.f32 %v2108, %v2185
      %v2286 = vmax.f32 %v2109, %v2187
      %v2287 = vmax.f32 %v2110, %v2186
      %v2288 = vmax.f32 %v2111, %v2190
      %v2289 = vmax.f32 %v2112, %v2192
      %v2290 = vmax.f32 %v2113, %v2191
      %v2291 = vmax.f32 %v2114, %v2195
      %v2292 = vmax.f32 %v2115, %v2197
      %v2293 = vmax.f32 %v2116, %v2196
      %vm2294 = vcmask 1044480
      %v2295 = vrot.slane %v1844, 3
      %v2296 = vrot.slane %v1845, 3
      %v2297 = vsel %vm2294, %v2295, %v2296
      %v2298 = vrot.slane %v1846, 3
      %v2299 = vsel %vm2294, %v2296, %v2298
      %v2300 = vrot.slane %v1847, 3
      %v2301 = vrot.slane %v1848, 3
      %v2302 = vsel %vm2294, %v2300, %v2301
      %v2303 = vrot.slane %v1849, 3
      %v2304 = vsel %vm2294, %v2301, %v2303
      %v2305 = vrot.slane %v1850, 3
      %v2306 = vrot.slane %v1851, 3
      %v2307 = vsel %vm2294, %v2305, %v2306
      %v2308 = vrot.slane %v1852, 3
      %v2309 = vsel %vm2294, %v2306, %v2308
      %v2310 = vrot.slane %v1853, 3
      %v2311 = vrot.slane %v1854, 3
      %v2312 = vsel %vm2294, %v2310, %v2311
      %v2313 = vrot.slane %v1855, 3
      %v2314 = vsel %vm2294, %v2311, %v2313
      %v2315 = vrot.slane %v1856, 3
      %v2316 = vrot.slane %v1857, 3
      %v2317 = vsel %vm2294, %v2315, %v2316
      %v2318 = vrot.slane %v1858, 3
      %v2319 = vsel %vm2294, %v2316, %v2318
      %v2320 = vrot.slane %v1859, 3
      %v2321 = vrot.slane %v1860, 3
      %v2322 = vsel %vm2294, %v2320, %v2321
      %v2323 = vrot.slane %v1861, 3
      %v2324 = vsel %vm2294, %v2321, %v2323
      %v2325 = vrot.slane %v1862, 3
      %v2326 = vrot.slane %v1863, 3
      %v2327 = vsel %vm2294, %v2325, %v2326
      %v2328 = vrot.slane %v1864, 3
      %v2329 = vsel %vm2294, %v2326, %v2328
      %v2330 = vrot.slane %v1865, 3
      %v2331 = vrot.slane %v1866, 3
      %v2332 = vsel %vm2294, %v2330, %v2331
      %v2333 = vrot.slane %v1867, 3
      %v2334 = vsel %vm2294, %v2331, %v2333
      %v2335 = vrot.slane %v1868, 3
      %v2336 = vrot.slane %v1869, 3
      %v2337 = vsel %vm2294, %v2335, %v2336
      %v2338 = vrot.slane %v1870, 3
      %v2339 = vsel %vm2294, %v2336, %v2338
      %v2340 = vrot.slane %v1871, 3
      %v2341 = vrot.slane %v1872, 3
      %v2342 = vsel %vm2294, %v2340, %v2341
      %v2343 = vrot.slane %v1873, 3
      %v2344 = vsel %vm2294, %v2341, %v2343
      %v2345 = vrot.slane %v1874, 3
      %v2346 = vrot.slane %v1875, 3
      %v2347 = vsel %vm2294, %v2345, %v2346
      %v2348 = vrot.slane %v1876, 3
      %v2349 = vsel %vm2294, %v2346, %v2348
      %v2350 = vrot.slane %v1877, 3
      %v2351 = vrot.slane %v1878, 3
      %v2352 = vsel %vm2294, %v2350, %v2351
      %v2353 = vrot.slane %v1879, 3
      %v2354 = vsel %vm2294, %v2351, %v2353
      %v2355 = vrot.slane %v1880, 3
      %v2356 = vrot.slane %v1881, 3
      %v2357 = vsel %vm2294, %v2355, %v2356
      %v2358 = vrot.slane %v1882, 3
      %v2359 = vsel %vm2294, %v2356, %v2358
      %v2360 = vrot.slane %v1883, 3
      %v2361 = vrot.slane %v1884, 3
      %v2362 = vsel %vm2294, %v2360, %v2361
      %v2363 = vrot.slane %v1885, 3
      %v2364 = vsel %vm2294, %v2361, %v2363
      %v2365 = vrot.slane %v1886, 3
      %v2366 = vrot.slane %v1887, 3
      %v2367 = vsel %vm2294, %v2365, %v2366
      %v2368 = vrot.slane %v1888, 3
      %v2369 = vsel %vm2294, %v2366, %v2368
      %v2370 = vrot.slane %v1889, 3
      %v2371 = vrot.slane %v1890, 3
      %v2372 = vsel %vm2294, %v2370, %v2371
      %v2373 = vrot.slane %v1891, 3
      %v2374 = vsel %vm2294, %v2371, %v2373
      %v2423 = vmax.f32 %v2246, %v2297
      %v2424 = vmax.f32 %v2247, %v2299
      %v2425 = vmax.f32 %v2248, %v2298
      %v2426 = vmax.f32 %v2249, %v2302
      %v2427 = vmax.f32 %v2250, %v2304
      %v2428 = vmax.f32 %v2251, %v2303
      %v2429 = vmax.f32 %v2252, %v2307
      %v2430 = vmax.f32 %v2253, %v2309
      %v2431 = vmax.f32 %v2254, %v2308
      %v2432 = vmax.f32 %v2255, %v2312
      %v2433 = vmax.f32 %v2256, %v2314
      %v2434 = vmax.f32 %v2257, %v2313
      %v2435 = vmax.f32 %v2258, %v2317
      %v2436 = vmax.f32 %v2259, %v2319
      %v2437 = vmax.f32 %v2260, %v2318
      %v2438 = vmax.f32 %v2261, %v2322
      %v2439 = vmax.f32 %v2262, %v2324
      %v2440 = vmax.f32 %v2263, %v2323
      %v2441 = vmax.f32 %v2264, %v2327
      %v2442 = vmax.f32 %v2265, %v2329
      %v2443 = vmax.f32 %v2266, %v2328
      %v2444 = vmax.f32 %v2267, %v2332
      %v2445 = vmax.f32 %v2268, %v2334
      %v2446 = vmax.f32 %v2269, %v2333
      %v2447 = vmax.f32 %v2270, %v2337
      %v2448 = vmax.f32 %v2271, %v2339
      %v2449 = vmax.f32 %v2272, %v2338
      %v2450 = vmax.f32 %v2273, %v2342
      %v2451 = vmax.f32 %v2274, %v2344
      %v2452 = vmax.f32 %v2275, %v2343
      %v2453 = vmax.f32 %v2276, %v2347
      %v2454 = vmax.f32 %v2277, %v2349
      %v2455 = vmax.f32 %v2278, %v2348
      %v2456 = vmax.f32 %v2279, %v2352
      %v2457 = vmax.f32 %v2280, %v2354
      %v2458 = vmax.f32 %v2281, %v2353
      %v2459 = vmax.f32 %v2282, %v2357
      %v2460 = vmax.f32 %v2283, %v2359
      %v2461 = vmax.f32 %v2284, %v2358
      %v2462 = vmax.f32 %v2285, %v2362
      %v2463 = vmax.f32 %v2286, %v2364
      %v2464 = vmax.f32 %v2287, %v2363
      %v2465 = vmax.f32 %v2288, %v2367
      %v2466 = vmax.f32 %v2289, %v2369
      %v2467 = vmax.f32 %v2290, %v2368
      %v2468 = vmax.f32 %v2291, %v2372
      %v2469 = vmax.f32 %v2292, %v2374
      %v2470 = vmax.f32 %v2293, %v2373
      %v2471 = vrot.slane %v1845, 4
      %v2472 = vrot.slane %v1846, 4
      %v2473 = vsel %vm443, %v2471, %v2472
      %v2474 = vrot.slane %v1848, 4
      %v2475 = vrot.slane %v1849, 4
      %v2476 = vsel %vm443, %v2474, %v2475
      %v2477 = vrot.slane %v1851, 4
      %v2478 = vrot.slane %v1852, 4
      %v2479 = vsel %vm443, %v2477, %v2478
      %v2480 = vrot.slane %v1854, 4
      %v2481 = vrot.slane %v1855, 4
      %v2482 = vsel %vm443, %v2480, %v2481
      %v2483 = vrot.slane %v1857, 4
      %v2484 = vrot.slane %v1858, 4
      %v2485 = vsel %vm443, %v2483, %v2484
      %v2486 = vrot.slane %v1860, 4
      %v2487 = vrot.slane %v1861, 4
      %v2488 = vsel %vm443, %v2486, %v2487
      %v2489 = vrot.slane %v1863, 4
      %v2490 = vrot.slane %v1864, 4
      %v2491 = vsel %vm443, %v2489, %v2490
      %v2492 = vrot.slane %v1866, 4
      %v2493 = vrot.slane %v1867, 4
      %v2494 = vsel %vm443, %v2492, %v2493
      %v2495 = vrot.slane %v1869, 4
      %v2496 = vrot.slane %v1870, 4
      %v2497 = vsel %vm443, %v2495, %v2496
      %v2498 = vrot.slane %v1872, 4
      %v2499 = vrot.slane %v1873, 4
      %v2500 = vsel %vm443, %v2498, %v2499
      %v2501 = vrot.slane %v1875, 4
      %v2502 = vrot.slane %v1876, 4
      %v2503 = vsel %vm443, %v2501, %v2502
      %v2504 = vrot.slane %v1878, 4
      %v2505 = vrot.slane %v1879, 4
      %v2506 = vsel %vm443, %v2504, %v2505
      %v2507 = vrot.slane %v1881, 4
      %v2508 = vrot.slane %v1882, 4
      %v2509 = vsel %vm443, %v2507, %v2508
      %v2510 = vrot.slane %v1884, 4
      %v2511 = vrot.slane %v1885, 4
      %v2512 = vsel %vm443, %v2510, %v2511
      %v2513 = vrot.slane %v1887, 4
      %v2514 = vrot.slane %v1888, 4
      %v2515 = vsel %vm443, %v2513, %v2514
      %v2516 = vrot.slane %v1890, 4
      %v2517 = vrot.slane %v1891, 4
      %v2518 = vsel %vm443, %v2516, %v2517
      %v2567 = vmax.f32 %v2423, %v2471
      %v2568 = vmax.f32 %v2424, %v2473
      %v2569 = vmax.f32 %v2425, %v2472
      %v2570 = vmax.f32 %v2426, %v2474
      %v2571 = vmax.f32 %v2427, %v2476
      %v2572 = vmax.f32 %v2428, %v2475
      %v2573 = vmax.f32 %v2429, %v2477
      %v2574 = vmax.f32 %v2430, %v2479
      %v2575 = vmax.f32 %v2431, %v2478
      %v2576 = vmax.f32 %v2432, %v2480
      %v2577 = vmax.f32 %v2433, %v2482
      %v2578 = vmax.f32 %v2434, %v2481
      %v2579 = vmax.f32 %v2435, %v2483
      %v2580 = vmax.f32 %v2436, %v2485
      %v2581 = vmax.f32 %v2437, %v2484
      %v2582 = vmax.f32 %v2438, %v2486
      %v2583 = vmax.f32 %v2439, %v2488
      %v2584 = vmax.f32 %v2440, %v2487
      %v2585 = vmax.f32 %v2441, %v2489
      %v2586 = vmax.f32 %v2442, %v2491
      %v2587 = vmax.f32 %v2443, %v2490
      %v2588 = vmax.f32 %v2444, %v2492
      %v2589 = vmax.f32 %v2445, %v2494
      %v2590 = vmax.f32 %v2446, %v2493
      %v2591 = vmax.f32 %v2447, %v2495
      %v2592 = vmax.f32 %v2448, %v2497
      %v2593 = vmax.f32 %v2449, %v2496
      %v2594 = vmax.f32 %v2450, %v2498
      %v2595 = vmax.f32 %v2451, %v2500
      %v2596 = vmax.f32 %v2452, %v2499
      %v2597 = vmax.f32 %v2453, %v2501
      %v2598 = vmax.f32 %v2454, %v2503
      %v2599 = vmax.f32 %v2455, %v2502
      %v2600 = vmax.f32 %v2456, %v2504
      %v2601 = vmax.f32 %v2457, %v2506
      %v2602 = vmax.f32 %v2458, %v2505
      %v2603 = vmax.f32 %v2459, %v2507
      %v2604 = vmax.f32 %v2460, %v2509
      %v2605 = vmax.f32 %v2461, %v2508
      %v2606 = vmax.f32 %v2462, %v2510
      %v2607 = vmax.f32 %v2463, %v2512
      %v2608 = vmax.f32 %v2464, %v2511
      %v2609 = vmax.f32 %v2465, %v2513
      %v2610 = vmax.f32 %v2466, %v2515
      %v2611 = vmax.f32 %v2467, %v2514
      %v2612 = vmax.f32 %v2468, %v2516
      %v2613 = vmax.f32 %v2469, %v2518
      %v2614 = vmax.f32 %v2470, %v2517
      %v2663 = vrot.slane %v2567, 4
      %v2664 = vrot.slane %v2568, 4
      %v2665 = vsel %vm443, %v2663, %v2664
      %v2666 = vrot.slane %v2569, 4
      %v2667 = vsel %vm443, %v2664, %v2666
      %v2668 = vrot.slane %v2570, 4
      %v2669 = vrot.slane %v2571, 4
      %v2670 = vsel %vm443, %v2668, %v2669
      %v2671 = vrot.slane %v2572, 4
      %v2672 = vsel %vm443, %v2669, %v2671
      %v2673 = vrot.slane %v2573, 4
      %v2674 = vrot.slane %v2574, 4
      %v2675 = vsel %vm443, %v2673, %v2674
      %v2676 = vrot.slane %v2575, 4
      %v2677 = vsel %vm443, %v2674, %v2676
      %v2678 = vrot.slane %v2576, 4
      %v2679 = vrot.slane %v2577, 4
      %v2680 = vsel %vm443, %v2678, %v2679
      %v2681 = vrot.slane %v2578, 4
      %v2682 = vsel %vm443, %v2679, %v2681
      %v2683 = vrot.slane %v2579, 4
      %v2684 = vrot.slane %v2580, 4
      %v2685 = vsel %vm443, %v2683, %v2684
      %v2686 = vrot.slane %v2581, 4
      %v2687 = vsel %vm443, %v2684, %v2686
      %v2688 = vrot.slane %v2582, 4
      %v2689 = vrot.slane %v2583, 4
      %v2690 = vsel %vm443, %v2688, %v2689
      %v2691 = vrot.slane %v2584, 4
      %v2692 = vsel %vm443, %v2689, %v2691
      %v2693 = vrot.slane %v2585, 4
      %v2694 = vrot.slane %v2586, 4
      %v2695 = vsel %vm443, %v2693, %v2694
      %v2696 = vrot.slane %v2587, 4
      %v2697 = vsel %vm443, %v2694, %v2696
      %v2698 = vrot.slane %v2588, 4
      %v2699 = vrot.slane %v2589, 4
      %v2700 = vsel %vm443, %v2698, %v2699
      %v2701 = vrot.slane %v2590, 4
      %v2702 = vsel %vm443, %v2699, %v2701
      %v2703 = vrot.slane %v2591, 4
      %v2704 = vrot.slane %v2592, 4
      %v2705 = vsel %vm443, %v2703, %v2704
      %v2706 = vrot.slane %v2593, 4
      %v2707 = vsel %vm443, %v2704, %v2706
      %v2708 = vrot.slane %v2594, 4
      %v2709 = vrot.slane %v2595, 4
      %v2710 = vsel %vm443, %v2708, %v2709
      %v2711 = vrot.slane %v2596, 4
      %v2712 = vsel %vm443, %v2709, %v2711
      %v2713 = vrot.slane %v2597, 4
      %v2714 = vrot.slane %v2598, 4
      %v2715 = vsel %vm443, %v2713, %v2714
      %v2716 = vrot.slane %v2599, 4
      %v2717 = vsel %vm443, %v2714, %v2716
      %v2718 = vrot.slane %v2600, 4
      %v2719 = vrot.slane %v2601, 4
      %v2720 = vsel %vm443, %v2718, %v2719
      %v2721 = vrot.slane %v2602, 4
      %v2722 = vsel %vm443, %v2719, %v2721
      %v2723 = vrot.slane %v2603, 4
      %v2724 = vrot.slane %v2604, 4
      %v2725 = vsel %vm443, %v2723, %v2724
      %v2726 = vrot.slane %v2605, 4
      %v2727 = vsel %vm443, %v2724, %v2726
      %v2728 = vrot.slane %v2606, 4
      %v2729 = vrot.slane %v2607, 4
      %v2730 = vsel %vm443, %v2728, %v2729
      %v2731 = vrot.slane %v2608, 4
      %v2732 = vsel %vm443, %v2729, %v2731
      %v2733 = vrot.slane %v2609, 4
      %v2734 = vrot.slane %v2610, 4
      %v2735 = vsel %vm443, %v2733, %v2734
      %v2736 = vrot.slane %v2611, 4
      %v2737 = vsel %vm443, %v2734, %v2736
      %v2738 = vrot.slane %v2612, 4
      %v2739 = vrot.slane %v2613, 4
      %v2740 = vsel %vm443, %v2738, %v2739
      %v2741 = vrot.slane %v2614, 4
      %v2742 = vsel %vm443, %v2739, %v2741
      %v2743 = vld [vmem:[%s4] sm:$0x3]
      %v2744 = vsel %vm896, %v2665, 0
      %v2746 = vsel %vm896, %v2667, 0
      %v2748 = vsel %vm896, %v2670, 0
      %v2750 = vsel %vm896, %v2672, 0
      %v2752 = vsel %vm896, %v2675, 0
      %v2754 = vsel %vm896, %v2677, 0
      %v2756 = vsel %vm896, %v2680, 0
      %v2758 = vsel %vm896, %v2682, 0
      %v2760 = vsel %vm896, %v2685, 0
      %v2762 = vsel %vm896, %v2687, 0
      %v2764 = vsel %vm896, %v2690, 0
      %v2766 = vsel %vm896, %v2692, 0
      %v2768 = vsel %vm896, %v2695, 0
      %v2770 = vsel %vm896, %v2697, 0
      %v2772 = vsel %vm896, %v2700, 0
      %v2774 = vsel %vm896, %v2702, 0
      %v2776 = vsel %vm896, %v2705, 0
      %v2778 = vsel %vm896, %v2707, 0
      %v2780 = vsel %vm896, %v2710, 0
      %v2782 = vsel %vm896, %v2712, 0
      %v2784 = vsel %vm896, %v2715, 0
      %v2786 = vsel %vm896, %v2717, 0
      %v2788 = vsel %vm896, %v2720, 0
      %v2790 = vsel %vm896, %v2722, 0
      %v2792 = vsel %vm896, %v2725, 0
      %v2794 = vsel %vm896, %v2727, 0
      %v2796 = vsel %vm896, %v2730, 0
      %v2798 = vsel %vm896, %v2732, 0
      %v2800 = vsel %vm896, %v2735, 0
      %v2802 = vsel %vm896, %v2737, 0
      %v2804 = vsel %vm896, %v2740, 0
      %v2806 = vsel %vm896, %v2742, 0
      %v2809 = vsel %vm1147, %v2743, 0
      %2811 = vmatprep.subr.mxu0 0.0
      %2812 = vmatpush1.msra.mxu0 %v2809
      %2813 = vmatprep.subr.mxu0 0.0
      %2814 = vmatpush1.msra.mxu0 0.0
      %2815 = vmatprep.subr.mxu0 0.0
      %2816 = vmatpush1.msra.mxu0 0.0
      %2817 = vmatprep.subr.mxu0 0.0
      %2818 = vmatpush1.msra.mxu0 0.0
      %2819 = vmatprep.subr.mxu0 0.0
      %2820 = vmatpush1.msra.mxu0 0.0
      %2821 = vmatprep.subr.mxu0 0.0
      %2822 = vmatpush1.msra.mxu0 0.0
      %2823 = vmatprep.subr.mxu0 0.0
      %2824 = vmatpush1.msra.mxu0 0.0
      %2825 = vmatprep.subr.mxu0 0.0
      %2826 = vmatpush1.msra.mxu0 0.0
      %2827 = vmatprep.subr.mxu0 0.0
      %2828 = vmatpush1.msra.mxu0 0.0
      %2829 = vmatprep.subr.mxu0 0.0
      %2830 = vmatpush1.msra.mxu0 0.0
      %2831 = vmatprep.subr.mxu0 0.0
      %2832 = vmatpush1.msra.mxu0 0.0
      %2833 = vmatprep.subr.mxu0 0.0
      %2834 = vmatpush1.msra.mxu0 0.0
      %2835 = vmatprep.subr.mxu0 0.0
      %2836 = vmatpush1.msra.mxu0 0.0
      %2837 = vmatprep.subr.mxu0 0.0
      %2838 = vmatpush1.msra.mxu0 0.0
      %2839 = vmatprep.subr.mxu0 0.0
      %2840 = vmatpush1.msra.mxu0 0.0
      %2841 = vmatprep.subr.mxu0 0.0
      %2842 = vmatpush1.msra.mxu0 0.0
      %2843 = vmatprep.subr.mxu0 0.0
      %2844 = vmatpush1.msra.mxu0 0.0
      %2845 = vmatprep.subr.mxu0 0.0
      %2846 = vmatpush1.msra.mxu0 0.0
      %2847 = vmatprep.subr.mxu0 0.0
      %2848 = vmatpush1.msra.mxu0 0.0
      %2849 = vmatprep.subr.mxu0 0.0
      %2850 = vmatpush1.msra.mxu0 0.0
      %2851 = vmatprep.subr.mxu0 0.0
      %2852 = vmatpush1.msra.mxu0 0.0
      %2853 = vmatprep.subr.mxu0 0.0
      %2854 = vmatpush1.msra.mxu0 0.0
      %2855 = vmatprep.subr.mxu0 0.0
      %2856 = vmatpush1.msra.mxu0 0.0
      %2857 = vmatprep.subr.mxu0 0.0
      %2858 = vmatpush1.msra.mxu0 0.0
      %2859 = vmatprep.subr.mxu0 0.0
      %2860 = vmatpush1.msra.mxu0 0.0
      %2861 = vmatprep.subr.mxu0 0.0
      %2862 = vmatpush1.msra.mxu0 0.0
      %2863 = vmatprep.subr.mxu0 0.0
      %2864 = vmatpush1.msra.mxu0 0.0
      %2865 = vmatprep.subr.mxu0 0.0
      %2866 = vmatpush1.msra.mxu0 0.0
      %2867 = vmatprep.subr.mxu0 0.0
      %2868 = vmatpush1.msra.mxu0 0.0
      %2869 = vmatprep.subr.mxu0 0.0
      %2870 = vmatpush1.msra.mxu0 0.0
      %2871 = vmatprep.subr.mxu0 0.0
      %2872 = vmatpush1.msra.mxu0 0.0
      %2873 = vmatprep.subr.mxu0 0.0
      %2874 = vmatpush1.msra.mxu0 0.0
      %2875 = vmatprep.mubr.f32.mxu0 0.0
      %2876 = vmatmul.mubr.f32.gmra.mrb[0].mxu0 %v2744
      %v2877 = vpop.f32.mrb[0].mxu0
      %v2878 = vadd.f32 0.0, %v2877
      %v2879 = vpop.f32.mrb[0].mxu0
      %2880 = vmatprep.mubr.f32.mxu0 0.0
      %2881 = vmatmul.mubr.f32.gmra.mrb[0].mxu0 %v2746
      %v2882 = vpop.f32.mrb[0].mxu0
      %v2883 = vadd.f32 0.0, %v2882
      %v2884 = vpop.f32.mrb[0].mxu0
      %2885 = vmatprep.mubr.f32.mxu0 0.0
      %2886 = vmatmul.mubr.f32.gmra.mrb[0].mxu0 %v2748
      %v2887 = vpop.f32.mrb[0].mxu0
      %v2888 = vadd.f32 0.0, %v2887
      %v2889 = vpop.f32.mrb[0].mxu0
      %2890 = vmatprep.mubr.f32.mxu0 0.0
      %2891 = vmatmul.mubr.f32.gmra.mrb[0].mxu0 %v2750
      %v2892 = vpop.f32.mrb[0].mxu0
      %v2893 = vadd.f32 0.0, %v2892
      %v2894 = vpop.f32.mrb[0].mxu0
      %2895 = vmatprep.mubr.f32.mxu0 0.0
      %2896 = vmatmul.mubr.f32.gmra.mrb[0].mxu0 %v2752
      %v2897 = vpop.f32.mrb[0].mxu0
      %v2898 = vadd.f32 0.0, %v2897
      %v2899 = vpop.f32.mrb[0].mxu0
      %2900 = vmatprep.mubr.f32.mxu0 0.0
      %2901 = vmatmul.mubr.f32.gmra.mrb[0].mxu0 %v2754
      %v2902 = vpop.f32.mrb[0].mxu0
      %v2903 = vadd.f32 0.0, %v2902
      %v2904 = vpop.f32.mrb[0].mxu0
      %2905 = vmatprep.mubr.f32.mxu0 0.0
      %2906 = vmatmul.mubr.f32.gmra.mrb[0].mxu0 %v2756
      %v2907 = vpop.f32.mrb[0].mxu0
      %v2908 = vadd.f32 0.0, %v2907
      %v2909 = vpop.f32.mrb[0].mxu0
      %2910 = vmatprep.mubr.f32.mxu0 0.0
      %2911 = vmatmul.mubr.f32.gmra.mrb[0].mxu0 %v2758
      %v2912 = vpop.f32.mrb[0].mxu0
      %v2913 = vadd.f32 0.0, %v2912
      %v2914 = vpop.f32.mrb[0].mxu0
      %2915 = vmatprep.mubr.f32.mxu0 0.0
      %2916 = vmatmul.mubr.f32.gmra.mrb[0].mxu0 %v2760
      %v2917 = vpop.f32.mrb[0].mxu0
      %v2918 = vadd.f32 0.0, %v2917
      %v2919 = vpop.f32.mrb[0].mxu0
      %2920 = vmatprep.mubr.f32.mxu0 0.0
      %2921 = vmatmul.mubr.f32.gmra.mrb[0].mxu0 %v2762
      %v2922 = vpop.f32.mrb[0].mxu0
      %v2923 = vadd.f32 0.0, %v2922
      %v2924 = vpop.f32.mrb[0].mxu0
      %2925 = vmatprep.mubr.f32.mxu0 0.0
      %2926 = vmatmul.mubr.f32.gmra.mrb[0].mxu0 %v2764
      %v2927 = vpop.f32.mrb[0].mxu0
      %v2928 = vadd.f32 0.0, %v2927
      %v2929 = vpop.f32.mrb[0].mxu0
      %2930 = vmatprep.mubr.f32.mxu0 0.0
      %2931 = vmatmul.mubr.f32.gmra.mrb[0].mxu0 %v2766
      %v2932 = vpop.f32.mrb[0].mxu0
      %v2933 = vadd.f32 0.0, %v2932
      %v2934 = vpop.f32.mrb[0].mxu0
      %2935 = vmatprep.mubr.f32.mxu0 0.0
      %2936 = vmatmul.mubr.f32.gmra.mrb[0].mxu0 %v2768
      %v2937 = vpop.f32.mrb[0].mxu0
      %v2938 = vadd.f32 0.0, %v2937
      %v2939 = vpop.f32.mrb[0].mxu0
      %2940 = vmatprep.mubr.f32.mxu0 0.0
      %2941 = vmatmul.mubr.f32.gmra.mrb[0].mxu0 %v2770
      %v2942 = vpop.f32.mrb[0].mxu0
      %v2943 = vadd.f32 0.0, %v2942
      %v2944 = vpop.f32.mrb[0].mxu0
      %2945 = vmatprep.mubr.f32.mxu0 0.0
      %2946 = vmatmul.mubr.f32.gmra.mrb[0].mxu0 %v2772
      %v2947 = vpop.f32.mrb[0].mxu0
      %v2948 = vadd.f32 0.0, %v2947
      %v2949 = vpop.f32.mrb[0].mxu0
      %2950 = vmatprep.mubr.f32.mxu0 0.0
      %2951 = vmatmul.mubr.f32.gmra.mrb[0].mxu0 %v2774
      %v2952 = vpop.f32.mrb[0].mxu0
      %v2953 = vadd.f32 0.0, %v2952
      %v2954 = vpop.f32.mrb[0].mxu0
      %2955 = vmatprep.mubr.f32.mxu0 0.0
      %2956 = vmatmul.mubr.f32.gmra.mrb[0].mxu0 %v2776
      %v2957 = vpop.f32.mrb[0].mxu0
      %v2958 = vadd.f32 0.0, %v2957
      %v2959 = vpop.f32.mrb[0].mxu0
      %2960 = vmatprep.mubr.f32.mxu0 0.0
      %2961 = vmatmul.mubr.f32.gmra.mrb[0].mxu0 %v2778
      %v2962 = vpop.f32.mrb[0].mxu0
      %v2963 = vadd.f32 0.0, %v2962
      %v2964 = vpop.f32.mrb[0].mxu0
      %2965 = vmatprep.mubr.f32.mxu0 0.0
      %2966 = vmatmul.mubr.f32.gmra.mrb[0].mxu0 %v2780
      %v2967 = vpop.f32.mrb[0].mxu0
      %v2968 = vadd.f32 0.0, %v2967
      %v2969 = vpop.f32.mrb[0].mxu0
      %2970 = vmatprep.mubr.f32.mxu0 0.0
      %2971 = vmatmul.mubr.f32.gmra.mrb[0].mxu0 %v2782
      %v2972 = vpop.f32.mrb[0].mxu0
      %v2973 = vadd.f32 0.0, %v2972
      %v2974 = vpop.f32.mrb[0].mxu0
      %2975 = vmatprep.mubr.f32.mxu0 0.0
      %2976 = vmatmul.mubr.f32.gmra.mrb[0].mxu0 %v2784
      %v2977 = vpop.f32.mrb[0].mxu0
      %v2978 = vadd.f32 0.0, %v2977
      %v2979 = vpop.f32.mrb[0].mxu0
      %2980 = vmatprep.mubr.f32.mxu0 0.0
      %2981 = vmatmul.mubr.f32.gmra.mrb[0].mxu0 %v2786
      %v2982 = vpop.f32.mrb[0].mxu0
      %v2983 = vadd.f32 0.0, %v2982
      %v2984 = vpop.f32.mrb[0].mxu0
      %2985 = vmatprep.mubr.f32.mxu0 0.0
      %2986 = vmatmul.mubr.f32.gmra.mrb[0].mxu0 %v2788
      %v2987 = vpop.f32.mrb[0].mxu0
      %v2988 = vadd.f32 0.0, %v2987
      %v2989 = vpop.f32.mrb[0].mxu0
      %2990 = vmatprep.mubr.f32.mxu0 0.0
      %2991 = vmatmul.mubr.f32.gmra.mrb[0].mxu0 %v2790
      %v2992 = vpop.f32.mrb[0].mxu0
      %v2993 = vadd.f32 0.0, %v2992
      %v2994 = vpop.f32.mrb[0].mxu0
      %2995 = vmatprep.mubr.f32.mxu0 0.0
      %2996 = vmatmul.mubr.f32.gmra.mrb[0].mxu0 %v2792
      %v2997 = vpop.f32.mrb[0].mxu0
      %v2998 = vadd.f32 0.0, %v2997
      %v2999 = vpop.f32.mrb[0].mxu0
      %3000 = vmatprep.mubr.f32.mxu0 0.0
      %3001 = vmatmul.mubr.f32.gmra.mrb[0].mxu0 %v2794
      %v3002 = vpop.f32.mrb[0].mxu0
      %v3003 = vadd.f32 0.0, %v3002
      %v3004 = vpop.f32.mrb[0].mxu0
      %3005 = vmatprep.mubr.f32.mxu0 0.0
      %3006 = vmatmul.mubr.f32.gmra.mrb[0].mxu0 %v2796
      %v3007 = vpop.f32.mrb[0].mxu0
      %v3008 = vadd.f32 0.0, %v3007
      %v3009 = vpop.f32.mrb[0].mxu0
      %3010 = vmatprep.mubr.f32.mxu0 0.0
      %3011 = vmatmul.mubr.f32.gmra.mrb[0].mxu0 %v2798
      %v3012 = vpop.f32.mrb[0].mxu0
      %v3013 = vadd.f32 0.0, %v3012
      %v3014 = vpop.f32.mrb[0].mxu0
      %3015 = vmatprep.mubr.f32.mxu0 0.0
      %3016 = vmatmul.mubr.f32.gmra.mrb[0].mxu0 %v2800
      %v3017 = vpop.f32.mrb[0].mxu0
      %v3018 = vadd.f32 0.0, %v3017
      %v3019 = vpop.f32.mrb[0].mxu0
      %3020 = vmatprep.mubr.f32.mxu0 0.0
      %3021 = vmatmul.mubr.f32.gmra.mrb[0].mxu0 %v2802
      %v3022 = vpop.f32.mrb[0].mxu0
      %v3023 = vadd.f32 0.0, %v3022
      %v3024 = vpop.f32.mrb[0].mxu0
      %3025 = vmatprep.mubr.f32.mxu0 0.0
      %3026 = vmatmul.mubr.f32.gmra.mrb[0].mxu0 %v2804
      %v3027 = vpop.f32.mrb[0].mxu0
      %v3028 = vadd.f32 0.0, %v3027
      %v3029 = vpop.f32.mrb[0].mxu0
      %3030 = vmatprep.mubr.f32.mxu0 0.0
      %3031 = vmatmul.mubr.f32.gmra.mrb[0].mxu0 %v2806
      %v3032 = vpop.f32.mrb[0].mxu0
      %v3033 = vadd.f32 0.0, %v3032
      %v3034 = vpop.f32.mrb[0].mxu0
      %3035 = vdwg.mxu0
      %v3036 = vadd.f32 %v1218, %v2878
      %v3037 = vadd.f32 %v1223, %v2883
      %v3038 = vadd.f32 %v1228, %v2888
      %v3039 = vadd.f32 %v1233, %v2893
      %v3040 = vadd.f32 %v1238, %v2898
      %v3041 = vadd.f32 %v1243, %v2903
      %v3042 = vadd.f32 %v1248, %v2908
      %v3043 = vadd.f32 %v1253, %v2913
      %v3044 = vadd.f32 %v1258, %v2918
      %v3045 = vadd.f32 %v1263, %v2923
      %v3046 = vadd.f32 %v1268, %v2928
      %v3047 = vadd.f32 %v1273, %v2933
      %v3048 = vadd.f32 %v1278, %v2938
      %v3049 = vadd.f32 %v1283, %v2943
      %v3050 = vadd.f32 %v1288, %v2948
      %v3051 = vadd.f32 %v1293, %v2953
      %v3052 = vadd.f32 %v1298, %v2958
      %v3053 = vadd.f32 %v1303, %v2963
      %v3054 = vadd.f32 %v1308, %v2968
      %v3055 = vadd.f32 %v1313, %v2973
      %v3056 = vadd.f32 %v1318, %v2978
      %v3057 = vadd.f32 %v1323, %v2983
      %v3058 = vadd.f32 %v1328, %v2988
      %v3059 = vadd.f32 %v1333, %v2993
      %v3060 = vadd.f32 %v1338, %v2998
      %v3061 = vadd.f32 %v1343, %v3003
      %v3062 = vadd.f32 %v1348, %v3008
      %v3063 = vadd.f32 %v1353, %v3013
      %v3064 = vadd.f32 %v1358, %v3018
      %v3065 = vadd.f32 %v1363, %v3023
      %v3066 = vadd.f32 %v1368, %v3028
      %v3067 = vadd.f32 %v1373, %v3033
      %s3068 = scalar_lea.vmem [#allocation2], 64
      %v3069 = vld [vmem:[%s3068] sm:$0xff]
      %v3070 = vld [vmem:[%s3068 + $0x8] sm:$0xff]
      %v3071 = vld [vmem:[%s3068 + $0x10] sm:$0xff]
      %v3072 = vld [vmem:[%s3068 + $0x18] sm:$0xf]
      %v3073 = vld [vmem:[%s3068 + $0x20] sm:$0xff]
      %v3074 = vld [vmem:[%s3068 + $0x28] sm:$0xff]
      %v3075 = vld [vmem:[%s3068 + $0x30] sm:$0xff]
      %v3076 = vld [vmem:[%s3068 + $0x38] sm:$0xf]
      %v3077 = vld [vmem:[%s3068 + $0x40] sm:$0xff]
      %v3078 = vld [vmem:[%s3068 + $0x48] sm:$0xff]
      %v3079 = vld [vmem:[%s3068 + $0x50] sm:$0xff]
      %v3080 = vld [vmem:[%s3068 + $0x58] sm:$0xf]
      %v3081 = vld [vmem:[%s3068 + $0x60] sm:$0xff]
      %v3082 = vld [vmem:[%s3068 + $0x68] sm:$0xff]
      %v3083 = vld [vmem:[%s3068 + $0x70] sm:$0xff]
      %v3084 = vld [vmem:[%s3068 + $0x78] sm:$0xf]
      %v3085 = vld [vmem:[%s3068 + $0x80] sm:$0xff]
      %v3086 = vld [vmem:[%s3068 + $0x88] sm:$0xff]
      %v3087 = vld [vmem:[%s3068 + $0x90] sm:$0xff]
      %v3088 = vld [vmem:[%s3068 + $0x98] sm:$0xf]
      %v3089 = vld [vmem:[%s3068 + $0xa0] sm:$0xff]
      %v3090 = vld [vmem:[%s3068 + $0xa8] sm:$0xff]
      %v3091 = vld [vmem:[%s3068 + $0xb0] sm:$0xff]
      %v3092 = vld [vmem:[%s3068 + $0xb8] sm:$0xf]
      %v3093 = vld [vmem:[%s3068 + $0xc0] sm:$0xff]
      %v3094 = vld [vmem:[%s3068 + $0xc8] sm:$0xff]
      %v3095 = vld [vmem:[%s3068 + $0xd0] sm:$0xff]
      %v3096 = vld [vmem:[%s3068 + $0xd8] sm:$0xf]
      %v3097 = vld [vmem:[%s3068 + $0xe0] sm:$0xff]
      %v3098 = vld [vmem:[%s3068 + $0xe8] sm:$0xff]
      %v3099 = vld [vmem:[%s3068 + $0xf0] sm:$0xff]
      %v3100 = vld [vmem:[%s3068 + $0xf8] sm:$0xf]
      %v3101 = vld [vmem:[%s3068 + $0x100] sm:$0xff]
      %v3102 = vld [vmem:[%s3068 + $0x108] sm:$0xff]
      %v3103 = vld [vmem:[%s3068 + $0x110] sm:$0xff]
      %v3104 = vld [vmem:[%s3068 + $0x118] sm:$0xf]
      %v3105 = vld [vmem:[%s3068 + $0x120] sm:$0xff]
      %v3106 = vld [vmem:[%s3068 + $0x128] sm:$0xff]
      %v3107 = vld [vmem:[%s3068 + $0x130] sm:$0xff]
      %v3108 = vld [vmem:[%s3068 + $0x138] sm:$0xf]
      %v3109 = vld [vmem:[%s3068 + $0x140] sm:$0xff]
      %v3110 = vld [vmem:[%s3068 + $0x148] sm:$0xff]
      %v3111 = vld [vmem:[%s3068 + $0x150] sm:$0xff]
      %v3112 = vld [vmem:[%s3068 + $0x158] sm:$0xf]
      %v3113 = vld [vmem:[%s3068 + $0x160] sm:$0xff]
      %v3114 = vld [vmem:[%s3068 + $0x168] sm:$0xff]
      %v3115 = vld [vmem:[%s3068 + $0x170] sm:$0xff]
      %v3116 = vld [vmem:[%s3068 + $0x178] sm:$0xf]
      %v3117 = vld [vmem:[%s3068 + $0x180] sm:$0xff]
      %v3118 = vld [vmem:[%s3068 + $0x188] sm:$0xff]
      %v3119 = vld [vmem:[%s3068 + $0x190] sm:$0xff]
      %v3120 = vld [vmem:[%s3068 + $0x198] sm:$0xf]
      %v3121 = vld [vmem:[%s3068 + $0x1a0] sm:$0xff]
      %v3122 = vld [vmem:[%s3068 + $0x1a8] sm:$0xff]
      %v3123 = vld [vmem:[%s3068 + $0x1b0] sm:$0xff]
      %v3124 = vld [vmem:[%s3068 + $0x1b8] sm:$0xf]
      %v3125 = vld [vmem:[%s3068 + $0x1c0] sm:$0xff]
      %v3126 = vld [vmem:[%s3068 + $0x1c8] sm:$0xff]
      %v3127 = vld [vmem:[%s3068 + $0x1d0] sm:$0xff]
      %v3128 = vld [vmem:[%s3068 + $0x1d8] sm:$0xf]
      %v3129 = vld [vmem:[%s3068 + $0x1e0] sm:$0xff]
      %v3130 = vld [vmem:[%s3068 + $0x1e8] sm:$0xff]
      %v3131 = vld [vmem:[%s3068 + $0x1f0] sm:$0xff]
      %v3132 = vld [vmem:[%s3068 + $0x1f8] sm:$0xf]
      %s3133 = scalar_lea.vmem [#allocation2], 96
      %v3134 = vld [vmem:[%s3133] sm:$0xff]
      %v3135 = vld [vmem:[%s3133 + $0x8] sm:$0xff]
      %v3136 = vld [vmem:[%s3133 + $0x10] sm:$0xff]
      %v3137 = vld [vmem:[%s3133 + $0x18] sm:$0xf]
      %v3138 = vld [vmem:[%s3133 + $0x20] sm:$0xff]
      %v3139 = vld [vmem:[%s3133 + $0x28] sm:$0xff]
      %v3140 = vld [vmem:[%s3133 + $0x30] sm:$0xff]
      %v3141 = vld [vmem:[%s3133 + $0x38] sm:$0xf]
      %v3142 = vld [vmem:[%s3133 + $0x40] sm:$0xff]
      %v3143 = vld [vmem:[%s3133 + $0x48] sm:$0xff]
      %v3144 = vld [vmem:[%s3133 + $0x50] sm:$0xff]
      %v3145 = vld [vmem:[%s3133 + $0x58] sm:$0xf]
      %v3146 = vld [vmem:[%s3133 + $0x60] sm:$0xff]
      %v3147 = vld [vmem:[%s3133 + $0x68] sm:$0xff]
      %v3148 = vld [vmem:[%s3133 + $0x70] sm:$0xff]
      %v3149 = vld [vmem:[%s3133 + $0x78] sm:$0xf]
      %v3150 = vld [vmem:[%s3133 + $0x80] sm:$0xff]
      %v3151 = vld [vmem:[%s3133 + $0x88] sm:$0xff]
      %v3152 = vld [vmem:[%s3133 + $0x90] sm:$0xff]
      %v3153 = vld [vmem:[%s3133 + $0x98] sm:$0xf]
      %v3154 = vld [vmem:[%s3133 + $0xa0] sm:$0xff]
      %v3155 = vld [vmem:[%s3133 + $0xa8] sm:$0xff]
      %v3156 = vld [vmem:[%s3133 + $0xb0] sm:$0xff]
      %v3157 = vld [vmem:[%s3133 + $0xb8] sm:$0xf]
      %v3158 = vld [vmem:[%s3133 + $0xc0] sm:$0xff]
      %v3159 = vld [vmem:[%s3133 + $0xc8] sm:$0xff]
      %v3160 = vld [vmem:[%s3133 + $0xd0] sm:$0xff]
      %v3161 = vld [vmem:[%s3133 + $0xd8] sm:$0xf]
      %v3162 = vld [vmem:[%s3133 + $0xe0] sm:$0xff]
      %v3163 = vld [vmem:[%s3133 + $0xe8] sm:$0xff]
      %v3164 = vld [vmem:[%s3133 + $0xf0] sm:$0xff]
      %v3165 = vld [vmem:[%s3133 + $0xf8] sm:$0xf]
      %v3166 = vld [vmem:[%s3133 + $0x100] sm:$0xff]
      %v3167 = vld [vmem:[%s3133 + $0x108] sm:$0xff]
      %v3168 = vld [vmem:[%s3133 + $0x110] sm:$0xff]
      %v3169 = vld [vmem:[%s3133 + $0x118] sm:$0xf]
      %v3170 = vld [vmem:[%s3133 + $0x120] sm:$0xff]
      %v3171 = vld [vmem:[%s3133 + $0x128] sm:$0xff]
      %v3172 = vld [vmem:[%s3133 + $0x130] sm:$0xff]
      %v3173 = vld [vmem:[%s3133 + $0x138] sm:$0xf]
      %v3174 = vld [vmem:[%s3133 + $0x140] sm:$0xff]
      %v3175 = vld [vmem:[%s3133 + $0x148] sm:$0xff]
      %v3176 = vld [vmem:[%s3133 + $0x150] sm:$0xff]
      %v3177 = vld [vmem:[%s3133 + $0x158] sm:$0xf]
      %v3178 = vld [vmem:[%s3133 + $0x160] sm:$0xff]
      %v3179 = vld [vmem:[%s3133 + $0x168] sm:$0xff]
      %v3180 = vld [vmem:[%s3133 + $0x170] sm:$0xff]
      %v3181 = vld [vmem:[%s3133 + $0x178] sm:$0xf]
      %v3182 = vld [vmem:[%s3133 + $0x180] sm:$0xff]
      %v3183 = vld [vmem:[%s3133 + $0x188] sm:$0xff]
      %v3184 = vld [vmem:[%s3133 + $0x190] sm:$0xff]
      %v3185 = vld [vmem:[%s3133 + $0x198] sm:$0xf]
      %v3186 = vld [vmem:[%s3133 + $0x1a0] sm:$0xff]
      %v3187 = vld [vmem:[%s3133 + $0x1a8] sm:$0xff]
      %v3188 = vld [vmem:[%s3133 + $0x1b0] sm:$0xff]
      %v3189 = vld [vmem:[%s3133 + $0x1b8] sm:$0xf]
      %v3190 = vld [vmem:[%s3133 + $0x1c0] sm:$0xff]
      %v3191 = vld [vmem:[%s3133 + $0x1c8] sm:$0xff]
      %v3192 = vld [vmem:[%s3133 + $0x1d0] sm:$0xff]
      %v3193 = vld [vmem:[%s3133 + $0x1d8] sm:$0xf]
      %v3194 = vld [vmem:[%s3133 + $0x1e0] sm:$0xff]
      %v3195 = vld [vmem:[%s3133 + $0x1e8] sm:$0xff]
      %v3196 = vld [vmem:[%s3133 + $0x1f0] sm:$0xff]
      %v3197 = vld [vmem:[%s3133 + $0x1f8] sm:$0xf]
      %v3198 = vmax.f32 %v3069, %v3134
      %v3199 = vmax.f32 %v3070, %v3135
      %v3200 = vmax.f32 %v3071, %v3136
      %v3201 = vmax.f32 %v3072, %v3137
      %v3202 = vmax.f32 %v3073, %v3138
      %v3203 = vmax.f32 %v3074, %v3139
      %v3204 = vmax.f32 %v3075, %v3140
      %v3205 = vmax.f32 %v3076, %v3141
      %v3206 = vmax.f32 %v3077, %v3142
      %v3207 = vmax.f32 %v3078, %v3143
      %v3208 = vmax.f32 %v3079, %v3144
      %v3209 = vmax.f32 %v3080, %v3145
      %v3210 = vmax.f32 %v3081, %v3146
      %v3211 = vmax.f32 %v3082, %v3147
      %v3212 = vmax.f32 %v3083, %v3148
      %v3213 = vmax.f32 %v3084, %v3149
      %v3214 = vmax.f32 %v3085, %v3150
      %v3215 = vmax.f32 %v3086, %v3151
      %v3216 = vmax.f32 %v3087, %v3152
      %v3217 = vmax.f32 %v3088, %v3153
      %v3218 = vmax.f32 %v3089, %v3154
      %v3219 = vmax.f32 %v3090, %v3155
      %v3220 = vmax.f32 %v3091, %v3156
      %v3221 = vmax.f32 %v3092, %v3157
      %v3222 = vmax.f32 %v3093, %v3158
      %v3223 = vmax.f32 %v3094, %v3159
      %v3224 = vmax.f32 %v3095, %v3160
      %v3225 = vmax.f32 %v3096, %v3161
      %v3226 = vmax.f32 %v3097, %v3162
      %v3227 = vmax.f32 %v3098, %v3163
      %v3228 = vmax.f32 %v3099, %v3164
      %v3229 = vmax.f32 %v3100, %v3165
      %v3230 = vmax.f32 %v3101, %v3166
      %v3231 = vmax.f32 %v3102, %v3167
      %v3232 = vmax.f32 %v3103, %v3168
      %v3233 = vmax.f32 %v3104, %v3169
      %v3234 = vmax.f32 %v3105, %v3170
      %v3235 = vmax.f32 %v3106, %v3171
      %v3236 = vmax.f32 %v3107, %v3172
      %v3237 = vmax.f32 %v3108, %v3173
      %v3238 = vmax.f32 %v3109, %v3174
      %v3239 = vmax.f32 %v3110, %v3175
      %v3240 = vmax.f32 %v3111, %v3176
      %v3241 = vmax.f32 %v3112, %v3177
      %v3242 = vmax.f32 %v3113, %v3178
      %v3243 = vmax.f32 %v3114, %v3179
      %v3244 = vmax.f32 %v3115, %v3180
      %v3245 = vmax.f32 %v3116, %v3181
      %v3246 = vmax.f32 %v3117, %v3182
      %v3247 = vmax.f32 %v3118, %v3183
      %v3248 = vmax.f32 %v3119, %v3184
      %v3249 = vmax.f32 %v3120, %v3185
      %v3250 = vmax.f32 %v3121, %v3186
      %v3251 = vmax.f32 %v3122, %v3187
      %v3252 = vmax.f32 %v3123, %v3188
      %v3253 = vmax.f32 %v3124, %v3189
      %v3254 = vmax.f32 %v3125, %v3190
      %v3255 = vmax.f32 %v3126, %v3191
      %v3256 = vmax.f32 %v3127, %v3192
      %v3257 = vmax.f32 %v3128, %v3193
      %v3258 = vmax.f32 %v3129, %v3194
      %v3259 = vmax.f32 %v3130, %v3195
      %v3260 = vmax.f32 %v3131, %v3196
      %v3261 = vmax.f32 %v3132, %v3197
      %v3262 = vmax.f32 %v3198, %v1377
      %v3263 = vmax.f32 %v3199, %v1378
      %v3264 = vmax.f32 %v3200, %v1379
      %v3265 = vmax.f32 %v3201, %v1380
      %v3266 = vmax.f32 %v3202, %v1381
      %v3267 = vmax.f32 %v3203, %v1382
      %v3268 = vmax.f32 %v3204, %v1383
      %v3269 = vmax.f32 %v3205, %v1384
      %v3270 = vmax.f32 %v3206, %v1385
      %v3271 = vmax.f32 %v3207, %v1386
      %v3272 = vmax.f32 %v3208, %v1387
      %v3273 = vmax.f32 %v3209, %v1388
      %v3274 = vmax.f32 %v3210, %v1389
      %v3275 = vmax.f32 %v3211, %v1390
      %v3276 = vmax.f32 %v3212, %v1391
      %v3277 = vmax.f32 %v3213, %v1392
      %v3278 = vmax.f32 %v3214, %v1393
      %v3279 = vmax.f32 %v3215, %v1394
      %v3280 = vmax.f32 %v3216, %v1395
      %v3281 = vmax.f32 %v3217, %v1396
      %v3282 = vmax.f32 %v3218, %v1397
      %v3283 = vmax.f32 %v3219, %v1398
      %v3284 = vmax.f32 %v3220, %v1399
      %v3285 = vmax.f32 %v3221, %v1400
      %v3286 = vmax.f32 %v3222, %v1401
      %v3287 = vmax.f32 %v3223, %v1402
      %v3288 = vmax.f32 %v3224, %v1403
      %v3289 = vmax.f32 %v3225, %v1404
      %v3290 = vmax.f32 %v3226, %v1405
      %v3291 = vmax.f32 %v3227, %v1406
      %v3292 = vmax.f32 %v3228, %v1407
      %v3293 = vmax.f32 %v3229, %v1408
      %v3294 = vmax.f32 %v3230, %v1409
      %v3295 = vmax.f32 %v3231, %v1410
      %v3296 = vmax.f32 %v3232, %v1411
      %v3297 = vmax.f32 %v3233, %v1412
      %v3298 = vmax.f32 %v3234, %v1413
      %v3299 = vmax.f32 %v3235, %v1414
      %v3300 = vmax.f32 %v3236, %v1415
      %v3301 = vmax.f32 %v3237, %v1416
      %v3302 = vmax.f32 %v3238, %v1417
      %v3303 = vmax.f32 %v3239, %v1418
      %v3304 = vmax.f32 %v3240, %v1419
      %v3305 = vmax.f32 %v3241, %v1420
      %v3306 = vmax.f32 %v3242, %v1421
      %v3307 = vmax.f32 %v3243, %v1422
      %v3308 = vmax.f32 %v3244, %v1423
      %v3309 = vmax.f32 %v3245, %v1424
      %v3310 = vmax.f32 %v3246, %v1425
      %v3311 = vmax.f32 %v3247, %v1426
      %v3312 = vmax.f32 %v3248, %v1427
      %v3313 = vmax.f32 %v3249, %v1428
      %v3314 = vmax.f32 %v3250, %v1429
      %v3315 = vmax.f32 %v3251, %v1430
      %v3316 = vmax.f32 %v3252, %v1431
      %v3317 = vmax.f32 %v3253, %v1432
      %v3318 = vmax.f32 %v3254, %v1433
      %v3319 = vmax.f32 %v3255, %v1434
      %v3320 = vmax.f32 %v3256, %v1435
      %v3321 = vmax.f32 %v3257, %v1436
      %v3322 = vmax.f32 %v3258, %v1437
      %v3323 = vmax.f32 %v3259, %v1438
      %v3324 = vmax.f32 %v3260, %v1439
      %v3325 = vmax.f32 %v3261, %v1440
      %v3326 = vmax.f32 %v3262, %v1442
      %v3327 = vmax.f32 %v3263, %v1443
      %v3328 = vmax.f32 %v3264, %v1444
      %v3329 = vmax.f32 %v3265, %v1445
      %v3330 = vmax.f32 %v3266, %v1446
      %v3331 = vmax.f32 %v3267, %v1447
      %v3332 = vmax.f32 %v3268, %v1448
      %v3333 = vmax.f32 %v3269, %v1449
      %v3334 = vmax.f32 %v3270, %v1450
      %v3335 = vmax.f32 %v3271, %v1451
      %v3336 = vmax.f32 %v3272, %v1452
      %v3337 = vmax.f32 %v3273, %v1453
      %v3338 = vmax.f32 %v3274, %v1454
      %v3339 = vmax.f32 %v3275, %v1455
      %v3340 = vmax.f32 %v3276, %v1456
      %v3341 = vmax.f32 %v3277, %v1457
      %v3342 = vmax.f32 %v3278, %v1458
      %v3343 = vmax.f32 %v3279, %v1459
      %v3344 = vmax.f32 %v3280, %v1460
      %v3345 = vmax.f32 %v3281, %v1461
      %v3346 = vmax.f32 %v3282, %v1462
      %v3347 = vmax.f32 %v3283, %v1463
      %v3348 = vmax.f32 %v3284, %v1464
      %v3349 = vmax.f32 %v3285, %v1465
      %v3350 = vmax.f32 %v3286, %v1466
      %v3351 = vmax.f32 %v3287, %v1467
      %v3352 = vmax.f32 %v3288, %v1468
      %v3353 = vmax.f32 %v3289, %v1469
      %v3354 = vmax.f32 %v3290, %v1470
      %v3355 = vmax.f32 %v3291, %v1471
      %v3356 = vmax.f32 %v3292, %v1472
      %v3357 = vmax.f32 %v3293, %v1473
      %v3358 = vmax.f32 %v3294, %v1474
      %v3359 = vmax.f32 %v3295, %v1475
      %v3360 = vmax.f32 %v3296, %v1476
      %v3361 = vmax.f32 %v3297, %v1477
      %v3362 = vmax.f32 %v3298, %v1478
      %v3363 = vmax.f32 %v3299, %v1479
      %v3364 = vmax.f32 %v3300, %v1480
      %v3365 = vmax.f32 %v3301, %v1481
      %v3366 = vmax.f32 %v3302, %v1482
      %v3367 = vmax.f32 %v3303, %v1483
      %v3368 = vmax.f32 %v3304, %v1484
      %v3369 = vmax.f32 %v3305, %v1485
      %v3370 = vmax.f32 %v3306, %v1486
      %v3371 = vmax.f32 %v3307, %v1487
      %v3372 = vmax.f32 %v3308, %v1488
      %v3373 = vmax.f32 %v3309, %v1489
      %v3374 = vmax.f32 %v3310, %v1490
      %v3375 = vmax.f32 %v3311, %v1491
      %v3376 = vmax.f32 %v3312, %v1492
      %v3377 = vmax.f32 %v3313, %v1493
      %v3378 = vmax.f32 %v3314, %v1494
      %v3379 = vmax.f32 %v3315, %v1495
      %v3380 = vmax.f32 %v3316, %v1496
      %v3381 = vmax.f32 %v3317, %v1497
      %v3382 = vmax.f32 %v3318, %v1498
      %v3383 = vmax.f32 %v3319, %v1499
      %v3384 = vmax.f32 %v3320, %v1500
      %v3385 = vmax.f32 %v3321, %v1501
      %v3386 = vmax.f32 %v3322, %v1502
      %v3387 = vmax.f32 %v3323, %v1503
      %v3388 = vmax.f32 %v3324, %v1504
      %v3389 = vmax.f32 %v3325, %v1505
      %v3390 = vmax.f32 %v3326, %v1554
      %v3391 = vmax.f32 %v3327, %v1555
      %v3392 = vmax.f32 %v3328, %v1556
      %v3393 = vmax.f32 %v3329, %v1557
      %v3394 = vmax.f32 %v3330, %v1558
      %v3395 = vmax.f32 %v3331, %v1559
      %v3396 = vmax.f32 %v3332, %v1560
      %v3397 = vmax.f32 %v3333, %v1561
      %v3398 = vmax.f32 %v3334, %v1562
      %v3399 = vmax.f32 %v3335, %v1563
      %v3400 = vmax.f32 %v3336, %v1564
      %v3401 = vmax.f32 %v3337, %v1565
      %v3402 = vmax.f32 %v3338, %v1566
      %v3403 = vmax.f32 %v3339, %v1567
      %v3404 = vmax.f32 %v3340, %v1568
      %v3405 = vmax.f32 %v3341, %v1569
      %v3406 = vmax.f32 %v3342, %v1570
      %v3407 = vmax.f32 %v3343, %v1571
      %v3408 = vmax.f32 %v3344, %v1572
      %v3409 = vmax.f32 %v3345, %v1573
      %v3410 = vmax.f32 %v3346, %v1574
      %v3411 = vmax.f32 %v3347, %v1575
      %v3412 = vmax.f32 %v3348, %v1576
      %v3413 = vmax.f32 %v3349, %v1577
      %v3414 = vmax.f32 %v3350, %v1578
      %v3415 = vmax.f32 %v3351, %v1579
      %v3416 = vmax.f32 %v3352, %v1580
      %v3417 = vmax.f32 %v3353, %v1581
      %v3418 = vmax.f32 %v3354, %v1582
      %v3419 = vmax.f32 %v3355, %v1583
      %v3420 = vmax.f32 %v3356, %v1584
      %v3421 = vmax.f32 %v3357, %v1585
      %v3422 = vmax.f32 %v3358, %v1586
      %v3423 = vmax.f32 %v3359, %v1587
      %v3424 = vmax.f32 %v3360, %v1588
      %v3425 = vmax.f32 %v3361, %v1589
      %v3426 = vmax.f32 %v3362, %v1590
      %v3427 = vmax.f32 %v3363, %v1591
      %v3428 = vmax.f32 %v3364, %v1592
      %v3429 = vmax.f32 %v3365, %v1593
      %v3430 = vmax.f32 %v3366, %v1594
      %v3431 = vmax.f32 %v3367, %v1595
      %v3432 = vmax.f32 %v3368, %v1596
      %v3433 = vmax.f32 %v3369, %v1597
      %v3434 = vmax.f32 %v3370, %v1598
      %v3435 = vmax.f32 %v3371, %v1599
      %v3436 = vmax.f32 %v3372, %v1600
      %v3437 = vmax.f32 %v3373, %v1601
      %v3438 = vmax.f32 %v3374, %v1602
      %v3439 = vmax.f32 %v3375, %v1603
      %v3440 = vmax.f32 %v3376, %v1604
      %v3441 = vmax.f32 %v3377, %v1605
      %v3442 = vmax.f32 %v3378, %v1606
      %v3443 = vmax.f32 %v3379, %v1607
      %v3444 = vmax.f32 %v3380, %v1608
      %v3445 = vmax.f32 %v3381, %v1609
      %v3446 = vmax.f32 %v3382, %v1610
      %v3447 = vmax.f32 %v3383, %v1611
      %v3448 = vmax.f32 %v3384, %v1612
      %v3449 = vmax.f32 %v3385, %v1613
      %v3450 = vmax.f32 %v3386, %v1614
      %v3451 = vmax.f32 %v3387, %v1615
      %v3452 = vmax.f32 %v3388, %v1616
      %v3453 = vmax.f32 %v3389, %v1617
      %v3454 = vmax.f32 %v3390, %v1667
      %v3455 = vmax.f32 %v3391, %v1668
      %v3456 = vmax.f32 %v3392, %v1669
      %v3457 = vmax.f32 %v3393, %v1670
      %v3458 = vmax.f32 %v3394, %v1671
      %v3459 = vmax.f32 %v3395, %v1672
      %v3460 = vmax.f32 %v3396, %v1673
      %v3461 = vmax.f32 %v3397, %v1674
      %v3462 = vmax.f32 %v3398, %v1675
      %v3463 = vmax.f32 %v3399, %v1676
      %v3464 = vmax.f32 %v3400, %v1677
      %v3465 = vmax.f32 %v3401, %v1678
      %v3466 = vmax.f32 %v3402, %v1679
      %v3467 = vmax.f32 %v3403, %v1680
      %v3468 = vmax.f32 %v3404, %v1681
      %v3469 = vmax.f32 %v3405, %v1682
      %v3470 = vmax.f32 %v3406, %v1683
      %v3471 = vmax.f32 %v3407, %v1684
      %v3472 = vmax.f32 %v3408, %v1685
      %v3473 = vmax.f32 %v3409, %v1686
      %v3474 = vmax.f32 %v3410, %v1687
      %v3475 = vmax.f32 %v3411, %v1688
      %v3476 = vmax.f32 %v3412, %v1689
      %v3477 = vmax.f32 %v3413, %v1690
      %v3478 = vmax.f32 %v3414, %v1691
      %v3479 = vmax.f32 %v3415, %v1692
      %v3480 = vmax.f32 %v3416, %v1693
      %v3481 = vmax.f32 %v3417, %v1694
      %v3482 = vmax.f32 %v3418, %v1695
      %v3483 = vmax.f32 %v3419, %v1696
      %v3484 = vmax.f32 %v3420, %v1697
      %v3485 = vmax.f32 %v3421, %v1698
      %v3486 = vmax.f32 %v3422, %v1699
      %v3487 = vmax.f32 %v3423, %v1700
      %v3488 = vmax.f32 %v3424, %v1701
      %v3489 = vmax.f32 %v3425, %v1702
      %v3490 = vmax.f32 %v3426, %v1703
      %v3491 = vmax.f32 %v3427, %v1704
      %v3492 = vmax.f32 %v3428, %v1705
      %v3493 = vmax.f32 %v3429, %v1706
      %v3494 = vmax.f32 %v3430, %v1707
      %v3495 = vmax.f32 %v3431, %v1708
      %v3496 = vmax.f32 %v3432, %v1709
      %v3497 = vmax.f32 %v3433, %v1710
      %v3498 = vmax.f32 %v3434, %v1711
      %v3499 = vmax.f32 %v3435, %v1712
      %v3500 = vmax.f32 %v3436, %v1713
      %v3501 = vmax.f32 %v3437, %v1714
      %v3502 = vmax.f32 %v3438, %v1715
      %v3503 = vmax.f32 %v3439, %v1716
      %v3504 = vmax.f32 %v3440, %v1717
      %v3505 = vmax.f32 %v3441, %v1718
      %v3506 = vmax.f32 %v3442, %v1719
      %v3507 = vmax.f32 %v3443, %v1720
      %v3508 = vmax.f32 %v3444, %v1721
      %v3509 = vmax.f32 %v3445, %v1722
      %v3510 = vmax.f32 %v3446, %v1723
      %v3511 = vmax.f32 %v3447, %v1724
      %v3512 = vmax.f32 %v3448, %v1725
      %v3513 = vmax.f32 %v3449, %v1726
      %v3514 = vmax.f32 %v3450, %v1727
      %v3515 = vmax.f32 %v3451, %v1728
      %v3516 = vmax.f32 %v3452, %v1729
      %v3517 = vmax.f32 %v3453, %v1730
      %v3518 = vmax.f32 %v3454, %v1780
      %v3519 = vmax.f32 %v3455, %v1781
      %v3520 = vmax.f32 %v3456, %v1782
      %v3521 = vmax.f32 %v3457, %v1783
      %v3522 = vmax.f32 %v3458, %v1784
      %v3523 = vmax.f32 %v3459, %v1785
      %v3524 = vmax.f32 %v3460, %v1786
      %v3525 = vmax.f32 %v3461, %v1787
      %v3526 = vmax.f32 %v3462, %v1788
      %v3527 = vmax.f32 %v3463, %v1789
      %v3528 = vmax.f32 %v3464, %v1790
      %v3529 = vmax.f32 %v3465, %v1791
      %v3530 = vmax.f32 %v3466, %v1792
      %v3531 = vmax.f32 %v3467, %v1793
      %v3532 = vmax.f32 %v3468, %v1794
      %v3533 = vmax.f32 %v3469, %v1795
      %v3534 = vmax.f32 %v3470, %v1796
      %v3535 = vmax.f32 %v3471, %v1797
      %v3536 = vmax.f32 %v3472, %v1798
      %v3537 = vmax.f32 %v3473, %v1799
      %v3538 = vmax.f32 %v3474, %v1800
      %v3539 = vmax.f32 %v3475, %v1801
      %v3540 = vmax.f32 %v3476, %v1802
      %v3541 = vmax.f32 %v3477, %v1803
      %v3542 = vmax.f32 %v3478, %v1804
      %v3543 = vmax.f32 %v3479, %v1805
      %v3544 = vmax.f32 %v3480, %v1806
      %v3545 = vmax.f32 %v3481, %v1807
      %v3546 = vmax.f32 %v3482, %v1808
      %v3547 = vmax.f32 %v3483, %v1809
      %v3548 = vmax.f32 %v3484, %v1810
      %v3549 = vmax.f32 %v3485, %v1811
      %v3550 = vmax.f32 %v3486, %v1812
      %v3551 = vmax.f32 %v3487, %v1813
      %v3552 = vmax.f32 %v3488, %v1814
      %v3553 = vmax.f32 %v3489, %v1815
      %v3554 = vmax.f32 %v3490, %v1816
      %v3555 = vmax.f32 %v3491, %v1817
      %v3556 = vmax.f32 %v3492, %v1818
      %v3557 = vmax.f32 %v3493, %v1819
      %v3558 = vmax.f32 %v3494, %v1820
      %v3559 = vmax.f32 %v3495, %v1821
      %v3560 = vmax.f32 %v3496, %v1822
      %v3561 = vmax.f32 %v3497, %v1823
      %v3562 = vmax.f32 %v3498, %v1824
      %v3563 = vmax.f32 %v3499, %v1825
      %v3564 = vmax.f32 %v3500, %v1826
      %v3565 = vmax.f32 %v3501, %v1827
      %v3566 = vmax.f32 %v3502, %v1828
      %v3567 = vmax.f32 %v3503, %v1829
      %v3568 = vmax.f32 %v3504, %v1830
      %v3569 = vmax.f32 %v3505, %v1831
      %v3570 = vmax.f32 %v3506, %v1832
      %v3571 = vmax.f32 %v3507, %v1833
      %v3572 = vmax.f32 %v3508, %v1834
      %v3573 = vmax.f32 %v3509, %v1835
      %v3574 = vmax.f32 %v3510, %v1836
      %v3575 = vmax.f32 %v3511, %v1837
      %v3576 = vmax.f32 %v3512, %v1838
      %v3577 = vmax.f32 %v3513, %v1839
      %v3578 = vmax.f32 %v3514, %v1840
      %v3579 = vmax.f32 %v3515, %v1841
      %v3580 = vmax.f32 %v3516, %v1842
      %v3581 = vmax.f32 %v3517, %v1843
      %s3582 = scalar_lea.vmem [#allocation2], 288
      %v3583 = vld [vmem:[%s3582] sm:$0xff]
      %v3584 = vld [vmem:[%s3582 + $0x8] sm:$0xff]
      %v3585 = vld [vmem:[%s3582 + $0x10] sm:$0xff]
      %v3586 = vld [vmem:[%s3582 + $0x18] sm:$0xf]
      %v3587 = vld [vmem:[%s3582 + $0x20] sm:$0xff]
      %v3588 = vld [vmem:[%s3582 + $0x28] sm:$0xff]
      %v3589 = vld [vmem:[%s3582 + $0x30] sm:$0xff]
      %v3590 = vld [vmem:[%s3582 + $0x38] sm:$0xf]
      %v3591 = vld [vmem:[%s3582 + $0x40] sm:$0xff]
      %v3592 = vld [vmem:[%s3582 + $0x48] sm:$0xff]
      %v3593 = vld [vmem:[%s3582 + $0x50] sm:$0xff]
      %v3594 = vld [vmem:[%s3582 + $0x58] sm:$0xf]
      %v3595 = vld [vmem:[%s3582 + $0x60] sm:$0xff]
      %v3596 = vld [vmem:[%s3582 + $0x68] sm:$0xff]
      %v3597 = vld [vmem:[%s3582 + $0x70] sm:$0xff]
      %v3598 = vld [vmem:[%s3582 + $0x78] sm:$0xf]
      %v3599 = vld [vmem:[%s3582 + $0x80] sm:$0xff]
      %v3600 = vld [vmem:[%s3582 + $0x88] sm:$0xff]
      %v3601 = vld [vmem:[%s3582 + $0x90] sm:$0xff]
      %v3602 = vld [vmem:[%s3582 + $0x98] sm:$0xf]
      %v3603 = vld [vmem:[%s3582 + $0xa0] sm:$0xff]
      %v3604 = vld [vmem:[%s3582 + $0xa8] sm:$0xff]
      %v3605 = vld [vmem:[%s3582 + $0xb0] sm:$0xff]
      %v3606 = vld [vmem:[%s3582 + $0xb8] sm:$0xf]
      %v3607 = vld [vmem:[%s3582 + $0xc0] sm:$0xff]
      %v3608 = vld [vmem:[%s3582 + $0xc8] sm:$0xff]
      %v3609 = vld [vmem:[%s3582 + $0xd0] sm:$0xff]
      %v3610 = vld [vmem:[%s3582 + $0xd8] sm:$0xf]
      %v3611 = vld [vmem:[%s3582 + $0xe0] sm:$0xff]
      %v3612 = vld [vmem:[%s3582 + $0xe8] sm:$0xff]
      %v3613 = vld [vmem:[%s3582 + $0xf0] sm:$0xff]
      %v3614 = vld [vmem:[%s3582 + $0xf8] sm:$0xf]
      %v3615 = vld [vmem:[%s3582 + $0x100] sm:$0xff]
      %v3616 = vld [vmem:[%s3582 + $0x108] sm:$0xff]
      %v3617 = vld [vmem:[%s3582 + $0x110] sm:$0xff]
      %v3618 = vld [vmem:[%s3582 + $0x118] sm:$0xf]
      %v3619 = vld [vmem:[%s3582 + $0x120] sm:$0xff]
      %v3620 = vld [vmem:[%s3582 + $0x128] sm:$0xff]
      %v3621 = vld [vmem:[%s3582 + $0x130] sm:$0xff]
      %v3622 = vld [vmem:[%s3582 + $0x138] sm:$0xf]
      %v3623 = vld [vmem:[%s3582 + $0x140] sm:$0xff]
      %v3624 = vld [vmem:[%s3582 + $0x148] sm:$0xff]
      %v3625 = vld [vmem:[%s3582 + $0x150] sm:$0xff]
      %v3626 = vld [vmem:[%s3582 + $0x158] sm:$0xf]
      %v3627 = vld [vmem:[%s3582 + $0x160] sm:$0xff]
      %v3628 = vld [vmem:[%s3582 + $0x168] sm:$0xff]
      %v3629 = vld [vmem:[%s3582 + $0x170] sm:$0xff]
      %v3630 = vld [vmem:[%s3582 + $0x178] sm:$0xf]
      %v3631 = vld [vmem:[%s3582 + $0x180] sm:$0xff]
      %v3632 = vld [vmem:[%s3582 + $0x188] sm:$0xff]
      %v3633 = vld [vmem:[%s3582 + $0x190] sm:$0xff]
      %v3634 = vld [vmem:[%s3582 + $0x198] sm:$0xf]
      %v3635 = vld [vmem:[%s3582 + $0x1a0] sm:$0xff]
      %v3636 = vld [vmem:[%s3582 + $0x1a8] sm:$0xff]
      %v3637 = vld [vmem:[%s3582 + $0x1b0] sm:$0xff]
      %v3638 = vld [vmem:[%s3582 + $0x1b8] sm:$0xf]
      %v3639 = vld [vmem:[%s3582 + $0x1c0] sm:$0xff]
      %v3640 = vld [vmem:[%s3582 + $0x1c8] sm:$0xff]
      %v3641 = vld [vmem:[%s3582 + $0x1d0] sm:$0xff]
      %v3642 = vld [vmem:[%s3582 + $0x1d8] sm:$0xf]
      %v3643 = vld [vmem:[%s3582 + $0x1e0] sm:$0xff]
      %v3644 = vld [vmem:[%s3582 + $0x1e8] sm:$0xff]
      %v3645 = vld [vmem:[%s3582 + $0x1f0] sm:$0xff]
      %v3646 = vld [vmem:[%s3582 + $0x1f8] sm:$0xf]
      %v3647 = vmax.f32 %v3518, %v3583
      %v3648 = vmax.f32 %v3519, %v3584
      %v3649 = vmax.f32 %v3520, %v3585
      %v3650 = vmax.f32 %v3521, %v3586
      %v3651 = vmax.f32 %v3522, %v3587
      %v3652 = vmax.f32 %v3523, %v3588
      %v3653 = vmax.f32 %v3524, %v3589
      %v3654 = vmax.f32 %v3525, %v3590
      %v3655 = vmax.f32 %v3526, %v3591
      %v3656 = vmax.f32 %v3527, %v3592
      %v3657 = vmax.f32 %v3528, %v3593
      %v3658 = vmax.f32 %v3529, %v3594
      %v3659 = vmax.f32 %v3530, %v3595
      %v3660 = vmax.f32 %v3531, %v3596
      %v3661 = vmax.f32 %v3532, %v3597
      %v3662 = vmax.f32 %v3533, %v3598
      %v3663 = vmax.f32 %v3534, %v3599
      %v3664 = vmax.f32 %v3535, %v3600
      %v3665 = vmax.f32 %v3536, %v3601
      %v3666 = vmax.f32 %v3537, %v3602
      %v3667 = vmax.f32 %v3538, %v3603
      %v3668 = vmax.f32 %v3539, %v3604
      %v3669 = vmax.f32 %v3540, %v3605
      %v3670 = vmax.f32 %v3541, %v3606
      %v3671 = vmax.f32 %v3542, %v3607
      %v3672 = vmax.f32 %v3543, %v3608
      %v3673 = vmax.f32 %v3544, %v3609
      %v3674 = vmax.f32 %v3545, %v3610
      %v3675 = vmax.f32 %v3546, %v3611
      %v3676 = vmax.f32 %v3547, %v3612
      %v3677 = vmax.f32 %v3548, %v3613
      %v3678 = vmax.f32 %v3549, %v3614
      %v3679 = vmax.f32 %v3550, %v3615
      %v3680 = vmax.f32 %v3551, %v3616
      %v3681 = vmax.f32 %v3552, %v3617
      %v3682 = vmax.f32 %v3553, %v3618
      %v3683 = vmax.f32 %v3554, %v3619
      %v3684 = vmax.f32 %v3555, %v3620
      %v3685 = vmax.f32 %v3556, %v3621
      %v3686 = vmax.f32 %v3557, %v3622
      %v3687 = vmax.f32 %v3558, %v3623
      %v3688 = vmax.f32 %v3559, %v3624
      %v3689 = vmax.f32 %v3560, %v3625
      %v3690 = vmax.f32 %v3561, %v3626
      %v3691 = vmax.f32 %v3562, %v3627
      %v3692 = vmax.f32 %v3563, %v3628
      %v3693 = vmax.f32 %v3564, %v3629
      %v3694 = vmax.f32 %v3565, %v3630
      %v3695 = vmax.f32 %v3566, %v3631
      %v3696 = vmax.f32 %v3567, %v3632
      %v3697 = vmax.f32 %v3568, %v3633
      %v3698 = vmax.f32 %v3569, %v3634
      %v3699 = vmax.f32 %v3570, %v3635
      %v3700 = vmax.f32 %v3571, %v3636
      %v3701 = vmax.f32 %v3572, %v3637
      %v3702 = vmax.f32 %v3573, %v3638
      %v3703 = vmax.f32 %v3574, %v3639
      %v3704 = vmax.f32 %v3575, %v3640
      %v3705 = vmax.f32 %v3576, %v3641
      %v3706 = vmax.f32 %v3577, %v3642
      %v3707 = vmax.f32 %v3578, %v3643
      %v3708 = vmax.f32 %v3579, %v3644
      %v3709 = vmax.f32 %v3580, %v3645
      %v3710 = vmax.f32 %v3581, %v3646
      %s3711 = scalar_lea.vmem [#allocation2], 320
      %v3712 = vld [vmem:[%s3711] sm:$0xff]
      %v3713 = vld [vmem:[%s3711 + $0x8] sm:$0xff]
      %v3714 = vld [vmem:[%s3711 + $0x10] sm:$0xff]
      %v3715 = vld [vmem:[%s3711 + $0x18] sm:$0xf]
      %v3716 = vld [vmem:[%s3711 + $0x20] sm:$0xff]
      %v3717 = vld [vmem:[%s3711 + $0x28] sm:$0xff]
      %v3718 = vld [vmem:[%s3711 + $0x30] sm:$0xff]
      %v3719 = vld [vmem:[%s3711 + $0x38] sm:$0xf]
      %v3720 = vld [vmem:[%s3711 + $0x40] sm:$0xff]
      %v3721 = vld [vmem:[%s3711 + $0x48] sm:$0xff]
      %v3722 = vld [vmem:[%s3711 + $0x50] sm:$0xff]
      %v3723 = vld [vmem:[%s3711 + $0x58] sm:$0xf]
      %v3724 = vld [vmem:[%s3711 + $0x60] sm:$0xff]
      %v3725 = vld [vmem:[%s3711 + $0x68] sm:$0xff]
      %v3726 = vld [vmem:[%s3711 + $0x70] sm:$0xff]
      %v3727 = vld [vmem:[%s3711 + $0x78] sm:$0xf]
      %v3728 = vld [vmem:[%s3711 + $0x80] sm:$0xff]
      %v3729 = vld [vmem:[%s3711 + $0x88] sm:$0xff]
      %v3730 = vld [vmem:[%s3711 + $0x90] sm:$0xff]
      %v3731 = vld [vmem:[%s3711 + $0x98] sm:$0xf]
      %v3732 = vld [vmem:[%s3711 + $0xa0] sm:$0xff]
      %v3733 = vld [vmem:[%s3711 + $0xa8] sm:$0xff]
      %v3734 = vld [vmem:[%s3711 + $0xb0] sm:$0xff]
      %v3735 = vld [vmem:[%s3711 + $0xb8] sm:$0xf]
      %v3736 = vld [vmem:[%s3711 + $0xc0] sm:$0xff]
      %v3737 = vld [vmem:[%s3711 + $0xc8] sm:$0xff]
      %v3738 = vld [vmem:[%s3711 + $0xd0] sm:$0xff]
      %v3739 = vld [vmem:[%s3711 + $0xd8] sm:$0xf]
      %v3740 = vld [vmem:[%s3711 + $0xe0] sm:$0xff]
      %v3741 = vld [vmem:[%s3711 + $0xe8] sm:$0xff]
      %v3742 = vld [vmem:[%s3711 + $0xf0] sm:$0xff]
      %v3743 = vld [vmem:[%s3711 + $0xf8] sm:$0xf]
      %v3744 = vld [vmem:[%s3711 + $0x100] sm:$0xff]
      %v3745 = vld [vmem:[%s3711 + $0x108] sm:$0xff]
      %v3746 = vld [vmem:[%s3711 + $0x110] sm:$0xff]
      %v3747 = vld [vmem:[%s3711 + $0x118] sm:$0xf]
      %v3748 = vld [vmem:[%s3711 + $0x120] sm:$0xff]
      %v3749 = vld [vmem:[%s3711 + $0x128] sm:$0xff]
      %v3750 = vld [vmem:[%s3711 + $0x130] sm:$0xff]
      %v3751 = vld [vmem:[%s3711 + $0x138] sm:$0xf]
      %v3752 = vld [vmem:[%s3711 + $0x140] sm:$0xff]
      %v3753 = vld [vmem:[%s3711 + $0x148] sm:$0xff]
      %v3754 = vld [vmem:[%s3711 + $0x150] sm:$0xff]
      %v3755 = vld [vmem:[%s3711 + $0x158] sm:$0xf]
      %v3756 = vld [vmem:[%s3711 + $0x160] sm:$0xff]
      %v3757 = vld [vmem:[%s3711 + $0x168] sm:$0xff]
      %v3758 = vld [vmem:[%s3711 + $0x170] sm:$0xff]
      %v3759 = vld [vmem:[%s3711 + $0x178] sm:$0xf]
      %v3760 = vld [vmem:[%s3711 + $0x180] sm:$0xff]
      %v3761 = vld [vmem:[%s3711 + $0x188] sm:$0xff]
      %v3762 = vld [vmem:[%s3711 + $0x190] sm:$0xff]
      %v3763 = vld [vmem:[%s3711 + $0x198] sm:$0xf]
      %v3764 = vld [vmem:[%s3711 + $0x1a0] sm:$0xff]
      %v3765 = vld [vmem:[%s3711 + $0x1a8] sm:$0xff]
      %v3766 = vld [vmem:[%s3711 + $0x1b0] sm:$0xff]
      %v3767 = vld [vmem:[%s3711 + $0x1b8] sm:$0xf]
      %v3768 = vld [vmem:[%s3711 + $0x1c0] sm:$0xff]
      %v3769 = vld [vmem:[%s3711 + $0x1c8] sm:$0xff]
      %v3770 = vld [vmem:[%s3711 + $0x1d0] sm:$0xff]
      %v3771 = vld [vmem:[%s3711 + $0x1d8] sm:$0xf]
      %v3772 = vld [vmem:[%s3711 + $0x1e0] sm:$0xff]
      %v3773 = vld [vmem:[%s3711 + $0x1e8] sm:$0xff]
      %v3774 = vld [vmem:[%s3711 + $0x1f0] sm:$0xff]
      %v3775 = vld [vmem:[%s3711 + $0x1f8] sm:$0xf]
      %v3776 = vmax.f32 %v3647, %v3712
      %v3777 = vmax.f32 %v3648, %v3713
      %v3778 = vmax.f32 %v3649, %v3714
      %v3779 = vmax.f32 %v3650, %v3715
      %v3780 = vmax.f32 %v3651, %v3716
      %v3781 = vmax.f32 %v3652, %v3717
      %v3782 = vmax.f32 %v3653, %v3718
      %v3783 = vmax.f32 %v3654, %v3719
      %v3784 = vmax.f32 %v3655, %v3720
      %v3785 = vmax.f32 %v3656, %v3721
      %v3786 = vmax.f32 %v3657, %v3722
      %v3787 = vmax.f32 %v3658, %v3723
      %v3788 = vmax.f32 %v3659, %v3724
      %v3789 = vmax.f32 %v3660, %v3725
      %v3790 = vmax.f32 %v3661, %v3726
      %v3791 = vmax.f32 %v3662, %v3727
      %v3792 = vmax.f32 %v3663, %v3728
      %v3793 = vmax.f32 %v3664, %v3729
      %v3794 = vmax.f32 %v3665, %v3730
      %v3795 = vmax.f32 %v3666, %v3731
      %v3796 = vmax.f32 %v3667, %v3732
      %v3797 = vmax.f32 %v3668, %v3733
      %v3798 = vmax.f32 %v3669, %v3734
      %v3799 = vmax.f32 %v3670, %v3735
      %v3800 = vmax.f32 %v3671, %v3736
      %v3801 = vmax.f32 %v3672, %v3737
      %v3802 = vmax.f32 %v3673, %v3738
      %v3803 = vmax.f32 %v3674, %v3739
      %v3804 = vmax.f32 %v3675, %v3740
      %v3805 = vmax.f32 %v3676, %v3741
      %v3806 = vmax.f32 %v3677, %v3742
      %v3807 = vmax.f32 %v3678, %v3743
      %v3808 = vmax.f32 %v3679, %v3744
      %v3809 = vmax.f32 %v3680, %v3745
      %v3810 = vmax.f32 %v3681, %v3746
      %v3811 = vmax.f32 %v3682, %v3747
      %v3812 = vmax.f32 %v3683, %v3748
      %v3813 = vmax.f32 %v3684, %v3749
      %v3814 = vmax.f32 %v3685, %v3750
      %v3815 = vmax.f32 %v3686, %v3751
      %v3816 = vmax.f32 %v3687, %v3752
      %v3817 = vmax.f32 %v3688, %v3753
      %v3818 = vmax.f32 %v3689, %v3754
      %v3819 = vmax.f32 %v3690, %v3755
      %v3820 = vmax.f32 %v3691, %v3756
      %v3821 = vmax.f32 %v3692, %v3757
      %v3822 = vmax.f32 %v3693, %v3758
      %v3823 = vmax.f32 %v3694, %v3759
      %v3824 = vmax.f32 %v3695, %v3760
      %v3825 = vmax.f32 %v3696, %v3761
      %v3826 = vmax.f32 %v3697, %v3762
      %v3827 = vmax.f32 %v3698, %v3763
      %v3828 = vmax.f32 %v3699, %v3764
      %v3829 = vmax.f32 %v3700, %v3765
      %v3830 = vmax.f32 %v3701, %v3766
      %v3831 = vmax.f32 %v3702, %v3767
      %v3832 = vmax.f32 %v3703, %v3768
      %v3833 = vmax.f32 %v3704, %v3769
      %v3834 = vmax.f32 %v3705, %v3770
      %v3835 = vmax.f32 %v3706, %v3771
      %v3836 = vmax.f32 %v3707, %v3772
      %v3837 = vmax.f32 %v3708, %v3773
      %v3838 = vmax.f32 %v3709, %v3774
      %v3839 = vmax.f32 %v3710, %v3775
      %v3888 = vrot.slane %v3776, 1
      %v3889 = vrot.slane %v3777, 1
      %v3890 = vsel %vm1940, %v3888, %v3889
      %v3891 = vrot.slane %v3778, 1
      %v3892 = vsel %vm1940, %v3889, %v3891
      %v3893 = vrot.slane %v3780, 1
      %v3894 = vrot.slane %v3781, 1
      %v3895 = vsel %vm1940, %v3893, %v3894
      %v3896 = vrot.slane %v3782, 1
      %v3897 = vsel %vm1940, %v3894, %v3896
      %v3898 = vrot.slane %v3784, 1
      %v3899 = vrot.slane %v3785, 1
      %v3900 = vsel %vm1940, %v3898, %v3899
      %v3901 = vrot.slane %v3786, 1
      %v3902 = vsel %vm1940, %v3899, %v3901
      %v3903 = vrot.slane %v3788, 1
      %v3904 = vrot.slane %v3789, 1
      %v3905 = vsel %vm1940, %v3903, %v3904
      %v3906 = vrot.slane %v3790, 1
      %v3907 = vsel %vm1940, %v3904, %v3906
      %v3908 = vrot.slane %v3792, 1
      %v3909 = vrot.slane %v3793, 1
      %v3910 = vsel %vm1940, %v3908, %v3909
      %v3911 = vrot.slane %v3794, 1
      %v3912 = vsel %vm1940, %v3909, %v3911
      %v3913 = vrot.slane %v3796, 1
      %v3914 = vrot.slane %v3797, 1
      %v3915 = vsel %vm1940, %v3913, %v3914
      %v3916 = vrot.slane %v3798, 1
      %v3917 = vsel %vm1940, %v3914, %v3916
      %v3918 = vrot.slane %v3800, 1
      %v3919 = vrot.slane %v3801, 1
      %v3920 = vsel %vm1940, %v3918, %v3919
      %v3921 = vrot.slane %v3802, 1
      %v3922 = vsel %vm1940, %v3919, %v3921
      %v3923 = vrot.slane %v3804, 1
      %v3924 = vrot.slane %v3805, 1
      %v3925 = vsel %vm1940, %v3923, %v3924
      %v3926 = vrot.slane %v3806, 1
      %v3927 = vsel %vm1940, %v3924, %v3926
      %v3928 = vrot.slane %v3808, 1
      %v3929 = vrot.slane %v3809, 1
      %v3930 = vsel %vm1940, %v3928, %v3929
      %v3931 = vrot.slane %v3810, 1
      %v3932 = vsel %vm1940, %v3929, %v3931
      %v3933 = vrot.slane %v3812, 1
      %v3934 = vrot.slane %v3813, 1
      %v3935 = vsel %vm1940, %v3933, %v3934
      %v3936 = vrot.slane %v3814, 1
      %v3937 = vsel %vm1940, %v3934, %v3936
      %v3938 = vrot.slane %v3816, 1
      %v3939 = vrot.slane %v3817, 1
      %v3940 = vsel %vm1940, %v3938, %v3939
      %v3941 = vrot.slane %v3818, 1
      %v3942 = vsel %vm1940, %v3939, %v3941
      %v3943 = vrot.slane %v3820, 1
      %v3944 = vrot.slane %v3821, 1
      %v3945 = vsel %vm1940, %v3943, %v3944
      %v3946 = vrot.slane %v3822, 1
      %v3947 = vsel %vm1940, %v3944, %v3946
      %v3948 = vrot.slane %v3824, 1
      %v3949 = vrot.slane %v3825, 1
      %v3950 = vsel %vm1940, %v3948, %v3949
      %v3951 = vrot.slane %v3826, 1
      %v3952 = vsel %vm1940, %v3949, %v3951
      %v3953 = vrot.slane %v3828, 1
      %v3954 = vrot.slane %v3829, 1
      %v3955 = vsel %vm1940, %v3953, %v3954
      %v3956 = vrot.slane %v3830, 1
      %v3957 = vsel %vm1940, %v3954, %v3956
      %v3958 = vrot.slane %v3832, 1
      %v3959 = vrot.slane %v3833, 1
      %v3960 = vsel %vm1940, %v3958, %v3959
      %v3961 = vrot.slane %v3834, 1
      %v3962 = vsel %vm1940, %v3959, %v3961
      %v3963 = vrot.slane %v3836, 1
      %v3964 = vrot.slane %v3837, 1
      %v3965 = vsel %vm1940, %v3963, %v3964
      %v3966 = vrot.slane %v3838, 1
      %v3967 = vsel %vm1940, %v3964, %v3966
      %v4016 = vmax.f32 %v3776, %v3890
      %v4017 = vmax.f32 %v3777, %v3892
      %v4018 = vmax.f32 %v3778, %v3891
      %v4019 = vmax.f32 %v3780, %v3895
      %v4020 = vmax.f32 %v3781, %v3897
      %v4021 = vmax.f32 %v3782, %v3896
      %v4022 = vmax.f32 %v3784, %v3900
      %v4023 = vmax.f32 %v3785, %v3902
      %v4024 = vmax.f32 %v3786, %v3901
      %v4025 = vmax.f32 %v3788, %v3905
      %v4026 = vmax.f32 %v3789, %v3907
      %v4027 = vmax.f32 %v3790, %v3906
      %v4028 = vmax.f32 %v3792, %v3910
      %v4029 = vmax.f32 %v3793, %v3912
      %v4030 = vmax.f32 %v3794, %v3911
      %v4031 = vmax.f32 %v3796, %v3915
      %v4032 = vmax.f32 %v3797, %v3917
      %v4033 = vmax.f32 %v3798, %v3916
      %v4034 = vmax.f32 %v3800, %v3920
      %v4035 = vmax.f32 %v3801, %v3922
      %v4036 = vmax.f32 %v3802, %v3921
      %v4037 = vmax.f32 %v3804, %v3925
      %v4038 = vmax.f32 %v3805, %v3927
      %v4039 = vmax.f32 %v3806, %v3926
      %v4040 = vmax.f32 %v3808, %v3930
      %v4041 = vmax.f32 %v3809, %v3932
      %v4042 = vmax.f32 %v3810, %v3931
      %v4043 = vmax.f32 %v3812, %v3935
      %v4044 = vmax.f32 %v3813, %v3937
      %v4045 = vmax.f32 %v3814, %v3936
      %v4046 = vmax.f32 %v3816, %v3940
      %v4047 = vmax.f32 %v3817, %v3942
      %v4048 = vmax.f32 %v3818, %v3941
      %v4049 = vmax.f32 %v3820, %v3945
      %v4050 = vmax.f32 %v3821, %v3947
      %v4051 = vmax.f32 %v3822, %v3946
      %v4052 = vmax.f32 %v3824, %v3950
      %v4053 = vmax.f32 %v3825, %v3952
      %v4054 = vmax.f32 %v3826, %v3951
      %v4055 = vmax.f32 %v3828, %v3955
      %v4056 = vmax.f32 %v3829, %v3957
      %v4057 = vmax.f32 %v3830, %v3956
      %v4058 = vmax.f32 %v3832, %v3960
      %v4059 = vmax.f32 %v3833, %v3962
      %v4060 = vmax.f32 %v3834, %v3961
      %v4061 = vmax.f32 %v3836, %v3965
      %v4062 = vmax.f32 %v3837, %v3967
      %v4063 = vmax.f32 %v3838, %v3966
      %v4064 = vrot.slane %v3776, 2
      %v4065 = vrot.slane %v3777, 2
      %v4066 = vsel %vm2117, %v4064, %v4065
      %v4067 = vrot.slane %v3778, 2
      %v4068 = vsel %vm2117, %v4065, %v4067
      %v4069 = vrot.slane %v3780, 2
      %v4070 = vrot.slane %v3781, 2
      %v4071 = vsel %vm2117, %v4069, %v4070
      %v4072 = vrot.slane %v3782, 2
      %v4073 = vsel %vm2117, %v4070, %v4072
      %v4074 = vrot.slane %v3784, 2
      %v4075 = vrot.slane %v3785, 2
      %v4076 = vsel %vm2117, %v4074, %v4075
      %v4077 = vrot.slane %v3786, 2
      %v4078 = vsel %vm2117, %v4075, %v4077
      %v4079 = vrot.slane %v3788, 2
      %v4080 = vrot.slane %v3789, 2
      %v4081 = vsel %vm2117, %v4079, %v4080
      %v4082 = vrot.slane %v3790, 2
      %v4083 = vsel %vm2117, %v4080, %v4082
      %v4084 = vrot.slane %v3792, 2
      %v4085 = vrot.slane %v3793, 2
      %v4086 = vsel %vm2117, %v4084, %v4085
      %v4087 = vrot.slane %v3794, 2
      %v4088 = vsel %vm2117, %v4085, %v4087
      %v4089 = vrot.slane %v3796, 2
      %v4090 = vrot.slane %v3797, 2
      %v4091 = vsel %vm2117, %v4089, %v4090
      %v4092 = vrot.slane %v3798, 2
      %v4093 = vsel %vm2117, %v4090, %v4092
      %v4094 = vrot.slane %v3800, 2
      %v4095 = vrot.slane %v3801, 2
      %v4096 = vsel %vm2117, %v4094, %v4095
      %v4097 = vrot.slane %v3802, 2
      %v4098 = vsel %vm2117, %v4095, %v4097
      %v4099 = vrot.slane %v3804, 2
      %v4100 = vrot.slane %v3805, 2
      %v4101 = vsel %vm2117, %v4099, %v4100
      %v4102 = vrot.slane %v3806, 2
      %v4103 = vsel %vm2117, %v4100, %v4102
      %v4104 = vrot.slane %v3808, 2
      %v4105 = vrot.slane %v3809, 2
      %v4106 = vsel %vm2117, %v4104, %v4105
      %v4107 = vrot.slane %v3810, 2
      %v4108 = vsel %vm2117, %v4105, %v4107
      %v4109 = vrot.slane %v3812, 2
      %v4110 = vrot.slane %v3813, 2
      %v4111 = vsel %vm2117, %v4109, %v4110
      %v4112 = vrot.slane %v3814, 2
      %v4113 = vsel %vm2117, %v4110, %v4112
      %v4114 = vrot.slane %v3816, 2
      %v4115 = vrot.slane %v3817, 2
      %v4116 = vsel %vm2117, %v4114, %v4115
      %v4117 = vrot.slane %v3818, 2
      %v4118 = vsel %vm2117, %v4115, %v4117
      %v4119 = vrot.slane %v3820, 2
      %v4120 = vrot.slane %v3821, 2
      %v4121 = vsel %vm2117, %v4119, %v4120
      %v4122 = vrot.slane %v3822, 2
      %v4123 = vsel %vm2117, %v4120, %v4122
      %v4124 = vrot.slane %v3824, 2
      %v4125 = vrot.slane %v3825, 2
      %v4126 = vsel %vm2117, %v4124, %v4125
      %v4127 = vrot.slane %v3826, 2
      %v4128 = vsel %vm2117, %v4125, %v4127
      %v4129 = vrot.slane %v3828, 2
      %v4130 = vrot.slane %v3829, 2
      %v4131 = vsel %vm2117, %v4129, %v4130
      %v4132 = vrot.slane %v3830, 2
      %v4133 = vsel %vm2117, %v4130, %v4132
      %v4134 = vrot.slane %v3832, 2
      %v4135 = vrot.slane %v3833, 2
      %v4136 = vsel %vm2117, %v4134, %v4135
      %v4137 = vrot.slane %v3834, 2
      %v4138 = vsel %vm2117, %v4135, %v4137
      %v4139 = vrot.slane %v3836, 2
      %v4140 = vrot.slane %v3837, 2
      %v4141 = vsel %vm2117, %v4139, %v4140
      %v4142 = vrot.slane %v3838, 2
      %v4143 = vsel %vm2117, %v4140, %v4142
      %v4192 = vmax.f32 %v4016, %v4066
      %v4193 = vmax.f32 %v4017, %v4068
      %v4194 = vmax.f32 %v4018, %v4067
      %v4195 = vmax.f32 %v4019, %v4071
      %v4196 = vmax.f32 %v4020, %v4073
      %v4197 = vmax.f32 %v4021, %v4072
      %v4198 = vmax.f32 %v4022, %v4076
      %v4199 = vmax.f32 %v4023, %v4078
      %v4200 = vmax.f32 %v4024, %v4077
      %v4201 = vmax.f32 %v4025, %v4081
      %v4202 = vmax.f32 %v4026, %v4083
      %v4203 = vmax.f32 %v4027, %v4082
      %v4204 = vmax.f32 %v4028, %v4086
      %v4205 = vmax.f32 %v4029, %v4088
      %v4206 = vmax.f32 %v4030, %v4087
      %v4207 = vmax.f32 %v4031, %v4091
      %v4208 = vmax.f32 %v4032, %v4093
      %v4209 = vmax.f32 %v4033, %v4092
      %v4210 = vmax.f32 %v4034, %v4096
      %v4211 = vmax.f32 %v4035, %v4098
      %v4212 = vmax.f32 %v4036, %v4097
      %v4213 = vmax.f32 %v4037, %v4101
      %v4214 = vmax.f32 %v4038, %v4103
      %v4215 = vmax.f32 %v4039, %v4102
      %v4216 = vmax.f32 %v4040, %v4106
      %v4217 = vmax.f32 %v4041, %v4108
      %v4218 = vmax.f32 %v4042, %v4107
      %v4219 = vmax.f32 %v4043, %v4111
      %v4220 = vmax.f32 %v4044, %v4113
      %v4221 = vmax.f32 %v4045, %v4112
      %v4222 = vmax.f32 %v4046, %v4116
      %v4223 = vmax.f32 %v4047, %v4118
      %v4224 = vmax.f32 %v4048, %v4117
      %v4225 = vmax.f32 %v4049, %v4121
      %v4226 = vmax.f32 %v4050, %v4123
      %v4227 = vmax.f32 %v4051, %v4122
      %v4228 = vmax.f32 %v4052, %v4126
      %v4229 = vmax.f32 %v4053, %v4128
      %v4230 = vmax.f32 %v4054, %v4127
      %v4231 = vmax.f32 %v4055, %v4131
      %v4232 = vmax.f32 %v4056, %v4133
      %v4233 = vmax.f32 %v4057, %v4132
      %v4234 = vmax.f32 %v4058, %v4136
      %v4235 = vmax.f32 %v4059, %v4138
      %v4236 = vmax.f32 %v4060, %v4137
      %v4237 = vmax.f32 %v4061, %v4141
      %v4238 = vmax.f32 %v4062, %v4143
      %v4239 = vmax.f32 %v4063, %v4142
      %v4240 = vrot.slane %v3776, 3
      %v4241 = vrot.slane %v3777, 3
      %v4242 = vsel %vm2294, %v4240, %v4241
      %v4243 = vrot.slane %v3778, 3
      %v4244 = vsel %vm2294, %v4241, %v4243
      %v4245 = vrot.slane %v3780, 3
      %v4246 = vrot.slane %v3781, 3
      %v4247 = vsel %vm2294, %v4245, %v4246
      %v4248 = vrot.slane %v3782, 3
      %v4249 = vsel %vm2294, %v4246, %v4248
      %v4250 = vrot.slane %v3784, 3
      %v4251 = vrot.slane %v3785, 3
      %v4252 = vsel %vm2294, %v4250, %v4251
      %v4253 = vrot.slane %v3786, 3
      %v4254 = vsel %vm2294, %v4251, %v4253
      %v4255 = vrot.slane %v3788, 3
      %v4256 = vrot.slane %v3789, 3
      %v4257 = vsel %vm2294, %v4255, %v4256
      %v4258 = vrot.slane %v3790, 3
      %v4259 = vsel %vm2294, %v4256, %v4258
      %v4260 = vrot.slane %v3792, 3
      %v4261 = vrot.slane %v3793, 3
      %v4262 = vsel %vm2294, %v4260, %v4261
      %v4263 = vrot.slane %v3794, 3
      %v4264 = vsel %vm2294, %v4261, %v4263
      %v4265 = vrot.slane %v3796, 3
      %v4266 = vrot.slane %v3797, 3
      %v4267 = vsel %vm2294, %v4265, %v4266
      %v4268 = vrot.slane %v3798, 3
      %v4269 = vsel %vm2294, %v4266, %v4268
      %v4270 = vrot.slane %v3800, 3
      %v4271 = vrot.slane %v3801, 3
      %v4272 = vsel %vm2294, %v4270, %v4271
      %v4273 = vrot.slane %v3802, 3
      %v4274 = vsel %vm2294, %v4271, %v4273
      %v4275 = vrot.slane %v3804, 3
      %v4276 = vrot.slane %v3805, 3
      %v4277 = vsel %vm2294, %v4275, %v4276
      %v4278 = vrot.slane %v3806, 3
      %v4279 = vsel %vm2294, %v4276, %v4278
      %v4280 = vrot.slane %v3808, 3
      %v4281 = vrot.slane %v3809, 3
      %v4282 = vsel %vm2294, %v4280, %v4281
      %v4283 = vrot.slane %v3810, 3
      %v4284 = vsel %vm2294, %v4281, %v4283
      %v4285 = vrot.slane %v3812, 3
      %v4286 = vrot.slane %v3813, 3
      %v4287 = vsel %vm2294, %v4285, %v4286
      %v4288 = vrot.slane %v3814, 3
      %v4289 = vsel %vm2294, %v4286, %v4288
      %v4290 = vrot.slane %v3816, 3
      %v4291 = vrot.slane %v3817, 3
      %v4292 = vsel %vm2294, %v4290, %v4291
      %v4293 = vrot.slane %v3818, 3
      %v4294 = vsel %vm2294, %v4291, %v4293
      %v4295 = vrot.slane %v3820, 3
      %v4296 = vrot.slane %v3821, 3
      %v4297 = vsel %vm2294, %v4295, %v4296
      %v4298 = vrot.slane %v3822, 3
      %v4299 = vsel %vm2294, %v4296, %v4298
      %v4300 = vrot.slane %v3824, 3
      %v4301 = vrot.slane %v3825, 3
      %v4302 = vsel %vm2294, %v4300, %v4301
      %v4303 = vrot.slane %v3826, 3
      %v4304 = vsel %vm2294, %v4301, %v4303
      %v4305 = vrot.slane %v3828, 3
      %v4306 = vrot.slane %v3829, 3
      %v4307 = vsel %vm2294, %v4305, %v4306
      %v4308 = vrot.slane %v3830, 3
      %v4309 = vsel %vm2294, %v4306, %v4308
      %v4310 = vrot.slane %v3832, 3
      %v4311 = vrot.slane %v3833, 3
      %v4312 = vsel %vm2294, %v4310, %v4311
      %v4313 = vrot.slane %v3834, 3
      %v4314 = vsel %vm2294, %v4311, %v4313
      %v4315 = vrot.slane %v3836, 3
      %v4316 = vrot.slane %v3837, 3
      %v4317 = vsel %vm2294, %v4315, %v4316
      %v4318 = vrot.slane %v3838, 3
      %v4319 = vsel %vm2294, %v4316, %v4318
      %v4368 = vmax.f32 %v4192, %v4242
      %v4369 = vmax.f32 %v4193, %v4244
      %v4370 = vmax.f32 %v4194, %v4243
      %v4371 = vmax.f32 %v4195, %v4247
      %v4372 = vmax.f32 %v4196, %v4249
      %v4373 = vmax.f32 %v4197, %v4248
      %v4374 = vmax.f32 %v4198, %v4252
      %v4375 = vmax.f32 %v4199, %v4254
      %v4376 = vmax.f32 %v4200, %v4253
      %v4377 = vmax.f32 %v4201, %v4257
      %v4378 = vmax.f32 %v4202, %v4259
      %v4379 = vmax.f32 %v4203, %v4258
      %v4380 = vmax.f32 %v4204, %v4262
      %v4381 = vmax.f32 %v4205, %v4264
      %v4382 = vmax.f32 %v4206, %v4263
      %v4383 = vmax.f32 %v4207, %v4267
      %v4384 = vmax.f32 %v4208, %v4269
      %v4385 = vmax.f32 %v4209, %v4268
      %v4386 = vmax.f32 %v4210, %v4272
      %v4387 = vmax.f32 %v4211, %v4274
      %v4388 = vmax.f32 %v4212, %v4273
      %v4389 = vmax.f32 %v4213, %v4277
      %v4390 = vmax.f32 %v4214, %v4279
      %v4391 = vmax.f32 %v4215, %v4278
      %v4392 = vmax.f32 %v4216, %v4282
      %v4393 = vmax.f32 %v4217, %v4284
      %v4394 = vmax.f32 %v4218, %v4283
      %v4395 = vmax.f32 %v4219, %v4287
      %v4396 = vmax.f32 %v4220, %v4289
      %v4397 = vmax.f32 %v4221, %v4288
      %v4398 = vmax.f32 %v4222, %v4292
      %v4399 = vmax.f32 %v4223, %v4294
      %v4400 = vmax.f32 %v4224, %v4293
      %v4401 = vmax.f32 %v4225, %v4297
      %v4402 = vmax.f32 %v4226, %v4299
      %v4403 = vmax.f32 %v4227, %v4298
      %v4404 = vmax.f32 %v4228, %v4302
      %v4405 = vmax.f32 %v4229, %v4304
      %v4406 = vmax.f32 %v4230, %v4303
      %v4407 = vmax.f32 %v4231, %v4307
      %v4408 = vmax.f32 %v4232, %v4309
      %v4409 = vmax.f32 %v4233, %v4308
      %v4410 = vmax.f32 %v4234, %v4312
      %v4411 = vmax.f32 %v4235, %v4314
      %v4412 = vmax.f32 %v4236, %v4313
      %v4413 = vmax.f32 %v4237, %v4317
      %v4414 = vmax.f32 %v4238, %v4319
      %v4415 = vmax.f32 %v4239, %v4318
      %v4416 = vrot.slane %v3776, 4
      %v4417 = vrot.slane %v3777, 4
      %v4418 = vsel %vm443, %v4416, %v4417
      %v4419 = vrot.slane %v3778, 4
      %v4420 = vsel %vm443, %v4417, %v4419
      %v4421 = vrot.slane %v3780, 4
      %v4422 = vrot.slane %v3781, 4
      %v4423 = vsel %vm443, %v4421, %v4422
      %v4424 = vrot.slane %v3782, 4
      %v4425 = vsel %vm443, %v4422, %v4424
      %v4426 = vrot.slane %v3784, 4
      %v4427 = vrot.slane %v3785, 4
      %v4428 = vsel %vm443, %v4426, %v4427
      %v4429 = vrot.slane %v3786, 4
      %v4430 = vsel %vm443, %v4427, %v4429
      %v4431 = vrot.slane %v3788, 4
      %v4432 = vrot.slane %v3789, 4
      %v4433 = vsel %vm443, %v4431, %v4432
      %v4434 = vrot.slane %v3790, 4
      %v4435 = vsel %vm443, %v4432, %v4434
      %v4436 = vrot.slane %v3792, 4
      %v4437 = vrot.slane %v3793, 4
      %v4438 = vsel %vm443, %v4436, %v4437
      %v4439 = vrot.slane %v3794, 4
      %v4440 = vsel %vm443, %v4437, %v4439
      %v4441 = vrot.slane %v3796, 4
      %v4442 = vrot.slane %v3797, 4
      %v4443 = vsel %vm443, %v4441, %v4442
      %v4444 = vrot.slane %v3798, 4
      %v4445 = vsel %vm443, %v4442, %v4444
      %v4446 = vrot.slane %v3800, 4
      %v4447 = vrot.slane %v3801, 4
      %v4448 = vsel %vm443, %v4446, %v4447
      %v4449 = vrot.slane %v3802, 4
      %v4450 = vsel %vm443, %v4447, %v4449
      %v4451 = vrot.slane %v3804, 4
      %v4452 = vrot.slane %v3805, 4
      %v4453 = vsel %vm443, %v4451, %v4452
      %v4454 = vrot.slane %v3806, 4
      %v4455 = vsel %vm443, %v4452, %v4454
      %v4456 = vrot.slane %v3808, 4
      %v4457 = vrot.slane %v3809, 4
      %v4458 = vsel %vm443, %v4456, %v4457
      %v4459 = vrot.slane %v3810, 4
      %v4460 = vsel %vm443, %v4457, %v4459
      %v4461 = vrot.slane %v3812, 4
      %v4462 = vrot.slane %v3813, 4
      %v4463 = vsel %vm443, %v4461, %v4462
      %v4464 = vrot.slane %v3814, 4
      %v4465 = vsel %vm443, %v4462, %v4464
      %v4466 = vrot.slane %v3816, 4
      %v4467 = vrot.slane %v3817, 4
      %v4468 = vsel %vm443, %v4466, %v4467
      %v4469 = vrot.slane %v3818, 4
      %v4470 = vsel %vm443, %v4467, %v4469
      %v4471 = vrot.slane %v3820, 4
      %v4472 = vrot.slane %v3821, 4
      %v4473 = vsel %vm443, %v4471, %v4472
      %v4474 = vrot.slane %v3822, 4
      %v4475 = vsel %vm443, %v4472, %v4474
      %v4476 = vrot.slane %v3824, 4
      %v4477 = vrot.slane %v3825, 4
      %v4478 = vsel %vm443, %v4476, %v4477
      %v4479 = vrot.slane %v3826, 4
      %v4480 = vsel %vm443, %v4477, %v4479
      %v4481 = vrot.slane %v3828, 4
      %v4482 = vrot.slane %v3829, 4
      %v4483 = vsel %vm443, %v4481, %v4482
      %v4484 = vrot.slane %v3830, 4
      %v4485 = vsel %vm443, %v4482, %v4484
      %v4486 = vrot.slane %v3832, 4
      %v4487 = vrot.slane %v3833, 4
      %v4488 = vsel %vm443, %v4486, %v4487
      %v4489 = vrot.slane %v3834, 4
      %v4490 = vsel %vm443, %v4487, %v4489
      %v4491 = vrot.slane %v3836, 4
      %v4492 = vrot.slane %v3837, 4
      %v4493 = vsel %vm443, %v4491, %v4492
      %v4494 = vrot.slane %v3838, 4
      %v4495 = vsel %vm443, %v4492, %v4494
      %v4544 = vmax.f32 %v4368, %v4418
      %v4545 = vmax.f32 %v4369, %v4420
      %v4546 = vmax.f32 %v4370, %v4419
      %v4547 = vmax.f32 %v4371, %v4423
      %v4548 = vmax.f32 %v4372, %v4425
      %v4549 = vmax.f32 %v4373, %v4424
      %v4550 = vmax.f32 %v4374, %v4428
      %v4551 = vmax.f32 %v4375, %v4430
      %v4552 = vmax.f32 %v4376, %v4429
      %v4553 = vmax.f32 %v4377, %v4433
      %v4554 = vmax.f32 %v4378, %v4435
      %v4555 = vmax.f32 %v4379, %v4434
      %v4556 = vmax.f32 %v4380, %v4438
      %v4557 = vmax.f32 %v4381, %v4440
      %v4558 = vmax.f32 %v4382, %v4439
      %v4559 = vmax.f32 %v4383, %v4443
      %v4560 = vmax.f32 %v4384, %v4445
      %v4561 = vmax.f32 %v4385, %v4444
      %v4562 = vmax.f32 %v4386, %v4448
      %v4563 = vmax.f32 %v4387, %v4450
      %v4564 = vmax.f32 %v4388, %v4449
      %v4565 = vmax.f32 %v4389, %v4453
      %v4566 = vmax.f32 %v4390, %v4455
      %v4567 = vmax.f32 %v4391, %v4454
      %v4568 = vmax.f32 %v4392, %v4458
      %v4569 = vmax.f32 %v4393, %v4460
      %v4570 = vmax.f32 %v4394, %v4459
      %v4571 = vmax.f32 %v4395, %v4463
      %v4572 = vmax.f32 %v4396, %v4465
      %v4573 = vmax.f32 %v4397, %v4464
      %v4574 = vmax.f32 %v4398, %v4468
      %v4575 = vmax.f32 %v4399, %v4470
      %v4576 = vmax.f32 %v4400, %v4469
      %v4577 = vmax.f32 %v4401, %v4473
      %v4578 = vmax.f32 %v4402, %v4475
      %v4579 = vmax.f32 %v4403, %v4474
      %v4580 = vmax.f32 %v4404, %v4478
      %v4581 = vmax.f32 %v4405, %v4480
      %v4582 = vmax.f32 %v4406, %v4479
      %v4583 = vmax.f32 %v4407, %v4483
      %v4584 = vmax.f32 %v4408, %v4485
      %v4585 = vmax.f32 %v4409, %v4484
      %v4586 = vmax.f32 %v4410, %v4488
      %v4587 = vmax.f32 %v4411, %v4490
      %v4588 = vmax.f32 %v4412, %v4489
      %v4589 = vmax.f32 %v4413, %v4493
      %v4590 = vmax.f32 %v4414, %v4495
      %v4591 = vmax.f32 %v4415, %v4494
      %vm4592 = vcmask 1042432
      %v4593 = vrot.slane %v3776, 5
      %v4594 = vrot.slane %v3777, 5
      %v4595 = vsel %vm4592, %v4593, %v4594
      %v4596 = vrot.slane %v3778, 5
      %v4597 = vsel %vm4592, %v4594, %v4596
      %v4598 = vrot.slane %v3780, 5
      %v4599 = vrot.slane %v3781, 5
      %v4600 = vsel %vm4592, %v4598, %v4599
      %v4601 = vrot.slane %v3782, 5
      %v4602 = vsel %vm4592, %v4599, %v4601
      %v4603 = vrot.slane %v3784, 5
      %v4604 = vrot.slane %v3785, 5
      %v4605 = vsel %vm4592, %v4603, %v4604
      %v4606 = vrot.slane %v3786, 5
      %v4607 = vsel %vm4592, %v4604, %v4606
      %v4608 = vrot.slane %v3788, 5
      %v4609 = vrot.slane %v3789, 5
      %v4610 = vsel %vm4592, %v4608, %v4609
      %v4611 = vrot.slane %v3790, 5
      %v4612 = vsel %vm4592, %v4609, %v4611
      %v4613 = vrot.slane %v3792, 5
      %v4614 = vrot.slane %v3793, 5
      %v4615 = vsel %vm4592, %v4613, %v4614
      %v4616 = vrot.slane %v3794, 5
      %v4617 = vsel %vm4592, %v4614, %v4616
      %v4618 = vrot.slane %v3796, 5
      %v4619 = vrot.slane %v3797, 5
      %v4620 = vsel %vm4592, %v4618, %v4619
      %v4621 = vrot.slane %v3798, 5
      %v4622 = vsel %vm4592, %v4619, %v4621
      %v4623 = vrot.slane %v3800, 5
      %v4624 = vrot.slane %v3801, 5
      %v4625 = vsel %vm4592, %v4623, %v4624
      %v4626 = vrot.slane %v3802, 5
      %v4627 = vsel %vm4592, %v4624, %v4626
      %v4628 = vrot.slane %v3804, 5
      %v4629 = vrot.slane %v3805, 5
      %v4630 = vsel %vm4592, %v4628, %v4629
      %v4631 = vrot.slane %v3806, 5
      %v4632 = vsel %vm4592, %v4629, %v4631
      %v4633 = vrot.slane %v3808, 5
      %v4634 = vrot.slane %v3809, 5
      %v4635 = vsel %vm4592, %v4633, %v4634
      %v4636 = vrot.slane %v3810, 5
      %v4637 = vsel %vm4592, %v4634, %v4636
      %v4638 = vrot.slane %v3812, 5
      %v4639 = vrot.slane %v3813, 5
      %v4640 = vsel %vm4592, %v4638, %v4639
      %v4641 = vrot.slane %v3814, 5
      %v4642 = vsel %vm4592, %v4639, %v4641
      %v4643 = vrot.slane %v3816, 5
      %v4644 = vrot.slane %v3817, 5
      %v4645 = vsel %vm4592, %v4643, %v4644
      %v4646 = vrot.slane %v3818, 5
      %v4647 = vsel %vm4592, %v4644, %v4646
      %v4648 = vrot.slane %v3820, 5
      %v4649 = vrot.slane %v3821, 5
      %v4650 = vsel %vm4592, %v4648, %v4649
      %v4651 = vrot.slane %v3822, 5
      %v4652 = vsel %vm4592, %v4649, %v4651
      %v4653 = vrot.slane %v3824, 5
      %v4654 = vrot.slane %v3825, 5
      %v4655 = vsel %vm4592, %v4653, %v4654
      %v4656 = vrot.slane %v3826, 5
      %v4657 = vsel %vm4592, %v4654, %v4656
      %v4658 = vrot.slane %v3828, 5
      %v4659 = vrot.slane %v3829, 5
      %v4660 = vsel %vm4592, %v4658, %v4659
      %v4661 = vrot.slane %v3830, 5
      %v4662 = vsel %vm4592, %v4659, %v4661
      %v4663 = vrot.slane %v3832, 5
      %v4664 = vrot.slane %v3833, 5
      %v4665 = vsel %vm4592, %v4663, %v4664
      %v4666 = vrot.slane %v3834, 5
      %v4667 = vsel %vm4592, %v4664, %v4666
      %v4668 = vrot.slane %v3836, 5
      %v4669 = vrot.slane %v3837, 5
      %v4670 = vsel %vm4592, %v4668, %v4669
      %v4671 = vrot.slane %v3838, 5
      %v4672 = vsel %vm4592, %v4669, %v4671
      %v4721 = vmax.f32 %v4544, %v4595
      %v4722 = vmax.f32 %v4545, %v4597
      %v4723 = vmax.f32 %v4546, %v4596
      %v4724 = vmax.f32 %v4547, %v4600
      %v4725 = vmax.f32 %v4548, %v4602
      %v4726 = vmax.f32 %v4549, %v4601
      %v4727 = vmax.f32 %v4550, %v4605
      %v4728 = vmax.f32 %v4551, %v4607
      %v4729 = vmax.f32 %v4552, %v4606
      %v4730 = vmax.f32 %v4553, %v4610
      %v4731 = vmax.f32 %v4554, %v4612
      %v4732 = vmax.f32 %v4555, %v4611
      %v4733 = vmax.f32 %v4556, %v4615
      %v4734 = vmax.f32 %v4557, %v4617
      %v4735 = vmax.f32 %v4558, %v4616
      %v4736 = vmax.f32 %v4559, %v4620
      %v4737 = vmax.f32 %v4560, %v4622
      %v4738 = vmax.f32 %v4561, %v4621
      %v4739 = vmax.f32 %v4562, %v4625
      %v4740 = vmax.f32 %v4563, %v4627
      %v4741 = vmax.f32 %v4564, %v4626
      %v4742 = vmax.f32 %v4565, %v4630
      %v4743 = vmax.f32 %v4566, %v4632
      %v4744 = vmax.f32 %v4567, %v4631
      %v4745 = vmax.f32 %v4568, %v4635
      %v4746 = vmax.f32 %v4569, %v4637
      %v4747 = vmax.f32 %v4570, %v4636
      %v4748 = vmax.f32 %v4571, %v4640
      %v4749 = vmax.f32 %v4572, %v4642
      %v4750 = vmax.f32 %v4573, %v4641
      %v4751 = vmax.f32 %v4574, %v4645
      %v4752 = vmax.f32 %v4575, %v4647
      %v4753 = vmax.f32 %v4576, %v4646
      %v4754 = vmax.f32 %v4577, %v4650
      %v4755 = vmax.f32 %v4578, %v4652
      %v4756 = vmax.f32 %v4579, %v4651
      %v4757 = vmax.f32 %v4580, %v4655
      %v4758 = vmax.f32 %v4581, %v4657
      %v4759 = vmax.f32 %v4582, %v4656
      %v4760 = vmax.f32 %v4583, %v4660
      %v4761 = vmax.f32 %v4584, %v4662
      %v4762 = vmax.f32 %v4585, %v4661
      %v4763 = vmax.f32 %v4586, %v4665
      %v4764 = vmax.f32 %v4587, %v4667
      %v4765 = vmax.f32 %v4588, %v4666
      %v4766 = vmax.f32 %v4589, %v4670
      %v4767 = vmax.f32 %v4590, %v4672
      %v4768 = vmax.f32 %v4591, %v4671
      %v4769 = vrot.slane %v3777, 6
      %v4770 = vrot.slane %v3778, 6
      %v4771 = vsel %vm1147, %v4769, %v4770
      %v4772 = vrot.slane %v3781, 6
      %v4773 = vrot.slane %v3782, 6
      %v4774 = vsel %vm1147, %v4772, %v4773
      %v4775 = vrot.slane %v3785, 6
      %v4776 = vrot.slane %v3786, 6
      %v4777 = vsel %vm1147, %v4775, %v4776
      %v4778 = vrot.slane %v3789, 6
      %v4779 = vrot.slane %v3790, 6
      %v4780 = vsel %vm1147, %v4778, %v4779
      %v4781 = vrot.slane %v3793, 6
      %v4782 = vrot.slane %v3794, 6
      %v4783 = vsel %vm1147, %v4781, %v4782
      %v4784 = vrot.slane %v3797, 6
      %v4785 = vrot.slane %v3798, 6
      %v4786 = vsel %vm1147, %v4784, %v4785
      %v4787 = vrot.slane %v3801, 6
      %v4788 = vrot.slane %v3802, 6
      %v4789 = vsel %vm1147, %v4787, %v4788
      %v4790 = vrot.slane %v3805, 6
      %v4791 = vrot.slane %v3806, 6
      %v4792 = vsel %vm1147, %v4790, %v4791
      %v4793 = vrot.slane %v3809, 6
      %v4794 = vrot.slane %v3810, 6
      %v4795 = vsel %vm1147, %v4793, %v4794
      %v4796 = vrot.slane %v3813, 6
      %v4797 = vrot.slane %v3814, 6
      %v4798 = vsel %vm1147, %v4796, %v4797
      %v4799 = vrot.slane %v3817, 6
      %v4800 = vrot.slane %v3818, 6
      %v4801 = vsel %vm1147, %v4799, %v4800
      %v4802 = vrot.slane %v3821, 6
      %v4803 = vrot.slane %v3822, 6
      %v4804 = vsel %vm1147, %v4802, %v4803
      %v4805 = vrot.slane %v3825, 6
      %v4806 = vrot.slane %v3826, 6
      %v4807 = vsel %vm1147, %v4805, %v4806
      %v4808 = vrot.slane %v3829, 6
      %v4809 = vrot.slane %v3830, 6
      %v4810 = vsel %vm1147, %v4808, %v4809
      %v4811 = vrot.slane %v3833, 6
      %v4812 = vrot.slane %v3834, 6
      %v4813 = vsel %vm1147, %v4811, %v4812
      %v4814 = vrot.slane %v3837, 6
      %v4815 = vrot.slane %v3838, 6
      %v4816 = vsel %vm1147, %v4814, %v4815
      %v4865 = vmax.f32 %v4721, %v4769
      %v4866 = vmax.f32 %v4722, %v4771
      %v4867 = vmax.f32 %v4723, %v4770
      %v4868 = vmax.f32 %v4724, %v4772
      %v4869 = vmax.f32 %v4725, %v4774
      %v4870 = vmax.f32 %v4726, %v4773
      %v4871 = vmax.f32 %v4727, %v4775
      %v4872 = vmax.f32 %v4728, %v4777
      %v4873 = vmax.f32 %v4729, %v4776
      %v4874 = vmax.f32 %v4730, %v4778
      %v4875 = vmax.f32 %v4731, %v4780
      %v4876 = vmax.f32 %v4732, %v4779
      %v4877 = vmax.f32 %v4733, %v4781
      %v4878 = vmax.f32 %v4734, %v4783
      %v4879 = vmax.f32 %v4735, %v4782
      %v4880 = vmax.f32 %v4736, %v4784
      %v4881 = vmax.f32 %v4737, %v4786
      %v4882 = vmax.f32 %v4738, %v4785
      %v4883 = vmax.f32 %v4739, %v4787
      %v4884 = vmax.f32 %v4740, %v4789
      %v4885 = vmax.f32 %v4741, %v4788
      %v4886 = vmax.f32 %v4742, %v4790
      %v4887 = vmax.f32 %v4743, %v4792
      %v4888 = vmax.f32 %v4744, %v4791
      %v4889 = vmax.f32 %v4745, %v4793
      %v4890 = vmax.f32 %v4746, %v4795
      %v4891 = vmax.f32 %v4747, %v4794
      %v4892 = vmax.f32 %v4748, %v4796
      %v4893 = vmax.f32 %v4749, %v4798
      %v4894 = vmax.f32 %v4750, %v4797
      %v4895 = vmax.f32 %v4751, %v4799
      %v4896 = vmax.f32 %v4752, %v4801
      %v4897 = vmax.f32 %v4753, %v4800
      %v4898 = vmax.f32 %v4754, %v4802
      %v4899 = vmax.f32 %v4755, %v4804
      %v4900 = vmax.f32 %v4756, %v4803
      %v4901 = vmax.f32 %v4757, %v4805
      %v4902 = vmax.f32 %v4758, %v4807
      %v4903 = vmax.f32 %v4759, %v4806
      %v4904 = vmax.f32 %v4760, %v4808
      %v4905 = vmax.f32 %v4761, %v4810
      %v4906 = vmax.f32 %v4762, %v4809
      %v4907 = vmax.f32 %v4763, %v4811
      %v4908 = vmax.f32 %v4764, %v4813
      %v4909 = vmax.f32 %v4765, %v4812
      %v4910 = vmax.f32 %v4766, %v4814
      %v4911 = vmax.f32 %v4767, %v4816
      %v4912 = vmax.f32 %v4768, %v4815
      %vm4929 = vcmask 1040384
      %v4930 = vrot.slane %v3777, 7
      %v4931 = vrot.slane %v3778, 7
      %v4932 = vsel %vm4929, %v4930, %v4931
      %v4933 = vrot.slane %v3779, 7
      %v4934 = vsel %vm4929, %v4931, %v4933
      %v4935 = vrot.slane %v3781, 7
      %v4936 = vrot.slane %v3782, 7
      %v4937 = vsel %vm4929, %v4935, %v4936
      %v4938 = vrot.slane %v3783, 7
      %v4939 = vsel %vm4929, %v4936, %v4938
      %v4940 = vrot.slane %v3785, 7
      %v4941 = vrot.slane %v3786, 7
      %v4942 = vsel %vm4929, %v4940, %v4941
      %v4943 = vrot.slane %v3787, 7
      %v4944 = vsel %vm4929, %v4941, %v4943
      %v4945 = vrot.slane %v3789, 7
      %v4946 = vrot.slane %v3790, 7
      %v4947 = vsel %vm4929, %v4945, %v4946
      %v4948 = vrot.slane %v3791, 7
      %v4949 = vsel %vm4929, %v4946, %v4948
      %v4950 = vrot.slane %v3793, 7
      %v4951 = vrot.slane %v3794, 7
      %v4952 = vsel %vm4929, %v4950, %v4951
      %v4953 = vrot.slane %v3795, 7
      %v4954 = vsel %vm4929, %v4951, %v4953
      %v4955 = vrot.slane %v3797, 7
      %v4956 = vrot.slane %v3798, 7
      %v4957 = vsel %vm4929, %v4955, %v4956
      %v4958 = vrot.slane %v3799, 7
      %v4959 = vsel %vm4929, %v4956, %v4958
      %v4960 = vrot.slane %v3801, 7
      %v4961 = vrot.slane %v3802, 7
      %v4962 = vsel %vm4929, %v4960, %v4961
      %v4963 = vrot.slane %v3803, 7
      %v4964 = vsel %vm4929, %v4961, %v4963
      %v4965 = vrot.slane %v3805, 7
      %v4966 = vrot.slane %v3806, 7
      %v4967 = vsel %vm4929, %v4965, %v4966
      %v4968 = vrot.slane %v3807, 7
      %v4969 = vsel %vm4929, %v4966, %v4968
      %v4970 = vrot.slane %v3809, 7
      %v4971 = vrot.slane %v3810, 7
      %v4972 = vsel %vm4929, %v4970, %v4971
      %v4973 = vrot.slane %v3811, 7
      %v4974 = vsel %vm4929, %v4971, %v4973
      %v4975 = vrot.slane %v3813, 7
      %v4976 = vrot.slane %v3814, 7
      %v4977 = vsel %vm4929, %v4975, %v4976
      %v4978 = vrot.slane %v3815, 7
      %v4979 = vsel %vm4929, %v4976, %v4978
      %v4980 = vrot.slane %v3817, 7
      %v4981 = vrot.slane %v3818, 7
      %v4982 = vsel %vm4929, %v4980, %v4981
      %v4983 = vrot.slane %v3819, 7
      %v4984 = vsel %vm4929, %v4981, %v4983
      %v4985 = vrot.slane %v3821, 7
      %v4986 = vrot.slane %v3822, 7
      %v4987 = vsel %vm4929, %v4985, %v4986
      %v4988 = vrot.slane %v3823, 7
      %v4989 = vsel %vm4929, %v4986, %v4988
      %v4990 = vrot.slane %v3825, 7
      %v4991 = vrot.slane %v3826, 7
      %v4992 = vsel %vm4929, %v4990, %v4991
      %v4993 = vrot.slane %v3827, 7
      %v4994 = vsel %vm4929, %v4991, %v4993
      %v4995 = vrot.slane %v3829, 7
      %v4996 = vrot.slane %v3830, 7
      %v4997 = vsel %vm4929, %v4995, %v4996
      %v4998 = vrot.slane %v3831, 7
      %v4999 = vsel %vm4929, %v4996, %v4998
      %v5000 = vrot.slane %v3833, 7
      %v5001 = vrot.slane %v3834, 7
      %v5002 = vsel %vm4929, %v5000, %v5001
      %v5003 = vrot.slane %v3835, 7
      %v5004 = vsel %vm4929, %v5001, %v5003
      %v5005 = vrot.slane %v3837, 7
      %v5006 = vrot.slane %v3838, 7
      %v5007 = vsel %vm4929, %v5005, %v5006
      %v5008 = vrot.slane %v3839, 7
      %v5009 = vsel %vm4929, %v5006, %v5008
      %v5058 = vmax.f32 %v4865, %v4930
      %v5059 = vmax.f32 %v4866, %v4932
      %v5060 = vmax.f32 %v4867, %v4934
      %v5061 = vmax.f32 %v4868, %v4935
      %v5062 = vmax.f32 %v4869, %v4937
      %v5063 = vmax.f32 %v4870, %v4939
      %v5064 = vmax.f32 %v4871, %v4940
      %v5065 = vmax.f32 %v4872, %v4942
      %v5066 = vmax.f32 %v4873, %v4944
      %v5067 = vmax.f32 %v4874, %v4945
      %v5068 = vmax.f32 %v4875, %v4947
      %v5069 = vmax.f32 %v4876, %v4949
      %v5070 = vmax.f32 %v4877, %v4950
      %v5071 = vmax.f32 %v4878, %v4952
      %v5072 = vmax.f32 %v4879, %v4954
      %v5073 = vmax.f32 %v4880, %v4955
      %v5074 = vmax.f32 %v4881, %v4957
      %v5075 = vmax.f32 %v4882, %v4959
      %v5076 = vmax.f32 %v4883, %v4960
      %v5077 = vmax.f32 %v4884, %v4962
      %v5078 = vmax.f32 %v4885, %v4964
      %v5079 = vmax.f32 %v4886, %v4965
      %v5080 = vmax.f32 %v4887, %v4967
      %v5081 = vmax.f32 %v4888, %v4969
      %v5082 = vmax.f32 %v4889, %v4970
      %v5083 = vmax.f32 %v4890, %v4972
      %v5084 = vmax.f32 %v4891, %v4974
      %v5085 = vmax.f32 %v4892, %v4975
      %v5086 = vmax.f32 %v4893, %v4977
      %v5087 = vmax.f32 %v4894, %v4979
      %v5088 = vmax.f32 %v4895, %v4980
      %v5089 = vmax.f32 %v4896, %v4982
      %v5090 = vmax.f32 %v4897, %v4984
      %v5091 = vmax.f32 %v4898, %v4985
      %v5092 = vmax.f32 %v4899, %v4987
      %v5093 = vmax.f32 %v4900, %v4989
      %v5094 = vmax.f32 %v4901, %v4990
      %v5095 = vmax.f32 %v4902, %v4992
      %v5096 = vmax.f32 %v4903, %v4994
      %v5097 = vmax.f32 %v4904, %v4995
      %v5098 = vmax.f32 %v4905, %v4997
      %v5099 = vmax.f32 %v4906, %v4999
      %v5100 = vmax.f32 %v4907, %v5000
      %v5101 = vmax.f32 %v4908, %v5002
      %v5102 = vmax.f32 %v4909, %v5004
      %v5103 = vmax.f32 %v4910, %v5005
      %v5104 = vmax.f32 %v4911, %v5007
      %v5105 = vmax.f32 %v4912, %v5009
      %v5106 = vmax.f32 %v5058, %v3777
      %v5107 = vmax.f32 %v5059, %v3778
      %v5108 = vmax.f32 %v5060, %v3779
      %v5109 = vmax.f32 %v5061, %v3781
      %v5110 = vmax.f32 %v5062, %v3782
      %v5111 = vmax.f32 %v5063, %v3783
      %v5112 = vmax.f32 %v5064, %v3785
      %v5113 = vmax.f32 %v5065, %v3786
      %v5114 = vmax.f32 %v5066, %v3787
      %v5115 = vmax.f32 %v5067, %v3789
      %v5116 = vmax.f32 %v5068, %v3790
      %v5117 = vmax.f32 %v5069, %v3791
      %v5118 = vmax.f32 %v5070, %v3793
      %v5119 = vmax.f32 %v5071, %v3794
      %v5120 = vmax.f32 %v5072, %v3795
      %v5121 = vmax.f32 %v5073, %v3797
      %v5122 = vmax.f32 %v5074, %v3798
      %v5123 = vmax.f32 %v5075, %v3799
      %v5124 = vmax.f32 %v5076, %v3801
      %v5125 = vmax.f32 %v5077, %v3802
      %v5126 = vmax.f32 %v5078, %v3803
      %v5127 = vmax.f32 %v5079, %v3805
      %v5128 = vmax.f32 %v5080, %v3806
      %v5129 = vmax.f32 %v5081, %v3807
      %v5130 = vmax.f32 %v5082, %v3809
      %v5131 = vmax.f32 %v5083, %v3810
      %v5132 = vmax.f32 %v5084, %v3811
      %v5133 = vmax.f32 %v5085, %v3813
      %v5134 = vmax.f32 %v5086, %v3814
      %v5135 = vmax.f32 %v5087, %v3815
      %v5136 = vmax.f32 %v5088, %v3817
      %v5137 = vmax.f32 %v5089, %v3818
      %v5138 = vmax.f32 %v5090, %v3819
      %v5139 = vmax.f32 %v5091, %v3821
      %v5140 = vmax.f32 %v5092, %v3822
      %v5141 = vmax.f32 %v5093, %v3823
      %v5142 = vmax.f32 %v5094, %v3825
      %v5143 = vmax.f32 %v5095, %v3826
      %v5144 = vmax.f32 %v5096, %v3827
      %v5145 = vmax.f32 %v5097, %v3829
      %v5146 = vmax.f32 %v5098, %v3830
      %v5147 = vmax.f32 %v5099, %v3831
      %v5148 = vmax.f32 %v5100, %v3833
      %v5149 = vmax.f32 %v5101, %v3834
      %v5150 = vmax.f32 %v5102, %v3835
      %v5151 = vmax.f32 %v5103, %v3837
      %v5152 = vmax.f32 %v5104, %v3838
      %v5153 = vmax.f32 %v5105, %v3839
      %v5202 = vrot.slane %v5106, 2
      %v5203 = vrot.slane %v5107, 2
      %v5204 = vsel %vm2117, %v5202, %v5203
      %v5205 = vrot.slane %v5108, 2
      %v5206 = vsel %vm2117, %v5203, %v5205
      %v5207 = vrot.slane %v5109, 2
      %v5208 = vrot.slane %v5110, 2
      %v5209 = vsel %vm2117, %v5207, %v5208
      %v5210 = vrot.slane %v5111, 2
      %v5211 = vsel %vm2117, %v5208, %v5210
      %v5212 = vrot.slane %v5112, 2
      %v5213 = vrot.slane %v5113, 2
      %v5214 = vsel %vm2117, %v5212, %v5213
      %v5215 = vrot.slane %v5114, 2
      %v5216 = vsel %vm2117, %v5213, %v5215
      %v5217 = vrot.slane %v5115, 2
      %v5218 = vrot.slane %v5116, 2
      %v5219 = vsel %vm2117, %v5217, %v5218
      %v5220 = vrot.slane %v5117, 2
      %v5221 = vsel %vm2117, %v5218, %v5220
      %v5222 = vrot.slane %v5118, 2
      %v5223 = vrot.slane %v5119, 2
      %v5224 = vsel %vm2117, %v5222, %v5223
      %v5225 = vrot.slane %v5120, 2
      %v5226 = vsel %vm2117, %v5223, %v5225
      %v5227 = vrot.slane %v5121, 2
      %v5228 = vrot.slane %v5122, 2
      %v5229 = vsel %vm2117, %v5227, %v5228
      %v5230 = vrot.slane %v5123, 2
      %v5231 = vsel %vm2117, %v5228, %v5230
      %v5232 = vrot.slane %v5124, 2
      %v5233 = vrot.slane %v5125, 2
      %v5234 = vsel %vm2117, %v5232, %v5233
      %v5235 = vrot.slane %v5126, 2
      %v5236 = vsel %vm2117, %v5233, %v5235
      %v5237 = vrot.slane %v5127, 2
      %v5238 = vrot.slane %v5128, 2
      %v5239 = vsel %vm2117, %v5237, %v5238
      %v5240 = vrot.slane %v5129, 2
      %v5241 = vsel %vm2117, %v5238, %v5240
      %v5242 = vrot.slane %v5130, 2
      %v5243 = vrot.slane %v5131, 2
      %v5244 = vsel %vm2117, %v5242, %v5243
      %v5245 = vrot.slane %v5132, 2
      %v5246 = vsel %vm2117, %v5243, %v5245
      %v5247 = vrot.slane %v5133, 2
      %v5248 = vrot.slane %v5134, 2
      %v5249 = vsel %vm2117, %v5247, %v5248
      %v5250 = vrot.slane %v5135, 2
      %v5251 = vsel %vm2117, %v5248, %v5250
      %v5252 = vrot.slane %v5136, 2
      %v5253 = vrot.slane %v5137, 2
      %v5254 = vsel %vm2117, %v5252, %v5253
      %v5255 = vrot.slane %v5138, 2
      %v5256 = vsel %vm2117, %v5253, %v5255
      %v5257 = vrot.slane %v5139, 2
      %v5258 = vrot.slane %v5140, 2
      %v5259 = vsel %vm2117, %v5257, %v5258
      %v5260 = vrot.slane %v5141, 2
      %v5261 = vsel %vm2117, %v5258, %v5260
      %v5262 = vrot.slane %v5142, 2
      %v5263 = vrot.slane %v5143, 2
      %v5264 = vsel %vm2117, %v5262, %v5263
      %v5265 = vrot.slane %v5144, 2
      %v5266 = vsel %vm2117, %v5263, %v5265
      %v5267 = vrot.slane %v5145, 2
      %v5268 = vrot.slane %v5146, 2
      %v5269 = vsel %vm2117, %v5267, %v5268
      %v5270 = vrot.slane %v5147, 2
      %v5271 = vsel %vm2117, %v5268, %v5270
      %v5272 = vrot.slane %v5148, 2
      %v5273 = vrot.slane %v5149, 2
      %v5274 = vsel %vm2117, %v5272, %v5273
      %v5275 = vrot.slane %v5150, 2
      %v5276 = vsel %vm2117, %v5273, %v5275
      %v5277 = vrot.slane %v5151, 2
      %v5278 = vrot.slane %v5152, 2
      %v5279 = vsel %vm2117, %v5277, %v5278
      %v5280 = vrot.slane %v5153, 2
      %v5281 = vsel %vm2117, %v5278, %v5280
      %v5282 = vld [vmem:[%s5] sm:$0x3]
      %v5283 = vsel %vm896, %v5204, 0
      %v5285 = vsel %vm896, %v5206, 0
      %v5287 = vsel %vm896, %v5209, 0
      %v5289 = vsel %vm896, %v5211, 0
      %v5291 = vsel %vm896, %v5214, 0
      %v5293 = vsel %vm896, %v5216, 0
      %v5295 = vsel %vm896, %v5219, 0
      %v5297 = vsel %vm896, %v5221, 0
      %v5299 = vsel %vm896, %v5224, 0
      %v5301 = vsel %vm896, %v5226, 0
      %v5303 = vsel %vm896, %v5229, 0
      %v5305 = vsel %vm896, %v5231, 0
      %v5307 = vsel %vm896, %v5234, 0
      %v5309 = vsel %vm896, %v5236, 0
      %v5311 = vsel %vm896, %v5239, 0
      %v5313 = vsel %vm896, %v5241, 0
      %v5315 = vsel %vm896, %v5244, 0
      %v5317 = vsel %vm896, %v5246, 0
      %v5319 = vsel %vm896, %v5249, 0
      %v5321 = vsel %vm896, %v5251, 0
      %v5323 = vsel %vm896, %v5254, 0
      %v5325 = vsel %vm896, %v5256, 0
      %v5327 = vsel %vm896, %v5259, 0
      %v5329 = vsel %vm896, %v5261, 0
      %v5331 = vsel %vm896, %v5264, 0
      %v5333 = vsel %vm896, %v5266, 0
      %v5335 = vsel %vm896, %v5269, 0
      %v5337 = vsel %vm896, %v5271, 0
      %v5339 = vsel %vm896, %v5274, 0
      %v5341 = vsel %vm896, %v5276, 0
      %v5343 = vsel %vm896, %v5279, 0
      %v5345 = vsel %vm896, %v5281, 0
      %v5348 = vsel %vm1147, %v5282, 0
      %5350 = vmatprep.subr.mxu0 0.0
      %5351 = vmatpush1.msra.mxu0 %v5348
      %5352 = vmatprep.subr.mxu0 0.0
      %5353 = vmatpush1.msra.mxu0 0.0
      %5354 = vmatprep.subr.mxu0 0.0
      %5355 = vmatpush1.msra.mxu0 0.0
      %5356 = vmatprep.subr.mxu0 0.0
      %5357 = vmatpush1.msra.mxu0 0.0
      %5358 = vmatprep.subr.mxu0 0.0
      %5359 = vmatpush1.msra.mxu0 0.0
      %5360 = vmatprep.subr.mxu0 0.0
      %5361 = vmatpush1.msra.mxu0 0.0
      %5362 = vmatprep.subr.mxu0 0.0
      %5363 = vmatpush1.msra.mxu0 0.0
      %5364 = vmatprep.subr.mxu0 0.0
      %5365 = vmatpush1.msra.mxu0 0.0
      %5366 = vmatprep.subr.mxu0 0.0
      %5367 = vmatpush1.msra.mxu0 0.0
      %5368 = vmatprep.subr.mxu0 0.0
      %5369 = vmatpush1.msra.mxu0 0.0
      %5370 = vmatprep.subr.mxu0 0.0
      %5371 = vmatpush1.msra.mxu0 0.0
      %5372 = vmatprep.subr.mxu0 0.0
      %5373 = vmatpush1.msra.mxu0 0.0
      %5374 = vmatprep.subr.mxu0 0.0
      %5375 = vmatpush1.msra.mxu0 0.0
      %5376 = vmatprep.subr.mxu0 0.0
      %5377 = vmatpush1.msra.mxu0 0.0
      %5378 = vmatprep.subr.mxu0 0.0
      %5379 = vmatpush1.msra.mxu0 0.0
      %5380 = vmatprep.subr.mxu0 0.0
      %5381 = vmatpush1.msra.mxu0 0.0
      %5382 = vmatprep.subr.mxu0 0.0
      %5383 = vmatpush1.msra.mxu0 0.0
      %5384 = vmatprep.subr.mxu0 0.0
      %5385 = vmatpush1.msra.mxu0 0.0
      %5386 = vmatprep.subr.mxu0 0.0
      %5387 = vmatpush1.msra.mxu0 0.0
      %5388 = vmatprep.subr.mxu0 0.0
      %5389 = vmatpush1.msra.mxu0 0.0
      %5390 = vmatprep.subr.mxu0 0.0
      %5391 = vmatpush1.msra.mxu0 0.0
      %5392 = vmatprep.subr.mxu0 0.0
      %5393 = vmatpush1.msra.mxu0 0.0
      %5394 = vmatprep.subr.mxu0 0.0
      %5395 = vmatpush1.msra.mxu0 0.0
      %5396 = vmatprep.subr.mxu0 0.0
      %5397 = vmatpush1.msra.mxu0 0.0
      %5398 = vmatprep.subr.mxu0 0.0
      %5399 = vmatpush1.msra.mxu0 0.0
      %5400 = vmatprep.subr.mxu0 0.0
      %5401 = vmatpush1.msra.mxu0 0.0
      %5402 = vmatprep.subr.mxu0 0.0
      %5403 = vmatpush1.msra.mxu0 0.0
      %5404 = vmatprep.subr.mxu0 0.0
      %5405 = vmatpush1.msra.mxu0 0.0
      %5406 = vmatprep.subr.mxu0 0.0
      %5407 = vmatpush1.msra.mxu0 0.0
      %5408 = vmatprep.subr.mxu0 0.0
      %5409 = vmatpush1.msra.mxu0 0.0
      %5410 = vmatprep.subr.mxu0 0.0
      %5411 = vmatpush1.msra.mxu0 0.0
      %5412 = vmatprep.subr.mxu0 0.0
      %5413 = vmatpush1.msra.mxu0 0.0
      %5414 = vmatprep.mubr.f32.mxu0 0.0
      %5415 = vmatmul.mubr.f32.gmra.mrb[0].mxu0 %v5283
      %v5416 = vpop.f32.mrb[0].mxu0
      %v5417 = vadd.f32 0.0, %v5416
      %v5418 = vpop.f32.mrb[0].mxu0
      %5419 = vmatprep.mubr.f32.mxu0 0.0
      %5420 = vmatmul.mubr.f32.gmra.mrb[0].mxu0 %v5285
      %v5421 = vpop.f32.mrb[0].mxu0
      %v5422 = vadd.f32 0.0, %v5421
      %v5423 = vpop.f32.mrb[0].mxu0
      %5424 = vmatprep.mubr.f32.mxu0 0.0
      %5425 = vmatmul.mubr.f32.gmra.mrb[0].mxu0 %v5287
      %v5426 = vpop.f32.mrb[0].mxu0
      %v5427 = vadd.f32 0.0, %v5426
      %v5428 = vpop.f32.mrb[0].mxu0
      %5429 = vmatprep.mubr.f32.mxu0 0.0
      %5430 = vmatmul.mubr.f32.gmra.mrb[0].mxu0 %v5289
      %v5431 = vpop.f32.mrb[0].mxu0
      %v5432 = vadd.f32 0.0, %v5431
      %v5433 = vpop.f32.mrb[0].mxu0
      %5434 = vmatprep.mubr.f32.mxu0 0.0
      %5435 = vmatmul.mubr.f32.gmra.mrb[0].mxu0 %v5291
      %v5436 = vpop.f32.mrb[0].mxu0
      %v5437 = vadd.f32 0.0, %v5436
      %v5438 = vpop.f32.mrb[0].mxu0
      %5439 = vmatprep.mubr.f32.mxu0 0.0
      %5440 = vmatmul.mubr.f32.gmra.mrb[0].mxu0 %v5293
      %v5441 = vpop.f32.mrb[0].mxu0
      %v5442 = vadd.f32 0.0, %v5441
      %v5443 = vpop.f32.mrb[0].mxu0
      %5444 = vmatprep.mubr.f32.mxu0 0.0
      %5445 = vmatmul.mubr.f32.gmra.mrb[0].mxu0 %v5295
      %v5446 = vpop.f32.mrb[0].mxu0
      %v5447 = vadd.f32 0.0, %v5446
      %v5448 = vpop.f32.mrb[0].mxu0
      %5449 = vmatprep.mubr.f32.mxu0 0.0
      %5450 = vmatmul.mubr.f32.gmra.mrb[0].mxu0 %v5297
      %v5451 = vpop.f32.mrb[0].mxu0
      %v5452 = vadd.f32 0.0, %v5451
      %v5453 = vpop.f32.mrb[0].mxu0
      %5454 = vmatprep.mubr.f32.mxu0 0.0
      %5455 = vmatmul.mubr.f32.gmra.mrb[0].mxu0 %v5299
      %v5456 = vpop.f32.mrb[0].mxu0
      %v5457 = vadd.f32 0.0, %v5456
      %v5458 = vpop.f32.mrb[0].mxu0
      %5459 = vmatprep.mubr.f32.mxu0 0.0
      %5460 = vmatmul.mubr.f32.gmra.mrb[0].mxu0 %v5301
      %v5461 = vpop.f32.mrb[0].mxu0
      %v5462 = vadd.f32 0.0, %v5461
      %v5463 = vpop.f32.mrb[0].mxu0
      %5464 = vmatprep.mubr.f32.mxu0 0.0
      %5465 = vmatmul.mubr.f32.gmra.mrb[0].mxu0 %v5303
      %v5466 = vpop.f32.mrb[0].mxu0
      %v5467 = vadd.f32 0.0, %v5466
      %v5468 = vpop.f32.mrb[0].mxu0
      %5469 = vmatprep.mubr.f32.mxu0 0.0
      %5470 = vmatmul.mubr.f32.gmra.mrb[0].mxu0 %v5305
      %v5471 = vpop.f32.mrb[0].mxu0
      %v5472 = vadd.f32 0.0, %v5471
      %v5473 = vpop.f32.mrb[0].mxu0
      %5474 = vmatprep.mubr.f32.mxu0 0.0
      %5475 = vmatmul.mubr.f32.gmra.mrb[0].mxu0 %v5307
      %v5476 = vpop.f32.mrb[0].mxu0
      %v5477 = vadd.f32 0.0, %v5476
      %v5478 = vpop.f32.mrb[0].mxu0
      %5479 = vmatprep.mubr.f32.mxu0 0.0
      %5480 = vmatmul.mubr.f32.gmra.mrb[0].mxu0 %v5309
      %v5481 = vpop.f32.mrb[0].mxu0
      %v5482 = vadd.f32 0.0, %v5481
      %v5483 = vpop.f32.mrb[0].mxu0
      %5484 = vmatprep.mubr.f32.mxu0 0.0
      %5485 = vmatmul.mubr.f32.gmra.mrb[0].mxu0 %v5311
      %v5486 = vpop.f32.mrb[0].mxu0
      %v5487 = vadd.f32 0.0, %v5486
      %v5488 = vpop.f32.mrb[0].mxu0
      %5489 = vmatprep.mubr.f32.mxu0 0.0
      %5490 = vmatmul.mubr.f32.gmra.mrb[0].mxu0 %v5313
      %v5491 = vpop.f32.mrb[0].mxu0
      %v5492 = vadd.f32 0.0, %v5491
      %v5493 = vpop.f32.mrb[0].mxu0
      %5494 = vmatprep.mubr.f32.mxu0 0.0
      %5495 = vmatmul.mubr.f32.gmra.mrb[0].mxu0 %v5315
      %v5496 = vpop.f32.mrb[0].mxu0
      %v5497 = vadd.f32 0.0, %v5496
      %v5498 = vpop.f32.mrb[0].mxu0
      %5499 = vmatprep.mubr.f32.mxu0 0.0
      %5500 = vmatmul.mubr.f32.gmra.mrb[0].mxu0 %v5317
      %v5501 = vpop.f32.mrb[0].mxu0
      %v5502 = vadd.f32 0.0, %v5501
      %v5503 = vpop.f32.mrb[0].mxu0
      %5504 = vmatprep.mubr.f32.mxu0 0.0
      %5505 = vmatmul.mubr.f32.gmra.mrb[0].mxu0 %v5319
      %v5506 = vpop.f32.mrb[0].mxu0
      %v5507 = vadd.f32 0.0, %v5506
      %v5508 = vpop.f32.mrb[0].mxu0
      %5509 = vmatprep.mubr.f32.mxu0 0.0
      %5510 = vmatmul.mubr.f32.gmra.mrb[0].mxu0 %v5321
      %v5511 = vpop.f32.mrb[0].mxu0
      %v5512 = vadd.f32 0.0, %v5511
      %v5513 = vpop.f32.mrb[0].mxu0
      %5514 = vmatprep.mubr.f32.mxu0 0.0
      %5515 = vmatmul.mubr.f32.gmra.mrb[0].mxu0 %v5323
      %v5516 = vpop.f32.mrb[0].mxu0
      %v5517 = vadd.f32 0.0, %v5516
      %v5518 = vpop.f32.mrb[0].mxu0
      %5519 = vmatprep.mubr.f32.mxu0 0.0
      %5520 = vmatmul.mubr.f32.gmra.mrb[0].mxu0 %v5325
      %v5521 = vpop.f32.mrb[0].mxu0
      %v5522 = vadd.f32 0.0, %v5521
      %v5523 = vpop.f32.mrb[0].mxu0
      %5524 = vmatprep.mubr.f32.mxu0 0.0
      %5525 = vmatmul.mubr.f32.gmra.mrb[0].mxu0 %v5327
      %v5526 = vpop.f32.mrb[0].mxu0
      %v5527 = vadd.f32 0.0, %v5526
      %v5528 = vpop.f32.mrb[0].mxu0
      %5529 = vmatprep.mubr.f32.mxu0 0.0
      %5530 = vmatmul.mubr.f32.gmra.mrb[0].mxu0 %v5329
      %v5531 = vpop.f32.mrb[0].mxu0
      %v5532 = vadd.f32 0.0, %v5531
      %v5533 = vpop.f32.mrb[0].mxu0
      %5534 = vmatprep.mubr.f32.mxu0 0.0
      %5535 = vmatmul.mubr.f32.gmra.mrb[0].mxu0 %v5331
      %v5536 = vpop.f32.mrb[0].mxu0
      %v5537 = vadd.f32 0.0, %v5536
      %v5538 = vpop.f32.mrb[0].mxu0
      %5539 = vmatprep.mubr.f32.mxu0 0.0
      %5540 = vmatmul.mubr.f32.gmra.mrb[0].mxu0 %v5333
      %v5541 = vpop.f32.mrb[0].mxu0
      %v5542 = vadd.f32 0.0, %v5541
      %v5543 = vpop.f32.mrb[0].mxu0
      %5544 = vmatprep.mubr.f32.mxu0 0.0
      %5545 = vmatmul.mubr.f32.gmra.mrb[0].mxu0 %v5335
      %v5546 = vpop.f32.mrb[0].mxu0
      %v5547 = vadd.f32 0.0, %v5546
      %v5548 = vpop.f32.mrb[0].mxu0
      %5549 = vmatprep.mubr.f32.mxu0 0.0
      %5550 = vmatmul.mubr.f32.gmra.mrb[0].mxu0 %v5337
      %v5551 = vpop.f32.mrb[0].mxu0
      %v5552 = vadd.f32 0.0, %v5551
      %v5553 = vpop.f32.mrb[0].mxu0
      %5554 = vmatprep.mubr.f32.mxu0 0.0
      %5555 = vmatmul.mubr.f32.gmra.mrb[0].mxu0 %v5339
      %v5556 = vpop.f32.mrb[0].mxu0
      %v5557 = vadd.f32 0.0, %v5556
      %v5558 = vpop.f32.mrb[0].mxu0
      %5559 = vmatprep.mubr.f32.mxu0 0.0
      %5560 = vmatmul.mubr.f32.gmra.mrb[0].mxu0 %v5341
      %v5561 = vpop.f32.mrb[0].mxu0
      %v5562 = vadd.f32 0.0, %v5561
      %v5563 = vpop.f32.mrb[0].mxu0
      %5564 = vmatprep.mubr.f32.mxu0 0.0
      %5565 = vmatmul.mubr.f32.gmra.mrb[0].mxu0 %v5343
      %v5566 = vpop.f32.mrb[0].mxu0
      %v5567 = vadd.f32 0.0, %v5566
      %v5568 = vpop.f32.mrb[0].mxu0
      %5569 = vmatprep.mubr.f32.mxu0 0.0
      %5570 = vmatmul.mubr.f32.gmra.mrb[0].mxu0 %v5345
      %v5571 = vpop.f32.mrb[0].mxu0
      %v5572 = vadd.f32 0.0, %v5571
      %v5573 = vpop.f32.mrb[0].mxu0
      %5574 = vdwg.mxu0
      %v5575 = vadd.f32 %v3036, %v5417
      %v5576 = vadd.f32 %v3037, %v5422
      %v5577 = vadd.f32 %v3038, %v5427
      %v5578 = vadd.f32 %v3039, %v5432
      %v5579 = vadd.f32 %v3040, %v5437
      %v5580 = vadd.f32 %v3041, %v5442
      %v5581 = vadd.f32 %v3042, %v5447
      %v5582 = vadd.f32 %v3043, %v5452
      %v5583 = vadd.f32 %v3044, %v5457
      %v5584 = vadd.f32 %v3045, %v5462
      %v5585 = vadd.f32 %v3046, %v5467
      %v5586 = vadd.f32 %v3047, %v5472
      %v5587 = vadd.f32 %v3048, %v5477
      %v5588 = vadd.f32 %v3049, %v5482
      %v5589 = vadd.f32 %v3050, %v5487
      %v5590 = vadd.f32 %v3051, %v5492
      %v5591 = vadd.f32 %v3052, %v5497
      %v5592 = vadd.f32 %v3053, %v5502
      %v5593 = vadd.f32 %v3054, %v5507
      %v5594 = vadd.f32 %v3055, %v5512
      %v5595 = vadd.f32 %v3056, %v5517
      %v5596 = vadd.f32 %v3057, %v5522
      %v5597 = vadd.f32 %v3058, %v5527
      %v5598 = vadd.f32 %v3059, %v5532
      %v5599 = vadd.f32 %v3060, %v5537
      %v5600 = vadd.f32 %v3061, %v5542
      %v5601 = vadd.f32 %v3062, %v5547
      %v5602 = vadd.f32 %v3063, %v5552
      %v5603 = vadd.f32 %v3064, %v5557
      %v5604 = vadd.f32 %v3065, %v5562
      %v5605 = vadd.f32 %v3066, %v5567
      %v5606 = vadd.f32 %v3067, %v5572
      %v5607 = vld [vmem:[#allocation2] sm:$0xff]
      %v5608 = vld [vmem:[#allocation2 + $0x8] sm:$0xff]
      %v5609 = vld [vmem:[#allocation2 + $0x10] sm:$0xff]
      %v5610 = vld [vmem:[#allocation2 + $0x18] sm:$0xf]
      %v5611 = vld [vmem:[#allocation2 + $0x20] sm:$0xff]
      %v5612 = vld [vmem:[#allocation2 + $0x28] sm:$0xff]
      %v5613 = vld [vmem:[#allocation2 + $0x30] sm:$0xff]
      %v5614 = vld [vmem:[#allocation2 + $0x38] sm:$0xf]
      %v5615 = vld [vmem:[#allocation2 + $0x40] sm:$0xff]
      %v5616 = vld [vmem:[#allocation2 + $0x48] sm:$0xff]
      %v5617 = vld [vmem:[#allocation2 + $0x50] sm:$0xff]
      %v5618 = vld [vmem:[#allocation2 + $0x58] sm:$0xf]
      %v5619 = vld [vmem:[#allocation2 + $0x60] sm:$0xff]
      %v5620 = vld [vmem:[#allocation2 + $0x68] sm:$0xff]
      %v5621 = vld [vmem:[#allocation2 + $0x70] sm:$0xff]
      %v5622 = vld [vmem:[#allocation2 + $0x78] sm:$0xf]
      %v5623 = vld [vmem:[#allocation2 + $0x80] sm:$0xff]
      %v5624 = vld [vmem:[#allocation2 + $0x88] sm:$0xff]
      %v5625 = vld [vmem:[#allocation2 + $0x90] sm:$0xff]
      %v5626 = vld [vmem:[#allocation2 + $0x98] sm:$0xf]
      %v5627 = vld [vmem:[#allocation2 + $0xa0] sm:$0xff]
      %v5628 = vld [vmem:[#allocation2 + $0xa8] sm:$0xff]
      %v5629 = vld [vmem:[#allocation2 + $0xb0] sm:$0xff]
      %v5630 = vld [vmem:[#allocation2 + $0xb8] sm:$0xf]
      %v5631 = vld [vmem:[#allocation2 + $0xc0] sm:$0xff]
      %v5632 = vld [vmem:[#allocation2 + $0xc8] sm:$0xff]
      %v5633 = vld [vmem:[#allocation2 + $0xd0] sm:$0xff]
      %v5634 = vld [vmem:[#allocation2 + $0xd8] sm:$0xf]
      %v5635 = vld [vmem:[#allocation2 + $0xe0] sm:$0xff]
      %v5636 = vld [vmem:[#allocation2 + $0xe8] sm:$0xff]
      %v5637 = vld [vmem:[#allocation2 + $0xf0] sm:$0xff]
      %v5638 = vld [vmem:[#allocation2 + $0xf8] sm:$0xf]
      %v5639 = vld [vmem:[#allocation2 + $0x100] sm:$0xff]
      %v5640 = vld [vmem:[#allocation2 + $0x108] sm:$0xff]
      %v5641 = vld [vmem:[#allocation2 + $0x110] sm:$0xff]
      %v5642 = vld [vmem:[#allocation2 + $0x118] sm:$0xf]
      %v5643 = vld [vmem:[#allocation2 + $0x120] sm:$0xff]
      %v5644 = vld [vmem:[#allocation2 + $0x128] sm:$0xff]
      %v5645 = vld [vmem:[#allocation2 + $0x130] sm:$0xff]
      %v5646 = vld [vmem:[#allocation2 + $0x138] sm:$0xf]
      %v5647 = vld [vmem:[#allocation2 + $0x140] sm:$0xff]
      %v5648 = vld [vmem:[#allocation2 + $0x148] sm:$0xff]
      %v5649 = vld [vmem:[#allocation2 + $0x150] sm:$0xff]
      %v5650 = vld [vmem:[#allocation2 + $0x158] sm:$0xf]
      %v5651 = vld [vmem:[#allocation2 + $0x160] sm:$0xff]
      %v5652 = vld [vmem:[#allocation2 + $0x168] sm:$0xff]
      %v5653 = vld [vmem:[#allocation2 + $0x170] sm:$0xff]
      %v5654 = vld [vmem:[#allocation2 + $0x178] sm:$0xf]
      %v5655 = vld [vmem:[#allocation2 + $0x180] sm:$0xff]
      %v5656 = vld [vmem:[#allocation2 + $0x188] sm:$0xff]
      %v5657 = vld [vmem:[#allocation2 + $0x190] sm:$0xff]
      %v5658 = vld [vmem:[#allocation2 + $0x198] sm:$0xf]
      %v5659 = vld [vmem:[#allocation2 + $0x1a0] sm:$0xff]
      %v5660 = vld [vmem:[#allocation2 + $0x1a8] sm:$0xff]
      %v5661 = vld [vmem:[#allocation2 + $0x1b0] sm:$0xff]
      %v5662 = vld [vmem:[#allocation2 + $0x1b8] sm:$0xf]
      %v5663 = vld [vmem:[#allocation2 + $0x1c0] sm:$0xff]
      %v5664 = vld [vmem:[#allocation2 + $0x1c8] sm:$0xff]
      %v5665 = vld [vmem:[#allocation2 + $0x1d0] sm:$0xff]
      %v5666 = vld [vmem:[#allocation2 + $0x1d8] sm:$0xf]
      %v5667 = vld [vmem:[#allocation2 + $0x1e0] sm:$0xff]
      %v5668 = vld [vmem:[#allocation2 + $0x1e8] sm:$0xff]
      %v5669 = vld [vmem:[#allocation2 + $0x1f0] sm:$0xff]
      %v5670 = vld [vmem:[#allocation2 + $0x1f8] sm:$0xf]
      %s5671 = scalar_lea.vmem [#allocation2], 32
      %v5672 = vld [vmem:[%s5671] sm:$0xff]
      %v5673 = vld [vmem:[%s5671 + $0x8] sm:$0xff]
      %v5674 = vld [vmem:[%s5671 + $0x10] sm:$0xff]
      %v5675 = vld [vmem:[%s5671 + $0x18] sm:$0xf]
      %v5676 = vld [vmem:[%s5671 + $0x20] sm:$0xff]
      %v5677 = vld [vmem:[%s5671 + $0x28] sm:$0xff]
      %v5678 = vld [vmem:[%s5671 + $0x30] sm:$0xff]
      %v5679 = vld [vmem:[%s5671 + $0x38] sm:$0xf]
      %v5680 = vld [vmem:[%s5671 + $0x40] sm:$0xff]
      %v5681 = vld [vmem:[%s5671 + $0x48] sm:$0xff]
      %v5682 = vld [vmem:[%s5671 + $0x50] sm:$0xff]
      %v5683 = vld [vmem:[%s5671 + $0x58] sm:$0xf]
      %v5684 = vld [vmem:[%s5671 + $0x60] sm:$0xff]
      %v5685 = vld [vmem:[%s5671 + $0x68] sm:$0xff]
      %v5686 = vld [vmem:[%s5671 + $0x70] sm:$0xff]
      %v5687 = vld [vmem:[%s5671 + $0x78] sm:$0xf]
      %v5688 = vld [vmem:[%s5671 + $0x80] sm:$0xff]
      %v5689 = vld [vmem:[%s5671 + $0x88] sm:$0xff]
      %v5690 = vld [vmem:[%s5671 + $0x90] sm:$0xff]
      %v5691 = vld [vmem:[%s5671 + $0x98] sm:$0xf]
      %v5692 = vld [vmem:[%s5671 + $0xa0] sm:$0xff]
      %v5693 = vld [vmem:[%s5671 + $0xa8] sm:$0xff]
      %v5694 = vld [vmem:[%s5671 + $0xb0] sm:$0xff]
      %v5695 = vld [vmem:[%s5671 + $0xb8] sm:$0xf]
      %v5696 = vld [vmem:[%s5671 + $0xc0] sm:$0xff]
      %v5697 = vld [vmem:[%s5671 + $0xc8] sm:$0xff]
      %v5698 = vld [vmem:[%s5671 + $0xd0] sm:$0xff]
      %v5699 = vld [vmem:[%s5671 + $0xd8] sm:$0xf]
      %v5700 = vld [vmem:[%s5671 + $0xe0] sm:$0xff]
      %v5701 = vld [vmem:[%s5671 + $0xe8] sm:$0xff]
      %v5702 = vld [vmem:[%s5671 + $0xf0] sm:$0xff]
      %v5703 = vld [vmem:[%s5671 + $0xf8] sm:$0xf]
      %v5704 = vld [vmem:[%s5671 + $0x100] sm:$0xff]
      %v5705 = vld [vmem:[%s5671 + $0x108] sm:$0xff]
      %v5706 = vld [vmem:[%s5671 + $0x110] sm:$0xff]
      %v5707 = vld [vmem:[%s5671 + $0x118] sm:$0xf]
      %v5708 = vld [vmem:[%s5671 + $0x120] sm:$0xff]
      %v5709 = vld [vmem:[%s5671 + $0x128] sm:$0xff]
      %v5710 = vld [vmem:[%s5671 + $0x130] sm:$0xff]
      %v5711 = vld [vmem:[%s5671 + $0x138] sm:$0xf]
      %v5712 = vld [vmem:[%s5671 + $0x140] sm:$0xff]
      %v5713 = vld [vmem:[%s5671 + $0x148] sm:$0xff]
      %v5714 = vld [vmem:[%s5671 + $0x150] sm:$0xff]
      %v5715 = vld [vmem:[%s5671 + $0x158] sm:$0xf]
      %v5716 = vld [vmem:[%s5671 + $0x160] sm:$0xff]
      %v5717 = vld [vmem:[%s5671 + $0x168] sm:$0xff]
      %v5718 = vld [vmem:[%s5671 + $0x170] sm:$0xff]
      %v5719 = vld [vmem:[%s5671 + $0x178] sm:$0xf]
      %v5720 = vld [vmem:[%s5671 + $0x180] sm:$0xff]
      %v5721 = vld [vmem:[%s5671 + $0x188] sm:$0xff]
      %v5722 = vld [vmem:[%s5671 + $0x190] sm:$0xff]
      %v5723 = vld [vmem:[%s5671 + $0x198] sm:$0xf]
      %v5724 = vld [vmem:[%s5671 + $0x1a0] sm:$0xff]
      %v5725 = vld [vmem:[%s5671 + $0x1a8] sm:$0xff]
      %v5726 = vld [vmem:[%s5671 + $0x1b0] sm:$0xff]
      %v5727 = vld [vmem:[%s5671 + $0x1b8] sm:$0xf]
      %v5728 = vld [vmem:[%s5671 + $0x1c0] sm:$0xff]
      %v5729 = vld [vmem:[%s5671 + $0x1c8] sm:$0xff]
      %v5730 = vld [vmem:[%s5671 + $0x1d0] sm:$0xff]
      %v5731 = vld [vmem:[%s5671 + $0x1d8] sm:$0xf]
      %v5732 = vld [vmem:[%s5671 + $0x1e0] sm:$0xff]
      %v5733 = vld [vmem:[%s5671 + $0x1e8] sm:$0xff]
      %v5734 = vld [vmem:[%s5671 + $0x1f0] sm:$0xff]
      %v5735 = vld [vmem:[%s5671 + $0x1f8] sm:$0xf]
      %v5736 = vmax.f32 %v5607, %v5672
      %v5737 = vmax.f32 %v5608, %v5673
      %v5738 = vmax.f32 %v5609, %v5674
      %v5739 = vmax.f32 %v5610, %v5675
      %v5740 = vmax.f32 %v5611, %v5676
      %v5741 = vmax.f32 %v5612, %v5677
      %v5742 = vmax.f32 %v5613, %v5678
      %v5743 = vmax.f32 %v5614, %v5679
      %v5744 = vmax.f32 %v5615, %v5680
      %v5745 = vmax.f32 %v5616, %v5681
      %v5746 = vmax.f32 %v5617, %v5682
      %v5747 = vmax.f32 %v5618, %v5683
      %v5748 = vmax.f32 %v5619, %v5684
      %v5749 = vmax.f32 %v5620, %v5685
      %v5750 = vmax.f32 %v5621, %v5686
      %v5751 = vmax.f32 %v5622, %v5687
      %v5752 = vmax.f32 %v5623, %v5688
      %v5753 = vmax.f32 %v5624, %v5689
      %v5754 = vmax.f32 %v5625, %v5690
      %v5755 = vmax.f32 %v5626, %v5691
      %v5756 = vmax.f32 %v5627, %v5692
      %v5757 = vmax.f32 %v5628, %v5693
      %v5758 = vmax.f32 %v5629, %v5694
      %v5759 = vmax.f32 %v5630, %v5695
      %v5760 = vmax.f32 %v5631, %v5696
      %v5761 = vmax.f32 %v5632, %v5697
      %v5762 = vmax.f32 %v5633, %v5698
      %v5763 = vmax.f32 %v5634, %v5699
      %v5764 = vmax.f32 %v5635, %v5700
      %v5765 = vmax.f32 %v5636, %v5701
      %v5766 = vmax.f32 %v5637, %v5702
      %v5767 = vmax.f32 %v5638, %v5703
      %v5768 = vmax.f32 %v5639, %v5704
      %v5769 = vmax.f32 %v5640, %v5705
      %v5770 = vmax.f32 %v5641, %v5706
      %v5771 = vmax.f32 %v5642, %v5707
      %v5772 = vmax.f32 %v5643, %v5708
      %v5773 = vmax.f32 %v5644, %v5709
      %v5774 = vmax.f32 %v5645, %v5710
      %v5775 = vmax.f32 %v5646, %v5711
      %v5776 = vmax.f32 %v5647, %v5712
      %v5777 = vmax.f32 %v5648, %v5713
      %v5778 = vmax.f32 %v5649, %v5714
      %v5779 = vmax.f32 %v5650, %v5715
      %v5780 = vmax.f32 %v5651, %v5716
      %v5781 = vmax.f32 %v5652, %v5717
      %v5782 = vmax.f32 %v5653, %v5718
      %v5783 = vmax.f32 %v5654, %v5719
      %v5784 = vmax.f32 %v5655, %v5720
      %v5785 = vmax.f32 %v5656, %v5721
      %v5786 = vmax.f32 %v5657, %v5722
      %v5787 = vmax.f32 %v5658, %v5723
      %v5788 = vmax.f32 %v5659, %v5724
      %v5789 = vmax.f32 %v5660, %v5725
      %v5790 = vmax.f32 %v5661, %v5726
      %v5791 = vmax.f32 %v5662, %v5727
      %v5792 = vmax.f32 %v5663, %v5728
      %v5793 = vmax.f32 %v5664, %v5729
      %v5794 = vmax.f32 %v5665, %v5730
      %v5795 = vmax.f32 %v5666, %v5731
      %v5796 = vmax.f32 %v5667, %v5732
      %v5797 = vmax.f32 %v5668, %v5733
      %v5798 = vmax.f32 %v5669, %v5734
      %v5799 = vmax.f32 %v5670, %v5735
      %v5800 = vmax.f32 %v5736, %v3069
      %v5801 = vmax.f32 %v5737, %v3070
      %v5802 = vmax.f32 %v5738, %v3071
      %v5803 = vmax.f32 %v5739, %v3072
      %v5804 = vmax.f32 %v5740, %v3073
      %v5805 = vmax.f32 %v5741, %v3074
      %v5806 = vmax.f32 %v5742, %v3075
      %v5807 = vmax.f32 %v5743, %v3076
      %v5808 = vmax.f32 %v5744, %v3077
      %v5809 = vmax.f32 %v5745, %v3078
      %v5810 = vmax.f32 %v5746, %v3079
      %v5811 = vmax.f32 %v5747, %v3080
      %v5812 = vmax.f32 %v5748, %v3081
      %v5813 = vmax.f32 %v5749, %v3082
      %v5814 = vmax.f32 %v5750, %v3083
      %v5815 = vmax.f32 %v5751, %v3084
      %v5816 = vmax.f32 %v5752, %v3085
      %v5817 = vmax.f32 %v5753, %v3086
      %v5818 = vmax.f32 %v5754, %v3087
      %v5819 = vmax.f32 %v5755, %v3088
      %v5820 = vmax.f32 %v5756, %v3089
      %v5821 = vmax.f32 %v5757, %v3090
      %v5822 = vmax.f32 %v5758, %v3091
      %v5823 = vmax.f32 %v5759, %v3092
      %v5824 = vmax.f32 %v5760, %v3093
      %v5825 = vmax.f32 %v5761, %v3094
      %v5826 = vmax.f32 %v5762, %v3095
      %v5827 = vmax.f32 %v5763, %v3096
      %v5828 = vmax.f32 %v5764, %v3097
      %v5829 = vmax.f32 %v5765, %v3098
      %v5830 = vmax.f32 %v5766, %v3099
      %v5831 = vmax.f32 %v5767, %v3100
      %v5832 = vmax.f32 %v5768, %v3101
      %v5833 = vmax.f32 %v5769, %v3102
      %v5834 = vmax.f32 %v5770, %v3103
      %v5835 = vmax.f32 %v5771, %v3104
      %v5836 = vmax.f32 %v5772, %v3105
      %v5837 = vmax.f32 %v5773, %v3106
      %v5838 = vmax.f32 %v5774, %v3107
      %v5839 = vmax.f32 %v5775, %v3108
      %v5840 = vmax.f32 %v5776, %v3109
      %v5841 = vmax.f32 %v5777, %v3110
      %v5842 = vmax.f32 %v5778, %v3111
      %v5843 = vmax.f32 %v5779, %v3112
      %v5844 = vmax.f32 %v5780, %v3113
      %v5845 = vmax.f32 %v5781, %v3114
      %v5846 = vmax.f32 %v5782, %v3115
      %v5847 = vmax.f32 %v5783, %v3116
      %v5848 = vmax.f32 %v5784, %v3117
      %v5849 = vmax.f32 %v5785, %v3118
      %v5850 = vmax.f32 %v5786, %v3119
      %v5851 = vmax.f32 %v5787, %v3120
      %v5852 = vmax.f32 %v5788, %v3121
      %v5853 = vmax.f32 %v5789, %v3122
      %v5854 = vmax.f32 %v5790, %v3123
      %v5855 = vmax.f32 %v5791, %v3124
      %v5856 = vmax.f32 %v5792, %v3125
      %v5857 = vmax.f32 %v5793, %v3126
      %v5858 = vmax.f32 %v5794, %v3127
      %v5859 = vmax.f32 %v5795, %v3128
      %v5860 = vmax.f32 %v5796, %v3129
      %v5861 = vmax.f32 %v5797, %v3130
      %v5862 = vmax.f32 %v5798, %v3131
      %v5863 = vmax.f32 %v5799, %v3132
      %v5864 = vmax.f32 %v5800, %v3134
      %v5865 = vmax.f32 %v5801, %v3135
      %v5866 = vmax.f32 %v5802, %v3136
      %v5867 = vmax.f32 %v5803, %v3137
      %v5868 = vmax.f32 %v5804, %v3138
      %v5869 = vmax.f32 %v5805, %v3139
      %v5870 = vmax.f32 %v5806, %v3140
      %v5871 = vmax.f32 %v5807, %v3141
      %v5872 = vmax.f32 %v5808, %v3142
      %v5873 = vmax.f32 %v5809, %v3143
      %v5874 = vmax.f32 %v5810, %v3144
      %v5875 = vmax.f32 %v5811, %v3145
      %v5876 = vmax.f32 %v5812, %v3146
      %v5877 = vmax.f32 %v5813, %v3147
      %v5878 = vmax.f32 %v5814, %v3148
      %v5879 = vmax.f32 %v5815, %v3149
      %v5880 = vmax.f32 %v5816, %v3150
      %v5881 = vmax.f32 %v5817, %v3151
      %v5882 = vmax.f32 %v5818, %v3152
      %v5883 = vmax.f32 %v5819, %v3153
      %v5884 = vmax.f32 %v5820, %v3154
      %v5885 = vmax.f32 %v5821, %v3155
      %v5886 = vmax.f32 %v5822, %v3156
      %v5887 = vmax.f32 %v5823, %v3157
      %v5888 = vmax.f32 %v5824, %v3158
      %v5889 = vmax.f32 %v5825, %v3159
      %v5890 = vmax.f32 %v5826, %v3160
      %v5891 = vmax.f32 %v5827, %v3161
      %v5892 = vmax.f32 %v5828, %v3162
      %v5893 = vmax.f32 %v5829, %v3163
      %v5894 = vmax.f32 %v5830, %v3164
      %v5895 = vmax.f32 %v5831, %v3165
      %v5896 = vmax.f32 %v5832, %v3166
      %v5897 = vmax.f32 %v5833, %v3167
      %v5898 = vmax.f32 %v5834, %v3168
      %v5899 = vmax.f32 %v5835, %v3169
      %v5900 = vmax.f32 %v5836, %v3170
      %v5901 = vmax.f32 %v5837, %v3171
      %v5902 = vmax.f32 %v5838, %v3172
      %v5903 = vmax.f32 %v5839, %v3173
      %v5904 = vmax.f32 %v5840, %v3174
      %v5905 = vmax.f32 %v5841, %v3175
      %v5906 = vmax.f32 %v5842, %v3176
      %v5907 = vmax.f32 %v5843, %v3177
      %v5908 = vmax.f32 %v5844, %v3178
      %v5909 = vmax.f32 %v5845, %v3179
      %v5910 = vmax.f32 %v5846, %v3180
      %v5911 = vmax.f32 %v5847, %v3181
      %v5912 = vmax.f32 %v5848, %v3182
      %v5913 = vmax.f32 %v5849, %v3183
      %v5914 = vmax.f32 %v5850, %v3184
      %v5915 = vmax.f32 %v5851, %v3185
      %v5916 = vmax.f32 %v5852, %v3186
      %v5917 = vmax.f32 %v5853, %v3187
      %v5918 = vmax.f32 %v5854, %v3188
      %v5919 = vmax.f32 %v5855, %v3189
      %v5920 = vmax.f32 %v5856, %v3190
      %v5921 = vmax.f32 %v5857, %v3191
      %v5922 = vmax.f32 %v5858, %v3192
      %v5923 = vmax.f32 %v5859, %v3193
      %v5924 = vmax.f32 %v5860, %v3194
      %v5925 = vmax.f32 %v5861, %v3195
      %v5926 = vmax.f32 %v5862, %v3196
      %v5927 = vmax.f32 %v5863, %v3197
      %v5928 = vmax.f32 %v5864, %v1377
      %v5929 = vmax.f32 %v5865, %v1378
      %v5930 = vmax.f32 %v5866, %v1379
      %v5931 = vmax.f32 %v5867, %v1380
      %v5932 = vmax.f32 %v5868, %v1381
      %v5933 = vmax.f32 %v5869, %v1382
      %v5934 = vmax.f32 %v5870, %v1383
      %v5935 = vmax.f32 %v5871, %v1384
      %v5936 = vmax.f32 %v5872, %v1385
      %v5937 = vmax.f32 %v5873, %v1386
      %v5938 = vmax.f32 %v5874, %v1387
      %v5939 = vmax.f32 %v5875, %v1388
      %v5940 = vmax.f32 %v5876, %v1389
      %v5941 = vmax.f32 %v5877, %v1390
      %v5942 = vmax.f32 %v5878, %v1391
      %v5943 = vmax.f32 %v5879, %v1392
      %v5944 = vmax.f32 %v5880, %v1393
      %v5945 = vmax.f32 %v5881, %v1394
      %v5946 = vmax.f32 %v5882, %v1395
      %v5947 = vmax.f32 %v5883, %v1396
      %v5948 = vmax.f32 %v5884, %v1397
      %v5949 = vmax.f32 %v5885, %v1398
      %v5950 = vmax.f32 %v5886, %v1399
      %v5951 = vmax.f32 %v5887, %v1400
      %v5952 = vmax.f32 %v5888, %v1401
      %v5953 = vmax.f32 %v5889, %v1402
      %v5954 = vmax.f32 %v5890, %v1403
      %v5955 = vmax.f32 %v5891, %v1404
      %v5956 = vmax.f32 %v5892, %v1405
      %v5957 = vmax.f32 %v5893, %v1406
      %v5958 = vmax.f32 %v5894, %v1407
      %v5959 = vmax.f32 %v5895, %v1408
      %v5960 = vmax.f32 %v5896, %v1409
      %v5961 = vmax.f32 %v5897, %v1410
      %v5962 = vmax.f32 %v5898, %v1411
      %v5963 = vmax.f32 %v5899, %v1412
      %v5964 = vmax.f32 %v5900, %v1413
      %v5965 = vmax.f32 %v5901, %v1414
      %v5966 = vmax.f32 %v5902, %v1415
      %v5967 = vmax.f32 %v5903, %v1416
      %v5968 = vmax.f32 %v5904, %v1417
      %v5969 = vmax.f32 %v5905, %v1418
      %v5970 = vmax.f32 %v5906, %v1419
      %v5971 = vmax.f32 %v5907, %v1420
      %v5972 = vmax.f32 %v5908, %v1421
      %v5973 = vmax.f32 %v5909, %v1422
      %v5974 = vmax.f32 %v5910, %v1423
      %v5975 = vmax.f32 %v5911, %v1424
      %v5976 = vmax.f32 %v5912, %v1425
      %v5977 = vmax.f32 %v5913, %v1426
      %v5978 = vmax.f32 %v5914, %v1427
      %v5979 = vmax.f32 %v5915, %v1428
      %v5980 = vmax.f32 %v5916, %v1429
      %v5981 = vmax.f32 %v5917, %v1430
      %v5982 = vmax.f32 %v5918, %v1431
      %v5983 = vmax.f32 %v5919, %v1432
      %v5984 = vmax.f32 %v5920, %v1433
      %v5985 = vmax.f32 %v5921, %v1434
      %v5986 = vmax.f32 %v5922, %v1435
      %v5987 = vmax.f32 %v5923, %v1436
      %v5988 = vmax.f32 %v5924, %v1437
      %v5989 = vmax.f32 %v5925, %v1438
      %v5990 = vmax.f32 %v5926, %v1439
      %v5991 = vmax.f32 %v5927, %v1440
      %v5992 = vmax.f32 %v5928, %v1442
      %v5993 = vmax.f32 %v5929, %v1443
      %v5994 = vmax.f32 %v5930, %v1444
      %v5995 = vmax.f32 %v5931, %v1445
      %v5996 = vmax.f32 %v5932, %v1446
      %v5997 = vmax.f32 %v5933, %v1447
      %v5998 = vmax.f32 %v5934, %v1448
      %v5999 = vmax.f32 %v5935, %v1449
      %v6000 = vmax.f32 %v5936, %v1450
      %v6001 = vmax.f32 %v5937, %v1451
      %v6002 = vmax.f32 %v5938, %v1452
      %v6003 = vmax.f32 %v5939, %v1453
      %v6004 = vmax.f32 %v5940, %v1454
      %v6005 = vmax.f32 %v5941, %v1455
      %v6006 = vmax.f32 %v5942, %v1456
      %v6007 = vmax.f32 %v5943, %v1457
      %v6008 = vmax.f32 %v5944, %v1458
      %v6009 = vmax.f32 %v5945, %v1459
      %v6010 = vmax.f32 %v5946, %v1460
      %v6011 = vmax.f32 %v5947, %v1461
      %v6012 = vmax.f32 %v5948, %v1462
      %v6013 = vmax.f32 %v5949, %v1463
      %v6014 = vmax.f32 %v5950, %v1464
      %v6015 = vmax.f32 %v5951, %v1465
      %v6016 = vmax.f32 %v5952, %v1466
      %v6017 = vmax.f32 %v5953, %v1467
      %v6018 = vmax.f32 %v5954, %v1468
      %v6019 = vmax.f32 %v5955, %v1469
      %v6020 = vmax.f32 %v5956, %v1470
      %v6021 = vmax.f32 %v5957, %v1471
      %v6022 = vmax.f32 %v5958, %v1472
      %v6023 = vmax.f32 %v5959, %v1473
      %v6024 = vmax.f32 %v5960, %v1474
      %v6025 = vmax.f32 %v5961, %v1475
      %v6026 = vmax.f32 %v5962, %v1476
      %v6027 = vmax.f32 %v5963, %v1477
      %v6028 = vmax.f32 %v5964, %v1478
      %v6029 = vmax.f32 %v5965, %v1479
      %v6030 = vmax.f32 %v5966, %v1480
      %v6031 = vmax.f32 %v5967, %v1481
      %v6032 = vmax.f32 %v5968, %v1482
      %v6033 = vmax.f32 %v5969, %v1483
      %v6034 = vmax.f32 %v5970, %v1484
      %v6035 = vmax.f32 %v5971, %v1485
      %v6036 = vmax.f32 %v5972, %v1486
      %v6037 = vmax.f32 %v5973, %v1487
      %v6038 = vmax.f32 %v5974, %v1488
      %v6039 = vmax.f32 %v5975, %v1489
      %v6040 = vmax.f32 %v5976, %v1490
      %v6041 = vmax.f32 %v5977, %v1491
      %v6042 = vmax.f32 %v5978, %v1492
      %v6043 = vmax.f32 %v5979, %v1493
      %v6044 = vmax.f32 %v5980, %v1494
      %v6045 = vmax.f32 %v5981, %v1495
      %v6046 = vmax.f32 %v5982, %v1496
      %v6047 = vmax.f32 %v5983, %v1497
      %v6048 = vmax.f32 %v5984, %v1498
      %v6049 = vmax.f32 %v5985, %v1499
      %v6050 = vmax.f32 %v5986, %v1500
      %v6051 = vmax.f32 %v5987, %v1501
      %v6052 = vmax.f32 %v5988, %v1502
      %v6053 = vmax.f32 %v5989, %v1503
      %v6054 = vmax.f32 %v5990, %v1504
      %v6055 = vmax.f32 %v5991, %v1505
      %v6056 = vmax.f32 %v5992, %v1554
      %v6057 = vmax.f32 %v5993, %v1555
      %v6058 = vmax.f32 %v5994, %v1556
      %v6059 = vmax.f32 %v5995, %v1557
      %v6060 = vmax.f32 %v5996, %v1558
      %v6061 = vmax.f32 %v5997, %v1559
      %v6062 = vmax.f32 %v5998, %v1560
      %v6063 = vmax.f32 %v5999, %v1561
      %v6064 = vmax.f32 %v6000, %v1562
      %v6065 = vmax.f32 %v6001, %v1563
      %v6066 = vmax.f32 %v6002, %v1564
      %v6067 = vmax.f32 %v6003, %v1565
      %v6068 = vmax.f32 %v6004, %v1566
      %v6069 = vmax.f32 %v6005, %v1567
      %v6070 = vmax.f32 %v6006, %v1568
      %v6071 = vmax.f32 %v6007, %v1569
      %v6072 = vmax.f32 %v6008, %v1570
      %v6073 = vmax.f32 %v6009, %v1571
      %v6074 = vmax.f32 %v6010, %v1572
      %v6075 = vmax.f32 %v6011, %v1573
      %v6076 = vmax.f32 %v6012, %v1574
      %v6077 = vmax.f32 %v6013, %v1575
      %v6078 = vmax.f32 %v6014, %v1576
      %v6079 = vmax.f32 %v6015, %v1577
      %v6080 = vmax.f32 %v6016, %v1578
      %v6081 = vmax.f32 %v6017, %v1579
      %v6082 = vmax.f32 %v6018, %v1580
      %v6083 = vmax.f32 %v6019, %v1581
      %v6084 = vmax.f32 %v6020, %v1582
      %v6085 = vmax.f32 %v6021, %v1583
      %v6086 = vmax.f32 %v6022, %v1584
      %v6087 = vmax.f32 %v6023, %v1585
      %v6088 = vmax.f32 %v6024, %v1586
      %v6089 = vmax.f32 %v6025, %v1587
      %v6090 = vmax.f32 %v6026, %v1588
      %v6091 = vmax.f32 %v6027, %v1589
      %v6092 = vmax.f32 %v6028, %v1590
      %v6093 = vmax.f32 %v6029, %v1591
      %v6094 = vmax.f32 %v6030, %v1592
      %v6095 = vmax.f32 %v6031, %v1593
      %v6096 = vmax.f32 %v6032, %v1594
      %v6097 = vmax.f32 %v6033, %v1595
      %v6098 = vmax.f32 %v6034, %v1596
      %v6099 = vmax.f32 %v6035, %v1597
      %v6100 = vmax.f32 %v6036, %v1598
      %v6101 = vmax.f32 %v6037, %v1599
      %v6102 = vmax.f32 %v6038, %v1600
      %v6103 = vmax.f32 %v6039, %v1601
      %v6104 = vmax.f32 %v6040, %v1602
      %v6105 = vmax.f32 %v6041, %v1603
      %v6106 = vmax.f32 %v6042, %v1604
      %v6107 = vmax.f32 %v6043, %v1605
      %v6108 = vmax.f32 %v6044, %v1606
      %v6109 = vmax.f32 %v6045, %v1607
      %v6110 = vmax.f32 %v6046, %v1608
      %v6111 = vmax.f32 %v6047, %v1609
      %v6112 = vmax.f32 %v6048, %v1610
      %v6113 = vmax.f32 %v6049, %v1611
      %v6114 = vmax.f32 %v6050, %v1612
      %v6115 = vmax.f32 %v6051, %v1613
      %v6116 = vmax.f32 %v6052, %v1614
      %v6117 = vmax.f32 %v6053, %v1615
      %v6118 = vmax.f32 %v6054, %v1616
      %v6119 = vmax.f32 %v6055, %v1617
      %v6120 = vmax.f32 %v6056, %v1667
      %v6121 = vmax.f32 %v6057, %v1668
      %v6122 = vmax.f32 %v6058, %v1669
      %v6123 = vmax.f32 %v6059, %v1670
      %v6124 = vmax.f32 %v6060, %v1671
      %v6125 = vmax.f32 %v6061, %v1672
      %v6126 = vmax.f32 %v6062, %v1673
      %v6127 = vmax.f32 %v6063, %v1674
      %v6128 = vmax.f32 %v6064, %v1675
      %v6129 = vmax.f32 %v6065, %v1676
      %v6130 = vmax.f32 %v6066, %v1677
      %v6131 = vmax.f32 %v6067, %v1678
      %v6132 = vmax.f32 %v6068, %v1679
      %v6133 = vmax.f32 %v6069, %v1680
      %v6134 = vmax.f32 %v6070, %v1681
      %v6135 = vmax.f32 %v6071, %v1682
      %v6136 = vmax.f32 %v6072, %v1683
      %v6137 = vmax.f32 %v6073, %v1684
      %v6138 = vmax.f32 %v6074, %v1685
      %v6139 = vmax.f32 %v6075, %v1686
      %v6140 = vmax.f32 %v6076, %v1687
      %v6141 = vmax.f32 %v6077, %v1688
      %v6142 = vmax.f32 %v6078, %v1689
      %v6143 = vmax.f32 %v6079, %v1690
      %v6144 = vmax.f32 %v6080, %v1691
      %v6145 = vmax.f32 %v6081, %v1692
      %v6146 = vmax.f32 %v6082, %v1693
      %v6147 = vmax.f32 %v6083, %v1694
      %v6148 = vmax.f32 %v6084, %v1695
      %v6149 = vmax.f32 %v6085, %v1696
      %v6150 = vmax.f32 %v6086, %v1697
      %v6151 = vmax.f32 %v6087, %v1698
      %v6152 = vmax.f32 %v6088, %v1699
      %v6153 = vmax.f32 %v6089, %v1700
      %v6154 = vmax.f32 %v6090, %v1701
      %v6155 = vmax.f32 %v6091, %v1702
      %v6156 = vmax.f32 %v6092, %v1703
      %v6157 = vmax.f32 %v6093, %v1704
      %v6158 = vmax.f32 %v6094, %v1705
      %v6159 = vmax.f32 %v6095, %v1706
      %v6160 = vmax.f32 %v6096, %v1707
      %v6161 = vmax.f32 %v6097, %v1708
      %v6162 = vmax.f32 %v6098, %v1709
      %v6163 = vmax.f32 %v6099, %v1710
      %v6164 = vmax.f32 %v6100, %v1711
      %v6165 = vmax.f32 %v6101, %v1712
      %v6166 = vmax.f32 %v6102, %v1713
      %v6167 = vmax.f32 %v6103, %v1714
      %v6168 = vmax.f32 %v6104, %v1715
      %v6169 = vmax.f32 %v6105, %v1716
      %v6170 = vmax.f32 %v6106, %v1717
      %v6171 = vmax.f32 %v6107, %v1718
      %v6172 = vmax.f32 %v6108, %v1719
      %v6173 = vmax.f32 %v6109, %v1720
      %v6174 = vmax.f32 %v6110, %v1721
      %v6175 = vmax.f32 %v6111, %v1722
      %v6176 = vmax.f32 %v6112, %v1723
      %v6177 = vmax.f32 %v6113, %v1724
      %v6178 = vmax.f32 %v6114, %v1725
      %v6179 = vmax.f32 %v6115, %v1726
      %v6180 = vmax.f32 %v6116, %v1727
      %v6181 = vmax.f32 %v6117, %v1728
      %v6182 = vmax.f32 %v6118, %v1729
      %v6183 = vmax.f32 %v6119, %v1730
      %v6184 = vmax.f32 %v6120, %v1780
      %v6185 = vmax.f32 %v6121, %v1781
      %v6186 = vmax.f32 %v6122, %v1782
      %v6187 = vmax.f32 %v6123, %v1783
      %v6188 = vmax.f32 %v6124, %v1784
      %v6189 = vmax.f32 %v6125, %v1785
      %v6190 = vmax.f32 %v6126, %v1786
      %v6191 = vmax.f32 %v6127, %v1787
      %v6192 = vmax.f32 %v6128, %v1788
      %v6193 = vmax.f32 %v6129, %v1789
      %v6194 = vmax.f32 %v6130, %v1790
      %v6195 = vmax.f32 %v6131, %v1791
      %v6196 = vmax.f32 %v6132, %v1792
      %v6197 = vmax.f32 %v6133, %v1793
      %v6198 = vmax.f32 %v6134, %v1794
      %v6199 = vmax.f32 %v6135, %v1795
      %v6200 = vmax.f32 %v6136, %v1796
      %v6201 = vmax.f32 %v6137, %v1797
      %v6202 = vmax.f32 %v6138, %v1798
      %v6203 = vmax.f32 %v6139, %v1799
      %v6204 = vmax.f32 %v6140, %v1800
      %v6205 = vmax.f32 %v6141, %v1801
      %v6206 = vmax.f32 %v6142, %v1802
      %v6207 = vmax.f32 %v6143, %v1803
      %v6208 = vmax.f32 %v6144, %v1804
      %v6209 = vmax.f32 %v6145, %v1805
      %v6210 = vmax.f32 %v6146, %v1806
      %v6211 = vmax.f32 %v6147, %v1807
      %v6212 = vmax.f32 %v6148, %v1808
      %v6213 = vmax.f32 %v6149, %v1809
      %v6214 = vmax.f32 %v6150, %v1810
      %v6215 = vmax.f32 %v6151, %v1811
      %v6216 = vmax.f32 %v6152, %v1812
      %v6217 = vmax.f32 %v6153, %v1813
      %v6218 = vmax.f32 %v6154, %v1814
      %v6219 = vmax.f32 %v6155, %v1815
      %v6220 = vmax.f32 %v6156, %v1816
      %v6221 = vmax.f32 %v6157, %v1817
      %v6222 = vmax.f32 %v6158, %v1818
      %v6223 = vmax.f32 %v6159, %v1819
      %v6224 = vmax.f32 %v6160, %v1820
      %v6225 = vmax.f32 %v6161, %v1821
      %v6226 = vmax.f32 %v6162, %v1822
      %v6227 = vmax.f32 %v6163, %v1823
      %v6228 = vmax.f32 %v6164, %v1824
      %v6229 = vmax.f32 %v6165, %v1825
      %v6230 = vmax.f32 %v6166, %v1826
      %v6231 = vmax.f32 %v6167, %v1827
      %v6232 = vmax.f32 %v6168, %v1828
      %v6233 = vmax.f32 %v6169, %v1829
      %v6234 = vmax.f32 %v6170, %v1830
      %v6235 = vmax.f32 %v6171, %v1831
      %v6236 = vmax.f32 %v6172, %v1832
      %v6237 = vmax.f32 %v6173, %v1833
      %v6238 = vmax.f32 %v6174, %v1834
      %v6239 = vmax.f32 %v6175, %v1835
      %v6240 = vmax.f32 %v6176, %v1836
      %v6241 = vmax.f32 %v6177, %v1837
      %v6242 = vmax.f32 %v6178, %v1838
      %v6243 = vmax.f32 %v6179, %v1839
      %v6244 = vmax.f32 %v6180, %v1840
      %v6245 = vmax.f32 %v6181, %v1841
      %v6246 = vmax.f32 %v6182, %v1842
      %v6247 = vmax.f32 %v6183, %v1843
      %v6248 = vmax.f32 %v6184, %v3583
      %v6249 = vmax.f32 %v6185, %v3584
      %v6250 = vmax.f32 %v6186, %v3585
      %v6251 = vmax.f32 %v6187, %v3586
      %v6252 = vmax.f32 %v6188, %v3587
      %v6253 = vmax.f32 %v6189, %v3588
      %v6254 = vmax.f32 %v6190, %v3589
      %v6255 = vmax.f32 %v6191, %v3590
      %v6256 = vmax.f32 %v6192, %v3591
      %v6257 = vmax.f32 %v6193, %v3592
      %v6258 = vmax.f32 %v6194, %v3593
      %v6259 = vmax.f32 %v6195, %v3594
      %v6260 = vmax.f32 %v6196, %v3595
      %v6261 = vmax.f32 %v6197, %v3596
      %v6262 = vmax.f32 %v6198, %v3597
      %v6263 = vmax.f32 %v6199, %v3598
      %v6264 = vmax.f32 %v6200, %v3599
      %v6265 = vmax.f32 %v6201, %v3600
      %v6266 = vmax.f32 %v6202, %v3601
      %v6267 = vmax.f32 %v6203, %v3602
      %v6268 = vmax.f32 %v6204, %v3603
      %v6269 = vmax.f32 %v6205, %v3604
      %v6270 = vmax.f32 %v6206, %v3605
      %v6271 = vmax.f32 %v6207, %v3606
      %v6272 = vmax.f32 %v6208, %v3607
      %v6273 = vmax.f32 %v6209, %v3608
      %v6274 = vmax.f32 %v6210, %v3609
      %v6275 = vmax.f32 %v6211, %v3610
      %v6276 = vmax.f32 %v6212, %v3611
      %v6277 = vmax.f32 %v6213, %v3612
      %v6278 = vmax.f32 %v6214, %v3613
      %v6279 = vmax.f32 %v6215, %v3614
      %v6280 = vmax.f32 %v6216, %v3615
      %v6281 = vmax.f32 %v6217, %v3616
      %v6282 = vmax.f32 %v6218, %v3617
      %v6283 = vmax.f32 %v6219, %v3618
      %v6284 = vmax.f32 %v6220, %v3619
      %v6285 = vmax.f32 %v6221, %v3620
      %v6286 = vmax.f32 %v6222, %v3621
      %v6287 = vmax.f32 %v6223, %v3622
      %v6288 = vmax.f32 %v6224, %v3623
      %v6289 = vmax.f32 %v6225, %v3624
      %v6290 = vmax.f32 %v6226, %v3625
      %v6291 = vmax.f32 %v6227, %v3626
      %v6292 = vmax.f32 %v6228, %v3627
      %v6293 = vmax.f32 %v6229, %v3628
      %v6294 = vmax.f32 %v6230, %v3629
      %v6295 = vmax.f32 %v6231, %v3630
      %v6296 = vmax.f32 %v6232, %v3631
      %v6297 = vmax.f32 %v6233, %v3632
      %v6298 = vmax.f32 %v6234, %v3633
      %v6299 = vmax.f32 %v6235, %v3634
      %v6300 = vmax.f32 %v6236, %v3635
      %v6301 = vmax.f32 %v6237, %v3636
      %v6302 = vmax.f32 %v6238, %v3637
      %v6303 = vmax.f32 %v6239, %v3638
      %v6304 = vmax.f32 %v6240, %v3639
      %v6305 = vmax.f32 %v6241, %v3640
      %v6306 = vmax.f32 %v6242, %v3641
      %v6307 = vmax.f32 %v6243, %v3642
      %v6308 = vmax.f32 %v6244, %v3643
      %v6309 = vmax.f32 %v6245, %v3644
      %v6310 = vmax.f32 %v6246, %v3645
      %v6311 = vmax.f32 %v6247, %v3646
      %v6312 = vmax.f32 %v6248, %v3712
      %v6313 = vmax.f32 %v6249, %v3713
      %v6314 = vmax.f32 %v6250, %v3714
      %v6315 = vmax.f32 %v6251, %v3715
      %v6316 = vmax.f32 %v6252, %v3716
      %v6317 = vmax.f32 %v6253, %v3717
      %v6318 = vmax.f32 %v6254, %v3718
      %v6319 = vmax.f32 %v6255, %v3719
      %v6320 = vmax.f32 %v6256, %v3720
      %v6321 = vmax.f32 %v6257, %v3721
      %v6322 = vmax.f32 %v6258, %v3722
      %v6323 = vmax.f32 %v6259, %v3723
      %v6324 = vmax.f32 %v6260, %v3724
      %v6325 = vmax.f32 %v6261, %v3725
      %v6326 = vmax.f32 %v6262, %v3726
      %v6327 = vmax.f32 %v6263, %v3727
      %v6328 = vmax.f32 %v6264, %v3728
      %v6329 = vmax.f32 %v6265, %v3729
      %v6330 = vmax.f32 %v6266, %v3730
      %v6331 = vmax.f32 %v6267, %v3731
      %v6332 = vmax.f32 %v6268, %v3732
      %v6333 = vmax.f32 %v6269, %v3733
      %v6334 = vmax.f32 %v6270, %v3734
      %v6335 = vmax.f32 %v6271, %v3735
      %v6336 = vmax.f32 %v6272, %v3736
      %v6337 = vmax.f32 %v6273, %v3737
      %v6338 = vmax.f32 %v6274, %v3738
      %v6339 = vmax.f32 %v6275, %v3739
      %v6340 = vmax.f32 %v6276, %v3740
      %v6341 = vmax.f32 %v6277, %v3741
      %v6342 = vmax.f32 %v6278, %v3742
      %v6343 = vmax.f32 %v6279, %v3743
      %v6344 = vmax.f32 %v6280, %v3744
      %v6345 = vmax.f32 %v6281, %v3745
      %v6346 = vmax.f32 %v6282, %v3746
      %v6347 = vmax.f32 %v6283, %v3747
      %v6348 = vmax.f32 %v6284, %v3748
      %v6349 = vmax.f32 %v6285, %v3749
      %v6350 = vmax.f32 %v6286, %v3750
      %v6351 = vmax.f32 %v6287, %v3751
      %v6352 = vmax.f32 %v6288, %v3752
      %v6353 = vmax.f32 %v6289, %v3753
      %v6354 = vmax.f32 %v6290, %v3754
      %v6355 = vmax.f32 %v6291, %v3755
      %v6356 = vmax.f32 %v6292, %v3756
      %v6357 = vmax.f32 %v6293, %v3757
      %v6358 = vmax.f32 %v6294, %v3758
      %v6359 = vmax.f32 %v6295, %v3759
      %v6360 = vmax.f32 %v6296, %v3760
      %v6361 = vmax.f32 %v6297, %v3761
      %v6362 = vmax.f32 %v6298, %v3762
      %v6363 = vmax.f32 %v6299, %v3763
      %v6364 = vmax.f32 %v6300, %v3764
      %v6365 = vmax.f32 %v6301, %v3765
      %v6366 = vmax.f32 %v6302, %v3766
      %v6367 = vmax.f32 %v6303, %v3767
      %v6368 = vmax.f32 %v6304, %v3768
      %v6369 = vmax.f32 %v6305, %v3769
      %v6370 = vmax.f32 %v6306, %v3770
      %v6371 = vmax.f32 %v6307, %v3771
      %v6372 = vmax.f32 %v6308, %v3772
      %v6373 = vmax.f32 %v6309, %v3773
      %v6374 = vmax.f32 %v6310, %v3774
      %v6375 = vmax.f32 %v6311, %v3775
      %s6376 = scalar_lea.vmem [#allocation2], 352
      %v6377 = vld [vmem:[%s6376] sm:$0xff]
      %v6378 = vld [vmem:[%s6376 + $0x8] sm:$0xff]
      %v6379 = vld [vmem:[%s6376 + $0x10] sm:$0xff]
      %v6380 = vld [vmem:[%s6376 + $0x18] sm:$0xf]
      %v6381 = vld [vmem:[%s6376 + $0x20] sm:$0xff]
      %v6382 = vld [vmem:[%s6376 + $0x28] sm:$0xff]
      %v6383 = vld [vmem:[%s6376 + $0x30] sm:$0xff]
      %v6384 = vld [vmem:[%s6376 + $0x38] sm:$0xf]
      %v6385 = vld [vmem:[%s6376 + $0x40] sm:$0xff]
      %v6386 = vld [vmem:[%s6376 + $0x48] sm:$0xff]
      %v6387 = vld [vmem:[%s6376 + $0x50] sm:$0xff]
      %v6388 = vld [vmem:[%s6376 + $0x58] sm:$0xf]
      %v6389 = vld [vmem:[%s6376 + $0x60] sm:$0xff]
      %v6390 = vld [vmem:[%s6376 + $0x68] sm:$0xff]
      %v6391 = vld [vmem:[%s6376 + $0x70] sm:$0xff]
      %v6392 = vld [vmem:[%s6376 + $0x78] sm:$0xf]
      %v6393 = vld [vmem:[%s6376 + $0x80] sm:$0xff]
      %v6394 = vld [vmem:[%s6376 + $0x88] sm:$0xff]
      %v6395 = vld [vmem:[%s6376 + $0x90] sm:$0xff]
      %v6396 = vld [vmem:[%s6376 + $0x98] sm:$0xf]
      %v6397 = vld [vmem:[%s6376 + $0xa0] sm:$0xff]
      %v6398 = vld [vmem:[%s6376 + $0xa8] sm:$0xff]
      %v6399 = vld [vmem:[%s6376 + $0xb0] sm:$0xff]
      %v6400 = vld [vmem:[%s6376 + $0xb8] sm:$0xf]
      %v6401 = vld [vmem:[%s6376 + $0xc0] sm:$0xff]
      %v6402 = vld [vmem:[%s6376 + $0xc8] sm:$0xff]
      %v6403 = vld [vmem:[%s6376 + $0xd0] sm:$0xff]
      %v6404 = vld [vmem:[%s6376 + $0xd8] sm:$0xf]
      %v6405 = vld [vmem:[%s6376 + $0xe0] sm:$0xff]
      %v6406 = vld [vmem:[%s6376 + $0xe8] sm:$0xff]
      %v6407 = vld [vmem:[%s6376 + $0xf0] sm:$0xff]
      %v6408 = vld [vmem:[%s6376 + $0xf8] sm:$0xf]
      %v6409 = vld [vmem:[%s6376 + $0x100] sm:$0xff]
      %v6410 = vld [vmem:[%s6376 + $0x108] sm:$0xff]
      %v6411 = vld [vmem:[%s6376 + $0x110] sm:$0xff]
      %v6412 = vld [vmem:[%s6376 + $0x118] sm:$0xf]
      %v6413 = vld [vmem:[%s6376 + $0x120] sm:$0xff]
      %v6414 = vld [vmem:[%s6376 + $0x128] sm:$0xff]
      %v6415 = vld [vmem:[%s6376 + $0x130] sm:$0xff]
      %v6416 = vld [vmem:[%s6376 + $0x138] sm:$0xf]
      %v6417 = vld [vmem:[%s6376 + $0x140] sm:$0xff]
      %v6418 = vld [vmem:[%s6376 + $0x148] sm:$0xff]
      %v6419 = vld [vmem:[%s6376 + $0x150] sm:$0xff]
      %v6420 = vld [vmem:[%s6376 + $0x158] sm:$0xf]
      %v6421 = vld [vmem:[%s6376 + $0x160] sm:$0xff]
      %v6422 = vld [vmem:[%s6376 + $0x168] sm:$0xff]
      %v6423 = vld [vmem:[%s6376 + $0x170] sm:$0xff]
      %v6424 = vld [vmem:[%s6376 + $0x178] sm:$0xf]
      %v6425 = vld [vmem:[%s6376 + $0x180] sm:$0xff]
      %v6426 = vld [vmem:[%s6376 + $0x188] sm:$0xff]
      %v6427 = vld [vmem:[%s6376 + $0x190] sm:$0xff]
      %v6428 = vld [vmem:[%s6376 + $0x198] sm:$0xf]
      %v6429 = vld [vmem:[%s6376 + $0x1a0] sm:$0xff]
      %v6430 = vld [vmem:[%s6376 + $0x1a8] sm:$0xff]
      %v6431 = vld [vmem:[%s6376 + $0x1b0] sm:$0xff]
      %v6432 = vld [vmem:[%s6376 + $0x1b8] sm:$0xf]
      %v6433 = vld [vmem:[%s6376 + $0x1c0] sm:$0xff]
      %v6434 = vld [vmem:[%s6376 + $0x1c8] sm:$0xff]
      %v6435 = vld [vmem:[%s6376 + $0x1d0] sm:$0xff]
      %v6436 = vld [vmem:[%s6376 + $0x1d8] sm:$0xf]
      %v6437 = vld [vmem:[%s6376 + $0x1e0] sm:$0xff]
      %v6438 = vld [vmem:[%s6376 + $0x1e8] sm:$0xff]
      %v6439 = vld [vmem:[%s6376 + $0x1f0] sm:$0xff]
      %v6440 = vld [vmem:[%s6376 + $0x1f8] sm:$0xf]
      %v6441 = vmax.f32 %v6312, %v6377
      %v6442 = vmax.f32 %v6313, %v6378
      %v6443 = vmax.f32 %v6314, %v6379
      %v6444 = vmax.f32 %v6315, %v6380
      %v6445 = vmax.f32 %v6316, %v6381
      %v6446 = vmax.f32 %v6317, %v6382
      %v6447 = vmax.f32 %v6318, %v6383
      %v6448 = vmax.f32 %v6319, %v6384
      %v6449 = vmax.f32 %v6320, %v6385
      %v6450 = vmax.f32 %v6321, %v6386
      %v6451 = vmax.f32 %v6322, %v6387
      %v6452 = vmax.f32 %v6323, %v6388
      %v6453 = vmax.f32 %v6324, %v6389
      %v6454 = vmax.f32 %v6325, %v6390
      %v6455 = vmax.f32 %v6326, %v6391
      %v6456 = vmax.f32 %v6327, %v6392
      %v6457 = vmax.f32 %v6328, %v6393
      %v6458 = vmax.f32 %v6329, %v6394
      %v6459 = vmax.f32 %v6330, %v6395
      %v6460 = vmax.f32 %v6331, %v6396
      %v6461 = vmax.f32 %v6332, %v6397
      %v6462 = vmax.f32 %v6333, %v6398
      %v6463 = vmax.f32 %v6334, %v6399
      %v6464 = vmax.f32 %v6335, %v6400
      %v6465 = vmax.f32 %v6336, %v6401
      %v6466 = vmax.f32 %v6337, %v6402
      %v6467 = vmax.f32 %v6338, %v6403
      %v6468 = vmax.f32 %v6339, %v6404
      %v6469 = vmax.f32 %v6340, %v6405
      %v6470 = vmax.f32 %v6341, %v6406
      %v6471 = vmax.f32 %v6342, %v6407
      %v6472 = vmax.f32 %v6343, %v6408
      %v6473 = vmax.f32 %v6344, %v6409
      %v6474 = vmax.f32 %v6345, %v6410
      %v6475 = vmax.f32 %v6346, %v6411
      %v6476 = vmax.f32 %v6347, %v6412
      %v6477 = vmax.f32 %v6348, %v6413
      %v6478 = vmax.f32 %v6349, %v6414
      %v6479 = vmax.f32 %v6350, %v6415
      %v6480 = vmax.f32 %v6351, %v6416
      %v6481 = vmax.f32 %v6352, %v6417
      %v6482 = vmax.f32 %v6353, %v6418
      %v6483 = vmax.f32 %v6354, %v6419
      %v6484 = vmax.f32 %v6355, %v6420
      %v6485 = vmax.f32 %v6356, %v6421
      %v6486 = vmax.f32 %v6357, %v6422
      %v6487 = vmax.f32 %v6358, %v6423
      %v6488 = vmax.f32 %v6359, %v6424
      %v6489 = vmax.f32 %v6360, %v6425
      %v6490 = vmax.f32 %v6361, %v6426
      %v6491 = vmax.f32 %v6362, %v6427
      %v6492 = vmax.f32 %v6363, %v6428
      %v6493 = vmax.f32 %v6364, %v6429
      %v6494 = vmax.f32 %v6365, %v6430
      %v6495 = vmax.f32 %v6366, %v6431
      %v6496 = vmax.f32 %v6367, %v6432
      %v6497 = vmax.f32 %v6368, %v6433
      %v6498 = vmax.f32 %v6369, %v6434
      %v6499 = vmax.f32 %v6370, %v6435
      %v6500 = vmax.f32 %v6371, %v6436
      %v6501 = vmax.f32 %v6372, %v6437
      %v6502 = vmax.f32 %v6373, %v6438
      %v6503 = vmax.f32 %v6374, %v6439
      %v6504 = vmax.f32 %v6375, %v6440
      %s6505 = scalar_lea.vmem [#allocation2], 384
      %v6506 = vld [vmem:[%s6505] sm:$0xff]
      %v6507 = vld [vmem:[%s6505 + $0x8] sm:$0xff]
      %v6508 = vld [vmem:[%s6505 + $0x10] sm:$0xff]
      %v6509 = vld [vmem:[%s6505 + $0x18] sm:$0xf]
      %v6510 = vld [vmem:[%s6505 + $0x20] sm:$0xff]
      %v6511 = vld [vmem:[%s6505 + $0x28] sm:$0xff]
      %v6512 = vld [vmem:[%s6505 + $0x30] sm:$0xff]
      %v6513 = vld [vmem:[%s6505 + $0x38] sm:$0xf]
      %v6514 = vld [vmem:[%s6505 + $0x40] sm:$0xff]
      %v6515 = vld [vmem:[%s6505 + $0x48] sm:$0xff]
      %v6516 = vld [vmem:[%s6505 + $0x50] sm:$0xff]
      %v6517 = vld [vmem:[%s6505 + $0x58] sm:$0xf]
      %v6518 = vld [vmem:[%s6505 + $0x60] sm:$0xff]
      %v6519 = vld [vmem:[%s6505 + $0x68] sm:$0xff]
      %v6520 = vld [vmem:[%s6505 + $0x70] sm:$0xff]
      %v6521 = vld [vmem:[%s6505 + $0x78] sm:$0xf]
      %v6522 = vld [vmem:[%s6505 + $0x80] sm:$0xff]
      %v6523 = vld [vmem:[%s6505 + $0x88] sm:$0xff]
      %v6524 = vld [vmem:[%s6505 + $0x90] sm:$0xff]
      %v6525 = vld [vmem:[%s6505 + $0x98] sm:$0xf]
      %v6526 = vld [vmem:[%s6505 + $0xa0] sm:$0xff]
      %v6527 = vld [vmem:[%s6505 + $0xa8] sm:$0xff]
      %v6528 = vld [vmem:[%s6505 + $0xb0] sm:$0xff]
      %v6529 = vld [vmem:[%s6505 + $0xb8] sm:$0xf]
      %v6530 = vld [vmem:[%s6505 + $0xc0] sm:$0xff]
      %v6531 = vld [vmem:[%s6505 + $0xc8] sm:$0xff]
      %v6532 = vld [vmem:[%s6505 + $0xd0] sm:$0xff]
      %v6533 = vld [vmem:[%s6505 + $0xd8] sm:$0xf]
      %v6534 = vld [vmem:[%s6505 + $0xe0] sm:$0xff]
      %v6535 = vld [vmem:[%s6505 + $0xe8] sm:$0xff]
      %v6536 = vld [vmem:[%s6505 + $0xf0] sm:$0xff]
      %v6537 = vld [vmem:[%s6505 + $0xf8] sm:$0xf]
      %v6538 = vld [vmem:[%s6505 + $0x100] sm:$0xff]
      %v6539 = vld [vmem:[%s6505 + $0x108] sm:$0xff]
      %v6540 = vld [vmem:[%s6505 + $0x110] sm:$0xff]
      %v6541 = vld [vmem:[%s6505 + $0x118] sm:$0xf]
      %v6542 = vld [vmem:[%s6505 + $0x120] sm:$0xff]
      %v6543 = vld [vmem:[%s6505 + $0x128] sm:$0xff]
      %v6544 = vld [vmem:[%s6505 + $0x130] sm:$0xff]
      %v6545 = vld [vmem:[%s6505 + $0x138] sm:$0xf]
      %v6546 = vld [vmem:[%s6505 + $0x140] sm:$0xff]
      %v6547 = vld [vmem:[%s6505 + $0x148] sm:$0xff]
      %v6548 = vld [vmem:[%s6505 + $0x150] sm:$0xff]
      %v6549 = vld [vmem:[%s6505 + $0x158] sm:$0xf]
      %v6550 = vld [vmem:[%s6505 + $0x160] sm:$0xff]
      %v6551 = vld [vmem:[%s6505 + $0x168] sm:$0xff]
      %v6552 = vld [vmem:[%s6505 + $0x170] sm:$0xff]
      %v6553 = vld [vmem:[%s6505 + $0x178] sm:$0xf]
      %v6554 = vld [vmem:[%s6505 + $0x180] sm:$0xff]
      %v6555 = vld [vmem:[%s6505 + $0x188] sm:$0xff]
      %v6556 = vld [vmem:[%s6505 + $0x190] sm:$0xff]
      %v6557 = vld [vmem:[%s6505 + $0x198] sm:$0xf]
      %v6558 = vld [vmem:[%s6505 + $0x1a0] sm:$0xff]
      %v6559 = vld [vmem:[%s6505 + $0x1a8] sm:$0xff]
      %v6560 = vld [vmem:[%s6505 + $0x1b0] sm:$0xff]
      %v6561 = vld [vmem:[%s6505 + $0x1b8] sm:$0xf]
      %v6562 = vld [vmem:[%s6505 + $0x1c0] sm:$0xff]
      %v6563 = vld [vmem:[%s6505 + $0x1c8] sm:$0xff]
      %v6564 = vld [vmem:[%s6505 + $0x1d0] sm:$0xff]
      %v6565 = vld [vmem:[%s6505 + $0x1d8] sm:$0xf]
      %v6566 = vld [vmem:[%s6505 + $0x1e0] sm:$0xff]
      %v6567 = vld [vmem:[%s6505 + $0x1e8] sm:$0xff]
      %v6568 = vld [vmem:[%s6505 + $0x1f0] sm:$0xff]
      %v6569 = vld [vmem:[%s6505 + $0x1f8] sm:$0xf]
      %v6570 = vmax.f32 %v6441, %v6506
      %v6571 = vmax.f32 %v6442, %v6507
      %v6572 = vmax.f32 %v6443, %v6508
      %v6573 = vmax.f32 %v6444, %v6509
      %v6574 = vmax.f32 %v6445, %v6510
      %v6575 = vmax.f32 %v6446, %v6511
      %v6576 = vmax.f32 %v6447, %v6512
      %v6577 = vmax.f32 %v6448, %v6513
      %v6578 = vmax.f32 %v6449, %v6514
      %v6579 = vmax.f32 %v6450, %v6515
      %v6580 = vmax.f32 %v6451, %v6516
      %v6581 = vmax.f32 %v6452, %v6517
      %v6582 = vmax.f32 %v6453, %v6518
      %v6583 = vmax.f32 %v6454, %v6519
      %v6584 = vmax.f32 %v6455, %v6520
      %v6585 = vmax.f32 %v6456, %v6521
      %v6586 = vmax.f32 %v6457, %v6522
      %v6587 = vmax.f32 %v6458, %v6523
      %v6588 = vmax.f32 %v6459, %v6524
      %v6589 = vmax.f32 %v6460, %v6525
      %v6590 = vmax.f32 %v6461, %v6526
      %v6591 = vmax.f32 %v6462, %v6527
      %v6592 = vmax.f32 %v6463, %v6528
      %v6593 = vmax.f32 %v6464, %v6529
      %v6594 = vmax.f32 %v6465, %v6530
      %v6595 = vmax.f32 %v6466, %v6531
      %v6596 = vmax.f32 %v6467, %v6532
      %v6597 = vmax.f32 %v6468, %v6533
      %v6598 = vmax.f32 %v6469, %v6534
      %v6599 = vmax.f32 %v6470, %v6535
      %v6600 = vmax.f32 %v6471, %v6536
      %v6601 = vmax.f32 %v6472, %v6537
      %v6602 = vmax.f32 %v6473, %v6538
      %v6603 = vmax.f32 %v6474, %v6539
      %v6604 = vmax.f32 %v6475, %v6540
      %v6605 = vmax.f32 %v6476, %v6541
      %v6606 = vmax.f32 %v6477, %v6542
      %v6607 = vmax.f32 %v6478, %v6543
      %v6608 = vmax.f32 %v6479, %v6544
      %v6609 = vmax.f32 %v6480, %v6545
      %v6610 = vmax.f32 %v6481, %v6546
      %v6611 = vmax.f32 %v6482, %v6547
      %v6612 = vmax.f32 %v6483, %v6548
      %v6613 = vmax.f32 %v6484, %v6549
      %v6614 = vmax.f32 %v6485, %v6550
      %v6615 = vmax.f32 %v6486, %v6551
      %v6616 = vmax.f32 %v6487, %v6552
      %v6617 = vmax.f32 %v6488, %v6553
      %v6618 = vmax.f32 %v6489, %v6554
      %v6619 = vmax.f32 %v6490, %v6555
      %v6620 = vmax.f32 %v6491, %v6556
      %v6621 = vmax.f32 %v6492, %v6557
      %v6622 = vmax.f32 %v6493, %v6558
      %v6623 = vmax.f32 %v6494, %v6559
      %v6624 = vmax.f32 %v6495, %v6560
      %v6625 = vmax.f32 %v6496, %v6561
      %v6626 = vmax.f32 %v6497, %v6562
      %v6627 = vmax.f32 %v6498, %v6563
      %v6628 = vmax.f32 %v6499, %v6564
      %v6629 = vmax.f32 %v6500, %v6565
      %v6630 = vmax.f32 %v6501, %v6566
      %v6631 = vmax.f32 %v6502, %v6567
      %v6632 = vmax.f32 %v6503, %v6568
      %v6633 = vmax.f32 %v6504, %v6569
      %v6682 = vrot.slane %v6570, 1
      %v6683 = vrot.slane %v6571, 1
      %v6684 = vsel %vm1940, %v6682, %v6683
      %v6685 = vrot.slane %v6572, 1
      %v6686 = vsel %vm1940, %v6683, %v6685
      %v6687 = vrot.slane %v6574, 1
      %v6688 = vrot.slane %v6575, 1
      %v6689 = vsel %vm1940, %v6687, %v6688
      %v6690 = vrot.slane %v6576, 1
      %v6691 = vsel %vm1940, %v6688, %v6690
      %v6692 = vrot.slane %v6578, 1
      %v6693 = vrot.slane %v6579, 1
      %v6694 = vsel %vm1940, %v6692, %v6693
      %v6695 = vrot.slane %v6580, 1
      %v6696 = vsel %vm1940, %v6693, %v6695
      %v6697 = vrot.slane %v6582, 1
      %v6698 = vrot.slane %v6583, 1
      %v6699 = vsel %vm1940, %v6697, %v6698
      %v6700 = vrot.slane %v6584, 1
      %v6701 = vsel %vm1940, %v6698, %v6700
      %v6702 = vrot.slane %v6586, 1
      %v6703 = vrot.slane %v6587, 1
      %v6704 = vsel %vm1940, %v6702, %v6703
      %v6705 = vrot.slane %v6588, 1
      %v6706 = vsel %vm1940, %v6703, %v6705
      %v6707 = vrot.slane %v6590, 1
      %v6708 = vrot.slane %v6591, 1
      %v6709 = vsel %vm1940, %v6707, %v6708
      %v6710 = vrot.slane %v6592, 1
      %v6711 = vsel %vm1940, %v6708, %v6710
      %v6712 = vrot.slane %v6594, 1
      %v6713 = vrot.slane %v6595, 1
      %v6714 = vsel %vm1940, %v6712, %v6713
      %v6715 = vrot.slane %v6596, 1
      %v6716 = vsel %vm1940, %v6713, %v6715
      %v6717 = vrot.slane %v6598, 1
      %v6718 = vrot.slane %v6599, 1
      %v6719 = vsel %vm1940, %v6717, %v6718
      %v6720 = vrot.slane %v6600, 1
      %v6721 = vsel %vm1940, %v6718, %v6720
      %v6722 = vrot.slane %v6602, 1
      %v6723 = vrot.slane %v6603, 1
      %v6724 = vsel %vm1940, %v6722, %v6723
      %v6725 = vrot.slane %v6604, 1
      %v6726 = vsel %vm1940, %v6723, %v6725
      %v6727 = vrot.slane %v6606, 1
      %v6728 = vrot.slane %v6607, 1
      %v6729 = vsel %vm1940, %v6727, %v6728
      %v6730 = vrot.slane %v6608, 1
      %v6731 = vsel %vm1940, %v6728, %v6730
      %v6732 = vrot.slane %v6610, 1
      %v6733 = vrot.slane %v6611, 1
      %v6734 = vsel %vm1940, %v6732, %v6733
      %v6735 = vrot.slane %v6612, 1
      %v6736 = vsel %vm1940, %v6733, %v6735
      %v6737 = vrot.slane %v6614, 1
      %v6738 = vrot.slane %v6615, 1
      %v6739 = vsel %vm1940, %v6737, %v6738
      %v6740 = vrot.slane %v6616, 1
      %v6741 = vsel %vm1940, %v6738, %v6740
      %v6742 = vrot.slane %v6618, 1
      %v6743 = vrot.slane %v6619, 1
      %v6744 = vsel %vm1940, %v6742, %v6743
      %v6745 = vrot.slane %v6620, 1
      %v6746 = vsel %vm1940, %v6743, %v6745
      %v6747 = vrot.slane %v6622, 1
      %v6748 = vrot.slane %v6623, 1
      %v6749 = vsel %vm1940, %v6747, %v6748
      %v6750 = vrot.slane %v6624, 1
      %v6751 = vsel %vm1940, %v6748, %v6750
      %v6752 = vrot.slane %v6626, 1
      %v6753 = vrot.slane %v6627, 1
      %v6754 = vsel %vm1940, %v6752, %v6753
      %v6755 = vrot.slane %v6628, 1
      %v6756 = vsel %vm1940, %v6753, %v6755
      %v6757 = vrot.slane %v6630, 1
      %v6758 = vrot.slane %v6631, 1
      %v6759 = vsel %vm1940, %v6757, %v6758
      %v6760 = vrot.slane %v6632, 1
      %v6761 = vsel %vm1940, %v6758, %v6760
      %v6794 = vmax.f32 %v6570, %v6684
      %v6795 = vmax.f32 %v6571, %v6686
      %v6796 = vmax.f32 %v6574, %v6689
      %v6797 = vmax.f32 %v6575, %v6691
      %v6798 = vmax.f32 %v6578, %v6694
      %v6799 = vmax.f32 %v6579, %v6696
      %v6800 = vmax.f32 %v6582, %v6699
      %v6801 = vmax.f32 %v6583, %v6701
      %v6802 = vmax.f32 %v6586, %v6704
      %v6803 = vmax.f32 %v6587, %v6706
      %v6804 = vmax.f32 %v6590, %v6709
      %v6805 = vmax.f32 %v6591, %v6711
      %v6806 = vmax.f32 %v6594, %v6714
      %v6807 = vmax.f32 %v6595, %v6716
      %v6808 = vmax.f32 %v6598, %v6719
      %v6809 = vmax.f32 %v6599, %v6721
      %v6810 = vmax.f32 %v6602, %v6724
      %v6811 = vmax.f32 %v6603, %v6726
      %v6812 = vmax.f32 %v6606, %v6729
      %v6813 = vmax.f32 %v6607, %v6731
      %v6814 = vmax.f32 %v6610, %v6734
      %v6815 = vmax.f32 %v6611, %v6736
      %v6816 = vmax.f32 %v6614, %v6739
      %v6817 = vmax.f32 %v6615, %v6741
      %v6818 = vmax.f32 %v6618, %v6744
      %v6819 = vmax.f32 %v6619, %v6746
      %v6820 = vmax.f32 %v6622, %v6749
      %v6821 = vmax.f32 %v6623, %v6751
      %v6822 = vmax.f32 %v6626, %v6754
      %v6823 = vmax.f32 %v6627, %v6756
      %v6824 = vmax.f32 %v6630, %v6759
      %v6825 = vmax.f32 %v6631, %v6761
      %v6826 = vrot.slane %v6570, 2
      %v6827 = vrot.slane %v6571, 2
      %v6828 = vsel %vm2117, %v6826, %v6827
      %v6829 = vrot.slane %v6572, 2
      %v6830 = vsel %vm2117, %v6827, %v6829
      %v6831 = vrot.slane %v6574, 2
      %v6832 = vrot.slane %v6575, 2
      %v6833 = vsel %vm2117, %v6831, %v6832
      %v6834 = vrot.slane %v6576, 2
      %v6835 = vsel %vm2117, %v6832, %v6834
      %v6836 = vrot.slane %v6578, 2
      %v6837 = vrot.slane %v6579, 2
      %v6838 = vsel %vm2117, %v6836, %v6837
      %v6839 = vrot.slane %v6580, 2
      %v6840 = vsel %vm2117, %v6837, %v6839
      %v6841 = vrot.slane %v6582, 2
      %v6842 = vrot.slane %v6583, 2
      %v6843 = vsel %vm2117, %v6841, %v6842
      %v6844 = vrot.slane %v6584, 2
      %v6845 = vsel %vm2117, %v6842, %v6844
      %v6846 = vrot.slane %v6586, 2
      %v6847 = vrot.slane %v6587, 2
      %v6848 = vsel %vm2117, %v6846, %v6847
      %v6849 = vrot.slane %v6588, 2
      %v6850 = vsel %vm2117, %v6847, %v6849
      %v6851 = vrot.slane %v6590, 2
      %v6852 = vrot.slane %v6591, 2
      %v6853 = vsel %vm2117, %v6851, %v6852
      %v6854 = vrot.slane %v6592, 2
      %v6855 = vsel %vm2117, %v6852, %v6854
      %v6856 = vrot.slane %v6594, 2
      %v6857 = vrot.slane %v6595, 2
      %v6858 = vsel %vm2117, %v6856, %v6857
      %v6859 = vrot.slane %v6596, 2
      %v6860 = vsel %vm2117, %v6857, %v6859
      %v6861 = vrot.slane %v6598, 2
      %v6862 = vrot.slane %v6599, 2
      %v6863 = vsel %vm2117, %v6861, %v6862
      %v6864 = vrot.slane %v6600, 2
      %v6865 = vsel %vm2117, %v6862, %v6864
      %v6866 = vrot.slane %v6602, 2
      %v6867 = vrot.slane %v6603, 2
      %v6868 = vsel %vm2117, %v6866, %v6867
      %v6869 = vrot.slane %v6604, 2
      %v6870 = vsel %vm2117, %v6867, %v6869
      %v6871 = vrot.slane %v6606, 2
      %v6872 = vrot.slane %v6607, 2
      %v6873 = vsel %vm2117, %v6871, %v6872
      %v6874 = vrot.slane %v6608, 2
      %v6875 = vsel %vm2117, %v6872, %v6874
      %v6876 = vrot.slane %v6610, 2
      %v6877 = vrot.slane %v6611, 2
      %v6878 = vsel %vm2117, %v6876, %v6877
      %v6879 = vrot.slane %v6612, 2
      %v6880 = vsel %vm2117, %v6877, %v6879
      %v6881 = vrot.slane %v6614, 2
      %v6882 = vrot.slane %v6615, 2
      %v6883 = vsel %vm2117, %v6881, %v6882
      %v6884 = vrot.slane %v6616, 2
      %v6885 = vsel %vm2117, %v6882, %v6884
      %v6886 = vrot.slane %v6618, 2
      %v6887 = vrot.slane %v6619, 2
      %v6888 = vsel %vm2117, %v6886, %v6887
      %v6889 = vrot.slane %v6620, 2
      %v6890 = vsel %vm2117, %v6887, %v6889
      %v6891 = vrot.slane %v6622, 2
      %v6892 = vrot.slane %v6623, 2
      %v6893 = vsel %vm2117, %v6891, %v6892
      %v6894 = vrot.slane %v6624, 2
      %v6895 = vsel %vm2117, %v6892, %v6894
      %v6896 = vrot.slane %v6626, 2
      %v6897 = vrot.slane %v6627, 2
      %v6898 = vsel %vm2117, %v6896, %v6897
      %v6899 = vrot.slane %v6628, 2
      %v6900 = vsel %vm2117, %v6897, %v6899
      %v6901 = vrot.slane %v6630, 2
      %v6902 = vrot.slane %v6631, 2
      %v6903 = vsel %vm2117, %v6901, %v6902
      %v6904 = vrot.slane %v6632, 2
      %v6905 = vsel %vm2117, %v6902, %v6904
      %v6938 = vmax.f32 %v6794, %v6828
      %v6939 = vmax.f32 %v6795, %v6830
      %v6940 = vmax.f32 %v6796, %v6833
      %v6941 = vmax.f32 %v6797, %v6835
      %v6942 = vmax.f32 %v6798, %v6838
      %v6943 = vmax.f32 %v6799, %v6840
      %v6944 = vmax.f32 %v6800, %v6843
      %v6945 = vmax.f32 %v6801, %v6845
      %v6946 = vmax.f32 %v6802, %v6848
      %v6947 = vmax.f32 %v6803, %v6850
      %v6948 = vmax.f32 %v6804, %v6853
      %v6949 = vmax.f32 %v6805, %v6855
      %v6950 = vmax.f32 %v6806, %v6858
      %v6951 = vmax.f32 %v6807, %v6860
      %v6952 = vmax.f32 %v6808, %v6863
      %v6953 = vmax.f32 %v6809, %v6865
      %v6954 = vmax.f32 %v6810, %v6868
      %v6955 = vmax.f32 %v6811, %v6870
      %v6956 = vmax.f32 %v6812, %v6873
      %v6957 = vmax.f32 %v6813, %v6875
      %v6958 = vmax.f32 %v6814, %v6878
      %v6959 = vmax.f32 %v6815, %v6880
      %v6960 = vmax.f32 %v6816, %v6883
      %v6961 = vmax.f32 %v6817, %v6885
      %v6962 = vmax.f32 %v6818, %v6888
      %v6963 = vmax.f32 %v6819, %v6890
      %v6964 = vmax.f32 %v6820, %v6893
      %v6965 = vmax.f32 %v6821, %v6895
      %v6966 = vmax.f32 %v6822, %v6898
      %v6967 = vmax.f32 %v6823, %v6900
      %v6968 = vmax.f32 %v6824, %v6903
      %v6969 = vmax.f32 %v6825, %v6905
      %v6970 = vrot.slane %v6570, 3
      %v6971 = vrot.slane %v6571, 3
      %v6972 = vsel %vm2294, %v6970, %v6971
      %v6973 = vrot.slane %v6572, 3
      %v6974 = vsel %vm2294, %v6971, %v6973
      %v6975 = vrot.slane %v6574, 3
      %v6976 = vrot.slane %v6575, 3
      %v6977 = vsel %vm2294, %v6975, %v6976
      %v6978 = vrot.slane %v6576, 3
      %v6979 = vsel %vm2294, %v6976, %v6978
      %v6980 = vrot.slane %v6578, 3
      %v6981 = vrot.slane %v6579, 3
      %v6982 = vsel %vm2294, %v6980, %v6981
      %v6983 = vrot.slane %v6580, 3
      %v6984 = vsel %vm2294, %v6981, %v6983
      %v6985 = vrot.slane %v6582, 3
      %v6986 = vrot.slane %v6583, 3
      %v6987 = vsel %vm2294, %v6985, %v6986
      %v6988 = vrot.slane %v6584, 3
      %v6989 = vsel %vm2294, %v6986, %v6988
      %v6990 = vrot.slane %v6586, 3
      %v6991 = vrot.slane %v6587, 3
      %v6992 = vsel %vm2294, %v6990, %v6991
      %v6993 = vrot.slane %v6588, 3
      %v6994 = vsel %vm2294, %v6991, %v6993
      %v6995 = vrot.slane %v6590, 3
      %v6996 = vrot.slane %v6591, 3
      %v6997 = vsel %vm2294, %v6995, %v6996
      %v6998 = vrot.slane %v6592, 3
      %v6999 = vsel %vm2294, %v6996, %v6998
      %v7000 = vrot.slane %v6594, 3
      %v7001 = vrot.slane %v6595, 3
      %v7002 = vsel %vm2294, %v7000, %v7001
      %v7003 = vrot.slane %v6596, 3
      %v7004 = vsel %vm2294, %v7001, %v7003
      %v7005 = vrot.slane %v6598, 3
      %v7006 = vrot.slane %v6599, 3
      %v7007 = vsel %vm2294, %v7005, %v7006
      %v7008 = vrot.slane %v6600, 3
      %v7009 = vsel %vm2294, %v7006, %v7008
      %v7010 = vrot.slane %v6602, 3
      %v7011 = vrot.slane %v6603, 3
      %v7012 = vsel %vm2294, %v7010, %v7011
      %v7013 = vrot.slane %v6604, 3
      %v7014 = vsel %vm2294, %v7011, %v7013
      %v7015 = vrot.slane %v6606, 3
      %v7016 = vrot.slane %v6607, 3
      %v7017 = vsel %vm2294, %v7015, %v7016
      %v7018 = vrot.slane %v6608, 3
      %v7019 = vsel %vm2294, %v7016, %v7018
      %v7020 = vrot.slane %v6610, 3
      %v7021 = vrot.slane %v6611, 3
      %v7022 = vsel %vm2294, %v7020, %v7021
      %v7023 = vrot.slane %v6612, 3
      %v7024 = vsel %vm2294, %v7021, %v7023
      %v7025 = vrot.slane %v6614, 3
      %v7026 = vrot.slane %v6615, 3
      %v7027 = vsel %vm2294, %v7025, %v7026
      %v7028 = vrot.slane %v6616, 3
      %v7029 = vsel %vm2294, %v7026, %v7028
      %v7030 = vrot.slane %v6618, 3
      %v7031 = vrot.slane %v6619, 3
      %v7032 = vsel %vm2294, %v7030, %v7031
      %v7033 = vrot.slane %v6620, 3
      %v7034 = vsel %vm2294, %v7031, %v7033
      %v7035 = vrot.slane %v6622, 3
      %v7036 = vrot.slane %v6623, 3
      %v7037 = vsel %vm2294, %v7035, %v7036
      %v7038 = vrot.slane %v6624, 3
      %v7039 = vsel %vm2294, %v7036, %v7038
      %v7040 = vrot.slane %v6626, 3
      %v7041 = vrot.slane %v6627, 3
      %v7042 = vsel %vm2294, %v7040, %v7041
      %v7043 = vrot.slane %v6628, 3
      %v7044 = vsel %vm2294, %v7041, %v7043
      %v7045 = vrot.slane %v6630, 3
      %v7046 = vrot.slane %v6631, 3
      %v7047 = vsel %vm2294, %v7045, %v7046
      %v7048 = vrot.slane %v6632, 3
      %v7049 = vsel %vm2294, %v7046, %v7048
      %v7082 = vmax.f32 %v6938, %v6972
      %v7083 = vmax.f32 %v6939, %v6974
      %v7084 = vmax.f32 %v6940, %v6977
      %v7085 = vmax.f32 %v6941, %v6979
      %v7086 = vmax.f32 %v6942, %v6982
      %v7087 = vmax.f32 %v6943, %v6984
      %v7088 = vmax.f32 %v6944, %v6987
      %v7089 = vmax.f32 %v6945, %v6989
      %v7090 = vmax.f32 %v6946, %v6992
      %v7091 = vmax.f32 %v6947, %v6994
      %v7092 = vmax.f32 %v6948, %v6997
      %v7093 = vmax.f32 %v6949, %v6999
      %v7094 = vmax.f32 %v6950, %v7002
      %v7095 = vmax.f32 %v6951, %v7004
      %v7096 = vmax.f32 %v6952, %v7007
      %v7097 = vmax.f32 %v6953, %v7009
      %v7098 = vmax.f32 %v6954, %v7012
      %v7099 = vmax.f32 %v6955, %v7014
      %v7100 = vmax.f32 %v6956, %v7017
      %v7101 = vmax.f32 %v6957, %v7019
      %v7102 = vmax.f32 %v6958, %v7022
      %v7103 = vmax.f32 %v6959, %v7024
      %v7104 = vmax.f32 %v6960, %v7027
      %v7105 = vmax.f32 %v6961, %v7029
      %v7106 = vmax.f32 %v6962, %v7032
      %v7107 = vmax.f32 %v6963, %v7034
      %v7108 = vmax.f32 %v6964, %v7037
      %v7109 = vmax.f32 %v6965, %v7039
      %v7110 = vmax.f32 %v6966, %v7042
      %v7111 = vmax.f32 %v6967, %v7044
      %v7112 = vmax.f32 %v6968, %v7047
      %v7113 = vmax.f32 %v6969, %v7049
      %v7114 = vrot.slane %v6570, 4
      %v7115 = vrot.slane %v6571, 4
      %v7116 = vsel %vm443, %v7114, %v7115
      %v7117 = vrot.slane %v6572, 4
      %v7118 = vsel %vm443, %v7115, %v7117
      %v7119 = vrot.slane %v6574, 4
      %v7120 = vrot.slane %v6575, 4
      %v7121 = vsel %vm443, %v7119, %v7120
      %v7122 = vrot.slane %v6576, 4
      %v7123 = vsel %vm443, %v7120, %v7122
      %v7124 = vrot.slane %v6578, 4
      %v7125 = vrot.slane %v6579, 4
      %v7126 = vsel %vm443, %v7124, %v7125
      %v7127 = vrot.slane %v6580, 4
      %v7128 = vsel %vm443, %v7125, %v7127
      %v7129 = vrot.slane %v6582, 4
      %v7130 = vrot.slane %v6583, 4
      %v7131 = vsel %vm443, %v7129, %v7130
      %v7132 = vrot.slane %v6584, 4
      %v7133 = vsel %vm443, %v7130, %v7132
      %v7134 = vrot.slane %v6586, 4
      %v7135 = vrot.slane %v6587, 4
      %v7136 = vsel %vm443, %v7134, %v7135
      %v7137 = vrot.slane %v6588, 4
      %v7138 = vsel %vm443, %v7135, %v7137
      %v7139 = vrot.slane %v6590, 4
      %v7140 = vrot.slane %v6591, 4
      %v7141 = vsel %vm443, %v7139, %v7140
      %v7142 = vrot.slane %v6592, 4
      %v7143 = vsel %vm443, %v7140, %v7142
      %v7144 = vrot.slane %v6594, 4
      %v7145 = vrot.slane %v6595, 4
      %v7146 = vsel %vm443, %v7144, %v7145
      %v7147 = vrot.slane %v6596, 4
      %v7148 = vsel %vm443, %v7145, %v7147
      %v7149 = vrot.slane %v6598, 4
      %v7150 = vrot.slane %v6599, 4
      %v7151 = vsel %vm443, %v7149, %v7150
      %v7152 = vrot.slane %v6600, 4
      %v7153 = vsel %vm443, %v7150, %v7152
      %v7154 = vrot.slane %v6602, 4
      %v7155 = vrot.slane %v6603, 4
      %v7156 = vsel %vm443, %v7154, %v7155
      %v7157 = vrot.slane %v6604, 4
      %v7158 = vsel %vm443, %v7155, %v7157
      %v7159 = vrot.slane %v6606, 4
      %v7160 = vrot.slane %v6607, 4
      %v7161 = vsel %vm443, %v7159, %v7160
      %v7162 = vrot.slane %v6608, 4
      %v7163 = vsel %vm443, %v7160, %v7162
      %v7164 = vrot.slane %v6610, 4
      %v7165 = vrot.slane %v6611, 4
      %v7166 = vsel %vm443, %v7164, %v7165
      %v7167 = vrot.slane %v6612, 4
      %v7168 = vsel %vm443, %v7165, %v7167
      %v7169 = vrot.slane %v6614, 4
      %v7170 = vrot.slane %v6615, 4
      %v7171 = vsel %vm443, %v7169, %v7170
      %v7172 = vrot.slane %v6616, 4
      %v7173 = vsel %vm443, %v7170, %v7172
      %v7174 = vrot.slane %v6618, 4
      %v7175 = vrot.slane %v6619, 4
      %v7176 = vsel %vm443, %v7174, %v7175
      %v7177 = vrot.slane %v6620, 4
      %v7178 = vsel %vm443, %v7175, %v7177
      %v7179 = vrot.slane %v6622, 4
      %v7180 = vrot.slane %v6623, 4
      %v7181 = vsel %vm443, %v7179, %v7180
      %v7182 = vrot.slane %v6624, 4
      %v7183 = vsel %vm443, %v7180, %v7182
      %v7184 = vrot.slane %v6626, 4
      %v7185 = vrot.slane %v6627, 4
      %v7186 = vsel %vm443, %v7184, %v7185
      %v7187 = vrot.slane %v6628, 4
      %v7188 = vsel %vm443, %v7185, %v7187
      %v7189 = vrot.slane %v6630, 4
      %v7190 = vrot.slane %v6631, 4
      %v7191 = vsel %vm443, %v7189, %v7190
      %v7192 = vrot.slane %v6632, 4
      %v7193 = vsel %vm443, %v7190, %v7192
      %v7226 = vmax.f32 %v7082, %v7116
      %v7227 = vmax.f32 %v7083, %v7118
      %v7228 = vmax.f32 %v7084, %v7121
      %v7229 = vmax.f32 %v7085, %v7123
      %v7230 = vmax.f32 %v7086, %v7126
      %v7231 = vmax.f32 %v7087, %v7128
      %v7232 = vmax.f32 %v7088, %v7131
      %v7233 = vmax.f32 %v7089, %v7133
      %v7234 = vmax.f32 %v7090, %v7136
      %v7235 = vmax.f32 %v7091, %v7138
      %v7236 = vmax.f32 %v7092, %v7141
      %v7237 = vmax.f32 %v7093, %v7143
      %v7238 = vmax.f32 %v7094, %v7146
      %v7239 = vmax.f32 %v7095, %v7148
      %v7240 = vmax.f32 %v7096, %v7151
      %v7241 = vmax.f32 %v7097, %v7153
      %v7242 = vmax.f32 %v7098, %v7156
      %v7243 = vmax.f32 %v7099, %v7158
      %v7244 = vmax.f32 %v7100, %v7161
      %v7245 = vmax.f32 %v7101, %v7163
      %v7246 = vmax.f32 %v7102, %v7166
      %v7247 = vmax.f32 %v7103, %v7168
      %v7248 = vmax.f32 %v7104, %v7171
      %v7249 = vmax.f32 %v7105, %v7173
      %v7250 = vmax.f32 %v7106, %v7176
      %v7251 = vmax.f32 %v7107, %v7178
      %v7252 = vmax.f32 %v7108, %v7181
      %v7253 = vmax.f32 %v7109, %v7183
      %v7254 = vmax.f32 %v7110, %v7186
      %v7255 = vmax.f32 %v7111, %v7188
      %v7256 = vmax.f32 %v7112, %v7191
      %v7257 = vmax.f32 %v7113, %v7193
      %v7258 = vrot.slane %v6570, 5
      %v7259 = vrot.slane %v6571, 5
      %v7260 = vsel %vm4592, %v7258, %v7259
      %v7261 = vrot.slane %v6572, 5
      %v7262 = vsel %vm4592, %v7259, %v7261
      %v7263 = vrot.slane %v6574, 5
      %v7264 = vrot.slane %v6575, 5
      %v7265 = vsel %vm4592, %v7263, %v7264
      %v7266 = vrot.slane %v6576, 5
      %v7267 = vsel %vm4592, %v7264, %v7266
      %v7268 = vrot.slane %v6578, 5
      %v7269 = vrot.slane %v6579, 5
      %v7270 = vsel %vm4592, %v7268, %v7269
      %v7271 = vrot.slane %v6580, 5
      %v7272 = vsel %vm4592, %v7269, %v7271
      %v7273 = vrot.slane %v6582, 5
      %v7274 = vrot.slane %v6583, 5
      %v7275 = vsel %vm4592, %v7273, %v7274
      %v7276 = vrot.slane %v6584, 5
      %v7277 = vsel %vm4592, %v7274, %v7276
      %v7278 = vrot.slane %v6586, 5
      %v7279 = vrot.slane %v6587, 5
      %v7280 = vsel %vm4592, %v7278, %v7279
      %v7281 = vrot.slane %v6588, 5
      %v7282 = vsel %vm4592, %v7279, %v7281
      %v7283 = vrot.slane %v6590, 5
      %v7284 = vrot.slane %v6591, 5
      %v7285 = vsel %vm4592, %v7283, %v7284
      %v7286 = vrot.slane %v6592, 5
      %v7287 = vsel %vm4592, %v7284, %v7286
      %v7288 = vrot.slane %v6594, 5
      %v7289 = vrot.slane %v6595, 5
      %v7290 = vsel %vm4592, %v7288, %v7289
      %v7291 = vrot.slane %v6596, 5
      %v7292 = vsel %vm4592, %v7289, %v7291
      %v7293 = vrot.slane %v6598, 5
      %v7294 = vrot.slane %v6599, 5
      %v7295 = vsel %vm4592, %v7293, %v7294
      %v7296 = vrot.slane %v6600, 5
      %v7297 = vsel %vm4592, %v7294, %v7296
      %v7298 = vrot.slane %v6602, 5
      %v7299 = vrot.slane %v6603, 5
      %v7300 = vsel %vm4592, %v7298, %v7299
      %v7301 = vrot.slane %v6604, 5
      %v7302 = vsel %vm4592, %v7299, %v7301
      %v7303 = vrot.slane %v6606, 5
      %v7304 = vrot.slane %v6607, 5
      %v7305 = vsel %vm4592, %v7303, %v7304
      %v7306 = vrot.slane %v6608, 5
      %v7307 = vsel %vm4592, %v7304, %v7306
      %v7308 = vrot.slane %v6610, 5
      %v7309 = vrot.slane %v6611, 5
      %v7310 = vsel %vm4592, %v7308, %v7309
      %v7311 = vrot.slane %v6612, 5
      %v7312 = vsel %vm4592, %v7309, %v7311
      %v7313 = vrot.slane %v6614, 5
      %v7314 = vrot.slane %v6615, 5
      %v7315 = vsel %vm4592, %v7313, %v7314
      %v7316 = vrot.slane %v6616, 5
      %v7317 = vsel %vm4592, %v7314, %v7316
      %v7318 = vrot.slane %v6618, 5
      %v7319 = vrot.slane %v6619, 5
      %v7320 = vsel %vm4592, %v7318, %v7319
      %v7321 = vrot.slane %v6620, 5
      %v7322 = vsel %vm4592, %v7319, %v7321
      %v7323 = vrot.slane %v6622, 5
      %v7324 = vrot.slane %v6623, 5
      %v7325 = vsel %vm4592, %v7323, %v7324
      %v7326 = vrot.slane %v6624, 5
      %v7327 = vsel %vm4592, %v7324, %v7326
      %v7328 = vrot.slane %v6626, 5
      %v7329 = vrot.slane %v6627, 5
      %v7330 = vsel %vm4592, %v7328, %v7329
      %v7331 = vrot.slane %v6628, 5
      %v7332 = vsel %vm4592, %v7329, %v7331
      %v7333 = vrot.slane %v6630, 5
      %v7334 = vrot.slane %v6631, 5
      %v7335 = vsel %vm4592, %v7333, %v7334
      %v7336 = vrot.slane %v6632, 5
      %v7337 = vsel %vm4592, %v7334, %v7336
      %v7370 = vmax.f32 %v7226, %v7260
      %v7371 = vmax.f32 %v7227, %v7262
      %v7372 = vmax.f32 %v7228, %v7265
      %v7373 = vmax.f32 %v7229, %v7267
      %v7374 = vmax.f32 %v7230, %v7270
      %v7375 = vmax.f32 %v7231, %v7272
      %v7376 = vmax.f32 %v7232, %v7275
      %v7377 = vmax.f32 %v7233, %v7277
      %v7378 = vmax.f32 %v7234, %v7280
      %v7379 = vmax.f32 %v7235, %v7282
      %v7380 = vmax.f32 %v7236, %v7285
      %v7381 = vmax.f32 %v7237, %v7287
      %v7382 = vmax.f32 %v7238, %v7290
      %v7383 = vmax.f32 %v7239, %v7292
      %v7384 = vmax.f32 %v7240, %v7295
      %v7385 = vmax.f32 %v7241, %v7297
      %v7386 = vmax.f32 %v7242, %v7300
      %v7387 = vmax.f32 %v7243, %v7302
      %v7388 = vmax.f32 %v7244, %v7305
      %v7389 = vmax.f32 %v7245, %v7307
      %v7390 = vmax.f32 %v7246, %v7310
      %v7391 = vmax.f32 %v7247, %v7312
      %v7392 = vmax.f32 %v7248, %v7315
      %v7393 = vmax.f32 %v7249, %v7317
      %v7394 = vmax.f32 %v7250, %v7320
      %v7395 = vmax.f32 %v7251, %v7322
      %v7396 = vmax.f32 %v7252, %v7325
      %v7397 = vmax.f32 %v7253, %v7327
      %v7398 = vmax.f32 %v7254, %v7330
      %v7399 = vmax.f32 %v7255, %v7332
      %v7400 = vmax.f32 %v7256, %v7335
      %v7401 = vmax.f32 %v7257, %v7337
      %v7402 = vrot.slane %v6570, 6
      %v7403 = vrot.slane %v6571, 6
      %v7404 = vsel %vm1147, %v7402, %v7403
      %v7405 = vrot.slane %v6572, 6
      %v7406 = vsel %vm1147, %v7403, %v7405
      %v7407 = vrot.slane %v6574, 6
      %v7408 = vrot.slane %v6575, 6
      %v7409 = vsel %vm1147, %v7407, %v7408
      %v7410 = vrot.slane %v6576, 6
      %v7411 = vsel %vm1147, %v7408, %v7410
      %v7412 = vrot.slane %v6578, 6
      %v7413 = vrot.slane %v6579, 6
      %v7414 = vsel %vm1147, %v7412, %v7413
      %v7415 = vrot.slane %v6580, 6
      %v7416 = vsel %vm1147, %v7413, %v7415
      %v7417 = vrot.slane %v6582, 6
      %v7418 = vrot.slane %v6583, 6
      %v7419 = vsel %vm1147, %v7417, %v7418
      %v7420 = vrot.slane %v6584, 6
      %v7421 = vsel %vm1147, %v7418, %v7420
      %v7422 = vrot.slane %v6586, 6
      %v7423 = vrot.slane %v6587, 6
      %v7424 = vsel %vm1147, %v7422, %v7423
      %v7425 = vrot.slane %v6588, 6
      %v7426 = vsel %vm1147, %v7423, %v7425
      %v7427 = vrot.slane %v6590, 6
      %v7428 = vrot.slane %v6591, 6
      %v7429 = vsel %vm1147, %v7427, %v7428
      %v7430 = vrot.slane %v6592, 6
      %v7431 = vsel %vm1147, %v7428, %v7430
      %v7432 = vrot.slane %v6594, 6
      %v7433 = vrot.slane %v6595, 6
      %v7434 = vsel %vm1147, %v7432, %v7433
      %v7435 = vrot.slane %v6596, 6
      %v7436 = vsel %vm1147, %v7433, %v7435
      %v7437 = vrot.slane %v6598, 6
      %v7438 = vrot.slane %v6599, 6
      %v7439 = vsel %vm1147, %v7437, %v7438
      %v7440 = vrot.slane %v6600, 6
      %v7441 = vsel %vm1147, %v7438, %v7440
      %v7442 = vrot.slane %v6602, 6
      %v7443 = vrot.slane %v6603, 6
      %v7444 = vsel %vm1147, %v7442, %v7443
      %v7445 = vrot.slane %v6604, 6
      %v7446 = vsel %vm1147, %v7443, %v7445
      %v7447 = vrot.slane %v6606, 6
      %v7448 = vrot.slane %v6607, 6
      %v7449 = vsel %vm1147, %v7447, %v7448
      %v7450 = vrot.slane %v6608, 6
      %v7451 = vsel %vm1147, %v7448, %v7450
      %v7452 = vrot.slane %v6610, 6
      %v7453 = vrot.slane %v6611, 6
      %v7454 = vsel %vm1147, %v7452, %v7453
      %v7455 = vrot.slane %v6612, 6
      %v7456 = vsel %vm1147, %v7453, %v7455
      %v7457 = vrot.slane %v6614, 6
      %v7458 = vrot.slane %v6615, 6
      %v7459 = vsel %vm1147, %v7457, %v7458
      %v7460 = vrot.slane %v6616, 6
      %v7461 = vsel %vm1147, %v7458, %v7460
      %v7462 = vrot.slane %v6618, 6
      %v7463 = vrot.slane %v6619, 6
      %v7464 = vsel %vm1147, %v7462, %v7463
      %v7465 = vrot.slane %v6620, 6
      %v7466 = vsel %vm1147, %v7463, %v7465
      %v7467 = vrot.slane %v6622, 6
      %v7468 = vrot.slane %v6623, 6
      %v7469 = vsel %vm1147, %v7467, %v7468
      %v7470 = vrot.slane %v6624, 6
      %v7471 = vsel %vm1147, %v7468, %v7470
      %v7472 = vrot.slane %v6626, 6
      %v7473 = vrot.slane %v6627, 6
      %v7474 = vsel %vm1147, %v7472, %v7473
      %v7475 = vrot.slane %v6628, 6
      %v7476 = vsel %vm1147, %v7473, %v7475
      %v7477 = vrot.slane %v6630, 6
      %v7478 = vrot.slane %v6631, 6
      %v7479 = vsel %vm1147, %v7477, %v7478
      %v7480 = vrot.slane %v6632, 6
      %v7481 = vsel %vm1147, %v7478, %v7480
      %v7514 = vmax.f32 %v7370, %v7404
      %v7515 = vmax.f32 %v7371, %v7406
      %v7516 = vmax.f32 %v7372, %v7409
      %v7517 = vmax.f32 %v7373, %v7411
      %v7518 = vmax.f32 %v7374, %v7414
      %v7519 = vmax.f32 %v7375, %v7416
      %v7520 = vmax.f32 %v7376, %v7419
      %v7521 = vmax.f32 %v7377, %v7421
      %v7522 = vmax.f32 %v7378, %v7424
      %v7523 = vmax.f32 %v7379, %v7426
      %v7524 = vmax.f32 %v7380, %v7429
      %v7525 = vmax.f32 %v7381, %v7431
      %v7526 = vmax.f32 %v7382, %v7434
      %v7527 = vmax.f32 %v7383, %v7436
      %v7528 = vmax.f32 %v7384, %v7439
      %v7529 = vmax.f32 %v7385, %v7441
      %v7530 = vmax.f32 %v7386, %v7444
      %v7531 = vmax.f32 %v7387, %v7446
      %v7532 = vmax.f32 %v7388, %v7449
      %v7533 = vmax.f32 %v7389, %v7451
      %v7534 = vmax.f32 %v7390, %v7454
      %v7535 = vmax.f32 %v7391, %v7456
      %v7536 = vmax.f32 %v7392, %v7459
      %v7537 = vmax.f32 %v7393, %v7461
      %v7538 = vmax.f32 %v7394, %v7464
      %v7539 = vmax.f32 %v7395, %v7466
      %v7540 = vmax.f32 %v7396, %v7469
      %v7541 = vmax.f32 %v7397, %v7471
      %v7542 = vmax.f32 %v7398, %v7474
      %v7543 = vmax.f32 %v7399, %v7476
      %v7544 = vmax.f32 %v7400, %v7479
      %v7545 = vmax.f32 %v7401, %v7481
      %v7546 = vrot.slane %v6570, 7
      %v7547 = vrot.slane %v6571, 7
      %v7548 = vsel %vm4929, %v7546, %v7547
      %v7549 = vrot.slane %v6572, 7
      %v7550 = vsel %vm4929, %v7547, %v7549
      %v7551 = vrot.slane %v6574, 7
      %v7552 = vrot.slane %v6575, 7
      %v7553 = vsel %vm4929, %v7551, %v7552
      %v7554 = vrot.slane %v6576, 7
      %v7555 = vsel %vm4929, %v7552, %v7554
      %v7556 = vrot.slane %v6578, 7
      %v7557 = vrot.slane %v6579, 7
      %v7558 = vsel %vm4929, %v7556, %v7557
      %v7559 = vrot.slane %v6580, 7
      %v7560 = vsel %vm4929, %v7557, %v7559
      %v7561 = vrot.slane %v6582, 7
      %v7562 = vrot.slane %v6583, 7
      %v7563 = vsel %vm4929, %v7561, %v7562
      %v7564 = vrot.slane %v6584, 7
      %v7565 = vsel %vm4929, %v7562, %v7564
      %v7566 = vrot.slane %v6586, 7
      %v7567 = vrot.slane %v6587, 7
      %v7568 = vsel %vm4929, %v7566, %v7567
      %v7569 = vrot.slane %v6588, 7
      %v7570 = vsel %vm4929, %v7567, %v7569
      %v7571 = vrot.slane %v6590, 7
      %v7572 = vrot.slane %v6591, 7
      %v7573 = vsel %vm4929, %v7571, %v7572
      %v7574 = vrot.slane %v6592, 7
      %v7575 = vsel %vm4929, %v7572, %v7574
      %v7576 = vrot.slane %v6594, 7
      %v7577 = vrot.slane %v6595, 7
      %v7578 = vsel %vm4929, %v7576, %v7577
      %v7579 = vrot.slane %v6596, 7
      %v7580 = vsel %vm4929, %v7577, %v7579
      %v7581 = vrot.slane %v6598, 7
      %v7582 = vrot.slane %v6599, 7
      %v7583 = vsel %vm4929, %v7581, %v7582
      %v7584 = vrot.slane %v6600, 7
      %v7585 = vsel %vm4929, %v7582, %v7584
      %v7586 = vrot.slane %v6602, 7
      %v7587 = vrot.slane %v6603, 7
      %v7588 = vsel %vm4929, %v7586, %v7587
      %v7589 = vrot.slane %v6604, 7
      %v7590 = vsel %vm4929, %v7587, %v7589
      %v7591 = vrot.slane %v6606, 7
      %v7592 = vrot.slane %v6607, 7
      %v7593 = vsel %vm4929, %v7591, %v7592
      %v7594 = vrot.slane %v6608, 7
      %v7595 = vsel %vm4929, %v7592, %v7594
      %v7596 = vrot.slane %v6610, 7
      %v7597 = vrot.slane %v6611, 7
      %v7598 = vsel %vm4929, %v7596, %v7597
      %v7599 = vrot.slane %v6612, 7
      %v7600 = vsel %vm4929, %v7597, %v7599
      %v7601 = vrot.slane %v6614, 7
      %v7602 = vrot.slane %v6615, 7
      %v7603 = vsel %vm4929, %v7601, %v7602
      %v7604 = vrot.slane %v6616, 7
      %v7605 = vsel %vm4929, %v7602, %v7604
      %v7606 = vrot.slane %v6618, 7
      %v7607 = vrot.slane %v6619, 7
      %v7608 = vsel %vm4929, %v7606, %v7607
      %v7609 = vrot.slane %v6620, 7
      %v7610 = vsel %vm4929, %v7607, %v7609
      %v7611 = vrot.slane %v6622, 7
      %v7612 = vrot.slane %v6623, 7
      %v7613 = vsel %vm4929, %v7611, %v7612
      %v7614 = vrot.slane %v6624, 7
      %v7615 = vsel %vm4929, %v7612, %v7614
      %v7616 = vrot.slane %v6626, 7
      %v7617 = vrot.slane %v6627, 7
      %v7618 = vsel %vm4929, %v7616, %v7617
      %v7619 = vrot.slane %v6628, 7
      %v7620 = vsel %vm4929, %v7617, %v7619
      %v7621 = vrot.slane %v6630, 7
      %v7622 = vrot.slane %v6631, 7
      %v7623 = vsel %vm4929, %v7621, %v7622
      %v7624 = vrot.slane %v6632, 7
      %v7625 = vsel %vm4929, %v7622, %v7624
      %v7658 = vmax.f32 %v7514, %v7548
      %v7659 = vmax.f32 %v7515, %v7550
      %v7660 = vmax.f32 %v7516, %v7553
      %v7661 = vmax.f32 %v7517, %v7555
      %v7662 = vmax.f32 %v7518, %v7558
      %v7663 = vmax.f32 %v7519, %v7560
      %v7664 = vmax.f32 %v7520, %v7563
      %v7665 = vmax.f32 %v7521, %v7565
      %v7666 = vmax.f32 %v7522, %v7568
      %v7667 = vmax.f32 %v7523, %v7570
      %v7668 = vmax.f32 %v7524, %v7573
      %v7669 = vmax.f32 %v7525, %v7575
      %v7670 = vmax.f32 %v7526, %v7578
      %v7671 = vmax.f32 %v7527, %v7580
      %v7672 = vmax.f32 %v7528, %v7583
      %v7673 = vmax.f32 %v7529, %v7585
      %v7674 = vmax.f32 %v7530, %v7588
      %v7675 = vmax.f32 %v7531, %v7590
      %v7676 = vmax.f32 %v7532, %v7593
      %v7677 = vmax.f32 %v7533, %v7595
      %v7678 = vmax.f32 %v7534, %v7598
      %v7679 = vmax.f32 %v7535, %v7600
      %v7680 = vmax.f32 %v7536, %v7603
      %v7681 = vmax.f32 %v7537, %v7605
      %v7682 = vmax.f32 %v7538, %v7608
      %v7683 = vmax.f32 %v7539, %v7610
      %v7684 = vmax.f32 %v7540, %v7613
      %v7685 = vmax.f32 %v7541, %v7615
      %v7686 = vmax.f32 %v7542, %v7618
      %v7687 = vmax.f32 %v7543, %v7620
      %v7688 = vmax.f32 %v7544, %v7623
      %v7689 = vmax.f32 %v7545, %v7625
      %v7690 = vmax.f32 %v7658, %v6571
      %v7691 = vmax.f32 %v7659, %v6572
      %v7692 = vmax.f32 %v7660, %v6575
      %v7693 = vmax.f32 %v7661, %v6576
      %v7694 = vmax.f32 %v7662, %v6579
      %v7695 = vmax.f32 %v7663, %v6580
      %v7696 = vmax.f32 %v7664, %v6583
      %v7697 = vmax.f32 %v7665, %v6584
      %v7698 = vmax.f32 %v7666, %v6587
      %v7699 = vmax.f32 %v7667, %v6588
      %v7700 = vmax.f32 %v7668, %v6591
      %v7701 = vmax.f32 %v7669, %v6592
      %v7702 = vmax.f32 %v7670, %v6595
      %v7703 = vmax.f32 %v7671, %v6596
      %v7704 = vmax.f32 %v7672, %v6599
      %v7705 = vmax.f32 %v7673, %v6600
      %v7706 = vmax.f32 %v7674, %v6603
      %v7707 = vmax.f32 %v7675, %v6604
      %v7708 = vmax.f32 %v7676, %v6607
      %v7709 = vmax.f32 %v7677, %v6608
      %v7710 = vmax.f32 %v7678, %v6611
      %v7711 = vmax.f32 %v7679, %v6612
      %v7712 = vmax.f32 %v7680, %v6615
      %v7713 = vmax.f32 %v7681, %v6616
      %v7714 = vmax.f32 %v7682, %v6619
      %v7715 = vmax.f32 %v7683, %v6620
      %v7716 = vmax.f32 %v7684, %v6623
      %v7717 = vmax.f32 %v7685, %v6624
      %v7718 = vmax.f32 %v7686, %v6627
      %v7719 = vmax.f32 %v7687, %v6628
      %v7720 = vmax.f32 %v7688, %v6631
      %v7721 = vmax.f32 %v7689, %v6632
      %v7738 = vrot.slane %v6573, 1
      %v7739 = vsel %vm1940, %v6685, %v7738
      %v7740 = vrot.slane %v6577, 1
      %v7741 = vsel %vm1940, %v6690, %v7740
      %v7742 = vrot.slane %v6581, 1
      %v7743 = vsel %vm1940, %v6695, %v7742
      %v7744 = vrot.slane %v6585, 1
      %v7745 = vsel %vm1940, %v6700, %v7744
      %v7746 = vrot.slane %v6589, 1
      %v7747 = vsel %vm1940, %v6705, %v7746
      %v7748 = vrot.slane %v6593, 1
      %v7749 = vsel %vm1940, %v6710, %v7748
      %v7750 = vrot.slane %v6597, 1
      %v7751 = vsel %vm1940, %v6715, %v7750
      %v7752 = vrot.slane %v6601, 1
      %v7753 = vsel %vm1940, %v6720, %v7752
      %v7754 = vrot.slane %v6605, 1
      %v7755 = vsel %vm1940, %v6725, %v7754
      %v7756 = vrot.slane %v6609, 1
      %v7757 = vsel %vm1940, %v6730, %v7756
      %v7758 = vrot.slane %v6613, 1
      %v7759 = vsel %vm1940, %v6735, %v7758
      %v7760 = vrot.slane %v6617, 1
      %v7761 = vsel %vm1940, %v6740, %v7760
      %v7762 = vrot.slane %v6621, 1
      %v7763 = vsel %vm1940, %v6745, %v7762
      %v7764 = vrot.slane %v6625, 1
      %v7765 = vsel %vm1940, %v6750, %v7764
      %v7766 = vrot.slane %v6629, 1
      %v7767 = vsel %vm1940, %v6755, %v7766
      %v7768 = vrot.slane %v6633, 1
      %v7769 = vsel %vm1940, %v6760, %v7768
      %v7786 = vmax.f32 %v7690, %v6686
      %v7787 = vmax.f32 %v7691, %v7739
      %v7788 = vmax.f32 %v7692, %v6691
      %v7789 = vmax.f32 %v7693, %v7741
      %v7790 = vmax.f32 %v7694, %v6696
      %v7791 = vmax.f32 %v7695, %v7743
      %v7792 = vmax.f32 %v7696, %v6701
      %v7793 = vmax.f32 %v7697, %v7745
      %v7794 = vmax.f32 %v7698, %v6706
      %v7795 = vmax.f32 %v7699, %v7747
      %v7796 = vmax.f32 %v7700, %v6711
      %v7797 = vmax.f32 %v7701, %v7749
      %v7798 = vmax.f32 %v7702, %v6716
      %v7799 = vmax.f32 %v7703, %v7751
      %v7800 = vmax.f32 %v7704, %v6721
      %v7801 = vmax.f32 %v7705, %v7753
      %v7802 = vmax.f32 %v7706, %v6726
      %v7803 = vmax.f32 %v7707, %v7755
      %v7804 = vmax.f32 %v7708, %v6731
      %v7805 = vmax.f32 %v7709, %v7757
      %v7806 = vmax.f32 %v7710, %v6736
      %v7807 = vmax.f32 %v7711, %v7759
      %v7808 = vmax.f32 %v7712, %v6741
      %v7809 = vmax.f32 %v7713, %v7761
      %v7810 = vmax.f32 %v7714, %v6746
      %v7811 = vmax.f32 %v7715, %v7763
      %v7812 = vmax.f32 %v7716, %v6751
      %v7813 = vmax.f32 %v7717, %v7765
      %v7814 = vmax.f32 %v7718, %v6756
      %v7815 = vmax.f32 %v7719, %v7767
      %v7816 = vmax.f32 %v7720, %v6761
      %v7817 = vmax.f32 %v7721, %v7769
      %v7818 = vrot.slane %v6573, 2
      %v7819 = vsel %vm2117, %v6829, %v7818
      %v7820 = vrot.slane %v6577, 2
      %v7821 = vsel %vm2117, %v6834, %v7820
      %v7822 = vrot.slane %v6581, 2
      %v7823 = vsel %vm2117, %v6839, %v7822
      %v7824 = vrot.slane %v6585, 2
      %v7825 = vsel %vm2117, %v6844, %v7824
      %v7826 = vrot.slane %v6589, 2
      %v7827 = vsel %vm2117, %v6849, %v7826
      %v7828 = vrot.slane %v6593, 2
      %v7829 = vsel %vm2117, %v6854, %v7828
      %v7830 = vrot.slane %v6597, 2
      %v7831 = vsel %vm2117, %v6859, %v7830
      %v7832 = vrot.slane %v6601, 2
      %v7833 = vsel %vm2117, %v6864, %v7832
      %v7834 = vrot.slane %v6605, 2
      %v7835 = vsel %vm2117, %v6869, %v7834
      %v7836 = vrot.slane %v6609, 2
      %v7837 = vsel %vm2117, %v6874, %v7836
      %v7838 = vrot.slane %v6613, 2
      %v7839 = vsel %vm2117, %v6879, %v7838
      %v7840 = vrot.slane %v6617, 2
      %v7841 = vsel %vm2117, %v6884, %v7840
      %v7842 = vrot.slane %v6621, 2
      %v7843 = vsel %vm2117, %v6889, %v7842
      %v7844 = vrot.slane %v6625, 2
      %v7845 = vsel %vm2117, %v6894, %v7844
      %v7846 = vrot.slane %v6629, 2
      %v7847 = vsel %vm2117, %v6899, %v7846
      %v7848 = vrot.slane %v6633, 2
      %v7849 = vsel %vm2117, %v6904, %v7848
      %v7866 = vmax.f32 %v7786, %v6830
      %v7867 = vmax.f32 %v7787, %v7819
      %v7868 = vmax.f32 %v7788, %v6835
      %v7869 = vmax.f32 %v7789, %v7821
      %v7870 = vmax.f32 %v7790, %v6840
      %v7871 = vmax.f32 %v7791, %v7823
      %v7872 = vmax.f32 %v7792, %v6845
      %v7873 = vmax.f32 %v7793, %v7825
      %v7874 = vmax.f32 %v7794, %v6850
      %v7875 = vmax.f32 %v7795, %v7827
      %v7876 = vmax.f32 %v7796, %v6855
      %v7877 = vmax.f32 %v7797, %v7829
      %v7878 = vmax.f32 %v7798, %v6860
      %v7879 = vmax.f32 %v7799, %v7831
      %v7880 = vmax.f32 %v7800, %v6865
      %v7881 = vmax.f32 %v7801, %v7833
      %v7882 = vmax.f32 %v7802, %v6870
      %v7883 = vmax.f32 %v7803, %v7835
      %v7884 = vmax.f32 %v7804, %v6875
      %v7885 = vmax.f32 %v7805, %v7837
      %v7886 = vmax.f32 %v7806, %v6880
      %v7887 = vmax.f32 %v7807, %v7839
      %v7888 = vmax.f32 %v7808, %v6885
      %v7889 = vmax.f32 %v7809, %v7841
      %v7890 = vmax.f32 %v7810, %v6890
      %v7891 = vmax.f32 %v7811, %v7843
      %v7892 = vmax.f32 %v7812, %v6895
      %v7893 = vmax.f32 %v7813, %v7845
      %v7894 = vmax.f32 %v7814, %v6900
      %v7895 = vmax.f32 %v7815, %v7847
      %v7896 = vmax.f32 %v7816, %v6905
      %v7897 = vmax.f32 %v7817, %v7849
      %v7898 = vrot.slane %v6573, 3
      %v7899 = vsel %vm2294, %v6973, %v7898
      %v7900 = vrot.slane %v6577, 3
      %v7901 = vsel %vm2294, %v6978, %v7900
      %v7902 = vrot.slane %v6581, 3
      %v7903 = vsel %vm2294, %v6983, %v7902
      %v7904 = vrot.slane %v6585, 3
      %v7905 = vsel %vm2294, %v6988, %v7904
      %v7906 = vrot.slane %v6589, 3
      %v7907 = vsel %vm2294, %v6993, %v7906
      %v7908 = vrot.slane %v6593, 3
      %v7909 = vsel %vm2294, %v6998, %v7908
      %v7910 = vrot.slane %v6597, 3
      %v7911 = vsel %vm2294, %v7003, %v7910
      %v7912 = vrot.slane %v6601, 3
      %v7913 = vsel %vm2294, %v7008, %v7912
      %v7914 = vrot.slane %v6605, 3
      %v7915 = vsel %vm2294, %v7013, %v7914
      %v7916 = vrot.slane %v6609, 3
      %v7917 = vsel %vm2294, %v7018, %v7916
      %v7918 = vrot.slane %v6613, 3
      %v7919 = vsel %vm2294, %v7023, %v7918
      %v7920 = vrot.slane %v6617, 3
      %v7921 = vsel %vm2294, %v7028, %v7920
      %v7922 = vrot.slane %v6621, 3
      %v7923 = vsel %vm2294, %v7033, %v7922
      %v7924 = vrot.slane %v6625, 3
      %v7925 = vsel %vm2294, %v7038, %v7924
      %v7926 = vrot.slane %v6629, 3
      %v7927 = vsel %vm2294, %v7043, %v7926
      %v7928 = vrot.slane %v6633, 3
      %v7929 = vsel %vm2294, %v7048, %v7928
      %v7946 = vmax.f32 %v7866, %v6974
      %v7947 = vmax.f32 %v7867, %v7899
      %v7948 = vmax.f32 %v7868, %v6979
      %v7949 = vmax.f32 %v7869, %v7901
      %v7950 = vmax.f32 %v7870, %v6984
      %v7951 = vmax.f32 %v7871, %v7903
      %v7952 = vmax.f32 %v7872, %v6989
      %v7953 = vmax.f32 %v7873, %v7905
      %v7954 = vmax.f32 %v7874, %v6994
      %v7955 = vmax.f32 %v7875, %v7907
      %v7956 = vmax.f32 %v7876, %v6999
      %v7957 = vmax.f32 %v7877, %v7909
      %v7958 = vmax.f32 %v7878, %v7004
      %v7959 = vmax.f32 %v7879, %v7911
      %v7960 = vmax.f32 %v7880, %v7009
      %v7961 = vmax.f32 %v7881, %v7913
      %v7962 = vmax.f32 %v7882, %v7014
      %v7963 = vmax.f32 %v7883, %v7915
      %v7964 = vmax.f32 %v7884, %v7019
      %v7965 = vmax.f32 %v7885, %v7917
      %v7966 = vmax.f32 %v7886, %v7024
      %v7967 = vmax.f32 %v7887, %v7919
      %v7968 = vmax.f32 %v7888, %v7029
      %v7969 = vmax.f32 %v7889, %v7921
      %v7970 = vmax.f32 %v7890, %v7034
      %v7971 = vmax.f32 %v7891, %v7923
      %v7972 = vmax.f32 %v7892, %v7039
      %v7973 = vmax.f32 %v7893, %v7925
      %v7974 = vmax.f32 %v7894, %v7044
      %v7975 = vmax.f32 %v7895, %v7927
      %v7976 = vmax.f32 %v7896, %v7049
      %v7977 = vmax.f32 %v7897, %v7929
      %v7978 = vrot.slane %v6573, 4
      %v7979 = vsel %vm443, %v7117, %v7978
      %v7980 = vrot.slane %v6577, 4
      %v7981 = vsel %vm443, %v7122, %v7980
      %v7982 = vrot.slane %v6581, 4
      %v7983 = vsel %vm443, %v7127, %v7982
      %v7984 = vrot.slane %v6585, 4
      %v7985 = vsel %vm443, %v7132, %v7984
      %v7986 = vrot.slane %v6589, 4
      %v7987 = vsel %vm443, %v7137, %v7986
      %v7988 = vrot.slane %v6593, 4
      %v7989 = vsel %vm443, %v7142, %v7988
      %v7990 = vrot.slane %v6597, 4
      %v7991 = vsel %vm443, %v7147, %v7990
      %v7992 = vrot.slane %v6601, 4
      %v7993 = vsel %vm443, %v7152, %v7992
      %v7994 = vrot.slane %v6605, 4
      %v7995 = vsel %vm443, %v7157, %v7994
      %v7996 = vrot.slane %v6609, 4
      %v7997 = vsel %vm443, %v7162, %v7996
      %v7998 = vrot.slane %v6613, 4
      %v7999 = vsel %vm443, %v7167, %v7998
      %v8000 = vrot.slane %v6617, 4
      %v8001 = vsel %vm443, %v7172, %v8000
      %v8002 = vrot.slane %v6621, 4
      %v8003 = vsel %vm443, %v7177, %v8002
      %v8004 = vrot.slane %v6625, 4
      %v8005 = vsel %vm443, %v7182, %v8004
      %v8006 = vrot.slane %v6629, 4
      %v8007 = vsel %vm443, %v7187, %v8006
      %v8008 = vrot.slane %v6633, 4
      %v8009 = vsel %vm443, %v7192, %v8008
      %v8026 = vmax.f32 %v7946, %v7118
      %v8027 = vmax.f32 %v7947, %v7979
      %v8028 = vmax.f32 %v7948, %v7123
      %v8029 = vmax.f32 %v7949, %v7981
      %v8030 = vmax.f32 %v7950, %v7128
      %v8031 = vmax.f32 %v7951, %v7983
      %v8032 = vmax.f32 %v7952, %v7133
      %v8033 = vmax.f32 %v7953, %v7985
      %v8034 = vmax.f32 %v7954, %v7138
      %v8035 = vmax.f32 %v7955, %v7987
      %v8036 = vmax.f32 %v7956, %v7143
      %v8037 = vmax.f32 %v7957, %v7989
      %v8038 = vmax.f32 %v7958, %v7148
      %v8039 = vmax.f32 %v7959, %v7991
      %v8040 = vmax.f32 %v7960, %v7153
      %v8041 = vmax.f32 %v7961, %v7993
      %v8042 = vmax.f32 %v7962, %v7158
      %v8043 = vmax.f32 %v7963, %v7995
      %v8044 = vmax.f32 %v7964, %v7163
      %v8045 = vmax.f32 %v7965, %v7997
      %v8046 = vmax.f32 %v7966, %v7168
      %v8047 = vmax.f32 %v7967, %v7999
      %v8048 = vmax.f32 %v7968, %v7173
      %v8049 = vmax.f32 %v7969, %v8001
      %v8050 = vmax.f32 %v7970, %v7178
      %v8051 = vmax.f32 %v7971, %v8003
      %v8052 = vmax.f32 %v7972, %v7183
      %v8053 = vmax.f32 %v7973, %v8005
      %v8054 = vmax.f32 %v7974, %v7188
      %v8055 = vmax.f32 %v7975, %v8007
      %v8056 = vmax.f32 %v7976, %v7193
      %v8057 = vmax.f32 %v7977, %v8009
      %v8058 = vld [vmem:[%s6] sm:$0x3]
      %v8060 = vsel %vm896, %v8026, 0
      %v8063 = vsel %vm896, %v8027, 0
      %v8066 = vsel %vm896, %v8028, 0
      %v8069 = vsel %vm896, %v8029, 0
      %v8072 = vsel %vm896, %v8030, 0
      %v8075 = vsel %vm896, %v8031, 0
      %v8078 = vsel %vm896, %v8032, 0
      %v8081 = vsel %vm896, %v8033, 0
      %v8084 = vsel %vm896, %v8034, 0
      %v8087 = vsel %vm896, %v8035, 0
      %v8090 = vsel %vm896, %v8036, 0
      %v8093 = vsel %vm896, %v8037, 0
      %v8096 = vsel %vm896, %v8038, 0
      %v8099 = vsel %vm896, %v8039, 0
      %v8102 = vsel %vm896, %v8040, 0
      %v8105 = vsel %vm896, %v8041, 0
      %v8108 = vsel %vm896, %v8042, 0
      %v8111 = vsel %vm896, %v8043, 0
      %v8114 = vsel %vm896, %v8044, 0
      %v8117 = vsel %vm896, %v8045, 0
      %v8120 = vsel %vm896, %v8046, 0
      %v8123 = vsel %vm896, %v8047, 0
      %v8126 = vsel %vm896, %v8048, 0
      %v8129 = vsel %vm896, %v8049, 0
      %v8132 = vsel %vm896, %v8050, 0
      %v8135 = vsel %vm896, %v8051, 0
      %v8138 = vsel %vm896, %v8052, 0
      %v8141 = vsel %vm896, %v8053, 0
      %v8144 = vsel %vm896, %v8054, 0
      %v8147 = vsel %vm896, %v8055, 0
      %v8150 = vsel %vm896, %v8056, 0
      %v8153 = vsel %vm896, %v8057, 0
      %v8156 = vsel %vm1147, %v8058, 0
      %8158 = vmatprep.subr.mxu0 0.0
      %8159 = vmatpush1.msra.mxu0 %v8156
      %8160 = vmatprep.subr.mxu0 0.0
      %8161 = vmatpush1.msra.mxu0 0.0
      %8162 = vmatprep.subr.mxu0 0.0
      %8163 = vmatpush1.msra.mxu0 0.0
      %8164 = vmatprep.subr.mxu0 0.0
      %8165 = vmatpush1.msra.mxu0 0.0
      %8166 = vmatprep.subr.mxu0 0.0
      %8167 = vmatpush1.msra.mxu0 0.0
      %8168 = vmatprep.subr.mxu0 0.0
      %8169 = vmatpush1.msra.mxu0 0.0
      %8170 = vmatprep.subr.mxu0 0.0
      %8171 = vmatpush1.msra.mxu0 0.0
      %8172 = vmatprep.subr.mxu0 0.0
      %8173 = vmatpush1.msra.mxu0 0.0
      %8174 = vmatprep.subr.mxu0 0.0
      %8175 = vmatpush1.msra.mxu0 0.0
      %8176 = vmatprep.subr.mxu0 0.0
      %8177 = vmatpush1.msra.mxu0 0.0
      %8178 = vmatprep.subr.mxu0 0.0
      %8179 = vmatpush1.msra.mxu0 0.0
      %8180 = vmatprep.subr.mxu0 0.0
      %8181 = vmatpush1.msra.mxu0 0.0
      %8182 = vmatprep.subr.mxu0 0.0
      %8183 = vmatpush1.msra.mxu0 0.0
      %8184 = vmatprep.subr.mxu0 0.0
      %8185 = vmatpush1.msra.mxu0 0.0
      %8186 = vmatprep.subr.mxu0 0.0
      %8187 = vmatpush1.msra.mxu0 0.0
      %8188 = vmatprep.subr.mxu0 0.0
      %8189 = vmatpush1.msra.mxu0 0.0
      %8190 = vmatprep.subr.mxu0 0.0
      %8191 = vmatpush1.msra.mxu0 0.0
      %8192 = vmatprep.subr.mxu0 0.0
      %8193 = vmatpush1.msra.mxu0 0.0
      %8194 = vmatprep.subr.mxu0 0.0
      %8195 = vmatpush1.msra.mxu0 0.0
      %8196 = vmatprep.subr.mxu0 0.0
      %8197 = vmatpush1.msra.mxu0 0.0
      %8198 = vmatprep.subr.mxu0 0.0
      %8199 = vmatpush1.msra.mxu0 0.0
      %8200 = vmatprep.subr.mxu0 0.0
      %8201 = vmatpush1.msra.mxu0 0.0
      %8202 = vmatprep.subr.mxu0 0.0
      %8203 = vmatpush1.msra.mxu0 0.0
      %8204 = vmatprep.subr.mxu0 0.0
      %8205 = vmatpush1.msra.mxu0 0.0
      %8206 = vmatprep.subr.mxu0 0.0
      %8207 = vmatpush1.msra.mxu0 0.0
      %8208 = vmatprep.subr.mxu0 0.0
      %8209 = vmatpush1.msra.mxu0 0.0
      %8210 = vmatprep.subr.mxu0 0.0
      %8211 = vmatpush1.msra.mxu0 0.0
      %8212 = vmatprep.subr.mxu0 0.0
      %8213 = vmatpush1.msra.mxu0 0.0
      %8214 = vmatprep.subr.mxu0 0.0
      %8215 = vmatpush1.msra.mxu0 0.0
      %8216 = vmatprep.subr.mxu0 0.0
      %8217 = vmatpush1.msra.mxu0 0.0
      %8218 = vmatprep.subr.mxu0 0.0
      %8219 = vmatpush1.msra.mxu0 0.0
      %8220 = vmatprep.subr.mxu0 0.0
      %8221 = vmatpush1.msra.mxu0 0.0
      %8222 = vmatprep.mubr.f32.mxu0 0.0
      %8223 = vmatmul.mubr.f32.gmra.mrb[0].mxu0 %v8060
      %v8224 = vpop.f32.mrb[0].mxu0
      %v8225 = vadd.f32 0.0, %v8224
      %v8226 = vpop.f32.mrb[0].mxu0
      %8227 = vmatprep.mubr.f32.mxu0 0.0
      %8228 = vmatmul.mubr.f32.gmra.mrb[0].mxu0 %v8063
      %v8229 = vpop.f32.mrb[0].mxu0
      %v8230 = vadd.f32 0.0, %v8229
      %v8231 = vpop.f32.mrb[0].mxu0
      %8232 = vmatprep.mubr.f32.mxu0 0.0
      %8233 = vmatmul.mubr.f32.gmra.mrb[0].mxu0 %v8066
      %v8234 = vpop.f32.mrb[0].mxu0
      %v8235 = vadd.f32 0.0, %v8234
      %v8236 = vpop.f32.mrb[0].mxu0
      %8237 = vmatprep.mubr.f32.mxu0 0.0
      %8238 = vmatmul.mubr.f32.gmra.mrb[0].mxu0 %v8069
      %v8239 = vpop.f32.mrb[0].mxu0
      %v8240 = vadd.f32 0.0, %v8239
      %v8241 = vpop.f32.mrb[0].mxu0
      %8242 = vmatprep.mubr.f32.mxu0 0.0
      %8243 = vmatmul.mubr.f32.gmra.mrb[0].mxu0 %v8072
      %v8244 = vpop.f32.mrb[0].mxu0
      %v8245 = vadd.f32 0.0, %v8244
      %v8246 = vpop.f32.mrb[0].mxu0
      %8247 = vmatprep.mubr.f32.mxu0 0.0
      %8248 = vmatmul.mubr.f32.gmra.mrb[0].mxu0 %v8075
      %v8249 = vpop.f32.mrb[0].mxu0
      %v8250 = vadd.f32 0.0, %v8249
      %v8251 = vpop.f32.mrb[0].mxu0
      %8252 = vmatprep.mubr.f32.mxu0 0.0
      %8253 = vmatmul.mubr.f32.gmra.mrb[0].mxu0 %v8078
      %v8254 = vpop.f32.mrb[0].mxu0
      %v8255 = vadd.f32 0.0, %v8254
      %v8256 = vpop.f32.mrb[0].mxu0
      %8257 = vmatprep.mubr.f32.mxu0 0.0
      %8258 = vmatmul.mubr.f32.gmra.mrb[0].mxu0 %v8081
      %v8259 = vpop.f32.mrb[0].mxu0
      %v8260 = vadd.f32 0.0, %v8259
      %v8261 = vpop.f32.mrb[0].mxu0
      %8262 = vmatprep.mubr.f32.mxu0 0.0
      %8263 = vmatmul.mubr.f32.gmra.mrb[0].mxu0 %v8084
      %v8264 = vpop.f32.mrb[0].mxu0
      %v8265 = vadd.f32 0.0, %v8264
      %v8266 = vpop.f32.mrb[0].mxu0
      %8267 = vmatprep.mubr.f32.mxu0 0.0
      %8268 = vmatmul.mubr.f32.gmra.mrb[0].mxu0 %v8087
      %v8269 = vpop.f32.mrb[0].mxu0
      %v8270 = vadd.f32 0.0, %v8269
      %v8271 = vpop.f32.mrb[0].mxu0
      %8272 = vmatprep.mubr.f32.mxu0 0.0
      %8273 = vmatmul.mubr.f32.gmra.mrb[0].mxu0 %v8090
      %v8274 = vpop.f32.mrb[0].mxu0
      %v8275 = vadd.f32 0.0, %v8274
      %v8276 = vpop.f32.mrb[0].mxu0
      %8277 = vmatprep.mubr.f32.mxu0 0.0
      %8278 = vmatmul.mubr.f32.gmra.mrb[0].mxu0 %v8093
      %v8279 = vpop.f32.mrb[0].mxu0
      %v8280 = vadd.f32 0.0, %v8279
      %v8281 = vpop.f32.mrb[0].mxu0
      %8282 = vmatprep.mubr.f32.mxu0 0.0
      %8283 = vmatmul.mubr.f32.gmra.mrb[0].mxu0 %v8096
      %v8284 = vpop.f32.mrb[0].mxu0
      %v8285 = vadd.f32 0.0, %v8284
      %v8286 = vpop.f32.mrb[0].mxu0
      %8287 = vmatprep.mubr.f32.mxu0 0.0
      %8288 = vmatmul.mubr.f32.gmra.mrb[0].mxu0 %v8099
      %v8289 = vpop.f32.mrb[0].mxu0
      %v8290 = vadd.f32 0.0, %v8289
      %v8291 = vpop.f32.mrb[0].mxu0
      %8292 = vmatprep.mubr.f32.mxu0 0.0
      %8293 = vmatmul.mubr.f32.gmra.mrb[0].mxu0 %v8102
      %v8294 = vpop.f32.mrb[0].mxu0
      %v8295 = vadd.f32 0.0, %v8294
      %v8296 = vpop.f32.mrb[0].mxu0
      %8297 = vmatprep.mubr.f32.mxu0 0.0
      %8298 = vmatmul.mubr.f32.gmra.mrb[0].mxu0 %v8105
      %v8299 = vpop.f32.mrb[0].mxu0
      %v8300 = vadd.f32 0.0, %v8299
      %v8301 = vpop.f32.mrb[0].mxu0
      %8302 = vmatprep.mubr.f32.mxu0 0.0
      %8303 = vmatmul.mubr.f32.gmra.mrb[0].mxu0 %v8108
      %v8304 = vpop.f32.mrb[0].mxu0
      %v8305 = vadd.f32 0.0, %v8304
      %v8306 = vpop.f32.mrb[0].mxu0
      %8307 = vmatprep.mubr.f32.mxu0 0.0
      %8308 = vmatmul.mubr.f32.gmra.mrb[0].mxu0 %v8111
      %v8309 = vpop.f32.mrb[0].mxu0
      %v8310 = vadd.f32 0.0, %v8309
      %v8311 = vpop.f32.mrb[0].mxu0
      %8312 = vmatprep.mubr.f32.mxu0 0.0
      %8313 = vmatmul.mubr.f32.gmra.mrb[0].mxu0 %v8114
      %v8314 = vpop.f32.mrb[0].mxu0
      %v8315 = vadd.f32 0.0, %v8314
      %v8316 = vpop.f32.mrb[0].mxu0
      %8317 = vmatprep.mubr.f32.mxu0 0.0
      %8318 = vmatmul.mubr.f32.gmra.mrb[0].mxu0 %v8117
      %v8319 = vpop.f32.mrb[0].mxu0
      %v8320 = vadd.f32 0.0, %v8319
      %v8321 = vpop.f32.mrb[0].mxu0
      %8322 = vmatprep.mubr.f32.mxu0 0.0
      %8323 = vmatmul.mubr.f32.gmra.mrb[0].mxu0 %v8120
      %v8324 = vpop.f32.mrb[0].mxu0
      %v8325 = vadd.f32 0.0, %v8324
      %v8326 = vpop.f32.mrb[0].mxu0
      %8327 = vmatprep.mubr.f32.mxu0 0.0
      %8328 = vmatmul.mubr.f32.gmra.mrb[0].mxu0 %v8123
      %v8329 = vpop.f32.mrb[0].mxu0
      %v8330 = vadd.f32 0.0, %v8329
      %v8331 = vpop.f32.mrb[0].mxu0
      %8332 = vmatprep.mubr.f32.mxu0 0.0
      %8333 = vmatmul.mubr.f32.gmra.mrb[0].mxu0 %v8126
      %v8334 = vpop.f32.mrb[0].mxu0
      %v8335 = vadd.f32 0.0, %v8334
      %v8336 = vpop.f32.mrb[0].mxu0
      %8337 = vmatprep.mubr.f32.mxu0 0.0
      %8338 = vmatmul.mubr.f32.gmra.mrb[0].mxu0 %v8129
      %v8339 = vpop.f32.mrb[0].mxu0
      %v8340 = vadd.f32 0.0, %v8339
      %v8341 = vpop.f32.mrb[0].mxu0
      %8342 = vmatprep.mubr.f32.mxu0 0.0
      %8343 = vmatmul.mubr.f32.gmra.mrb[0].mxu0 %v8132
      %v8344 = vpop.f32.mrb[0].mxu0
      %v8345 = vadd.f32 0.0, %v8344
      %v8346 = vpop.f32.mrb[0].mxu0
      %8347 = vmatprep.mubr.f32.mxu0 0.0
      %8348 = vmatmul.mubr.f32.gmra.mrb[0].mxu0 %v8135
      %v8349 = vpop.f32.mrb[0].mxu0
      %v8350 = vadd.f32 0.0, %v8349
      %v8351 = vpop.f32.mrb[0].mxu0
      %8352 = vmatprep.mubr.f32.mxu0 0.0
      %8353 = vmatmul.mubr.f32.gmra.mrb[0].mxu0 %v8138
      %v8354 = vpop.f32.mrb[0].mxu0
      %v8355 = vadd.f32 0.0, %v8354
      %v8356 = vpop.f32.mrb[0].mxu0
      %8357 = vmatprep.mubr.f32.mxu0 0.0
      %8358 = vmatmul.mubr.f32.gmra.mrb[0].mxu0 %v8141
      %v8359 = vpop.f32.mrb[0].mxu0
      %v8360 = vadd.f32 0.0, %v8359
      %v8361 = vpop.f32.mrb[0].mxu0
      %8362 = vmatprep.mubr.f32.mxu0 0.0
      %8363 = vmatmul.mubr.f32.gmra.mrb[0].mxu0 %v8144
      %v8364 = vpop.f32.mrb[0].mxu0
      %v8365 = vadd.f32 0.0, %v8364
      %v8366 = vpop.f32.mrb[0].mxu0
      %8367 = vmatprep.mubr.f32.mxu0 0.0
      %8368 = vmatmul.mubr.f32.gmra.mrb[0].mxu0 %v8147
      %v8369 = vpop.f32.mrb[0].mxu0
      %v8370 = vadd.f32 0.0, %v8369
      %v8371 = vpop.f32.mrb[0].mxu0
      %8372 = vmatprep.mubr.f32.mxu0 0.0
      %8373 = vmatmul.mubr.f32.gmra.mrb[0].mxu0 %v8150
      %v8374 = vpop.f32.mrb[0].mxu0
      %v8375 = vadd.f32 0.0, %v8374
      %v8376 = vpop.f32.mrb[0].mxu0
      %8377 = vmatprep.mubr.f32.mxu0 0.0
      %8378 = vmatmul.mubr.f32.gmra.mrb[0].mxu0 %v8153
      %v8379 = vpop.f32.mrb[0].mxu0
      %v8380 = vadd.f32 0.0, %v8379
      %v8381 = vpop.f32.mrb[0].mxu0
      %8382 = vdwg.mxu0
      %v8383 = vadd.f32 %v5575, %v8225
      %v8384 = vadd.f32 %v5576, %v8230
      %v8385 = vadd.f32 %v5577, %v8235
      %v8386 = vadd.f32 %v5578, %v8240
      %v8387 = vadd.f32 %v5579, %v8245
      %v8388 = vadd.f32 %v5580, %v8250
      %v8389 = vadd.f32 %v5581, %v8255
      %v8390 = vadd.f32 %v5582, %v8260
      %v8391 = vadd.f32 %v5583, %v8265
      %v8392 = vadd.f32 %v5584, %v8270
      %v8393 = vadd.f32 %v5585, %v8275
      %v8394 = vadd.f32 %v5586, %v8280
      %v8395 = vadd.f32 %v5587, %v8285
      %v8396 = vadd.f32 %v5588, %v8290
      %v8397 = vadd.f32 %v5589, %v8295
      %v8398 = vadd.f32 %v5590, %v8300
      %v8399 = vadd.f32 %v5591, %v8305
      %v8400 = vadd.f32 %v5592, %v8310
      %v8401 = vadd.f32 %v5593, %v8315
      %v8402 = vadd.f32 %v5594, %v8320
      %v8403 = vadd.f32 %v5595, %v8325
      %v8404 = vadd.f32 %v5596, %v8330
      %v8405 = vadd.f32 %v5597, %v8335
      %v8406 = vadd.f32 %v5598, %v8340
      %v8407 = vadd.f32 %v5599, %v8345
      %v8408 = vadd.f32 %v5600, %v8350
      %v8409 = vadd.f32 %v5601, %v8355
      %v8410 = vadd.f32 %v5602, %v8360
      %v8411 = vadd.f32 %v5603, %v8365
      %v8412 = vadd.f32 %v5604, %v8370
      %v8413 = vadd.f32 %v5605, %v8375
      %v8414 = vadd.f32 %v5606, %v8380
      %v8415 = vxor.u32 %v8383, 2147483648
      %v8416 = vxor.u32 %v8384, 2147483648
      %v8417 = vxor.u32 %v8385, 2147483648
      %v8418 = vxor.u32 %v8386, 2147483648
      %v8419 = vxor.u32 %v8387, 2147483648
      %v8420 = vxor.u32 %v8388, 2147483648
      %v8421 = vxor.u32 %v8389, 2147483648
      %v8422 = vxor.u32 %v8390, 2147483648
      %v8423 = vxor.u32 %v8391, 2147483648
      %v8424 = vxor.u32 %v8392, 2147483648
      %v8425 = vxor.u32 %v8393, 2147483648
      %v8426 = vxor.u32 %v8394, 2147483648
      %v8427 = vxor.u32 %v8395, 2147483648
      %v8428 = vxor.u32 %v8396, 2147483648
      %v8429 = vxor.u32 %v8397, 2147483648
      %v8430 = vxor.u32 %v8398, 2147483648
      %v8431 = vxor.u32 %v8399, 2147483648
      %v8432 = vxor.u32 %v8400, 2147483648
      %v8433 = vxor.u32 %v8401, 2147483648
      %v8434 = vxor.u32 %v8402, 2147483648
      %v8435 = vxor.u32 %v8403, 2147483648
      %v8436 = vxor.u32 %v8404, 2147483648
      %v8437 = vxor.u32 %v8405, 2147483648
      %v8438 = vxor.u32 %v8406, 2147483648
      %v8439 = vxor.u32 %v8407, 2147483648
      %v8440 = vxor.u32 %v8408, 2147483648
      %v8441 = vxor.u32 %v8409, 2147483648
      %v8442 = vxor.u32 %v8410, 2147483648
      %v8443 = vxor.u32 %v8411, 2147483648
      %v8444 = vxor.u32 %v8412, 2147483648
      %v8445 = vxor.u32 %v8413, 2147483648
      %v8446 = vxor.u32 %v8414, 2147483648
      %v8447 = vmul.f32 %v8415, 1.442695
      %v8448 = vpow.pop %v8447
      %v8449 = vmul.f32 %v8416, 1.442695
      %v8450 = vpow.pop %v8449
      %v8451 = vmul.f32 %v8417, 1.442695
      %v8452 = vpow.pop %v8451
      %v8453 = vmul.f32 %v8418, 1.442695
      %v8454 = vpow.pop %v8453
      %v8455 = vmul.f32 %v8419, 1.442695
      %v8456 = vpow.pop %v8455
      %v8457 = vmul.f32 %v8420, 1.442695
      %v8458 = vpow.pop %v8457
      %v8459 = vmul.f32 %v8421, 1.442695
      %v8460 = vpow.pop %v8459
      %v8461 = vmul.f32 %v8422, 1.442695
      %v8462 = vpow.pop %v8461
      %v8463 = vmul.f32 %v8423, 1.442695
      %v8464 = vpow.pop %v8463
      %v8465 = vmul.f32 %v8424, 1.442695
      %v8466 = vpow.pop %v8465
      %v8467 = vmul.f32 %v8425, 1.442695
      %v8468 = vpow.pop %v8467
      %v8469 = vmul.f32 %v8426, 1.442695
      %v8470 = vpow.pop %v8469
      %v8471 = vmul.f32 %v8427, 1.442695
      %v8472 = vpow.pop %v8471
      %v8473 = vmul.f32 %v8428, 1.442695
      %v8474 = vpow.pop %v8473
      %v8475 = vmul.f32 %v8429, 1.442695
      %v8476 = vpow.pop %v8475
      %v8477 = vmul.f32 %v8430, 1.442695
      %v8478 = vpow.pop %v8477
      %v8479 = vmul.f32 %v8431, 1.442695
      %v8480 = vpow.pop %v8479
      %v8481 = vmul.f32 %v8432, 1.442695
      %v8482 = vpow.pop %v8481
      %v8483 = vmul.f32 %v8433, 1.442695
      %v8484 = vpow.pop %v8483
      %v8485 = vmul.f32 %v8434, 1.442695
      %v8486 = vpow.pop %v8485
      %v8487 = vmul.f32 %v8435, 1.442695
      %v8488 = vpow.pop %v8487
      %v8489 = vmul.f32 %v8436, 1.442695
      %v8490 = vpow.pop %v8489
      %v8491 = vmul.f32 %v8437, 1.442695
      %v8492 = vpow.pop %v8491
      %v8493 = vmul.f32 %v8438, 1.442695
      %v8494 = vpow.pop %v8493
      %v8495 = vmul.f32 %v8439, 1.442695
      %v8496 = vpow.pop %v8495
      %v8497 = vmul.f32 %v8440, 1.442695
      %v8498 = vpow.pop %v8497
      %v8499 = vmul.f32 %v8441, 1.442695
      %v8500 = vpow.pop %v8499
      %v8501 = vmul.f32 %v8442, 1.442695
      %v8502 = vpow.pop %v8501
      %v8503 = vmul.f32 %v8443, 1.442695
      %v8504 = vpow.pop %v8503
      %v8505 = vmul.f32 %v8444, 1.442695
      %v8506 = vpow.pop %v8505
      %v8507 = vmul.f32 %v8445, 1.442695
      %v8508 = vpow.pop %v8507
      %v8509 = vmul.f32 %v8446, 1.442695
      %v8510 = vpow.pop %v8509
      %v8511 = vadd.f32 %v8448, 1.0
      %v8512 = vadd.f32 %v8450, 1.0
      %v8513 = vadd.f32 %v8452, 1.0
      %v8514 = vadd.f32 %v8454, 1.0
      %v8515 = vadd.f32 %v8456, 1.0
      %v8516 = vadd.f32 %v8458, 1.0
      %v8517 = vadd.f32 %v8460, 1.0
      %v8518 = vadd.f32 %v8462, 1.0
      %v8519 = vadd.f32 %v8464, 1.0
      %v8520 = vadd.f32 %v8466, 1.0
      %v8521 = vadd.f32 %v8468, 1.0
      %v8522 = vadd.f32 %v8470, 1.0
      %v8523 = vadd.f32 %v8472, 1.0
      %v8524 = vadd.f32 %v8474, 1.0
      %v8525 = vadd.f32 %v8476, 1.0
      %v8526 = vadd.f32 %v8478, 1.0
      %v8527 = vadd.f32 %v8480, 1.0
      %v8528 = vadd.f32 %v8482, 1.0
      %v8529 = vadd.f32 %v8484, 1.0
      %v8530 = vadd.f32 %v8486, 1.0
      %v8531 = vadd.f32 %v8488, 1.0
      %v8532 = vadd.f32 %v8490, 1.0
      %v8533 = vadd.f32 %v8492, 1.0
      %v8534 = vadd.f32 %v8494, 1.0
      %v8535 = vadd.f32 %v8496, 1.0
      %v8536 = vadd.f32 %v8498, 1.0
      %v8537 = vadd.f32 %v8500, 1.0
      %v8538 = vadd.f32 %v8502, 1.0
      %v8539 = vadd.f32 %v8504, 1.0
      %v8540 = vadd.f32 %v8506, 1.0
      %v8541 = vadd.f32 %v8508, 1.0
      %v8542 = vadd.f32 %v8510, 1.0
      %v8543 = vrcp.pop %v8511
      %v8544 = vmul.f32 1.0, %v8543
      %v8545 = vrcp.pop %v8512
      %v8546 = vmul.f32 1.0, %v8545
      %v8547 = vrcp.pop %v8513
      %v8548 = vmul.f32 1.0, %v8547
      %v8549 = vrcp.pop %v8514
      %v8550 = vmul.f32 1.0, %v8549
      %v8551 = vrcp.pop %v8515
      %v8552 = vmul.f32 1.0, %v8551
      %v8553 = vrcp.pop %v8516
      %v8554 = vmul.f32 1.0, %v8553
      %v8555 = vrcp.pop %v8517
      %v8556 = vmul.f32 1.0, %v8555
      %v8557 = vrcp.pop %v8518
      %v8558 = vmul.f32 1.0, %v8557
      %v8559 = vrcp.pop %v8519
      %v8560 = vmul.f32 1.0, %v8559
      %v8561 = vrcp.pop %v8520
      %v8562 = vmul.f32 1.0, %v8561
      %v8563 = vrcp.pop %v8521
      %v8564 = vmul.f32 1.0, %v8563
      %v8565 = vrcp.pop %v8522
      %v8566 = vmul.f32 1.0, %v8565
      %v8567 = vrcp.pop %v8523
      %v8568 = vmul.f32 1.0, %v8567
      %v8569 = vrcp.pop %v8524
      %v8570 = vmul.f32 1.0, %v8569
      %v8571 = vrcp.pop %v8525
      %v8572 = vmul.f32 1.0, %v8571
      %v8573 = vrcp.pop %v8526
      %v8574 = vmul.f32 1.0, %v8573
      %v8575 = vrcp.pop %v8527
      %v8576 = vmul.f32 1.0, %v8575
      %v8577 = vrcp.pop %v8528
      %v8578 = vmul.f32 1.0, %v8577
      %v8579 = vrcp.pop %v8529
      %v8580 = vmul.f32 1.0, %v8579
      %v8581 = vrcp.pop %v8530
      %v8582 = vmul.f32 1.0, %v8581
      %v8583 = vrcp.pop %v8531
      %v8584 = vmul.f32 1.0, %v8583
      %v8585 = vrcp.pop %v8532
      %v8586 = vmul.f32 1.0, %v8585
      %v8587 = vrcp.pop %v8533
      %v8588 = vmul.f32 1.0, %v8587
      %v8589 = vrcp.pop %v8534
      %v8590 = vmul.f32 1.0, %v8589
      %v8591 = vrcp.pop %v8535
      %v8592 = vmul.f32 1.0, %v8591
      %v8593 = vrcp.pop %v8536
      %v8594 = vmul.f32 1.0, %v8593
      %v8595 = vrcp.pop %v8537
      %v8596 = vmul.f32 1.0, %v8595
      %v8597 = vrcp.pop %v8538
      %v8598 = vmul.f32 1.0, %v8597
      %v8599 = vrcp.pop %v8539
      %v8600 = vmul.f32 1.0, %v8599
      %v8601 = vrcp.pop %v8540
      %v8602 = vmul.f32 1.0, %v8601
      %v8603 = vrcp.pop %v8541
      %v8604 = vmul.f32 1.0, %v8603
      %v8605 = vrcp.pop %v8542
      %v8606 = vmul.f32 1.0, %v8605
      %v8607 = vmul.f32 %v8383, %v8544
      %v8608 = vmul.f32 %v8384, %v8546
      %v8609 = vmul.f32 %v8385, %v8548
      %v8610 = vmul.f32 %v8386, %v8550
      %v8611 = vmul.f32 %v8387, %v8552
      %v8612 = vmul.f32 %v8388, %v8554
      %v8613 = vmul.f32 %v8389, %v8556
      %v8614 = vmul.f32 %v8390, %v8558
      %v8615 = vmul.f32 %v8391, %v8560
      %v8616 = vmul.f32 %v8392, %v8562
      %v8617 = vmul.f32 %v8393, %v8564
      %v8618 = vmul.f32 %v8394, %v8566
      %v8619 = vmul.f32 %v8395, %v8568
      %v8620 = vmul.f32 %v8396, %v8570
      %v8621 = vmul.f32 %v8397, %v8572
      %v8622 = vmul.f32 %v8398, %v8574
      %v8623 = vmul.f32 %v8399, %v8576
      %v8624 = vmul.f32 %v8400, %v8578
      %v8625 = vmul.f32 %v8401, %v8580
      %v8626 = vmul.f32 %v8402, %v8582
      %v8627 = vmul.f32 %v8403, %v8584
      %v8628 = vmul.f32 %v8404, %v8586
      %v8629 = vmul.f32 %v8405, %v8588
      %v8630 = vmul.f32 %v8406, %v8590
      %v8631 = vmul.f32 %v8407, %v8592
      %v8632 = vmul.f32 %v8408, %v8594
      %v8633 = vmul.f32 %v8409, %v8596
      %v8634 = vmul.f32 %v8410, %v8598
      %v8635 = vmul.f32 %v8411, %v8600
      %v8636 = vmul.f32 %v8412, %v8602
      %v8637 = vmul.f32 %v8413, %v8604
      %v8638 = vmul.f32 %v8414, %v8606
      %8639 = vst.msk [vmem:[%s305] sm:$0xff] %vm346, %v8607
      %8640 = vst.msk [vmem:[%s305 + $0x8] sm:$0xff] %vm346, %v8608
      %8641 = vst.msk [vmem:[%s305 + $0x10] sm:$0xff] %vm346, %v8609
      %8642 = vst.msk [vmem:[%s305 + $0x18] sm:$0xff] %vm346, %v8610
      %8643 = vst.msk [vmem:[%s305 + $0x20] sm:$0xff] %vm346, %v8611
      %8644 = vst.msk [vmem:[%s305 + $0x28] sm:$0xff] %vm346, %v8612
      %8645 = vst.msk [vmem:[%s305 + $0x30] sm:$0xff] %vm346, %v8613
      %8646 = vst.msk [vmem:[%s305 + $0x38] sm:$0xff] %vm346, %v8614
      %8647 = vst.msk [vmem:[%s305 + $0x40] sm:$0xff] %vm346, %v8615
      %8648 = vst.msk [vmem:[%s305 + $0x48] sm:$0xff] %vm346, %v8616
      %8649 = vst.msk [vmem:[%s305 + $0x50] sm:$0xff] %vm346, %v8617
      %8650 = vst.msk [vmem:[%s305 + $0x58] sm:$0xff] %vm346, %v8618
      %8651 = vst.msk [vmem:[%s305 + $0x60] sm:$0xff] %vm346, %v8619
      %8652 = vst.msk [vmem:[%s305 + $0x68] sm:$0xff] %vm346, %v8620
      %8653 = vst.msk [vmem:[%s305 + $0x70] sm:$0xff] %vm346, %v8621
      %8654 = vst.msk [vmem:[%s305 + $0x78] sm:$0xff] %vm346, %v8622
      %8655 = vst.msk [vmem:[%s305 + $0x80] sm:$0xff] %vm346, %v8623
      %8656 = vst.msk [vmem:[%s305 + $0x88] sm:$0xff] %vm346, %v8624
      %8657 = vst.msk [vmem:[%s305 + $0x90] sm:$0xff] %vm346, %v8625
      %8658 = vst.msk [vmem:[%s305 + $0x98] sm:$0xff] %vm346, %v8626
      %8659 = vst.msk [vmem:[%s305 + $0xa0] sm:$0xff] %vm346, %v8627
      %8660 = vst.msk [vmem:[%s305 + $0xa8] sm:$0xff] %vm346, %v8628
      %8661 = vst.msk [vmem:[%s305 + $0xb0] sm:$0xff] %vm346, %v8629
      %8662 = vst.msk [vmem:[%s305 + $0xb8] sm:$0xff] %vm346, %v8630
      %8663 = vst.msk [vmem:[%s305 + $0xc0] sm:$0xff] %vm346, %v8631
      %8664 = vst.msk [vmem:[%s305 + $0xc8] sm:$0xff] %vm346, %v8632
      %8665 = vst.msk [vmem:[%s305 + $0xd0] sm:$0xff] %vm346, %v8633
      %8666 = vst.msk [vmem:[%s305 + $0xd8] sm:$0xff] %vm346, %v8634
      %8667 = vst.msk [vmem:[%s305 + $0xe0] sm:$0xff] %vm346, %v8635
      %8668 = vst.msk [vmem:[%s305 + $0xe8] sm:$0xff] %vm346, %v8636
      %8669 = vst.msk [vmem:[%s305 + $0xf0] sm:$0xff] %vm346, %v8637
      %8670 = vst.msk [vmem:[%s305 + $0xf8] sm:$0xff] %vm346, %v8638
      %p8671 = scmp.lt.s32.totalorder %s19, 1
      %s8672 = scalar_select %p8671, %s19, 1
      %s8673 = smul.addr %s8672, 32
      %s8674 = smul.addr %s8673, 8
      %s8675 = scalar_lea.vmem %s8, %s8674
      // Predicated region
      $region53: #{tpu_custom_call.1} parent=51 // pred_check
        %p8676 = pneg %p210
      $region54: #{tpu_custom_call.1} parent=51 // pred_check_branch
        %8678 = sbr.rel (%p8676) target = $region56
      $region55: #{tpu_custom_call.1} parent=51 // pred_region
        _
      $region56: #{tpu_custom_call.1} parent=51 // pred_fallthru
        _
    $region52: #{tpu_custom_call.1} parent=5 // pred_fallthru
      _
    %p8679 = scmp.le.s32.totalorder 2, %s14
    // Predicated region
    $region57: #{tpu_custom_call.1} parent=5 // pred_check
      %p8680 = pneg %p8679
    $region58: #{tpu_custom_call.1} parent=5 // pred_check_branch
      %8682 = sbr.rel (%p8680) target = $region60
    $region59: #{tpu_custom_call.1} parent=5 // pred_region
      %s8683 = ssub.s32 %s14, 2
      // Predicated region
      $region61: #{tpu_custom_call.1} parent=59 // pred_check
        %p8684 = pneg %p216
      $region62: #{tpu_custom_call.1} parent=59 // pred_check_branch
        %8686 = sbr.rel (%p8684) target = $region64
      $region63: #{tpu_custom_call.1} parent=59 // pred_region
        %p8687 = scmp.lt.s32.totalorder %s20, 1
        %s8688 = scalar_select %p8687, %s20, 1
        %s8689 = smul.addr %s8688, 32
        %s8690 = smul.addr %s8689, 8
        %s8691 = scalar_lea.vmem %s8, %s8690
      $region64: #{tpu_custom_call.1} parent=59 // pred_fallthru
        _
    $region60: #{tpu_custom_call.1} parent=5 // pred_fallthru
      _
  $region6: #{tpu_custom_call.1} parent=0 // loop_footer
    %s18 = sadd.s32 1, %s14
  $region7: #{tpu_custom_call.1} parent=0 // loop_footer_branch
    %13 = sbr.rel target = $region3
  $region8: #{tpu_custom_call.1} parent=0 // loop_exit
    _

</llo_original>
